<compile_context>
chip_gen: v7x
topology: tpu7x:2x2x1
jax: 0.10.0
libtpu: 0.0.40
codegen_flags: <defaults>
</compile_context>

<pallas_src>
import functools

import jax
import jax.numpy as jnp
from jax.experimental import pallas as pl
from jax.experimental.pallas import tpu as pltpu


def _round_up(x, m):
    return (x + m - 1) // m * m


# ---------------------------------------------------------------------------
# Kernel: encoder -> fused mu/logvar head -> reparameterize -> decoder,
# tiled over the batch dimension. Weights are VMEM-resident (constant index_map).
# ---------------------------------------------------------------------------
def _genevae_kernel(
    latent_dim,
    x_ref, eps_ref,
    w1_ref, b1_ref, w2_ref, b2_ref,
    wml_ref, bml_ref,
    wd1_ref, bd1_ref, wd2_ref, bd2_ref, wd3_ref, bd3_ref,
    mu_ref, logvar_ref, rec_ref,
):
    f32 = jnp.float32
    bf16 = jnp.bfloat16

    x = x_ref[...]                                            # (TB, 978) f32

    # --- encoder ---
    h1 = jnp.dot(x.astype(bf16), w1_ref[...], preferred_element_type=f32) + b1_ref[...]
    h1 = jnp.maximum(h1, 0.0)                                 # ReLU (VPU slot)
    h2 = jnp.dot(h1.astype(bf16), w2_ref[...], preferred_element_type=f32) + b2_ref[...]
    h2 = jnp.maximum(h2, 0.0)

    # --- fused latent heads: one N = 2*latent matmul, slice on a lane boundary ---
    ml = jnp.dot(h2.astype(bf16), wml_ref[...], preferred_element_type=f32) + bml_ref[...]
    mu = ml[:, :latent_dim]
    logvar = ml[:, latent_dim:]

    # --- reparameterize: z = mu + eps * exp(0.5 * logvar)  (exp -> EUP slot) ---
    z = mu + eps_ref[...] * jnp.exp(0.5 * logvar)

    # --- decoder ---
    d1 = jnp.dot(z.astype(bf16), wd1_ref[...], preferred_element_type=f32) + bd1_ref[...]
    d1 = jnp.maximum(d1, 0.0)
    d2 = jnp.dot(d1.astype(bf16), wd2_ref[...], preferred_element_type=f32) + bd2_ref[...]
    d2 = jnp.maximum(d2, 0.0)
    rec = jnp.dot(d2.astype(bf16), wd3_ref[...], preferred_element_type=f32) + bd3_ref[...]
    rec = jnp.maximum(rec, 0.0)

    mu_ref[...] = mu
    logvar_ref[...] = logvar
    rec_ref[...] = rec.astype(rec_ref.dtype)


# ---------------------------------------------------------------------------
# Wrapper
# ---------------------------------------------------------------------------
def genevae_forward(x, eps, kparams, *, batch_tile=256, rec_dtype=jnp.float32,
                    single_buffer_weights=True):
    """Fused GeneVAE forward.

    x: (B, input_dim) f32, eps: (B, latent_dim) f32 (reparameterization noise),
    kparams: dict from prepare_params(init_params(...)).

    batch_tile: 256 default (matches the 256-row MXU on v6e/v7x and amortizes
    per-grid-step overhead). Use 512 for very large batches (still <~45 MiB VMEM);
    on v7x keep the grid >= 2 steps per TensorCore before growing further.
    128 is adequate on v5e (4x 128x128 MXU). The tile auto-shrinks for small B.

    rec_dtype: pass jnp.bfloat16 to halve the reconstruction writeback stream
    (worth ~15-20% on HBM-bound v6e/v7x) if the consumer tolerates it.
    """
    B, D_in = x.shape
    latent_dim = eps.shape[1]
    hidden_dim1 = kparams["w1"].shape[1]
    hidden_dim2 = kparams["w2"].shape[1]

    # ---- batch tiling (shrink the tile for small batches; multiple of 8) -----
    tile = min(batch_tile, _round_up(B, 8))
    B_pad = _round_up(B, tile)
    pad_b = B_pad - B
    x_p, eps_p = x, eps
    if pad_b:
        x_p = jnp.pad(x, ((0, pad_b), (0, 0)))
        eps_p = jnp.pad(eps, ((0, pad_b), (0, 0)))

    param_arrays = [
        kparams["w1"], kparams["b1"], kparams["w2"], kparams["b2"],
        kparams["wml"], kparams["bml"],
        kparams["wd1"], kparams["bd1"], kparams["wd2"], kparams["bd2"],
        kparams["wd3"], kparams["bd3"],
    ]

    grid = (B_pad // tile,)

    def build_specs(single_buffer):
        def full_spec(arr):
            # Weights/biases: whole array resident in VMEM for every grid step.
            nd = arr.ndim
            kw = {}
            if single_buffer:
                # Constant index_map -> block never changes; one buffer is enough.
                kw["pipeline_mode"] = pl.Buffered(1)
            return pl.BlockSpec(arr.shape, lambda i, _nd=nd: (0,) * _nd, **kw)

        in_specs = [
            pl.BlockSpec((tile, D_in), lambda i: (i, 0)),        # x (full 978 lanes)
            pl.BlockSpec((tile, latent_dim), lambda i: (i, 0)),  # eps
        ] + [full_spec(p) for p in param_arrays]
        out_specs = [
            pl.BlockSpec((tile, latent_dim), lambda i: (i, 0)),  # mu
            pl.BlockSpec((tile, latent_dim), lambda i: (i, 0)),  # logvar
            pl.BlockSpec((tile, D_in), lambda i: (i, 0)),        # reconstructed
        ]
        return in_specs, out_specs

    out_shape = (
        jax.ShapeDtypeStruct((B_pad, latent_dim), jnp.float32),
        jax.ShapeDtypeStruct((B_pad, latent_dim), jnp.float32),
        jax.ShapeDtypeStruct((B_pad, D_in), rec_dtype),
    )

    # ---- VMEM budget from actual tile sizes (not a blanket 48 MiB) ----------
    rec_itemsize = jnp.dtype(rec_dtype).itemsize
    weight_bytes_raw = sum(int(a.size) * a.dtype.itemsize for a in param_arrays)
    io_tile_bytes = 2 * (  # double-buffered I/O streams
        tile * D_in * 4                      # x
        + tile * latent_dim * 4              # eps
        + 2 * tile * latent_dim * 4          # mu, logvar
        + tile * D_in * rec_itemsize         # rec
    )
    # f32 intermediates (h1, h2, ml, z, d1, d2, rec) with margin for live copies.
    interm_bytes = tile * (hidden_dim1 + hidden_dim2 + 2 * latent_dim + latent_dim
                           + hidden_dim2 + hidden_dim1 + D_in) * 4
    vmem_limit = io_tile_bytes + 2 * weight_bytes_raw + 3 * interm_bytes + (8 << 20)
    vmem_limit = int(min(max(vmem_limit, 16 << 20), 100 << 20))

    # ---- advisory cost estimate so XLA schedules around the kernel ----------
    flops = 2 * B_pad * (
        D_in * hidden_dim1 + hidden_dim1 * hidden_dim2 + hidden_dim2 * (2 * latent_dim)
        + latent_dim * hidden_dim2 + hidden_dim2 * hidden_dim1 + hidden_dim1 * D_in
    )
    bytes_accessed = (int(x_p.size) * 4 + int(eps_p.size) * 4 + weight_bytes_raw
                      + B_pad * latent_dim * 4 * 2 + B_pad * D_in * rec_itemsize)
    cost = pl.CostEstimate(
        flops=int(flops),
        transcendentals=int(B_pad * latent_dim),
        bytes_accessed=int(bytes_accessed),
    )

    kernel = functools.partial(_genevae_kernel, latent_dim)

    def call(single_buffer):
        in_specs, out_specs = build_specs(single_buffer)
        return pl.pallas_call(
            kernel,
            out_shape=out_shape,
            grid_spec=pltpu.PrefetchScalarGridSpec(
                num_scalar_prefetch=0,
                grid=grid,
                in_specs=in_specs,
                out_specs=out_specs,
            ),
            compiler_params=pltpu.CompilerParams(
                dimension_semantics=("parallel",),   # batch axis -> shard across TCs
                vmem_limit_bytes=vmem_limit,
            ),
            cost_estimate=cost,
        )(x_p, eps_p, *param_arrays)

    if single_buffer_weights:
        try:
            mu, logvar, rec = call(True)
        except Exception:
            # pl.Buffered(1) not supported on this build: fall back to the
            # default double-buffered weight path (weights are only ~2.7 MiB bf16).
            mu, logvar, rec = call(False)
    else:
        mu, logvar, rec = call(False)

    if pad_b:
        mu, logvar, rec = mu[:B], logvar[:B], rec[:B]
    return mu, logvar, rec


# ---------------------------------------------------------------------------
# Parameter init (shapes from GeneVAE.__init__). Weights stored transposed to
# (in, out) in bfloat16; biases (1, out) in float32. Both use the PyTorch
# nn.Linear default uniform(+-1/sqrt(fan_in)) init.
# ---------------------------------------------------------------------------
def init_params(key, input_dim=978, latent_dim=128, hidden_dim1=512, hidden_dim2=256):
    dims = {
        "w1":  (input_dim, hidden_dim1),
        "w2":  (hidden_dim1, hidden_dim2),
        "wmu": (hidden_dim2, latent_dim),
        "wlv": (hidden_dim2, latent_dim),
        "wd1": (latent_dim, hidden_dim2),
        "wd2": (hidden_dim2, hidden_dim1),
        "wd3": (hidden_dim1, input_dim),
    }
    params = {}
    keys = jax.random.split(key, 2 * len(dims))
    for idx, (name, (fan_in, fan_out)) in enumerate(dims.items()):
        scale = 1.0 / (float(fan_in) ** 0.5)
        w = jax.random.uniform(keys[2 * idx], (fan_in, fan_out), jnp.float32, -scale, scale)
        b = jax.random.uniform(keys[2 * idx + 1], (1, fan_out), jnp.float32, -scale, scale)
        params[name] = w.astype(jnp.bfloat16)            # bf16 weights (f32 MXU accum)
        params["b" + name[1:]] = b                       # f32 biases
    return params


def prepare_params(params):
    """One-time kernel-layout prep: fuse the mu/logvar heads into a single
    (hidden2, 2*latent) matmul so the per-call path is just the pallas_call
    (no per-forward concat / extra HBM passes)."""
    kp = dict(params)
    kp["wml"] = jnp.concatenate([params["wmu"], params["wlv"]], axis=1)
    kp["bml"] = jnp.concatenate([params["bmu"], params["blv"]], axis=1)
    for k in ("wmu", "wlv", "bmu", "blv"):
        kp.pop(k)
    return kp


# ---------------------------------------------------------------------------
# Pure-JAX reference mirroring the kernel numerics (bf16 matmul inputs,
# f32 accumulation) for correctness checking.
# ---------------------------------------------------------------------------
def genevae_ref(x, eps, p):
    bf16, f32 = jnp.bfloat16, jnp.float32

    def lin(a, w, b):
        return jnp.dot(a.astype(bf16), w, preferred_element_type=f32) + b

    relu = lambda a: jnp.maximum(a, 0.0)
    h = relu(lin(x, p["w1"], p["b1"]))
    h = relu(lin(h, p["w2"], p["b2"]))
    mu = lin(h, p["wmu"], p["bmu"])
    lv = lin(h, p["wlv"], p["blv"])
    z = mu + eps * jnp.exp(0.5 * lv)
    d = relu(lin(z, p["wd1"], p["bd1"]))
    d = relu(lin(d, p["wd2"], p["bd2"]))
    rec = relu(lin(d, p["wd3"], p["bd3"]))
    return mu, lv, rec


if __name__ == "__main__":
    # Module-default feature dims, small batch.
    input_dim, latent_dim, hidden_dim1, hidden_dim2 = 978, 128, 512, 256
    batch = 16

    root = jax.random.PRNGKey(0)
    k_x, k_eps, k_p = jax.random.split(root, 3)

    x = jax.random.normal(k_x, (batch, input_dim), jnp.float32)
    # eps is the reparameterization noise (torch.randn_like equivalent),
    # generated outside the kernel for determinism.
    # TODO(synk): optionally draw eps in-kernel via pltpu.prng_seed/stateful_normal.
    eps = jax.random.normal(k_eps, (batch, latent_dim), jnp.float32)
    params = init_params(k_p, input_dim, latent_dim, hidden_dim1, hidden_dim2)
    kparams = prepare_params(params)   # one-time fused-head prep

    mu, logvar, rec = genevae_forward(x, eps, kparams)
    jax.block_until_ready((mu, logvar, rec))

    mu_r, lv_r, rec_r = genevae_ref(x, eps, params)
    assert mu.shape == (batch, latent_dim)
    assert logvar.shape == (batch, latent_dim)
    assert rec.shape == (batch, input_dim)
    assert jnp.allclose(mu, mu_r, atol=2e-2, rtol=2e-2)
    assert jnp.allclose(logvar, lv_r, atol=2e-2, rtol=2e-2)
    assert jnp.allclose(rec, rec_r, atol=2e-2, rtol=2e-2)

    print("KERNEL_OK")
</pallas_src>

<mosaic_0001>
module attributes {stable_mosaic.version = 11 : i64} {
  func.func @_genevae_kernel(%arg0: i32, %arg1: memref<16x978xf32, #tpu.memory_space<vmem>>, %arg2: memref<16x128xf32, #tpu.memory_space<vmem>>, %arg3: memref<978x512xbf16, #tpu.memory_space<vmem>>, %arg4: memref<1x512xf32, #tpu.memory_space<vmem>>, %arg5: memref<512x256xbf16, #tpu.memory_space<vmem>>, %arg6: memref<1x256xf32, #tpu.memory_space<vmem>>, %arg7: memref<256x256xbf16, #tpu.memory_space<vmem>>, %arg8: memref<1x256xf32, #tpu.memory_space<vmem>>, %arg9: memref<128x256xbf16, #tpu.memory_space<vmem>>, %arg10: memref<1x256xf32, #tpu.memory_space<vmem>>, %arg11: memref<256x512xbf16, #tpu.memory_space<vmem>>, %arg12: memref<1x512xf32, #tpu.memory_space<vmem>>, %arg13: memref<512x978xbf16, #tpu.memory_space<vmem>>, %arg14: memref<1x978xf32, #tpu.memory_space<vmem>>, %arg15: memref<16x128xf32, #tpu.memory_space<vmem>>, %arg16: memref<16x128xf32, #tpu.memory_space<vmem>>, %arg17: memref<16x978xf32, #tpu.memory_space<vmem>>) attributes {dimension_semantics = [#tpu.dimension_semantics<parallel>], iteration_bounds = array<i64: 1>, scalar_prefetch = 0 : i64, scratch_operands = 0 : i64, tpu.core_type = #tpu.core_type<tc>, window_params = [{transform_indices = @transform_0, window_bounds = array<i64: 16, 978>}, {transform_indices = @transform_1, window_bounds = array<i64: 16, 128>}, {pipeline_mode = #tpu.pipeline_mode<synchronous>, transform_indices = @transform_2, window_bounds = array<i64: 978, 512>}, {pipeline_mode = #tpu.pipeline_mode<synchronous>, transform_indices = @transform_3, window_bounds = array<i64: 1, 512>}, {pipeline_mode = #tpu.pipeline_mode<synchronous>, transform_indices = @transform_4, window_bounds = array<i64: 512, 256>}, {pipeline_mode = #tpu.pipeline_mode<synchronous>, transform_indices = @transform_5, window_bounds = array<i64: 1, 256>}, {pipeline_mode = #tpu.pipeline_mode<synchronous>, transform_indices = @transform_6, window_bounds = array<i64: 256, 256>}, {pipeline_mode = #tpu.pipeline_mode<synchronous>, transform_indices = @transform_7, window_bounds = array<i64: 1, 256>}, {pipeline_mode = #tpu.pipeline_mode<synchronous>, transform_indices = @transform_8, window_bounds = array<i64: 128, 256>}, {pipeline_mode = #tpu.pipeline_mode<synchronous>, transform_indices = @transform_9, window_bounds = array<i64: 1, 256>}, {pipeline_mode = #tpu.pipeline_mode<synchronous>, transform_indices = @transform_10, window_bounds = array<i64: 256, 512>}, {pipeline_mode = #tpu.pipeline_mode<synchronous>, transform_indices = @transform_11, window_bounds = array<i64: 1, 512>}, {pipeline_mode = #tpu.pipeline_mode<synchronous>, transform_indices = @transform_12, window_bounds = array<i64: 512, 978>}, {pipeline_mode = #tpu.pipeline_mode<synchronous>, transform_indices = @transform_13, window_bounds = array<i64: 1, 978>}, {transform_indices = @transform_14, window_bounds = array<i64: 16, 128>}, {transform_indices = @transform_15, window_bounds = array<i64: 16, 128>}, {transform_indices = @transform_16, window_bounds = array<i64: 16, 978>}]} {
    %c0 = arith.constant 0 : index
    %c0_0 = arith.constant 0 : index
    %0 = vector.load %arg1[%c0, %c0_0] : memref<16x978xf32, #tpu.memory_space<vmem>>, vector<16x978xf32>
    %1 = arith.truncf %0 : vector<16x978xf32> to vector<16x978xbf16>
    %c0_1 = arith.constant 0 : index
    %c0_2 = arith.constant 0 : index
    %2 = vector.load %arg3[%c0_1, %c0_2] : memref<978x512xbf16, #tpu.memory_space<vmem>>, vector<978x512xbf16>
    %cst = arith.constant dense<0.000000e+00> : vector<16x512xf32>
    %3 = tpu.matmul %1, %2, %cst {dimension_numbers = #tpu.dot_dimension_numbers<[1], [0], [0], [1], [0, 0, 1, 1], [], []>} : vector<16x978xbf16>, vector<978x512xbf16>, vector<16x512xf32> -> vector<16x512xf32>
    %c0_3 = arith.constant 0 : index
    %c0_4 = arith.constant 0 : index
    %4 = vector.load %arg4[%c0_3, %c0_4] : memref<1x512xf32, #tpu.memory_space<vmem>>, vector<1x512xf32>
    %5 = vector.broadcast %4 : vector<1x512xf32> to vector<16x512xf32>
    %6 = arith.addf %3, %5 : vector<16x512xf32>
    %cst_5 = arith.constant 0.000000e+00 : f32
    %7 = vector.broadcast %cst_5 : f32 to vector<16x512xf32>
    %8 = arith.maximumf %6, %7 : vector<16x512xf32>
    %9 = arith.truncf %8 : vector<16x512xf32> to vector<16x512xbf16>
    %c0_6 = arith.constant 0 : index
    %c0_7 = arith.constant 0 : index
    %10 = vector.load %arg5[%c0_6, %c0_7] : memref<512x256xbf16, #tpu.memory_space<vmem>>, vector<512x256xbf16>
    %cst_8 = arith.constant dense<0.000000e+00> : vector<16x256xf32>
    %11 = tpu.matmul %9, %10, %cst_8 {dimension_numbers = #tpu.dot_dimension_numbers<[1], [0], [0], [1], [0, 0, 1, 1], [], []>} : vector<16x512xbf16>, vector<512x256xbf16>, vector<16x256xf32> -> vector<16x256xf32>
    %c0_9 = arith.constant 0 : index
    %c0_10 = arith.constant 0 : index
    %12 = vector.load %arg6[%c0_9, %c0_10] : memref<1x256xf32, #tpu.memory_space<vmem>>, vector<1x256xf32>
    %13 = vector.broadcast %12 : vector<1x256xf32> to vector<16x256xf32>
    %14 = arith.addf %11, %13 : vector<16x256xf32>
    %cst_11 = arith.constant 0.000000e+00 : f32
    %15 = vector.broadcast %cst_11 : f32 to vector<16x256xf32>
    %16 = arith.maximumf %14, %15 : vector<16x256xf32>
    %17 = arith.truncf %16 : vector<16x256xf32> to vector<16x256xbf16>
    %c0_12 = arith.constant 0 : index
    %c0_13 = arith.constant 0 : index
    %18 = vector.load %arg7[%c0_12, %c0_13] : memref<256x256xbf16, #tpu.memory_space<vmem>>, vector<256x256xbf16>
    %cst_14 = arith.constant dense<0.000000e+00> : vector<16x256xf32>
    %19 = tpu.matmul %17, %18, %cst_14 {dimension_numbers = #tpu.dot_dimension_numbers<[1], [0], [0], [1], [0, 0, 1, 1], [], []>} : vector<16x256xbf16>, vector<256x256xbf16>, vector<16x256xf32> -> vector<16x256xf32>
    %c0_15 = arith.constant 0 : index
    %c0_16 = arith.constant 0 : index
    %20 = vector.load %arg8[%c0_15, %c0_16] : memref<1x256xf32, #tpu.memory_space<vmem>>, vector<1x256xf32>
    %21 = vector.broadcast %20 : vector<1x256xf32> to vector<16x256xf32>
    %22 = arith.addf %19, %21 : vector<16x256xf32>
    %23 = vector.extract_strided_slice %22 {offsets = [0, 0], sizes = [16, 128], strides = [1, 1]} : vector<16x256xf32> to vector<16x128xf32>
    %24 = vector.extract_strided_slice %22 {offsets = [0, 128], sizes = [16, 128], strides = [1, 1]} : vector<16x256xf32> to vector<16x128xf32>
    %c0_17 = arith.constant 0 : index
    %c0_18 = arith.constant 0 : index
    %25 = vector.load %arg2[%c0_17, %c0_18] : memref<16x128xf32, #tpu.memory_space<vmem>>, vector<16x128xf32>
    %cst_19 = arith.constant 5.000000e-01 : f32
    %26 = vector.broadcast %cst_19 : f32 to vector<16x128xf32>
    %27 = arith.mulf %26, %24 : vector<16x128xf32>
    %28 = math.exp %27 : vector<16x128xf32>
    %29 = arith.mulf %25, %28 : vector<16x128xf32>
    %30 = arith.addf %23, %29 : vector<16x128xf32>
    %31 = arith.truncf %30 : vector<16x128xf32> to vector<16x128xbf16>
    %c0_20 = arith.constant 0 : index
    %c0_21 = arith.constant 0 : index
    %32 = vector.load %arg9[%c0_20, %c0_21] : memref<128x256xbf16, #tpu.memory_space<vmem>>, vector<128x256xbf16>
    %cst_22 = arith.constant dense<0.000000e+00> : vector<16x256xf32>
    %33 = tpu.matmul %31, %32, %cst_22 {dimension_numbers = #tpu.dot_dimension_numbers<[1], [0], [0], [1], [0, 0, 1, 1], [], []>} : vector<16x128xbf16>, vector<128x256xbf16>, vector<16x256xf32> -> vector<16x256xf32>
    %c0_23 = arith.constant 0 : index
    %c0_24 = arith.constant 0 : index
    %34 = vector.load %arg10[%c0_23, %c0_24] : memref<1x256xf32, #tpu.memory_space<vmem>>, vector<1x256xf32>
    %35 = vector.broadcast %34 : vector<1x256xf32> to vector<16x256xf32>
    %36 = arith.addf %33, %35 : vector<16x256xf32>
    %cst_25 = arith.constant 0.000000e+00 : f32
    %37 = vector.broadcast %cst_25 : f32 to vector<16x256xf32>
    %38 = arith.maximumf %36, %37 : vector<16x256xf32>
    %39 = arith.truncf %38 : vector<16x256xf32> to vector<16x256xbf16>
    %c0_26 = arith.constant 0 : index
    %c0_27 = arith.constant 0 : index
    %40 = vector.load %arg11[%c0_26, %c0_27] : memref<256x512xbf16, #tpu.memory_space<vmem>>, vector<256x512xbf16>
    %cst_28 = arith.constant dense<0.000000e+00> : vector<16x512xf32>
    %41 = tpu.matmul %39, %40, %cst_28 {dimension_numbers = #tpu.dot_dimension_numbers<[1], [0], [0], [1], [0, 0, 1, 1], [], []>} : vector<16x256xbf16>, vector<256x512xbf16>, vector<16x512xf32> -> vector<16x512xf32>
    %c0_29 = arith.constant 0 : index
    %c0_30 = arith.constant 0 : index
    %42 = vector.load %arg12[%c0_29, %c0_30] : memref<1x512xf32, #tpu.memory_space<vmem>>, vector<1x512xf32>
    %43 = vector.broadcast %42 : vector<1x512xf32> to vector<16x512xf32>
    %44 = arith.addf %41, %43 : vector<16x512xf32>
    %cst_31 = arith.constant 0.000000e+00 : f32
    %45 = vector.broadcast %cst_31 : f32 to vector<16x512xf32>
    %46 = arith.maximumf %44, %45 : vector<16x512xf32>
    %47 = arith.truncf %46 : vector<16x512xf32> to vector<16x512xbf16>
    %c0_32 = arith.constant 0 : index
    %c0_33 = arith.constant 0 : index
    %48 = vector.load %arg13[%c0_32, %c0_33] : memref<512x978xbf16, #tpu.memory_space<vmem>>, vector<512x978xbf16>
    %cst_34 = arith.constant dense<0.000000e+00> : vector<16x978xf32>
    %49 = tpu.matmul %47, %48, %cst_34 {dimension_numbers = #tpu.dot_dimension_numbers<[1], [0], [0], [1], [0, 0, 1, 1], [], []>} : vector<16x512xbf16>, vector<512x978xbf16>, vector<16x978xf32> -> vector<16x978xf32>
    %c0_35 = arith.constant 0 : index
    %c0_36 = arith.constant 0 : index
    %50 = vector.load %arg14[%c0_35, %c0_36] : memref<1x978xf32, #tpu.memory_space<vmem>>, vector<1x978xf32>
    %51 = vector.broadcast %50 : vector<1x978xf32> to vector<16x978xf32>
    %52 = arith.addf %49, %51 : vector<16x978xf32>
    %cst_37 = arith.constant 0.000000e+00 : f32
    %53 = vector.broadcast %cst_37 : f32 to vector<16x978xf32>
    %54 = arith.maximumf %52, %53 : vector<16x978xf32>
    %c0_38 = arith.constant 0 : index
    %c0_39 = arith.constant 0 : index
    %55 = vector.load %arg15[%c0_38, %c0_39] : memref<16x128xf32, #tpu.memory_space<vmem>>, vector<16x128xf32>
    tpu.vector_store %arg15[%c0_38, %c0_39], %23 {strides = array<i32>} : memref<16x128xf32, #tpu.memory_space<vmem>>, vector<16x128xf32>,
    %c0_40 = arith.constant 0 : index
    %c0_41 = arith.constant 0 : index
    %56 = vector.load %arg16[%c0_40, %c0_41] : memref<16x128xf32, #tpu.memory_space<vmem>>, vector<16x128xf32>
    tpu.vector_store %arg16[%c0_40, %c0_41], %24 {strides = array<i32>} : memref<16x128xf32, #tpu.memory_space<vmem>>, vector<16x128xf32>,
    %c0_42 = arith.constant 0 : index
    %c0_43 = arith.constant 0 : index
    %57 = vector.load %arg17[%c0_42, %c0_43] : memref<16x978xf32, #tpu.memory_space<vmem>>, vector<16x978xf32>
    tpu.vector_store %arg17[%c0_42, %c0_43], %54 {strides = array<i32>} : memref<16x978xf32, #tpu.memory_space<vmem>>, vector<16x978xf32>,
    return
  }
  func.func @transform_0(%arg0: i32) -> (i32, i32) {
    %c0_i32 = arith.constant 0 : i32
    %c0_i32_0 = arith.constant 0 : i32
    return %arg0, %c0_i32 : i32, i32
  }
  func.func @transform_1(%arg0: i32) -> (i32, i32) {
    %c0_i32 = arith.constant 0 : i32
    %c0_i32_0 = arith.constant 0 : i32
    return %arg0, %c0_i32 : i32, i32
  }
  func.func @transform_2(%arg0: i32) -> (i32, i32) {
    %c0_i32 = arith.constant 0 : i32
    %c0_i32_0 = arith.constant 0 : i32
    %c0_i32_1 = arith.constant 0 : i32
    return %c0_i32, %c0_i32_0 : i32, i32
  }
  func.func @transform_3(%arg0: i32) -> (i32, i32) {
    %c0_i32 = arith.constant 0 : i32
    %c0_i32_0 = arith.constant 0 : i32
    %c0_i32_1 = arith.constant 0 : i32
    return %c0_i32, %c0_i32_0 : i32, i32
  }
  func.func @transform_4(%arg0: i32) -> (i32, i32) {
    %c0_i32 = arith.constant 0 : i32
    %c0_i32_0 = arith.constant 0 : i32
    %c0_i32_1 = arith.constant 0 : i32
    return %c0_i32, %c0_i32_0 : i32, i32
  }
  func.func @transform_5(%arg0: i32) -> (i32, i32) {
    %c0_i32 = arith.constant 0 : i32
    %c0_i32_0 = arith.constant 0 : i32
    %c0_i32_1 = arith.constant 0 : i32
    return %c0_i32, %c0_i32_0 : i32, i32
  }
  func.func @transform_6(%arg0: i32) -> (i32, i32) {
    %c0_i32 = arith.constant 0 : i32
    %c0_i32_0 = arith.constant 0 : i32
    %c0_i32_1 = arith.constant 0 : i32
    return %c0_i32, %c0_i32_0 : i32, i32
  }
  func.func @transform_7(%arg0: i32) -> (i32, i32) {
    %c0_i32 = arith.constant 0 : i32
    %c0_i32_0 = arith.constant 0 : i32
    %c0_i32_1 = arith.constant 0 : i32
    return %c0_i32, %c0_i32_0 : i32, i32
  }
  func.func @transform_8(%arg0: i32) -> (i32, i32) {
    %c0_i32 = arith.constant 0 : i32
    %c0_i32_0 = arith.constant 0 : i32
    %c0_i32_1 = arith.constant 0 : i32
    return %c0_i32, %c0_i32_0 : i32, i32
  }
  func.func @transform_9(%arg0: i32) -> (i32, i32) {
    %c0_i32 = arith.constant 0 : i32
    %c0_i32_0 = arith.constant 0 : i32
    %c0_i32_1 = arith.constant 0 : i32
    return %c0_i32, %c0_i32_0 : i32, i32
  }
  func.func @transform_10(%arg0: i32) -> (i32, i32) {
    %c0_i32 = arith.constant 0 : i32
    %c0_i32_0 = arith.constant 0 : i32
    %c0_i32_1 = arith.constant 0 : i32
    return %c0_i32, %c0_i32_0 : i32, i32
  }
  func.func @transform_11(%arg0: i32) -> (i32, i32) {
    %c0_i32 = arith.constant 0 : i32
    %c0_i32_0 = arith.constant 0 : i32
    %c0_i32_1 = arith.constant 0 : i32
    return %c0_i32, %c0_i32_0 : i32, i32
  }
  func.func @transform_12(%arg0: i32) -> (i32, i32) {
    %c0_i32 = arith.constant 0 : i32
    %c0_i32_0 = arith.constant 0 : i32
    %c0_i32_1 = arith.constant 0 : i32
    return %c0_i32, %c0_i32_0 : i32, i32
  }
  func.func @transform_13(%arg0: i32) -> (i32, i32) {
    %c0_i32 = arith.constant 0 : i32
    %c0_i32_0 = arith.constant 0 : i32
    %c0_i32_1 = arith.constant 0 : i32
    return %c0_i32, %c0_i32_0 : i32, i32
  }
  func.func @transform_14(%arg0: i32) -> (i32, i32) {
    %c0_i32 = arith.constant 0 : i32
    %c0_i32_0 = arith.constant 0 : i32
    return %arg0, %c0_i32 : i32, i32
  }
  func.func @transform_15(%arg0: i32) -> (i32, i32) {
    %c0_i32 = arith.constant 0 : i32
    %c0_i32_0 = arith.constant 0 : i32
    return %arg0, %c0_i32 : i32, i32
  }
  func.func @transform_16(%arg0: i32) -> (i32, i32) {
    %c0_i32 = arith.constant 0 : i32
    %c0_i32_0 = arith.constant 0 : i32
    return %arg0, %c0_i32 : i32, i32
  }
}

module attributes {stable_mosaic.version = 11 : i64} {
  func.func @_genevae_kernel(%arg0: i32, %arg1: memref<16x978xf32, #tpu.memory_space<vmem>>, %arg2: memref<16x128xf32, #tpu.memory_space<vmem>>, %arg3: memref<978x512xbf16, #tpu.memory_space<vmem>>, %arg4: memref<1x512xf32, #tpu.memory_space<vmem>>, %arg5: memref<512x256xbf16, #tpu.memory_space<vmem>>, %arg6: memref<1x256xf32, #tpu.memory_space<vmem>>, %arg7: memref<256x256xbf16, #tpu.memory_space<vmem>>, %arg8: memref<1x256xf32, #tpu.memory_space<vmem>>, %arg9: memref<128x256xbf16, #tpu.memory_space<vmem>>, %arg10: memref<1x256xf32, #tpu.memory_space<vmem>>, %arg11: memref<256x512xbf16, #tpu.memory_space<vmem>>, %arg12: memref<1x512xf32, #tpu.memory_space<vmem>>, %arg13: memref<512x978xbf16, #tpu.memory_space<vmem>>, %arg14: memref<1x978xf32, #tpu.memory_space<vmem>>, %arg15: memref<16x128xf32, #tpu.memory_space<vmem>>, %arg16: memref<16x128xf32, #tpu.memory_space<vmem>>, %arg17: memref<16x978xf32, #tpu.memory_space<vmem>>) attributes {dimension_semantics = [#tpu.dimension_semantics<parallel>], iteration_bounds = array<i64: 1>, scalar_prefetch = 0 : i64, scratch_operands = 0 : i64, tpu.core_type = #tpu.core_type<tc>, window_params = [{transform_indices = @transform_0, window_bounds = array<i64: 16, 978>}, {transform_indices = @transform_1, window_bounds = array<i64: 16, 128>}, {pipeline_mode = #tpu.pipeline_mode<synchronous>, transform_indices = @transform_2, window_bounds = array<i64: 978, 512>}, {pipeline_mode = #tpu.pipeline_mode<synchronous>, transform_indices = @transform_3, window_bounds = array<i64: 1, 512>}, {pipeline_mode = #tpu.pipeline_mode<synchronous>, transform_indices = @transform_4, window_bounds = array<i64: 512, 256>}, {pipeline_mode = #tpu.pipeline_mode<synchronous>, transform_indices = @transform_5, window_bounds = array<i64: 1, 256>}, {pipeline_mode = #tpu.pipeline_mode<synchronous>, transform_indices = @transform_6, window_bounds = array<i64: 256, 256>}, {pipeline_mode = #tpu.pipeline_mode<synchronous>, transform_indices = @transform_7, window_bounds = array<i64: 1, 256>}, {pipeline_mode = #tpu.pipeline_mode<synchronous>, transform_indices = @transform_8, window_bounds = array<i64: 128, 256>}, {pipeline_mode = #tpu.pipeline_mode<synchronous>, transform_indices = @transform_9, window_bounds = array<i64: 1, 256>}, {pipeline_mode = #tpu.pipeline_mode<synchronous>, transform_indices = @transform_10, window_bounds = array<i64: 256, 512>}, {pipeline_mode = #tpu.pipeline_mode<synchronous>, transform_indices = @transform_11, window_bounds = array<i64: 1, 512>}, {pipeline_mode = #tpu.pipeline_mode<synchronous>, transform_indices = @transform_12, window_bounds = array<i64: 512, 978>}, {pipeline_mode = #tpu.pipeline_mode<synchronous>, transform_indices = @transform_13, window_bounds = array<i64: 1, 978>}, {transform_indices = @transform_14, window_bounds = array<i64: 16, 128>}, {transform_indices = @transform_15, window_bounds = array<i64: 16, 128>}, {transform_indices = @transform_16, window_bounds = array<i64: 16, 978>}]} {
    %c0 = arith.constant 0 : index
    %c0_0 = arith.constant 0 : index
    %0 = vector.load %arg1[%c0, %c0_0] : memref<16x978xf32, #tpu.memory_space<vmem>>, vector<16x978xf32>
    %1 = arith.truncf %0 : vector<16x978xf32> to vector<16x978xbf16>
    %c0_1 = arith.constant 0 : index
    %c0_2 = arith.constant 0 : index
    %2 = vector.load %arg3[%c0_1, %c0_2] : memref<978x512xbf16, #tpu.memory_space<vmem>>, vector<978x512xbf16>
    %cst = arith.constant dense<0.000000e+00> : vector<16x512xf32>
    %3 = tpu.matmul %1, %2, %cst {dimension_numbers = #tpu.dot_dimension_numbers<[1], [0], [0], [1], [0, 0, 1, 1], [], []>} : vector<16x978xbf16>, vector<978x512xbf16>, vector<16x512xf32> -> vector<16x512xf32>
    %c0_3 = arith.constant 0 : index
    %c0_4 = arith.constant 0 : index
    %4 = vector.load %arg4[%c0_3, %c0_4] : memref<1x512xf32, #tpu.memory_space<vmem>>, vector<1x512xf32>
    %5 = vector.broadcast %4 : vector<1x512xf32> to vector<16x512xf32>
    %6 = arith.addf %3, %5 : vector<16x512xf32>
    %cst_5 = arith.constant 0.000000e+00 : f32
    %7 = vector.broadcast %cst_5 : f32 to vector<16x512xf32>
    %8 = arith.maximumf %6, %7 : vector<16x512xf32>
    %9 = arith.truncf %8 : vector<16x512xf32> to vector<16x512xbf16>
    %c0_6 = arith.constant 0 : index
    %c0_7 = arith.constant 0 : index
    %10 = vector.load %arg5[%c0_6, %c0_7] : memref<512x256xbf16, #tpu.memory_space<vmem>>, vector<512x256xbf16>
    %cst_8 = arith.constant dense<0.000000e+00> : vector<16x256xf32>
    %11 = tpu.matmul %9, %10, %cst_8 {dimension_numbers = #tpu.dot_dimension_numbers<[1], [0], [0], [1], [0, 0, 1, 1], [], []>} : vector<16x512xbf16>, vector<512x256xbf16>, vector<16x256xf32> -> vector<16x256xf32>
    %c0_9 = arith.constant 0 : index
    %c0_10 = arith.constant 0 : index
    %12 = vector.load %arg6[%c0_9, %c0_10] : memref<1x256xf32, #tpu.memory_space<vmem>>, vector<1x256xf32>
    %13 = vector.broadcast %12 : vector<1x256xf32> to vector<16x256xf32>
    %14 = arith.addf %11, %13 : vector<16x256xf32>
    %cst_11 = arith.constant 0.000000e+00 : f32
    %15 = vector.broadcast %cst_11 : f32 to vector<16x256xf32>
    %16 = arith.maximumf %14, %15 : vector<16x256xf32>
    %17 = arith.truncf %16 : vector<16x256xf32> to vector<16x256xbf16>
    %c0_12 = arith.constant 0 : index
    %c0_13 = arith.constant 0 : index
    %18 = vector.load %arg7[%c0_12, %c0_13] : memref<256x256xbf16, #tpu.memory_space<vmem>>, vector<256x256xbf16>
    %cst_14 = arith.constant dense<0.000000e+00> : vector<16x256xf32>
    %19 = tpu.matmul %17, %18, %cst_14 {dimension_numbers = #tpu.dot_dimension_numbers<[1], [0], [0], [1], [0, 0, 1, 1], [], []>} : vector<16x256xbf16>, vector<256x256xbf16>, vector<16x256xf32> -> vector<16x256xf32>
    %c0_15 = arith.constant 0 : index
    %c0_16 = arith.constant 0 : index
    %20 = vector.load %arg8[%c0_15, %c0_16] : memref<1x256xf32, #tpu.memory_space<vmem>>, vector<1x256xf32>
    %21 = vector.broadcast %20 : vector<1x256xf32> to vector<16x256xf32>
    %22 = arith.addf %19, %21 : vector<16x256xf32>
    %23 = vector.extract_strided_slice %22 {offsets = [0, 0], sizes = [16, 128], strides = [1, 1]} : vector<16x256xf32> to vector<16x128xf32>
    %24 = vector.extract_strided_slice %22 {offsets = [0, 128], sizes = [16, 128], strides = [1, 1]} : vector<16x256xf32> to vector<16x128xf32>
    %c0_17 = arith.constant 0 : index
    %c0_18 = arith.constant 0 : index
    %25 = vector.load %arg2[%c0_17, %c0_18] : memref<16x128xf32, #tpu.memory_space<vmem>>, vector<16x128xf32>
    %cst_19 = arith.constant 5.000000e-01 : f32
    %26 = vector.broadcast %cst_19 : f32 to vector<16x128xf32>
    %27 = arith.mulf %26, %24 : vector<16x128xf32>
    %28 = math.exp %27 : vector<16x128xf32>
    %29 = arith.mulf %25, %28 : vector<16x128xf32>
    %30 = arith.addf %23, %29 : vector<16x128xf32>
    %31 = arith.truncf %30 : vector<16x128xf32> to vector<16x128xbf16>
    %c0_20 = arith.constant 0 : index
    %c0_21 = arith.constant 0 : index
    %32 = vector.load %arg9[%c0_20, %c0_21] : memref<128x256xbf16, #tpu.memory_space<vmem>>, vector<128x256xbf16>
    %cst_22 = arith.constant dense<0.000000e+00> : vector<16x256xf32>
    %33 = tpu.matmul %31, %32, %cst_22 {dimension_numbers = #tpu.dot_dimension_numbers<[1], [0], [0], [1], [0, 0, 1, 1], [], []>} : vector<16x128xbf16>, vector<128x256xbf16>, vector<16x256xf32> -> vector<16x256xf32>
    %c0_23 = arith.constant 0 : index
    %c0_24 = arith.constant 0 : index
    %34 = vector.load %arg10[%c0_23, %c0_24] : memref<1x256xf32, #tpu.memory_space<vmem>>, vector<1x256xf32>
    %35 = vector.broadcast %34 : vector<1x256xf32> to vector<16x256xf32>
    %36 = arith.addf %33, %35 : vector<16x256xf32>
    %cst_25 = arith.constant 0.000000e+00 : f32
    %37 = vector.broadcast %cst_25 : f32 to vector<16x256xf32>
    %38 = arith.maximumf %36, %37 : vector<16x256xf32>
    %39 = arith.truncf %38 : vector<16x256xf32> to vector<16x256xbf16>
    %c0_26 = arith.constant 0 : index
    %c0_27 = arith.constant 0 : index
    %40 = vector.load %arg11[%c0_26, %c0_27] : memref<256x512xbf16, #tpu.memory_space<vmem>>, vector<256x512xbf16>
    %cst_28 = arith.constant dense<0.000000e+00> : vector<16x512xf32>
    %41 = tpu.matmul %39, %40, %cst_28 {dimension_numbers = #tpu.dot_dimension_numbers<[1], [0], [0], [1], [0, 0, 1, 1], [], []>} : vector<16x256xbf16>, vector<256x512xbf16>, vector<16x512xf32> -> vector<16x512xf32>
    %c0_29 = arith.constant 0 : index
    %c0_30 = arith.constant 0 : index
    %42 = vector.load %arg12[%c0_29, %c0_30] : memref<1x512xf32, #tpu.memory_space<vmem>>, vector<1x512xf32>
    %43 = vector.broadcast %42 : vector<1x512xf32> to vector<16x512xf32>
    %44 = arith.addf %41, %43 : vector<16x512xf32>
    %cst_31 = arith.constant 0.000000e+00 : f32
    %45 = vector.broadcast %cst_31 : f32 to vector<16x512xf32>
    %46 = arith.maximumf %44, %45 : vector<16x512xf32>
    %47 = arith.truncf %46 : vector<16x512xf32> to vector<16x512xbf16>
    %c0_32 = arith.constant 0 : index
    %c0_33 = arith.constant 0 : index
    %48 = vector.load %arg13[%c0_32, %c0_33] : memref<512x978xbf16, #tpu.memory_space<vmem>>, vector<512x978xbf16>
    %cst_34 = arith.constant dense<0.000000e+00> : vector<16x978xf32>
    %49 = tpu.matmul %47, %48, %cst_34 {dimension_numbers = #tpu.dot_dimension_numbers<[1], [0], [0], [1], [0, 0, 1, 1], [], []>} : vector<16x512xbf16>, vector<512x978xbf16>, vector<16x978xf32> -> vector<16x978xf32>
    %c0_35 = arith.constant 0 : index
    %c0_36 = arith.constant 0 : index
    %50 = vector.load %arg14[%c0_35, %c0_36] : memref<1x978xf32, #tpu.memory_space<vmem>>, vector<1x978xf32>
    %51 = vector.broadcast %50 : vector<1x978xf32> to vector<16x978xf32>
    %52 = arith.addf %49, %51 : vector<16x978xf32>
    %cst_37 = arith.constant 0.000000e+00 : f32
    %53 = vector.broadcast %cst_37 : f32 to vector<16x978xf32>
    %54 = arith.maximumf %52, %53 : vector<16x978xf32>
    %c0_38 = arith.constant 0 : index
    %c0_39 = arith.constant 0 : index
    %55 = vector.load %arg15[%c0_38, %c0_39] : memref<16x128xf32, #tpu.memory_space<vmem>>, vector<16x128xf32>
    tpu.vector_store %arg15[%c0_38, %c0_39], %23 {strides = array<i32>} : memref<16x128xf32, #tpu.memory_space<vmem>>, vector<16x128xf32>,
    %c0_40 = arith.constant 0 : index
    %c0_41 = arith.constant 0 : index
    %56 = vector.load %arg16[%c0_40, %c0_41] : memref<16x128xf32, #tpu.memory_space<vmem>>, vector<16x128xf32>
    tpu.vector_store %arg16[%c0_40, %c0_41], %24 {strides = array<i32>} : memref<16x128xf32, #tpu.memory_space<vmem>>, vector<16x128xf32>,
    %c0_42 = arith.constant 0 : index
    %c0_43 = arith.constant 0 : index
    %57 = vector.load %arg17[%c0_42, %c0_43] : memref<16x978xf32, #tpu.memory_space<vmem>>, vector<16x978xf32>
    tpu.vector_store %arg17[%c0_42, %c0_43], %54 {strides = array<i32>} : memref<16x978xf32, #tpu.memory_space<vmem>>, vector<16x978xf32>,
    return
  }
  func.func @transform_0(%arg0: i32) -> (i32, i32) {
    %c0_i32 = arith.constant 0 : i32
    %c0_i32_0 = arith.constant 0 : i32
    return %arg0, %c0_i32 : i32, i32
  }
  func.func @transform_1(%arg0: i32) -> (i32, i32) {
    %c0_i32 = arith.constant 0 : i32
    %c0_i32_0 = arith.constant 0 : i32
    return %arg0, %c0_i32 : i32, i32
  }
  func.func @transform_2(%arg0: i32) -> (i32, i32) {
    %c0_i32 = arith.constant 0 : i32
    %c0_i32_0 = arith.constant 0 : i32
    %c0_i32_1 = arith.constant 0 : i32
    return %c0_i32, %c0_i32_0 : i32, i32
  }
  func.func @transform_3(%arg0: i32) -> (i32, i32) {
    %c0_i32 = arith.constant 0 : i32
    %c0_i32_0 = arith.constant 0 : i32
    %c0_i32_1 = arith.constant 0 : i32
    return %c0_i32, %c0_i32_0 : i32, i32
  }
  func.func @transform_4(%arg0: i32) -> (i32, i32) {
    %c0_i32 = arith.constant 0 : i32
    %c0_i32_0 = arith.constant 0 : i32
    %c0_i32_1 = arith.constant 0 : i32
    return %c0_i32, %c0_i32_0 : i32, i32
  }
  func.func @transform_5(%arg0: i32) -> (i32, i32) {
    %c0_i32 = arith.constant 0 : i32
    %c0_i32_0 = arith.constant 0 : i32
    %c0_i32_1 = arith.constant 0 : i32
    return %c0_i32, %c0_i32_0 : i32, i32
  }
  func.func @transform_6(%arg0: i32) -> (i32, i32) {
    %c0_i32 = arith.constant 0 : i32
    %c0_i32_0 = arith.constant 0 : i32
    %c0_i32_1 = arith.constant 0 : i32
    return %c0_i32, %c0_i32_0 : i32, i32
  }
  func.func @transform_7(%arg0: i32) -> (i32, i32) {
    %c0_i32 = arith.constant 0 : i32
    %c0_i32_0 = arith.constant 0 : i32
    %c0_i32_1 = arith.constant 0 : i32
    return %c0_i32, %c0_i32_0 : i32, i32
  }
  func.func @transform_8(%arg0: i32) -> (i32, i32) {
    %c0_i32 = arith.constant 0 : i32
    %c0_i32_0 = arith.constant 0 : i32
    %c0_i32_1 = arith.constant 0 : i32
    return %c0_i32, %c0_i32_0 : i32, i32
  }
  func.func @transform_9(%arg0: i32) -> (i32, i32) {
    %c0_i32 = arith.constant 0 : i32
    %c0_i32_0 = arith.constant 0 : i32
    %c0_i32_1 = arith.constant 0 : i32
    return %c0_i32, %c0_i32_0 : i32, i32
  }
  func.func @transform_10(%arg0: i32) -> (i32, i32) {
    %c0_i32 = arith.constant 0 : i32
    %c0_i32_0 = arith.constant 0 : i32
    %c0_i32_1 = arith.constant 0 : i32
    return %c0_i32, %c0_i32_0 : i32, i32
  }
  func.func @transform_11(%arg0: i32) -> (i32, i32) {
    %c0_i32 = arith.constant 0 : i32
    %c0_i32_0 = arith.constant 0 : i32
    %c0_i32_1 = arith.constant 0 : i32
    return %c0_i32, %c0_i32_0 : i32, i32
  }
  func.func @transform_12(%arg0: i32) -> (i32, i32) {
    %c0_i32 = arith.constant 0 : i32
    %c0_i32_0 = arith.constant 0 : i32
    %c0_i32_1 = arith.constant 0 : i32
    return %c0_i32, %c0_i32_0 : i32, i32
  }
  func.func @transform_13(%arg0: i32) -> (i32, i32) {
    %c0_i32 = arith.constant 0 : i32
    %c0_i32_0 = arith.constant 0 : i32
    %c0_i32_1 = arith.constant 0 : i32
    return %c0_i32, %c0_i32_0 : i32, i32
  }
  func.func @transform_14(%arg0: i32) -> (i32, i32) {
    %c0_i32 = arith.constant 0 : i32
    %c0_i32_0 = arith.constant 0 : i32
    return %arg0, %c0_i32 : i32, i32
  }
  func.func @transform_15(%arg0: i32) -> (i32, i32) {
    %c0_i32 = arith.constant 0 : i32
    %c0_i32_0 = arith.constant 0 : i32
    return %arg0, %c0_i32 : i32, i32
  }
  func.func @transform_16(%arg0: i32) -> (i32, i32) {
    %c0_i32 = arith.constant 0 : i32
    %c0_i32_0 = arith.constant 0 : i32
    return %arg0, %c0_i32 : i32, i32
  }
}

</mosaic_0001>

<llo_original>
// kernel: tpu_custom_call.1
$region0: #{tpu_custom_call.1}
  #allocation0 [shape = 'u32[]', space=smem, size = 0x4, offset = 0x4, fixed_abs, tag = 'smem constant byte address 0x4 - core index']
  #allocation1 [shape = 'u32[144,128]{1,0:T(1,128)}', space=vmem, size = 0x12000, scoped, tag = 'internal scratch']
  %s0 = inlined_call_operand.vmem [shape: f32[16,978], index: 0, kind: input, shape index: {}]
  %s1 = inlined_call_operand.vmem [shape: f32[16,128], index: 1, kind: input, shape index: {}]
  %s2 = inlined_call_operand.vmem [shape: bf16[978,512], index: 2, kind: input, shape index: {}]
  %s3 = inlined_call_operand.vmem [shape: f32[1,512], index: 3, kind: input, shape index: {}]
  %s4 = inlined_call_operand.vmem [shape: bf16[512,256], index: 4, kind: input, shape index: {}]
  %s5 = inlined_call_operand.vmem [shape: f32[1,256], index: 5, kind: input, shape index: {}]
  %s6 = inlined_call_operand.vmem [shape: bf16[256,256], index: 6, kind: input, shape index: {}]
  %s7 = inlined_call_operand.vmem [shape: f32[1,256], index: 7, kind: input, shape index: {}]
  %s8 = inlined_call_operand.vmem [shape: bf16[128,256], index: 8, kind: input, shape index: {}]
  %s9 = inlined_call_operand.vmem [shape: f32[1,256], index: 9, kind: input, shape index: {}]
  %s10 = inlined_call_operand.vmem [shape: bf16[256,512], index: 10, kind: input, shape index: {}]
  %s11 = inlined_call_operand.vmem [shape: f32[1,512], index: 11, kind: input, shape index: {}]
  %s12 = inlined_call_operand.vmem [shape: bf16[512,978], index: 12, kind: input, shape index: {}]
  %s13 = inlined_call_operand.vmem [shape: f32[1,978], index: 13, kind: input, shape index: {}]
  %s14 = inlined_call_operand.hbm [shape: f32[16,128], index: 14, kind: output, shape index: {0}]
  %s15 = inlined_call_operand.hbm [shape: f32[16,128], index: 15, kind: output, shape index: {1}]
  %s16 = inlined_call_operand.hbm [shape: f32[16,978], index: 16, kind: output, shape index: {2}]
  %17 = xla_tuple %s14, %s15, %s16
  %s18 = sld [smem:[#allocation0]]
  $region82: #{tpu_custom_call.1} parent=0
    _
  %s20 = ssub.s32 1, %s18
  %s21 = scalar_select 0, %s20, %s18
  $region1: #{tpu_custom_call.1} parent=0
    #allocation2 [shape = 'u8[8192]{0}', space=vmem, size = 0x2000, scoped, tag = 'output window, operand 0, single buffered']
    #allocation3 [shape = 's32[1]{0}', space=sflag, size = 0x4, scoped, tag = 'scoped memory for tpu_custom_call.1']
    #allocation4 [shape = 'u8[8192]{0}', space=vmem, size = 0x2000, scoped, tag = 'output window, operand 1, single buffered']
    #allocation5 [shape = 's32[1]{0}', space=sflag, size = 0x4, scoped, tag = 'scoped memory for tpu_custom_call.1']
    #allocation6 [shape = 'u8[65536]{0}', space=vmem, size = 0x10000, scoped, tag = 'output window, operand 2, single buffered']
    %22 = vsyncpa [#allocation3], 0
    %23 = vsyncpa [#allocation5], 0
    // Predicated region
    $region2: #{tpu_custom_call.1} parent=1 // pred_check
      _
    $region3: #{tpu_custom_call.1} parent=1 // pred_check_branch
      %25 = sbr.rel (0) target = $region5
    $region4: #{tpu_custom_call.1} parent=1 // pred_region
      _
    $region5: #{tpu_custom_call.1} parent=1 // pred_fallthru
      _
    // Predicated region
    $region6: #{tpu_custom_call.1} parent=1 // pred_check
      _
    $region7: #{tpu_custom_call.1} parent=1 // pred_check_branch
      %27 = sbr.rel (0) target = $region9
    $region8: #{tpu_custom_call.1} parent=1 // pred_region
      _
    $region9: #{tpu_custom_call.1} parent=1 // pred_fallthru
      _
    // Predicated region
    $region10: #{tpu_custom_call.1} parent=1 // pred_check
      _
    $region11: #{tpu_custom_call.1} parent=1 // pred_check_branch
      %29 = sbr.rel (0) target = $region13
    $region12: #{tpu_custom_call.1} parent=1 // pred_region
      _
    $region13: #{tpu_custom_call.1} parent=1 // pred_fallthru
      _
    // Predicated region
    $region14: #{tpu_custom_call.1} parent=1 // pred_check
      _
    $region15: #{tpu_custom_call.1} parent=1 // pred_check_branch
      %31 = sbr.rel (0) target = $region17
    $region16: #{tpu_custom_call.1} parent=1 // pred_region
      _
    $region17: #{tpu_custom_call.1} parent=1 // pred_fallthru
      _
    // Predicated region
    $region18: #{tpu_custom_call.1} parent=1 // pred_check
      _
    $region19: #{tpu_custom_call.1} parent=1 // pred_check_branch
      %33 = sbr.rel (0) target = $region21
    $region20: #{tpu_custom_call.1} parent=1 // pred_region
      _
    $region21: #{tpu_custom_call.1} parent=1 // pred_fallthru
      _
    // Predicated region
    $region22: #{tpu_custom_call.1} parent=1 // pred_check
      _
    $region23: #{tpu_custom_call.1} parent=1 // pred_check_branch
      %35 = sbr.rel (0) target = $region25
    $region24: #{tpu_custom_call.1} parent=1 // pred_region
      _
    $region25: #{tpu_custom_call.1} parent=1 // pred_fallthru
      _
    // Predicated region
    $region26: #{tpu_custom_call.1} parent=1 // pred_check
      _
    $region27: #{tpu_custom_call.1} parent=1 // pred_check_branch
      %37 = sbr.rel (0) target = $region29
    $region28: #{tpu_custom_call.1} parent=1 // pred_region
      _
    $region29: #{tpu_custom_call.1} parent=1 // pred_fallthru
      _
    // Predicated region
    $region30: #{tpu_custom_call.1} parent=1 // pred_check
      _
    $region31: #{tpu_custom_call.1} parent=1 // pred_check_branch
      %39 = sbr.rel (0) target = $region33
    $region32: #{tpu_custom_call.1} parent=1 // pred_region
      _
    $region33: #{tpu_custom_call.1} parent=1 // pred_fallthru
      _
    // Predicated region
    $region34: #{tpu_custom_call.1} parent=1 // pred_check
      _
    $region35: #{tpu_custom_call.1} parent=1 // pred_check_branch
      %41 = sbr.rel (0) target = $region37
    $region36: #{tpu_custom_call.1} parent=1 // pred_region
      _
    $region37: #{tpu_custom_call.1} parent=1 // pred_fallthru
      _
    // Predicated region
    $region38: #{tpu_custom_call.1} parent=1 // pred_check
      _
    $region39: #{tpu_custom_call.1} parent=1 // pred_check_branch
      %43 = sbr.rel (0) target = $region41
    $region40: #{tpu_custom_call.1} parent=1 // pred_region
      _
    $region41: #{tpu_custom_call.1} parent=1 // pred_fallthru
      _
    // Predicated region
    $region42: #{tpu_custom_call.1} parent=1 // pred_check
      _
    $region43: #{tpu_custom_call.1} parent=1 // pred_check_branch
      %45 = sbr.rel (0) target = $region45
    $region44: #{tpu_custom_call.1} parent=1 // pred_region
      _
    $region45: #{tpu_custom_call.1} parent=1 // pred_fallthru
      _
    // Predicated region
    $region46: #{tpu_custom_call.1} parent=1 // pred_check
      _
    $region47: #{tpu_custom_call.1} parent=1 // pred_check_branch
      %47 = sbr.rel (0) target = $region49
    $region48: #{tpu_custom_call.1} parent=1 // pred_region
      _
    $region49: #{tpu_custom_call.1} parent=1 // pred_fallthru
      _
    // Predicated region
    $region50: #{tpu_custom_call.1} parent=1 // pred_check
      _
    $region51: #{tpu_custom_call.1} parent=1 // pred_check_branch
      %49 = sbr.rel (0) target = $region53
    $region52: #{tpu_custom_call.1} parent=1 // pred_region
      _
    $region53: #{tpu_custom_call.1} parent=1 // pred_fallthru
      _
    // Predicated region
    $region54: #{tpu_custom_call.1} parent=1 // pred_check
      _
    $region55: #{tpu_custom_call.1} parent=1 // pred_check_branch
      %51 = sbr.rel (0) target = $region57
    $region56: #{tpu_custom_call.1} parent=1 // pred_region
      _
    $region57: #{tpu_custom_call.1} parent=1 // pred_fallthru
      _
    %v53 = vld [vmem:[%s0] sm:$0xff]
    %v54 = vld [vmem:[%s0 + $0x8] sm:$0xff]
    %v55 = vld [vmem:[%s0 + $0x10] sm:$0xff]
    %v56 = vld [vmem:[%s0 + $0x18] sm:$0xff]
    %v57 = vld [vmem:[%s0 + $0x20] sm:$0xff]
    %v58 = vld [vmem:[%s0 + $0x28] sm:$0xff]
    %v59 = vld [vmem:[%s0 + $0x30] sm:$0xff]
    %v60 = vld [vmem:[%s0 + $0x38] sm:$0xff]
    %v61 = vld [vmem:[%s0 + $0x40] sm:$0xff]
    %v62 = vld [vmem:[%s0 + $0x48] sm:$0xff]
    %v63 = vld [vmem:[%s0 + $0x50] sm:$0xff]
    %v64 = vld [vmem:[%s0 + $0x58] sm:$0xff]
    %v65 = vld [vmem:[%s0 + $0x60] sm:$0xff]
    %v66 = vld [vmem:[%s0 + $0x68] sm:$0xff]
    %v67 = vld [vmem:[%s0 + $0x70] sm:$0xff]
    %v68 = vld [vmem:[%s0 + $0x78] sm:$0xff]
    %v69 = vpack.c.bf16 %v61, %v53
    %v70 = vpack.c.bf16 %v62, %v54
    %v71 = vpack.c.bf16 %v63, %v55
    %v72 = vpack.c.bf16 %v64, %v56
    %v73 = vpack.c.bf16 %v65, %v57
    %v74 = vpack.c.bf16 %v66, %v58
    %v75 = vpack.c.bf16 %v67, %v59
    %v76 = vpack.c.bf16 %v68, %v60
    %v77 = vld [vmem:[%s2] sm:$0xff]
    %v78 = vld [vmem:[%s2 + $0x8] sm:$0xff]
    %v79 = vld [vmem:[%s2 + $0x10] sm:$0xff]
    %v80 = vld [vmem:[%s2 + $0x18] sm:$0xff]
    %v81 = vld [vmem:[%s2 + $0x20] sm:$0xff]
    %v82 = vld [vmem:[%s2 + $0x28] sm:$0xff]
    %v83 = vld [vmem:[%s2 + $0x30] sm:$0xff]
    %v84 = vld [vmem:[%s2 + $0x38] sm:$0xff]
    %v85 = vld [vmem:[%s2 + $0x40] sm:$0xff]
    %v86 = vld [vmem:[%s2 + $0x48] sm:$0xff]
    %v87 = vld [vmem:[%s2 + $0x50] sm:$0xff]
    %v88 = vld [vmem:[%s2 + $0x58] sm:$0xff]
    %v89 = vld [vmem:[%s2 + $0x60] sm:$0xff]
    %v90 = vld [vmem:[%s2 + $0x68] sm:$0xff]
    %v91 = vld [vmem:[%s2 + $0x70] sm:$0xff]
    %v92 = vld [vmem:[%s2 + $0x78] sm:$0xff]
    %v93 = vld [vmem:[%s2 + $0x80] sm:$0xff]
    %v94 = vld [vmem:[%s2 + $0x88] sm:$0xff]
    %v95 = vld [vmem:[%s2 + $0x90] sm:$0xff]
    %v96 = vld [vmem:[%s2 + $0x98] sm:$0xff]
    %v97 = vld [vmem:[%s2 + $0xa0] sm:$0xff]
    %v98 = vld [vmem:[%s2 + $0xa8] sm:$0xff]
    %v99 = vld [vmem:[%s2 + $0xb0] sm:$0xff]
    %v100 = vld [vmem:[%s2 + $0xb8] sm:$0xff]
    %v101 = vld [vmem:[%s2 + $0xc0] sm:$0xff]
    %v102 = vld [vmem:[%s2 + $0xc8] sm:$0xff]
    %v103 = vld [vmem:[%s2 + $0xd0] sm:$0xff]
    %v104 = vld [vmem:[%s2 + $0xd8] sm:$0xff]
    %v105 = vld [vmem:[%s2 + $0xe0] sm:$0xff]
    %v106 = vld [vmem:[%s2 + $0xe8] sm:$0xff]
    %v107 = vld [vmem:[%s2 + $0xf0] sm:$0xff]
    %v108 = vld [vmem:[%s2 + $0xf8] sm:$0xff]
    %v109 = vld [vmem:[%s2 + $0x100] sm:$0xff]
    %v110 = vld [vmem:[%s2 + $0x108] sm:$0xff]
    %v111 = vld [vmem:[%s2 + $0x110] sm:$0xff]
    %v112 = vld [vmem:[%s2 + $0x118] sm:$0xff]
    %v113 = vld [vmem:[%s2 + $0x120] sm:$0xff]
    %v114 = vld [vmem:[%s2 + $0x128] sm:$0xff]
    %v115 = vld [vmem:[%s2 + $0x130] sm:$0xff]
    %v116 = vld [vmem:[%s2 + $0x138] sm:$0xff]
    %v117 = vld [vmem:[%s2 + $0x140] sm:$0xff]
    %v118 = vld [vmem:[%s2 + $0x148] sm:$0xff]
    %v119 = vld [vmem:[%s2 + $0x150] sm:$0xff]
    %v120 = vld [vmem:[%s2 + $0x158] sm:$0xff]
    %v121 = vld [vmem:[%s2 + $0x160] sm:$0xff]
    %v122 = vld [vmem:[%s2 + $0x168] sm:$0xff]
    %v123 = vld [vmem:[%s2 + $0x170] sm:$0xff]
    %v124 = vld [vmem:[%s2 + $0x178] sm:$0xff]
    %v125 = vld [vmem:[%s2 + $0x180] sm:$0xff]
    %v126 = vld [vmem:[%s2 + $0x188] sm:$0xff]
    %v127 = vld [vmem:[%s2 + $0x190] sm:$0xff]
    %v128 = vld [vmem:[%s2 + $0x198] sm:$0xff]
    %v129 = vld [vmem:[%s2 + $0x1a0] sm:$0xff]
    %v130 = vld [vmem:[%s2 + $0x1a8] sm:$0xff]
    %v131 = vld [vmem:[%s2 + $0x1b0] sm:$0xff]
    %v132 = vld [vmem:[%s2 + $0x1b8] sm:$0xff]
    %v133 = vld [vmem:[%s2 + $0x1c0] sm:$0xff]
    %v134 = vld [vmem:[%s2 + $0x1c8] sm:$0xff]
    %v135 = vld [vmem:[%s2 + $0x1d0] sm:$0xff]
    %v136 = vld [vmem:[%s2 + $0x1d8] sm:$0xff]
    %v137 = vld [vmem:[%s2 + $0x1e0] sm:$0xff]
    %v138 = vld [vmem:[%s2 + $0x1e8] sm:$0xff]
    %v139 = vld [vmem:[%s2 + $0x1f0] sm:$0xff]
    %v140 = vld [vmem:[%s2 + $0x1f8] sm:$0xff]
    %v141 = vld [vmem:[%s2 + $0x200] sm:$0xff]
    %v142 = vld [vmem:[%s2 + $0x208] sm:$0xff]
    %v143 = vld [vmem:[%s2 + $0x210] sm:$0xff]
    %v144 = vld [vmem:[%s2 + $0x218] sm:$0xff]
    %v145 = vld [vmem:[%s2 + $0x220] sm:$0xff]
    %v146 = vld [vmem:[%s2 + $0x228] sm:$0xff]
    %v147 = vld [vmem:[%s2 + $0x230] sm:$0xff]
    %v148 = vld [vmem:[%s2 + $0x238] sm:$0xff]
    %v149 = vld [vmem:[%s2 + $0x240] sm:$0xff]
    %v150 = vld [vmem:[%s2 + $0x248] sm:$0xff]
    %v151 = vld [vmem:[%s2 + $0x250] sm:$0xff]
    %v152 = vld [vmem:[%s2 + $0x258] sm:$0xff]
    %v153 = vld [vmem:[%s2 + $0x260] sm:$0xff]
    %v154 = vld [vmem:[%s2 + $0x268] sm:$0xff]
    %v155 = vld [vmem:[%s2 + $0x270] sm:$0xff]
    %v156 = vld [vmem:[%s2 + $0x278] sm:$0xff]
    %v157 = vld [vmem:[%s2 + $0x280] sm:$0xff]
    %v158 = vld [vmem:[%s2 + $0x288] sm:$0xff]
    %v159 = vld [vmem:[%s2 + $0x290] sm:$0xff]
    %v160 = vld [vmem:[%s2 + $0x298] sm:$0xff]
    %v161 = vld [vmem:[%s2 + $0x2a0] sm:$0xff]
    %v162 = vld [vmem:[%s2 + $0x2a8] sm:$0xff]
    %v163 = vld [vmem:[%s2 + $0x2b0] sm:$0xff]
    %v164 = vld [vmem:[%s2 + $0x2b8] sm:$0xff]
    %v165 = vld [vmem:[%s2 + $0x2c0] sm:$0xff]
    %v166 = vld [vmem:[%s2 + $0x2c8] sm:$0xff]
    %v167 = vld [vmem:[%s2 + $0x2d0] sm:$0xff]
    %v168 = vld [vmem:[%s2 + $0x2d8] sm:$0xff]
    %v169 = vld [vmem:[%s2 + $0x2e0] sm:$0xff]
    %v170 = vld [vmem:[%s2 + $0x2e8] sm:$0xff]
    %v171 = vld [vmem:[%s2 + $0x2f0] sm:$0xff]
    %v172 = vld [vmem:[%s2 + $0x2f8] sm:$0xff]
    %v173 = vld [vmem:[%s2 + $0x300] sm:$0xff]
    %v174 = vld [vmem:[%s2 + $0x308] sm:$0xff]
    %v175 = vld [vmem:[%s2 + $0x310] sm:$0xff]
    %v176 = vld [vmem:[%s2 + $0x318] sm:$0xff]
    %v177 = vld [vmem:[%s2 + $0x320] sm:$0xff]
    %v178 = vld [vmem:[%s2 + $0x328] sm:$0xff]
    %v179 = vld [vmem:[%s2 + $0x330] sm:$0xff]
    %v180 = vld [vmem:[%s2 + $0x338] sm:$0xff]
    %v181 = vld [vmem:[%s2 + $0x340] sm:$0xff]
    %v182 = vld [vmem:[%s2 + $0x348] sm:$0xff]
    %v183 = vld [vmem:[%s2 + $0x350] sm:$0xff]
    %v184 = vld [vmem:[%s2 + $0x358] sm:$0xff]
    %v185 = vld [vmem:[%s2 + $0x360] sm:$0xff]
    %v186 = vld [vmem:[%s2 + $0x368] sm:$0xff]
    %v187 = vld [vmem:[%s2 + $0x370] sm:$0xff]
    %v188 = vld [vmem:[%s2 + $0x378] sm:$0xff]
    %v189 = vld [vmem:[%s2 + $0x380] sm:$0xff]
    %v190 = vld [vmem:[%s2 + $0x388] sm:$0xff]
    %v191 = vld [vmem:[%s2 + $0x390] sm:$0xff]
    %v192 = vld [vmem:[%s2 + $0x398] sm:$0xff]
    %v193 = vld [vmem:[%s2 + $0x3a0] sm:$0xff]
    %v194 = vld [vmem:[%s2 + $0x3a8] sm:$0xff]
    %v195 = vld [vmem:[%s2 + $0x3b0] sm:$0xff]
    %v196 = vld [vmem:[%s2 + $0x3b8] sm:$0xff]
    %v197 = vld [vmem:[%s2 + $0x3c0] sm:$0xff]
    %v198 = vld [vmem:[%s2 + $0x3c8] sm:$0xff]
    %v199 = vld [vmem:[%s2 + $0x3d0] sm:$0xff]
    %v200 = vld [vmem:[%s2 + $0x3d8] sm:$0xff]
    %v201 = vld [vmem:[%s2 + $0x3e0] sm:$0xff]
    %v202 = vld [vmem:[%s2 + $0x3e8] sm:$0xff]
    %v203 = vld [vmem:[%s2 + $0x3f0] sm:$0xff]
    %v204 = vld [vmem:[%s2 + $0x3f8] sm:$0xff]
    %v205 = vld [vmem:[%s2 + $0x400] sm:$0xff]
    %v206 = vld [vmem:[%s2 + $0x408] sm:$0xff]
    %v207 = vld [vmem:[%s2 + $0x410] sm:$0xff]
    %v208 = vld [vmem:[%s2 + $0x418] sm:$0xff]
    %v209 = vld [vmem:[%s2 + $0x420] sm:$0xff]
    %v210 = vld [vmem:[%s2 + $0x428] sm:$0xff]
    %v211 = vld [vmem:[%s2 + $0x430] sm:$0xff]
    %v212 = vld [vmem:[%s2 + $0x438] sm:$0xff]
    %v213 = vld [vmem:[%s2 + $0x440] sm:$0xff]
    %v214 = vld [vmem:[%s2 + $0x448] sm:$0xff]
    %v215 = vld [vmem:[%s2 + $0x450] sm:$0xff]
    %v216 = vld [vmem:[%s2 + $0x458] sm:$0xff]
    %v217 = vld [vmem:[%s2 + $0x460] sm:$0xff]
    %v218 = vld [vmem:[%s2 + $0x468] sm:$0xff]
    %v219 = vld [vmem:[%s2 + $0x470] sm:$0xff]
    %v220 = vld [vmem:[%s2 + $0x478] sm:$0xff]
    %v221 = vld [vmem:[%s2 + $0x480] sm:$0xff]
    %v222 = vld [vmem:[%s2 + $0x488] sm:$0xff]
    %v223 = vld [vmem:[%s2 + $0x490] sm:$0xff]
    %v224 = vld [vmem:[%s2 + $0x498] sm:$0xff]
    %v225 = vld [vmem:[%s2 + $0x4a0] sm:$0xff]
    %v226 = vld [vmem:[%s2 + $0x4a8] sm:$0xff]
    %v227 = vld [vmem:[%s2 + $0x4b0] sm:$0xff]
    %v228 = vld [vmem:[%s2 + $0x4b8] sm:$0xff]
    %v229 = vld [vmem:[%s2 + $0x4c0] sm:$0xff]
    %v230 = vld [vmem:[%s2 + $0x4c8] sm:$0xff]
    %v231 = vld [vmem:[%s2 + $0x4d0] sm:$0xff]
    %v232 = vld [vmem:[%s2 + $0x4d8] sm:$0xff]
    %v233 = vld [vmem:[%s2 + $0x4e0] sm:$0xff]
    %v234 = vld [vmem:[%s2 + $0x4e8] sm:$0xff]
    %v235 = vld [vmem:[%s2 + $0x4f0] sm:$0xff]
    %v236 = vld [vmem:[%s2 + $0x4f8] sm:$0xff]
    %v237 = vld [vmem:[%s2 + $0x500] sm:$0xff]
    %v238 = vld [vmem:[%s2 + $0x508] sm:$0xff]
    %v239 = vld [vmem:[%s2 + $0x510] sm:$0xff]
    %v240 = vld [vmem:[%s2 + $0x518] sm:$0xff]
    %v241 = vld [vmem:[%s2 + $0x520] sm:$0xff]
    %v242 = vld [vmem:[%s2 + $0x528] sm:$0xff]
    %v243 = vld [vmem:[%s2 + $0x530] sm:$0xff]
    %v244 = vld [vmem:[%s2 + $0x538] sm:$0xff]
    %v245 = vld [vmem:[%s2 + $0x540] sm:$0xff]
    %v246 = vld [vmem:[%s2 + $0x548] sm:$0xff]
    %v247 = vld [vmem:[%s2 + $0x550] sm:$0xff]
    %v248 = vld [vmem:[%s2 + $0x558] sm:$0xff]
    %v249 = vld [vmem:[%s2 + $0x560] sm:$0xff]
    %v250 = vld [vmem:[%s2 + $0x568] sm:$0xff]
    %v251 = vld [vmem:[%s2 + $0x570] sm:$0xff]
    %v252 = vld [vmem:[%s2 + $0x578] sm:$0xff]
    %v253 = vld [vmem:[%s2 + $0x580] sm:$0xff]
    %v254 = vld [vmem:[%s2 + $0x588] sm:$0xff]
    %v255 = vld [vmem:[%s2 + $0x590] sm:$0xff]
    %v256 = vld [vmem:[%s2 + $0x598] sm:$0xff]
    %v257 = vld [vmem:[%s2 + $0x5a0] sm:$0xff]
    %v258 = vld [vmem:[%s2 + $0x5a8] sm:$0xff]
    %v259 = vld [vmem:[%s2 + $0x5b0] sm:$0xff]
    %v260 = vld [vmem:[%s2 + $0x5b8] sm:$0xff]
    %v261 = vld [vmem:[%s2 + $0x5c0] sm:$0xff]
    %v262 = vld [vmem:[%s2 + $0x5c8] sm:$0xff]
    %v263 = vld [vmem:[%s2 + $0x5d0] sm:$0xff]
    %v264 = vld [vmem:[%s2 + $0x5d8] sm:$0xff]
    %v265 = vld [vmem:[%s2 + $0x5e0] sm:$0xff]
    %v266 = vld [vmem:[%s2 + $0x5e8] sm:$0xff]
    %v267 = vld [vmem:[%s2 + $0x5f0] sm:$0xff]
    %v268 = vld [vmem:[%s2 + $0x5f8] sm:$0xff]
    %v269 = vld [vmem:[%s2 + $0x600] sm:$0xff]
    %v270 = vld [vmem:[%s2 + $0x608] sm:$0xff]
    %v271 = vld [vmem:[%s2 + $0x610] sm:$0xff]
    %v272 = vld [vmem:[%s2 + $0x618] sm:$0xff]
    %v273 = vld [vmem:[%s2 + $0x620] sm:$0xff]
    %v274 = vld [vmem:[%s2 + $0x628] sm:$0xff]
    %v275 = vld [vmem:[%s2 + $0x630] sm:$0xff]
    %v276 = vld [vmem:[%s2 + $0x638] sm:$0xff]
    %v277 = vld [vmem:[%s2 + $0x640] sm:$0xff]
    %v278 = vld [vmem:[%s2 + $0x648] sm:$0xff]
    %v279 = vld [vmem:[%s2 + $0x650] sm:$0xff]
    %v280 = vld [vmem:[%s2 + $0x658] sm:$0xff]
    %v281 = vld [vmem:[%s2 + $0x660] sm:$0xff]
    %v282 = vld [vmem:[%s2 + $0x668] sm:$0xff]
    %v283 = vld [vmem:[%s2 + $0x670] sm:$0xff]
    %v284 = vld [vmem:[%s2 + $0x678] sm:$0xff]
    %v285 = vld [vmem:[%s2 + $0x680] sm:$0xff]
    %v286 = vld [vmem:[%s2 + $0x688] sm:$0xff]
    %v287 = vld [vmem:[%s2 + $0x690] sm:$0xff]
    %v288 = vld [vmem:[%s2 + $0x698] sm:$0xff]
    %v289 = vld [vmem:[%s2 + $0x6a0] sm:$0xff]
    %v290 = vld [vmem:[%s2 + $0x6a8] sm:$0xff]
    %v291 = vld [vmem:[%s2 + $0x6b0] sm:$0xff]
    %v292 = vld [vmem:[%s2 + $0x6b8] sm:$0xff]
    %v293 = vld [vmem:[%s2 + $0x6c0] sm:$0xff]
    %v294 = vld [vmem:[%s2 + $0x6c8] sm:$0xff]
    %v295 = vld [vmem:[%s2 + $0x6d0] sm:$0xff]
    %v296 = vld [vmem:[%s2 + $0x6d8] sm:$0xff]
    %v297 = vld [vmem:[%s2 + $0x6e0] sm:$0xff]
    %v298 = vld [vmem:[%s2 + $0x6e8] sm:$0xff]
    %v299 = vld [vmem:[%s2 + $0x6f0] sm:$0xff]
    %v300 = vld [vmem:[%s2 + $0x6f8] sm:$0xff]
    %v301 = vld [vmem:[%s2 + $0x700] sm:$0xff]
    %v302 = vld [vmem:[%s2 + $0x708] sm:$0xff]
    %v303 = vld [vmem:[%s2 + $0x710] sm:$0xff]
    %v304 = vld [vmem:[%s2 + $0x718] sm:$0xff]
    %v305 = vld [vmem:[%s2 + $0x720] sm:$0xff]
    %v306 = vld [vmem:[%s2 + $0x728] sm:$0xff]
    %v307 = vld [vmem:[%s2 + $0x730] sm:$0xff]
    %v308 = vld [vmem:[%s2 + $0x738] sm:$0xff]
    %v309 = vld [vmem:[%s2 + $0x740] sm:$0xff]
    %v310 = vld [vmem:[%s2 + $0x748] sm:$0xff]
    %v311 = vld [vmem:[%s2 + $0x750] sm:$0xff]
    %v312 = vld [vmem:[%s2 + $0x758] sm:$0xff]
    %v313 = vld [vmem:[%s2 + $0x760] sm:$0xff]
    %v314 = vld [vmem:[%s2 + $0x768] sm:$0xff]
    %v315 = vld [vmem:[%s2 + $0x770] sm:$0xff]
    %v316 = vld [vmem:[%s2 + $0x778] sm:$0xff]
    %v317 = vld [vmem:[%s2 + $0x780] sm:$0xff]
    %v318 = vld [vmem:[%s2 + $0x788] sm:$0xff]
    %v319 = vld [vmem:[%s2 + $0x790] sm:$0xff]
    %v320 = vld [vmem:[%s2 + $0x798] sm:$0xff]
    %v321 = vld [vmem:[%s2 + $0x7a0] sm:$0x11]
    %v322 = vld [vmem:[%s2 + $0x7a8] sm:$0x11]
    %v323 = vld [vmem:[%s3] sm:$0xf]
    %v325 = vlaneseq
    %v326 = vshrl.u32 %v325, 7
    %v327 = vsub.s32 0, %v326
    %v328 = vrot.slane %v323, %v327
    %v329 = vlaneseq
    %v330 = vshrl.u32 %v329, 7
    %v331 = vsub.s32 1, %v330
    %v332 = vrot.slane %v323, %v331
    %v333 = vlaneseq
    %v334 = vshrl.u32 %v333, 7
    %v335 = vsub.s32 2, %v334
    %v336 = vrot.slane %v323, %v335
    %v337 = vlaneseq
    %v338 = vshrl.u32 %v337, 7
    %v339 = vsub.s32 3, %v338
    %v340 = vrot.slane %v323, %v339
    %v591 = vunpack.c.l.b16 %v77
    %v592 = vunpack.c.h.b16 %v77
    %v593 = vunpack.c.l.b16 %v78
    %v594 = vunpack.c.h.b16 %v78
    %v595 = vunpack.c.l.b16 %v79
    %v596 = vunpack.c.h.b16 %v79
    %v597 = vunpack.c.l.b16 %v80
    %v598 = vunpack.c.h.b16 %v80
    %v599 = vunpack.c.l.b16 %v81
    %v600 = vunpack.c.h.b16 %v81
    %v601 = vunpack.c.l.b16 %v82
    %v602 = vunpack.c.h.b16 %v82
    %v603 = vunpack.c.l.b16 %v83
    %v604 = vunpack.c.h.b16 %v83
    %v605 = vunpack.c.l.b16 %v84
    %v606 = vunpack.c.h.b16 %v84
    %v607 = vunpack.c.l.b16 %v85
    %v608 = vunpack.c.h.b16 %v85
    %v609 = vunpack.c.l.b16 %v86
    %v610 = vunpack.c.h.b16 %v86
    %v611 = vunpack.c.l.b16 %v87
    %v612 = vunpack.c.h.b16 %v87
    %v613 = vunpack.c.l.b16 %v88
    %v614 = vunpack.c.h.b16 %v88
    %v615 = vunpack.c.l.b16 %v89
    %v616 = vunpack.c.h.b16 %v89
    %v617 = vunpack.c.l.b16 %v90
    %v618 = vunpack.c.h.b16 %v90
    %v619 = vunpack.c.l.b16 %v91
    %v620 = vunpack.c.h.b16 %v91
    %v621 = vunpack.c.l.b16 %v92
    %v622 = vunpack.c.h.b16 %v92
    %v623 = vunpack.c.l.b16 %v93
    %v624 = vunpack.c.h.b16 %v93
    %v625 = vunpack.c.l.b16 %v94
    %v626 = vunpack.c.h.b16 %v94
    %v627 = vunpack.c.l.b16 %v95
    %v628 = vunpack.c.h.b16 %v95
    %v629 = vunpack.c.l.b16 %v96
    %v630 = vunpack.c.h.b16 %v96
    %v631 = vunpack.c.l.b16 %v97
    %v632 = vunpack.c.h.b16 %v97
    %v633 = vunpack.c.l.b16 %v98
    %v634 = vunpack.c.h.b16 %v98
    %v635 = vunpack.c.l.b16 %v99
    %v636 = vunpack.c.h.b16 %v99
    %v637 = vunpack.c.l.b16 %v100
    %v638 = vunpack.c.h.b16 %v100
    %v639 = vunpack.c.l.b16 %v101
    %v640 = vunpack.c.h.b16 %v101
    %v641 = vunpack.c.l.b16 %v102
    %v642 = vunpack.c.h.b16 %v102
    %v643 = vunpack.c.l.b16 %v103
    %v644 = vunpack.c.h.b16 %v103
    %v645 = vunpack.c.l.b16 %v104
    %v646 = vunpack.c.h.b16 %v104
    %v647 = vunpack.c.l.b16 %v105
    %v648 = vunpack.c.h.b16 %v105
    %v649 = vunpack.c.l.b16 %v106
    %v650 = vunpack.c.h.b16 %v106
    %v651 = vunpack.c.l.b16 %v107
    %v652 = vunpack.c.h.b16 %v107
    %v653 = vunpack.c.l.b16 %v108
    %v654 = vunpack.c.h.b16 %v108
    %v655 = vunpack.c.l.b16 %v109
    %v656 = vunpack.c.h.b16 %v109
    %v657 = vunpack.c.l.b16 %v110
    %v658 = vunpack.c.h.b16 %v110
    %v659 = vunpack.c.l.b16 %v111
    %v660 = vunpack.c.h.b16 %v111
    %v661 = vunpack.c.l.b16 %v112
    %v662 = vunpack.c.h.b16 %v112
    %v663 = vunpack.c.l.b16 %v113
    %v664 = vunpack.c.h.b16 %v113
    %v665 = vunpack.c.l.b16 %v114
    %v666 = vunpack.c.h.b16 %v114
    %v667 = vunpack.c.l.b16 %v115
    %v668 = vunpack.c.h.b16 %v115
    %v669 = vunpack.c.l.b16 %v116
    %v670 = vunpack.c.h.b16 %v116
    %v671 = vunpack.c.l.b16 %v117
    %v672 = vunpack.c.h.b16 %v117
    %v673 = vunpack.c.l.b16 %v118
    %v674 = vunpack.c.h.b16 %v118
    %v675 = vunpack.c.l.b16 %v119
    %v676 = vunpack.c.h.b16 %v119
    %v677 = vunpack.c.l.b16 %v120
    %v678 = vunpack.c.h.b16 %v120
    %v679 = vunpack.c.l.b16 %v121
    %v680 = vunpack.c.h.b16 %v121
    %v681 = vunpack.c.l.b16 %v122
    %v682 = vunpack.c.h.b16 %v122
    %v683 = vunpack.c.l.b16 %v123
    %v684 = vunpack.c.h.b16 %v123
    %v685 = vunpack.c.l.b16 %v124
    %v686 = vunpack.c.h.b16 %v124
    %v687 = vunpack.c.l.b16 %v125
    %v688 = vunpack.c.h.b16 %v125
    %v689 = vunpack.c.l.b16 %v126
    %v690 = vunpack.c.h.b16 %v126
    %v691 = vunpack.c.l.b16 %v127
    %v692 = vunpack.c.h.b16 %v127
    %v693 = vunpack.c.l.b16 %v128
    %v694 = vunpack.c.h.b16 %v128
    %v695 = vunpack.c.l.b16 %v129
    %v696 = vunpack.c.h.b16 %v129
    %v697 = vunpack.c.l.b16 %v130
    %v698 = vunpack.c.h.b16 %v130
    %v699 = vunpack.c.l.b16 %v131
    %v700 = vunpack.c.h.b16 %v131
    %v701 = vunpack.c.l.b16 %v132
    %v702 = vunpack.c.h.b16 %v132
    %v703 = vunpack.c.l.b16 %v133
    %v704 = vunpack.c.h.b16 %v133
    %v705 = vunpack.c.l.b16 %v134
    %v706 = vunpack.c.h.b16 %v134
    %v707 = vunpack.c.l.b16 %v135
    %v708 = vunpack.c.h.b16 %v135
    %v709 = vunpack.c.l.b16 %v136
    %v710 = vunpack.c.h.b16 %v136
    %v711 = vunpack.c.l.b16 %v137
    %v712 = vunpack.c.h.b16 %v137
    %v713 = vunpack.c.l.b16 %v138
    %v714 = vunpack.c.h.b16 %v138
    %v715 = vunpack.c.l.b16 %v139
    %v716 = vunpack.c.h.b16 %v139
    %v717 = vunpack.c.l.b16 %v140
    %v718 = vunpack.c.h.b16 %v140
    %v719 = vunpack.c.l.b16 %v141
    %v720 = vunpack.c.h.b16 %v141
    %v721 = vunpack.c.l.b16 %v142
    %v722 = vunpack.c.h.b16 %v142
    %v723 = vunpack.c.l.b16 %v143
    %v724 = vunpack.c.h.b16 %v143
    %v725 = vunpack.c.l.b16 %v144
    %v726 = vunpack.c.h.b16 %v144
    %v727 = vunpack.c.l.b16 %v145
    %v728 = vunpack.c.h.b16 %v145
    %v729 = vunpack.c.l.b16 %v146
    %v730 = vunpack.c.h.b16 %v146
    %v731 = vunpack.c.l.b16 %v147
    %v732 = vunpack.c.h.b16 %v147
    %v733 = vunpack.c.l.b16 %v148
    %v734 = vunpack.c.h.b16 %v148
    %v735 = vunpack.c.l.b16 %v149
    %v736 = vunpack.c.h.b16 %v149
    %v737 = vunpack.c.l.b16 %v150
    %v738 = vunpack.c.h.b16 %v150
    %v739 = vunpack.c.l.b16 %v151
    %v740 = vunpack.c.h.b16 %v151
    %v741 = vunpack.c.l.b16 %v152
    %v742 = vunpack.c.h.b16 %v152
    %v743 = vunpack.c.l.b16 %v153
    %v744 = vunpack.c.h.b16 %v153
    %v745 = vunpack.c.l.b16 %v154
    %v746 = vunpack.c.h.b16 %v154
    %v747 = vunpack.c.l.b16 %v155
    %v748 = vunpack.c.h.b16 %v155
    %v749 = vunpack.c.l.b16 %v156
    %v750 = vunpack.c.h.b16 %v156
    %v751 = vunpack.c.l.b16 %v157
    %v752 = vunpack.c.h.b16 %v157
    %v753 = vunpack.c.l.b16 %v158
    %v754 = vunpack.c.h.b16 %v158
    %v755 = vunpack.c.l.b16 %v159
    %v756 = vunpack.c.h.b16 %v159
    %v757 = vunpack.c.l.b16 %v160
    %v758 = vunpack.c.h.b16 %v160
    %v759 = vunpack.c.l.b16 %v161
    %v760 = vunpack.c.h.b16 %v161
    %v761 = vunpack.c.l.b16 %v162
    %v762 = vunpack.c.h.b16 %v162
    %v763 = vunpack.c.l.b16 %v163
    %v764 = vunpack.c.h.b16 %v163
    %v765 = vunpack.c.l.b16 %v164
    %v766 = vunpack.c.h.b16 %v164
    %v767 = vunpack.c.l.b16 %v165
    %v768 = vunpack.c.h.b16 %v165
    %v769 = vunpack.c.l.b16 %v166
    %v770 = vunpack.c.h.b16 %v166
    %v771 = vunpack.c.l.b16 %v167
    %v772 = vunpack.c.h.b16 %v167
    %v773 = vunpack.c.l.b16 %v168
    %v774 = vunpack.c.h.b16 %v168
    %v775 = vunpack.c.l.b16 %v169
    %v776 = vunpack.c.h.b16 %v169
    %v777 = vunpack.c.l.b16 %v170
    %v778 = vunpack.c.h.b16 %v170
    %v779 = vunpack.c.l.b16 %v171
    %v780 = vunpack.c.h.b16 %v171
    %v781 = vunpack.c.l.b16 %v172
    %v782 = vunpack.c.h.b16 %v172
    %v783 = vunpack.c.l.b16 %v173
    %v784 = vunpack.c.h.b16 %v173
    %v785 = vunpack.c.l.b16 %v174
    %v786 = vunpack.c.h.b16 %v174
    %v787 = vunpack.c.l.b16 %v175
    %v788 = vunpack.c.h.b16 %v175
    %v789 = vunpack.c.l.b16 %v176
    %v790 = vunpack.c.h.b16 %v176
    %v791 = vunpack.c.l.b16 %v177
    %v792 = vunpack.c.h.b16 %v177
    %v793 = vunpack.c.l.b16 %v178
    %v794 = vunpack.c.h.b16 %v178
    %v795 = vunpack.c.l.b16 %v179
    %v796 = vunpack.c.h.b16 %v179
    %v797 = vunpack.c.l.b16 %v180
    %v798 = vunpack.c.h.b16 %v180
    %v799 = vunpack.c.l.b16 %v181
    %v800 = vunpack.c.h.b16 %v181
    %v801 = vunpack.c.l.b16 %v182
    %v802 = vunpack.c.h.b16 %v182
    %v803 = vunpack.c.l.b16 %v183
    %v804 = vunpack.c.h.b16 %v183
    %v805 = vunpack.c.l.b16 %v184
    %v806 = vunpack.c.h.b16 %v184
    %v807 = vunpack.c.l.b16 %v185
    %v808 = vunpack.c.h.b16 %v185
    %v809 = vunpack.c.l.b16 %v186
    %v810 = vunpack.c.h.b16 %v186
    %v811 = vunpack.c.l.b16 %v187
    %v812 = vunpack.c.h.b16 %v187
    %v813 = vunpack.c.l.b16 %v188
    %v814 = vunpack.c.h.b16 %v188
    %v815 = vunpack.c.l.b16 %v189
    %v816 = vunpack.c.h.b16 %v189
    %v817 = vunpack.c.l.b16 %v190
    %v818 = vunpack.c.h.b16 %v190
    %v819 = vunpack.c.l.b16 %v191
    %v820 = vunpack.c.h.b16 %v191
    %v821 = vunpack.c.l.b16 %v192
    %v822 = vunpack.c.h.b16 %v192
    %v823 = vunpack.c.l.b16 %v193
    %v824 = vunpack.c.h.b16 %v193
    %v825 = vunpack.c.l.b16 %v194
    %v826 = vunpack.c.h.b16 %v194
    %v827 = vunpack.c.l.b16 %v195
    %v828 = vunpack.c.h.b16 %v195
    %v829 = vunpack.c.l.b16 %v196
    %v830 = vunpack.c.h.b16 %v196
    %v831 = vunpack.c.l.b16 %v197
    %v832 = vunpack.c.h.b16 %v197
    %v833 = vunpack.c.l.b16 %v198
    %v834 = vunpack.c.h.b16 %v198
    %v835 = vunpack.c.l.b16 %v199
    %v836 = vunpack.c.h.b16 %v199
    %v837 = vunpack.c.l.b16 %v200
    %v838 = vunpack.c.h.b16 %v200
    %v839 = vunpack.c.l.b16 %v201
    %v840 = vunpack.c.h.b16 %v201
    %v841 = vunpack.c.l.b16 %v202
    %v842 = vunpack.c.h.b16 %v202
    %v843 = vunpack.c.l.b16 %v203
    %v844 = vunpack.c.h.b16 %v203
    %v845 = vunpack.c.l.b16 %v204
    %v846 = vunpack.c.h.b16 %v204
    %v847 = vunpack.c.l.b16 %v205
    %v848 = vunpack.c.h.b16 %v205
    %v849 = vunpack.c.l.b16 %v206
    %v850 = vunpack.c.h.b16 %v206
    %v851 = vunpack.c.l.b16 %v207
    %v852 = vunpack.c.h.b16 %v207
    %v853 = vunpack.c.l.b16 %v208
    %v854 = vunpack.c.h.b16 %v208
    %v855 = vunpack.c.l.b16 %v209
    %v856 = vunpack.c.h.b16 %v209
    %v857 = vunpack.c.l.b16 %v210
    %v858 = vunpack.c.h.b16 %v210
    %v859 = vunpack.c.l.b16 %v211
    %v860 = vunpack.c.h.b16 %v211
    %v861 = vunpack.c.l.b16 %v212
    %v862 = vunpack.c.h.b16 %v212
    %v863 = vunpack.c.l.b16 %v213
    %v864 = vunpack.c.h.b16 %v213
    %v865 = vunpack.c.l.b16 %v214
    %v866 = vunpack.c.h.b16 %v214
    %v867 = vunpack.c.l.b16 %v215
    %v868 = vunpack.c.h.b16 %v215
    %v869 = vunpack.c.l.b16 %v216
    %v870 = vunpack.c.h.b16 %v216
    %v871 = vunpack.c.l.b16 %v217
    %v872 = vunpack.c.h.b16 %v217
    %v873 = vunpack.c.l.b16 %v218
    %v874 = vunpack.c.h.b16 %v218
    %v875 = vunpack.c.l.b16 %v219
    %v876 = vunpack.c.h.b16 %v219
    %v877 = vunpack.c.l.b16 %v220
    %v878 = vunpack.c.h.b16 %v220
    %v879 = vunpack.c.l.b16 %v221
    %v880 = vunpack.c.h.b16 %v221
    %v881 = vunpack.c.l.b16 %v222
    %v882 = vunpack.c.h.b16 %v222
    %v883 = vunpack.c.l.b16 %v223
    %v884 = vunpack.c.h.b16 %v223
    %v885 = vunpack.c.l.b16 %v224
    %v886 = vunpack.c.h.b16 %v224
    %v887 = vunpack.c.l.b16 %v225
    %v888 = vunpack.c.h.b16 %v225
    %v889 = vunpack.c.l.b16 %v226
    %v890 = vunpack.c.h.b16 %v226
    %v891 = vunpack.c.l.b16 %v227
    %v892 = vunpack.c.h.b16 %v227
    %v893 = vunpack.c.l.b16 %v228
    %v894 = vunpack.c.h.b16 %v228
    %v895 = vunpack.c.l.b16 %v229
    %v896 = vunpack.c.h.b16 %v229
    %v897 = vunpack.c.l.b16 %v230
    %v898 = vunpack.c.h.b16 %v230
    %v899 = vunpack.c.l.b16 %v231
    %v900 = vunpack.c.h.b16 %v231
    %v901 = vunpack.c.l.b16 %v232
    %v902 = vunpack.c.h.b16 %v232
    %v903 = vunpack.c.l.b16 %v233
    %v904 = vunpack.c.h.b16 %v233
    %v905 = vunpack.c.l.b16 %v234
    %v906 = vunpack.c.h.b16 %v234
    %v907 = vunpack.c.l.b16 %v235
    %v908 = vunpack.c.h.b16 %v235
    %v909 = vunpack.c.l.b16 %v236
    %v910 = vunpack.c.h.b16 %v236
    %v911 = vunpack.c.l.b16 %v237
    %v912 = vunpack.c.h.b16 %v237
    %v913 = vunpack.c.l.b16 %v238
    %v914 = vunpack.c.h.b16 %v238
    %v915 = vunpack.c.l.b16 %v239
    %v916 = vunpack.c.h.b16 %v239
    %v917 = vunpack.c.l.b16 %v240
    %v918 = vunpack.c.h.b16 %v240
    %v919 = vunpack.c.l.b16 %v241
    %v920 = vunpack.c.h.b16 %v241
    %v921 = vunpack.c.l.b16 %v242
    %v922 = vunpack.c.h.b16 %v242
    %v923 = vunpack.c.l.b16 %v243
    %v924 = vunpack.c.h.b16 %v243
    %v925 = vunpack.c.l.b16 %v244
    %v926 = vunpack.c.h.b16 %v244
    %v927 = vunpack.c.l.b16 %v245
    %v928 = vunpack.c.h.b16 %v245
    %v929 = vunpack.c.l.b16 %v246
    %v930 = vunpack.c.h.b16 %v246
    %v931 = vunpack.c.l.b16 %v247
    %v932 = vunpack.c.h.b16 %v247
    %v933 = vunpack.c.l.b16 %v248
    %v934 = vunpack.c.h.b16 %v248
    %v935 = vunpack.c.l.b16 %v249
    %v936 = vunpack.c.h.b16 %v249
    %v937 = vunpack.c.l.b16 %v250
    %v938 = vunpack.c.h.b16 %v250
    %v939 = vunpack.c.l.b16 %v251
    %v940 = vunpack.c.h.b16 %v251
    %v941 = vunpack.c.l.b16 %v252
    %v942 = vunpack.c.h.b16 %v252
    %v943 = vunpack.c.l.b16 %v253
    %v944 = vunpack.c.h.b16 %v253
    %v945 = vunpack.c.l.b16 %v254
    %v946 = vunpack.c.h.b16 %v254
    %v947 = vunpack.c.l.b16 %v255
    %v948 = vunpack.c.h.b16 %v255
    %v949 = vunpack.c.l.b16 %v256
    %v950 = vunpack.c.h.b16 %v256
    %v951 = vunpack.c.l.b16 %v257
    %v952 = vunpack.c.h.b16 %v257
    %v953 = vunpack.c.l.b16 %v258
    %v954 = vunpack.c.h.b16 %v258
    %v955 = vunpack.c.l.b16 %v259
    %v956 = vunpack.c.h.b16 %v259
    %v957 = vunpack.c.l.b16 %v260
    %v958 = vunpack.c.h.b16 %v260
    %v959 = vunpack.c.l.b16 %v261
    %v960 = vunpack.c.h.b16 %v261
    %v961 = vunpack.c.l.b16 %v262
    %v962 = vunpack.c.h.b16 %v262
    %v963 = vunpack.c.l.b16 %v263
    %v964 = vunpack.c.h.b16 %v263
    %v965 = vunpack.c.l.b16 %v264
    %v966 = vunpack.c.h.b16 %v264
    %v967 = vunpack.c.l.b16 %v265
    %v968 = vunpack.c.h.b16 %v265
    %v969 = vunpack.c.l.b16 %v266
    %v970 = vunpack.c.h.b16 %v266
    %v971 = vunpack.c.l.b16 %v267
    %v972 = vunpack.c.h.b16 %v267
    %v973 = vunpack.c.l.b16 %v268
    %v974 = vunpack.c.h.b16 %v268
    %v975 = vunpack.c.l.b16 %v269
    %v976 = vunpack.c.h.b16 %v269
    %v977 = vunpack.c.l.b16 %v270
    %v978 = vunpack.c.h.b16 %v270
    %v979 = vunpack.c.l.b16 %v271
    %v980 = vunpack.c.h.b16 %v271
    %v981 = vunpack.c.l.b16 %v272
    %v982 = vunpack.c.h.b16 %v272
    %v983 = vunpack.c.l.b16 %v273
    %v984 = vunpack.c.h.b16 %v273
    %v985 = vunpack.c.l.b16 %v274
    %v986 = vunpack.c.h.b16 %v274
    %v987 = vunpack.c.l.b16 %v275
    %v988 = vunpack.c.h.b16 %v275
    %v989 = vunpack.c.l.b16 %v276
    %v990 = vunpack.c.h.b16 %v276
    %v991 = vunpack.c.l.b16 %v277
    %v992 = vunpack.c.h.b16 %v277
    %v993 = vunpack.c.l.b16 %v278
    %v994 = vunpack.c.h.b16 %v278
    %v995 = vunpack.c.l.b16 %v279
    %v996 = vunpack.c.h.b16 %v279
    %v997 = vunpack.c.l.b16 %v280
    %v998 = vunpack.c.h.b16 %v280
    %v999 = vunpack.c.l.b16 %v281
    %v1000 = vunpack.c.h.b16 %v281
    %v1001 = vunpack.c.l.b16 %v282
    %v1002 = vunpack.c.h.b16 %v282
    %v1003 = vunpack.c.l.b16 %v283
    %v1004 = vunpack.c.h.b16 %v283
    %v1005 = vunpack.c.l.b16 %v284
    %v1006 = vunpack.c.h.b16 %v284
    %v1007 = vunpack.c.l.b16 %v285
    %v1008 = vunpack.c.h.b16 %v285
    %v1009 = vunpack.c.l.b16 %v286
    %v1010 = vunpack.c.h.b16 %v286
    %v1011 = vunpack.c.l.b16 %v287
    %v1012 = vunpack.c.h.b16 %v287
    %v1013 = vunpack.c.l.b16 %v288
    %v1014 = vunpack.c.h.b16 %v288
    %v1015 = vunpack.c.l.b16 %v289
    %v1016 = vunpack.c.h.b16 %v289
    %v1017 = vunpack.c.l.b16 %v290
    %v1018 = vunpack.c.h.b16 %v290
    %v1019 = vunpack.c.l.b16 %v291
    %v1020 = vunpack.c.h.b16 %v291
    %v1021 = vunpack.c.l.b16 %v292
    %v1022 = vunpack.c.h.b16 %v292
    %v1023 = vunpack.c.l.b16 %v293
    %v1024 = vunpack.c.h.b16 %v293
    %v1025 = vunpack.c.l.b16 %v294
    %v1026 = vunpack.c.h.b16 %v294
    %v1027 = vunpack.c.l.b16 %v295
    %v1028 = vunpack.c.h.b16 %v295
    %v1029 = vunpack.c.l.b16 %v296
    %v1030 = vunpack.c.h.b16 %v296
    %v1031 = vunpack.c.l.b16 %v297
    %v1032 = vunpack.c.h.b16 %v297
    %v1033 = vunpack.c.l.b16 %v298
    %v1034 = vunpack.c.h.b16 %v298
    %v1035 = vunpack.c.l.b16 %v299
    %v1036 = vunpack.c.h.b16 %v299
    %v1037 = vunpack.c.l.b16 %v300
    %v1038 = vunpack.c.h.b16 %v300
    %v1039 = vunpack.c.l.b16 %v301
    %v1040 = vunpack.c.h.b16 %v301
    %v1041 = vunpack.c.l.b16 %v302
    %v1042 = vunpack.c.h.b16 %v302
    %v1043 = vunpack.c.l.b16 %v303
    %v1044 = vunpack.c.h.b16 %v303
    %v1045 = vunpack.c.l.b16 %v304
    %v1046 = vunpack.c.h.b16 %v304
    %v1047 = vunpack.c.l.b16 %v305
    %v1048 = vunpack.c.h.b16 %v305
    %v1049 = vunpack.c.l.b16 %v306
    %v1050 = vunpack.c.h.b16 %v306
    %v1051 = vunpack.c.l.b16 %v307
    %v1052 = vunpack.c.h.b16 %v307
    %v1053 = vunpack.c.l.b16 %v308
    %v1054 = vunpack.c.h.b16 %v308
    %v1055 = vunpack.c.l.b16 %v309
    %v1056 = vunpack.c.h.b16 %v309
    %v1057 = vunpack.c.l.b16 %v310
    %v1058 = vunpack.c.h.b16 %v310
    %v1059 = vunpack.c.l.b16 %v311
    %v1060 = vunpack.c.h.b16 %v311
    %v1061 = vunpack.c.l.b16 %v312
    %v1062 = vunpack.c.h.b16 %v312
    %v1063 = vunpack.c.l.b16 %v313
    %v1064 = vunpack.c.h.b16 %v313
    %v1065 = vunpack.c.l.b16 %v314
    %v1066 = vunpack.c.h.b16 %v314
    %v1067 = vunpack.c.l.b16 %v315
    %v1068 = vunpack.c.h.b16 %v315
    %v1069 = vunpack.c.l.b16 %v316
    %v1070 = vunpack.c.h.b16 %v316
    %v1071 = vunpack.c.l.b16 %v317
    %v1072 = vunpack.c.h.b16 %v317
    %v1073 = vunpack.c.l.b16 %v318
    %v1074 = vunpack.c.h.b16 %v318
    %v1075 = vunpack.c.l.b16 %v319
    %v1076 = vunpack.c.h.b16 %v319
    %v1077 = vunpack.c.l.b16 %v320
    %v1078 = vunpack.c.h.b16 %v320
    %v1079 = vunpack.c.l.b16 %v321
    %v1080 = vunpack.c.h.b16 %v321
    %v1081 = vunpack.c.l.b16 %v322
    %v1082 = vunpack.c.h.b16 %v322
    %v1083 = vpack.c.b16 %v595, %v591
    %v1084 = vpack.c.b16 %v596, %v592
    %v1085 = vpack.c.b16 %v597, %v593
    %v1086 = vpack.c.b16 %v598, %v594
    %v1087 = vpack.c.b16 %v603, %v599
    %v1088 = vpack.c.b16 %v604, %v600
    %v1089 = vpack.c.b16 %v605, %v601
    %v1090 = vpack.c.b16 %v606, %v602
    %v1091 = vpack.c.b16 %v611, %v607
    %v1092 = vpack.c.b16 %v612, %v608
    %v1093 = vpack.c.b16 %v613, %v609
    %v1094 = vpack.c.b16 %v614, %v610
    %v1095 = vpack.c.b16 %v619, %v615
    %v1096 = vpack.c.b16 %v620, %v616
    %v1097 = vpack.c.b16 %v621, %v617
    %v1098 = vpack.c.b16 %v622, %v618
    %v1099 = vpack.c.b16 %v627, %v623
    %v1100 = vpack.c.b16 %v628, %v624
    %v1101 = vpack.c.b16 %v629, %v625
    %v1102 = vpack.c.b16 %v630, %v626
    %v1103 = vpack.c.b16 %v635, %v631
    %v1104 = vpack.c.b16 %v636, %v632
    %v1105 = vpack.c.b16 %v637, %v633
    %v1106 = vpack.c.b16 %v638, %v634
    %v1107 = vpack.c.b16 %v643, %v639
    %v1108 = vpack.c.b16 %v644, %v640
    %v1109 = vpack.c.b16 %v645, %v641
    %v1110 = vpack.c.b16 %v646, %v642
    %v1111 = vpack.c.b16 %v651, %v647
    %v1112 = vpack.c.b16 %v652, %v648
    %v1113 = vpack.c.b16 %v653, %v649
    %v1114 = vpack.c.b16 %v654, %v650
    %v1115 = vpack.c.b16 %v659, %v655
    %v1116 = vpack.c.b16 %v660, %v656
    %v1117 = vpack.c.b16 %v661, %v657
    %v1118 = vpack.c.b16 %v662, %v658
    %v1119 = vpack.c.b16 %v667, %v663
    %v1120 = vpack.c.b16 %v668, %v664
    %v1121 = vpack.c.b16 %v669, %v665
    %v1122 = vpack.c.b16 %v670, %v666
    %v1123 = vpack.c.b16 %v675, %v671
    %v1124 = vpack.c.b16 %v676, %v672
    %v1125 = vpack.c.b16 %v677, %v673
    %v1126 = vpack.c.b16 %v678, %v674
    %v1127 = vpack.c.b16 %v683, %v679
    %v1128 = vpack.c.b16 %v684, %v680
    %v1129 = vpack.c.b16 %v685, %v681
    %v1130 = vpack.c.b16 %v686, %v682
    %v1131 = vpack.c.b16 %v691, %v687
    %v1132 = vpack.c.b16 %v692, %v688
    %v1133 = vpack.c.b16 %v693, %v689
    %v1134 = vpack.c.b16 %v694, %v690
    %v1135 = vpack.c.b16 %v699, %v695
    %v1136 = vpack.c.b16 %v700, %v696
    %v1137 = vpack.c.b16 %v701, %v697
    %v1138 = vpack.c.b16 %v702, %v698
    %v1139 = vpack.c.b16 %v707, %v703
    %v1140 = vpack.c.b16 %v708, %v704
    %v1141 = vpack.c.b16 %v709, %v705
    %v1142 = vpack.c.b16 %v710, %v706
    %v1143 = vpack.c.b16 %v715, %v711
    %v1144 = vpack.c.b16 %v716, %v712
    %v1145 = vpack.c.b16 %v717, %v713
    %v1146 = vpack.c.b16 %v718, %v714
    %v1147 = vpack.c.b16 %v723, %v719
    %v1148 = vpack.c.b16 %v724, %v720
    %v1149 = vpack.c.b16 %v725, %v721
    %v1150 = vpack.c.b16 %v726, %v722
    %v1151 = vpack.c.b16 %v731, %v727
    %v1152 = vpack.c.b16 %v732, %v728
    %v1153 = vpack.c.b16 %v733, %v729
    %v1154 = vpack.c.b16 %v734, %v730
    %v1155 = vpack.c.b16 %v739, %v735
    %v1156 = vpack.c.b16 %v740, %v736
    %v1157 = vpack.c.b16 %v741, %v737
    %v1158 = vpack.c.b16 %v742, %v738
    %v1159 = vpack.c.b16 %v747, %v743
    %v1160 = vpack.c.b16 %v748, %v744
    %v1161 = vpack.c.b16 %v749, %v745
    %v1162 = vpack.c.b16 %v750, %v746
    %v1163 = vpack.c.b16 %v755, %v751
    %v1164 = vpack.c.b16 %v756, %v752
    %v1165 = vpack.c.b16 %v757, %v753
    %v1166 = vpack.c.b16 %v758, %v754
    %v1167 = vpack.c.b16 %v763, %v759
    %v1168 = vpack.c.b16 %v764, %v760
    %v1169 = vpack.c.b16 %v765, %v761
    %v1170 = vpack.c.b16 %v766, %v762
    %v1171 = vpack.c.b16 %v771, %v767
    %v1172 = vpack.c.b16 %v772, %v768
    %v1173 = vpack.c.b16 %v773, %v769
    %v1174 = vpack.c.b16 %v774, %v770
    %v1175 = vpack.c.b16 %v779, %v775
    %v1176 = vpack.c.b16 %v780, %v776
    %v1177 = vpack.c.b16 %v781, %v777
    %v1178 = vpack.c.b16 %v782, %v778
    %v1179 = vpack.c.b16 %v787, %v783
    %v1180 = vpack.c.b16 %v788, %v784
    %v1181 = vpack.c.b16 %v789, %v785
    %v1182 = vpack.c.b16 %v790, %v786
    %v1183 = vpack.c.b16 %v795, %v791
    %v1184 = vpack.c.b16 %v796, %v792
    %v1185 = vpack.c.b16 %v797, %v793
    %v1186 = vpack.c.b16 %v798, %v794
    %v1187 = vpack.c.b16 %v803, %v799
    %v1188 = vpack.c.b16 %v804, %v800
    %v1189 = vpack.c.b16 %v805, %v801
    %v1190 = vpack.c.b16 %v806, %v802
    %v1191 = vpack.c.b16 %v811, %v807
    %v1192 = vpack.c.b16 %v812, %v808
    %v1193 = vpack.c.b16 %v813, %v809
    %v1194 = vpack.c.b16 %v814, %v810
    %v1195 = vpack.c.b16 %v819, %v815
    %v1196 = vpack.c.b16 %v820, %v816
    %v1197 = vpack.c.b16 %v821, %v817
    %v1198 = vpack.c.b16 %v822, %v818
    %v1199 = vpack.c.b16 %v827, %v823
    %v1200 = vpack.c.b16 %v828, %v824
    %v1201 = vpack.c.b16 %v829, %v825
    %v1202 = vpack.c.b16 %v830, %v826
    %v1203 = vpack.c.b16 %v835, %v831
    %v1204 = vpack.c.b16 %v836, %v832
    %v1205 = vpack.c.b16 %v837, %v833
    %v1206 = vpack.c.b16 %v838, %v834
    %v1207 = vpack.c.b16 %v843, %v839
    %v1208 = vpack.c.b16 %v844, %v840
    %v1209 = vpack.c.b16 %v845, %v841
    %v1210 = vpack.c.b16 %v846, %v842
    %v1211 = vpack.c.b16 %v851, %v847
    %v1212 = vpack.c.b16 %v852, %v848
    %v1213 = vpack.c.b16 %v853, %v849
    %v1214 = vpack.c.b16 %v854, %v850
    %v1215 = vpack.c.b16 %v859, %v855
    %v1216 = vpack.c.b16 %v860, %v856
    %v1217 = vpack.c.b16 %v861, %v857
    %v1218 = vpack.c.b16 %v862, %v858
    %v1219 = vpack.c.b16 %v867, %v863
    %v1220 = vpack.c.b16 %v868, %v864
    %v1221 = vpack.c.b16 %v869, %v865
    %v1222 = vpack.c.b16 %v870, %v866
    %v1223 = vpack.c.b16 %v875, %v871
    %v1224 = vpack.c.b16 %v876, %v872
    %v1225 = vpack.c.b16 %v877, %v873
    %v1226 = vpack.c.b16 %v878, %v874
    %v1227 = vpack.c.b16 %v883, %v879
    %v1228 = vpack.c.b16 %v884, %v880
    %v1229 = vpack.c.b16 %v885, %v881
    %v1230 = vpack.c.b16 %v886, %v882
    %v1231 = vpack.c.b16 %v891, %v887
    %v1232 = vpack.c.b16 %v892, %v888
    %v1233 = vpack.c.b16 %v893, %v889
    %v1234 = vpack.c.b16 %v894, %v890
    %v1235 = vpack.c.b16 %v899, %v895
    %v1236 = vpack.c.b16 %v900, %v896
    %v1237 = vpack.c.b16 %v901, %v897
    %v1238 = vpack.c.b16 %v902, %v898
    %v1239 = vpack.c.b16 %v907, %v903
    %v1240 = vpack.c.b16 %v908, %v904
    %v1241 = vpack.c.b16 %v909, %v905
    %v1242 = vpack.c.b16 %v910, %v906
    %v1243 = vpack.c.b16 %v915, %v911
    %v1244 = vpack.c.b16 %v916, %v912
    %v1245 = vpack.c.b16 %v917, %v913
    %v1246 = vpack.c.b16 %v918, %v914
    %v1247 = vpack.c.b16 %v923, %v919
    %v1248 = vpack.c.b16 %v924, %v920
    %v1249 = vpack.c.b16 %v925, %v921
    %v1250 = vpack.c.b16 %v926, %v922
    %v1251 = vpack.c.b16 %v931, %v927
    %v1252 = vpack.c.b16 %v932, %v928
    %v1253 = vpack.c.b16 %v933, %v929
    %v1254 = vpack.c.b16 %v934, %v930
    %v1255 = vpack.c.b16 %v939, %v935
    %v1256 = vpack.c.b16 %v940, %v936
    %v1257 = vpack.c.b16 %v941, %v937
    %v1258 = vpack.c.b16 %v942, %v938
    %v1259 = vpack.c.b16 %v947, %v943
    %v1260 = vpack.c.b16 %v948, %v944
    %v1261 = vpack.c.b16 %v949, %v945
    %v1262 = vpack.c.b16 %v950, %v946
    %v1263 = vpack.c.b16 %v955, %v951
    %v1264 = vpack.c.b16 %v956, %v952
    %v1265 = vpack.c.b16 %v957, %v953
    %v1266 = vpack.c.b16 %v958, %v954
    %v1267 = vpack.c.b16 %v963, %v959
    %v1268 = vpack.c.b16 %v964, %v960
    %v1269 = vpack.c.b16 %v965, %v961
    %v1270 = vpack.c.b16 %v966, %v962
    %v1271 = vpack.c.b16 %v971, %v967
    %v1272 = vpack.c.b16 %v972, %v968
    %v1273 = vpack.c.b16 %v973, %v969
    %v1274 = vpack.c.b16 %v974, %v970
    %v1275 = vpack.c.b16 %v979, %v975
    %v1276 = vpack.c.b16 %v980, %v976
    %v1277 = vpack.c.b16 %v981, %v977
    %v1278 = vpack.c.b16 %v982, %v978
    %v1279 = vpack.c.b16 %v987, %v983
    %v1280 = vpack.c.b16 %v988, %v984
    %v1281 = vpack.c.b16 %v989, %v985
    %v1282 = vpack.c.b16 %v990, %v986
    %v1283 = vpack.c.b16 %v995, %v991
    %v1284 = vpack.c.b16 %v996, %v992
    %v1285 = vpack.c.b16 %v997, %v993
    %v1286 = vpack.c.b16 %v998, %v994
    %v1287 = vpack.c.b16 %v1003, %v999
    %v1288 = vpack.c.b16 %v1004, %v1000
    %v1289 = vpack.c.b16 %v1005, %v1001
    %v1290 = vpack.c.b16 %v1006, %v1002
    %v1291 = vpack.c.b16 %v1011, %v1007
    %v1292 = vpack.c.b16 %v1012, %v1008
    %v1293 = vpack.c.b16 %v1013, %v1009
    %v1294 = vpack.c.b16 %v1014, %v1010
    %v1295 = vpack.c.b16 %v1019, %v1015
    %v1296 = vpack.c.b16 %v1020, %v1016
    %v1297 = vpack.c.b16 %v1021, %v1017
    %v1298 = vpack.c.b16 %v1022, %v1018
    %v1299 = vpack.c.b16 %v1027, %v1023
    %v1300 = vpack.c.b16 %v1028, %v1024
    %v1301 = vpack.c.b16 %v1029, %v1025
    %v1302 = vpack.c.b16 %v1030, %v1026
    %v1303 = vpack.c.b16 %v1035, %v1031
    %v1304 = vpack.c.b16 %v1036, %v1032
    %v1305 = vpack.c.b16 %v1037, %v1033
    %v1306 = vpack.c.b16 %v1038, %v1034
    %v1307 = vpack.c.b16 %v1043, %v1039
    %v1308 = vpack.c.b16 %v1044, %v1040
    %v1309 = vpack.c.b16 %v1045, %v1041
    %v1310 = vpack.c.b16 %v1046, %v1042
    %v1311 = vpack.c.b16 %v1051, %v1047
    %v1312 = vpack.c.b16 %v1052, %v1048
    %v1313 = vpack.c.b16 %v1053, %v1049
    %v1314 = vpack.c.b16 %v1054, %v1050
    %v1315 = vpack.c.b16 %v1059, %v1055
    %v1316 = vpack.c.b16 %v1060, %v1056
    %v1317 = vpack.c.b16 %v1061, %v1057
    %v1318 = vpack.c.b16 %v1062, %v1058
    %v1319 = vpack.c.b16 %v1067, %v1063
    %v1320 = vpack.c.b16 %v1068, %v1064
    %v1321 = vpack.c.b16 %v1069, %v1065
    %v1322 = vpack.c.b16 %v1070, %v1066
    %v1323 = vpack.c.b16 %v1075, %v1071
    %v1324 = vpack.c.b16 %v1076, %v1072
    %v1325 = vpack.c.b16 %v1077, %v1073
    %v1326 = vpack.c.b16 %v1078, %v1074
    %v1327 = vpack.c.b16 %v1079, %v1079
    %v1328 = vpack.c.b16 %v1080, %v1080
    %v1329 = vpack.c.b16 %v1081, %v1081
    %v1330 = vpack.c.b16 %v1082, %v1082
    %vm1575 = vcmask 670720
    %v1577 = vsel %vm1575, %v76, 0
    %vm1579 = vcmask 1040384
    %v1581 = vsel %vm1579, %v1327, 0
    %v1584 = vsel %vm1579, %v1328, 0
    %v1587 = vsel %vm1579, %v1329, 0
    %v1590 = vsel %vm1579, %v1330, 0
    %1592 = vmatprep.subr.bf16.mxu0 %v1084
    %1593 = vmatpush1.bf16.msra.mxu0 %v1083
    %1594 = vmatprep.subr.bf16.mxu0 %v1088
    %1595 = vmatpush1.bf16.msra.mxu0 %v1087
    %1596 = vmatprep.subr.bf16.mxu0 %v1092
    %1597 = vmatpush1.bf16.msra.mxu0 %v1091
    %1598 = vmatprep.subr.bf16.mxu0 %v1096
    %1599 = vmatpush1.bf16.msra.mxu0 %v1095
    %1600 = vmatprep.subr.bf16.mxu0 %v1100
    %1601 = vmatpush1.bf16.msra.mxu0 %v1099
    %1602 = vmatprep.subr.bf16.mxu0 %v1104
    %1603 = vmatpush1.bf16.msra.mxu0 %v1103
    %1604 = vmatprep.subr.bf16.mxu0 %v1108
    %1605 = vmatpush1.bf16.msra.mxu0 %v1107
    %1606 = vmatprep.subr.bf16.mxu0 %v1112
    %1607 = vmatpush1.bf16.msra.mxu0 %v1111
    %1608 = vmatprep.subr.bf16.mxu0 %v1116
    %1609 = vmatpush1.bf16.msra.mxu0 %v1115
    %1610 = vmatprep.subr.bf16.mxu0 %v1120
    %1611 = vmatpush1.bf16.msra.mxu0 %v1119
    %1612 = vmatprep.subr.bf16.mxu0 %v1124
    %1613 = vmatpush1.bf16.msra.mxu0 %v1123
    %1614 = vmatprep.subr.bf16.mxu0 %v1128
    %1615 = vmatpush1.bf16.msra.mxu0 %v1127
    %1616 = vmatprep.subr.bf16.mxu0 %v1132
    %1617 = vmatpush1.bf16.msra.mxu0 %v1131
    %1618 = vmatprep.subr.bf16.mxu0 %v1136
    %1619 = vmatpush1.bf16.msra.mxu0 %v1135
    %1620 = vmatprep.subr.bf16.mxu0 %v1140
    %1621 = vmatpush1.bf16.msra.mxu0 %v1139
    %1622 = vmatprep.subr.bf16.mxu0 %v1144
    %1623 = vmatpush1.bf16.msra.mxu0 %v1143
    %1624 = vmatprep.mubr.bf16.mxu0 %v70
    %1625 = vmatmul.mubr.bf16.gmra.mrb[0].mxu0 %v69
    %v1626 = vpop.f32.mrb[0].mxu0
    %v1627 = vadd.f32 %v328, %v1626
    %v1628 = vpop.f32.mrb[0].mxu0
    %v1629 = vadd.f32 %v332, %v1628
    %v1630 = vpop.f32.mrb[0].mxu0
    %v1631 = vadd.f32 %v328, %v1630
    %v1632 = vpop.f32.mrb[0].mxu0
    %v1633 = vadd.f32 %v332, %v1632
    %1634 = vdwg.mxu0
    %1635 = vmatprep.subr.bf16.mxu0 %v1148
    %1636 = vmatpush1.bf16.msra.mxu0 %v1147
    %1637 = vmatprep.subr.bf16.mxu0 %v1152
    %1638 = vmatpush1.bf16.msra.mxu0 %v1151
    %1639 = vmatprep.subr.bf16.mxu0 %v1156
    %1640 = vmatpush1.bf16.msra.mxu0 %v1155
    %1641 = vmatprep.subr.bf16.mxu0 %v1160
    %1642 = vmatpush1.bf16.msra.mxu0 %v1159
    %1643 = vmatprep.subr.bf16.mxu0 %v1164
    %1644 = vmatpush1.bf16.msra.mxu0 %v1163
    %1645 = vmatprep.subr.bf16.mxu0 %v1168
    %1646 = vmatpush1.bf16.msra.mxu0 %v1167
    %1647 = vmatprep.subr.bf16.mxu0 %v1172
    %1648 = vmatpush1.bf16.msra.mxu0 %v1171
    %1649 = vmatprep.subr.bf16.mxu0 %v1176
    %1650 = vmatpush1.bf16.msra.mxu0 %v1175
    %1651 = vmatprep.subr.bf16.mxu0 %v1180
    %1652 = vmatpush1.bf16.msra.mxu0 %v1179
    %1653 = vmatprep.subr.bf16.mxu0 %v1184
    %1654 = vmatpush1.bf16.msra.mxu0 %v1183
    %1655 = vmatprep.subr.bf16.mxu0 %v1188
    %1656 = vmatpush1.bf16.msra.mxu0 %v1187
    %1657 = vmatprep.subr.bf16.mxu0 %v1192
    %1658 = vmatpush1.bf16.msra.mxu0 %v1191
    %1659 = vmatprep.subr.bf16.mxu0 %v1196
    %1660 = vmatpush1.bf16.msra.mxu0 %v1195
    %1661 = vmatprep.subr.bf16.mxu0 %v1200
    %1662 = vmatpush1.bf16.msra.mxu0 %v1199
    %1663 = vmatprep.subr.bf16.mxu0 %v1204
    %1664 = vmatpush1.bf16.msra.mxu0 %v1203
    %1665 = vmatprep.subr.bf16.mxu0 %v1208
    %1666 = vmatpush1.bf16.msra.mxu0 %v1207
    %1667 = vmatprep.mubr.bf16.mxu0 %v72
    %1668 = vmatmul.mubr.bf16.gmra.mrb[0].mxu0 %v71
    %v1669 = vpop.f32.mrb[0].mxu0
    %v1670 = vadd.f32 %v1627, %v1669
    %v1671 = vpop.f32.mrb[0].mxu0
    %v1672 = vadd.f32 %v1629, %v1671
    %v1673 = vpop.f32.mrb[0].mxu0
    %v1674 = vadd.f32 %v1631, %v1673
    %v1675 = vpop.f32.mrb[0].mxu0
    %v1676 = vadd.f32 %v1633, %v1675
    %1677 = vdwg.mxu0
    %1678 = vmatprep.subr.bf16.mxu0 %v1212
    %1679 = vmatpush1.bf16.msra.mxu0 %v1211
    %1680 = vmatprep.subr.bf16.mxu0 %v1216
    %1681 = vmatpush1.bf16.msra.mxu0 %v1215
    %1682 = vmatprep.subr.bf16.mxu0 %v1220
    %1683 = vmatpush1.bf16.msra.mxu0 %v1219
    %1684 = vmatprep.subr.bf16.mxu0 %v1224
    %1685 = vmatpush1.bf16.msra.mxu0 %v1223
    %1686 = vmatprep.subr.bf16.mxu0 %v1228
    %1687 = vmatpush1.bf16.msra.mxu0 %v1227
    %1688 = vmatprep.subr.bf16.mxu0 %v1232
    %1689 = vmatpush1.bf16.msra.mxu0 %v1231
    %1690 = vmatprep.subr.bf16.mxu0 %v1236
    %1691 = vmatpush1.bf16.msra.mxu0 %v1235
    %1692 = vmatprep.subr.bf16.mxu0 %v1240
    %1693 = vmatpush1.bf16.msra.mxu0 %v1239
    %1694 = vmatprep.subr.bf16.mxu0 %v1244
    %1695 = vmatpush1.bf16.msra.mxu0 %v1243
    %1696 = vmatprep.subr.bf16.mxu0 %v1248
    %1697 = vmatpush1.bf16.msra.mxu0 %v1247
    %1698 = vmatprep.subr.bf16.mxu0 %v1252
    %1699 = vmatpush1.bf16.msra.mxu0 %v1251
    %1700 = vmatprep.subr.bf16.mxu0 %v1256
    %1701 = vmatpush1.bf16.msra.mxu0 %v1255
    %1702 = vmatprep.subr.bf16.mxu0 %v1260
    %1703 = vmatpush1.bf16.msra.mxu0 %v1259
    %1704 = vmatprep.subr.bf16.mxu0 %v1264
    %1705 = vmatpush1.bf16.msra.mxu0 %v1263
    %1706 = vmatprep.subr.bf16.mxu0 %v1268
    %1707 = vmatpush1.bf16.msra.mxu0 %v1267
    %1708 = vmatprep.subr.bf16.mxu0 %v1272
    %1709 = vmatpush1.bf16.msra.mxu0 %v1271
    %1710 = vmatprep.mubr.bf16.mxu0 %v74
    %1711 = vmatmul.mubr.bf16.gmra.mrb[0].mxu0 %v73
    %v1712 = vpop.f32.mrb[0].mxu0
    %v1713 = vadd.f32 %v1670, %v1712
    %v1714 = vpop.f32.mrb[0].mxu0
    %v1715 = vadd.f32 %v1672, %v1714
    %v1716 = vpop.f32.mrb[0].mxu0
    %v1717 = vadd.f32 %v1674, %v1716
    %v1718 = vpop.f32.mrb[0].mxu0
    %v1719 = vadd.f32 %v1676, %v1718
    %1720 = vdwg.mxu0
    %1721 = vmatprep.subr.bf16.mxu0 %v1276
    %1722 = vmatpush1.bf16.msra.mxu0 %v1275
    %1723 = vmatprep.subr.bf16.mxu0 %v1280
    %1724 = vmatpush1.bf16.msra.mxu0 %v1279
    %1725 = vmatprep.subr.bf16.mxu0 %v1284
    %1726 = vmatpush1.bf16.msra.mxu0 %v1283
    %1727 = vmatprep.subr.bf16.mxu0 %v1288
    %1728 = vmatpush1.bf16.msra.mxu0 %v1287
    %1729 = vmatprep.subr.bf16.mxu0 %v1292
    %1730 = vmatpush1.bf16.msra.mxu0 %v1291
    %1731 = vmatprep.subr.bf16.mxu0 %v1296
    %1732 = vmatpush1.bf16.msra.mxu0 %v1295
    %1733 = vmatprep.subr.bf16.mxu0 %v1300
    %1734 = vmatpush1.bf16.msra.mxu0 %v1299
    %1735 = vmatprep.subr.bf16.mxu0 %v1304
    %1736 = vmatpush1.bf16.msra.mxu0 %v1303
    %1737 = vmatprep.subr.bf16.mxu0 %v1308
    %1738 = vmatpush1.bf16.msra.mxu0 %v1307
    %1739 = vmatprep.subr.bf16.mxu0 %v1312
    %1740 = vmatpush1.bf16.msra.mxu0 %v1311
    %1741 = vmatprep.subr.bf16.mxu0 %v1316
    %1742 = vmatpush1.bf16.msra.mxu0 %v1315
    %1743 = vmatprep.subr.bf16.mxu0 %v1320
    %1744 = vmatpush1.bf16.msra.mxu0 %v1319
    %1745 = vmatprep.subr.bf16.mxu0 %v1324
    %1746 = vmatpush1.bf16.msra.mxu0 %v1323
    %1747 = vmatprep.subr.bf16.mxu0 %v1584
    %1748 = vmatpush1.bf16.msra.mxu0 %v1581
    %1749 = vmatprep.subr.bf16.mxu0 0
    %1750 = vmatpush1.bf16.msra.mxu0 0
    %1751 = vmatprep.subr.bf16.mxu0 0
    %1752 = vmatpush1.bf16.msra.mxu0 0
    %1753 = vmatprep.mubr.bf16.mxu0 %v1577
    %1754 = vmatmul.mubr.bf16.gmra.mrb[0].mxu0 %v75
    %v1755 = vpop.f32.mrb[0].mxu0
    %v1756 = vadd.f32 %v1713, %v1755
    %v1757 = vpop.f32.mrb[0].mxu0
    %v1758 = vadd.f32 %v1715, %v1757
    %v1759 = vpop.f32.mrb[0].mxu0
    %v1760 = vadd.f32 %v1717, %v1759
    %v1761 = vpop.f32.mrb[0].mxu0
    %v1762 = vadd.f32 %v1719, %v1761
    %1763 = vdwg.mxu0
    %1764 = vmatprep.subr.bf16.mxu0 %v1086
    %1765 = vmatpush1.bf16.msra.mxu0 %v1085
    %1766 = vmatprep.subr.bf16.mxu0 %v1090
    %1767 = vmatpush1.bf16.msra.mxu0 %v1089
    %1768 = vmatprep.subr.bf16.mxu0 %v1094
    %1769 = vmatpush1.bf16.msra.mxu0 %v1093
    %1770 = vmatprep.subr.bf16.mxu0 %v1098
    %1771 = vmatpush1.bf16.msra.mxu0 %v1097
    %1772 = vmatprep.subr.bf16.mxu0 %v1102
    %1773 = vmatpush1.bf16.msra.mxu0 %v1101
    %1774 = vmatprep.subr.bf16.mxu0 %v1106
    %1775 = vmatpush1.bf16.msra.mxu0 %v1105
    %1776 = vmatprep.subr.bf16.mxu0 %v1110
    %1777 = vmatpush1.bf16.msra.mxu0 %v1109
    %1778 = vmatprep.subr.bf16.mxu0 %v1114
    %1779 = vmatpush1.bf16.msra.mxu0 %v1113
    %1780 = vmatprep.subr.bf16.mxu0 %v1118
    %1781 = vmatpush1.bf16.msra.mxu0 %v1117
    %1782 = vmatprep.subr.bf16.mxu0 %v1122
    %1783 = vmatpush1.bf16.msra.mxu0 %v1121
    %1784 = vmatprep.subr.bf16.mxu0 %v1126
    %1785 = vmatpush1.bf16.msra.mxu0 %v1125
    %1786 = vmatprep.subr.bf16.mxu0 %v1130
    %1787 = vmatpush1.bf16.msra.mxu0 %v1129
    %1788 = vmatprep.subr.bf16.mxu0 %v1134
    %1789 = vmatpush1.bf16.msra.mxu0 %v1133
    %1790 = vmatprep.subr.bf16.mxu0 %v1138
    %1791 = vmatpush1.bf16.msra.mxu0 %v1137
    %1792 = vmatprep.subr.bf16.mxu0 %v1142
    %1793 = vmatpush1.bf16.msra.mxu0 %v1141
    %1794 = vmatprep.subr.bf16.mxu0 %v1146
    %1795 = vmatpush1.bf16.msra.mxu0 %v1145
    %1796 = vmatprep.mubr.bf16.mxu0 %v70
    %1797 = vmatmul.mubr.bf16.gmra.mrb[0].mxu0 %v69
    %v1798 = vpop.f32.mrb[0].mxu0
    %v1799 = vadd.f32 %v336, %v1798
    %v1800 = vpop.f32.mrb[0].mxu0
    %v1801 = vadd.f32 %v340, %v1800
    %v1802 = vpop.f32.mrb[0].mxu0
    %v1803 = vadd.f32 %v336, %v1802
    %v1804 = vpop.f32.mrb[0].mxu0
    %v1805 = vadd.f32 %v340, %v1804
    %1806 = vdwg.mxu0
    %1807 = vmatprep.subr.bf16.mxu0 %v1150
    %1808 = vmatpush1.bf16.msra.mxu0 %v1149
    %1809 = vmatprep.subr.bf16.mxu0 %v1154
    %1810 = vmatpush1.bf16.msra.mxu0 %v1153
    %1811 = vmatprep.subr.bf16.mxu0 %v1158
    %1812 = vmatpush1.bf16.msra.mxu0 %v1157
    %1813 = vmatprep.subr.bf16.mxu0 %v1162
    %1814 = vmatpush1.bf16.msra.mxu0 %v1161
    %1815 = vmatprep.subr.bf16.mxu0 %v1166
    %1816 = vmatpush1.bf16.msra.mxu0 %v1165
    %1817 = vmatprep.subr.bf16.mxu0 %v1170
    %1818 = vmatpush1.bf16.msra.mxu0 %v1169
    %1819 = vmatprep.subr.bf16.mxu0 %v1174
    %1820 = vmatpush1.bf16.msra.mxu0 %v1173
    %1821 = vmatprep.subr.bf16.mxu0 %v1178
    %1822 = vmatpush1.bf16.msra.mxu0 %v1177
    %1823 = vmatprep.subr.bf16.mxu0 %v1182
    %1824 = vmatpush1.bf16.msra.mxu0 %v1181
    %1825 = vmatprep.subr.bf16.mxu0 %v1186
    %1826 = vmatpush1.bf16.msra.mxu0 %v1185
    %1827 = vmatprep.subr.bf16.mxu0 %v1190
    %1828 = vmatpush1.bf16.msra.mxu0 %v1189
    %1829 = vmatprep.subr.bf16.mxu0 %v1194
    %1830 = vmatpush1.bf16.msra.mxu0 %v1193
    %1831 = vmatprep.subr.bf16.mxu0 %v1198
    %1832 = vmatpush1.bf16.msra.mxu0 %v1197
    %1833 = vmatprep.subr.bf16.mxu0 %v1202
    %1834 = vmatpush1.bf16.msra.mxu0 %v1201
    %1835 = vmatprep.subr.bf16.mxu0 %v1206
    %1836 = vmatpush1.bf16.msra.mxu0 %v1205
    %1837 = vmatprep.subr.bf16.mxu0 %v1210
    %1838 = vmatpush1.bf16.msra.mxu0 %v1209
    %1839 = vmatprep.mubr.bf16.mxu0 %v72
    %1840 = vmatmul.mubr.bf16.gmra.mrb[0].mxu0 %v71
    %v1841 = vpop.f32.mrb[0].mxu0
    %v1842 = vadd.f32 %v1799, %v1841
    %v1843 = vpop.f32.mrb[0].mxu0
    %v1844 = vadd.f32 %v1801, %v1843
    %v1845 = vpop.f32.mrb[0].mxu0
    %v1846 = vadd.f32 %v1803, %v1845
    %v1847 = vpop.f32.mrb[0].mxu0
    %v1848 = vadd.f32 %v1805, %v1847
    %1849 = vdwg.mxu0
    %1850 = vmatprep.subr.bf16.mxu0 %v1214
    %1851 = vmatpush1.bf16.msra.mxu0 %v1213
    %1852 = vmatprep.subr.bf16.mxu0 %v1218
    %1853 = vmatpush1.bf16.msra.mxu0 %v1217
    %1854 = vmatprep.subr.bf16.mxu0 %v1222
    %1855 = vmatpush1.bf16.msra.mxu0 %v1221
    %1856 = vmatprep.subr.bf16.mxu0 %v1226
    %1857 = vmatpush1.bf16.msra.mxu0 %v1225
    %1858 = vmatprep.subr.bf16.mxu0 %v1230
    %1859 = vmatpush1.bf16.msra.mxu0 %v1229
    %1860 = vmatprep.subr.bf16.mxu0 %v1234
    %1861 = vmatpush1.bf16.msra.mxu0 %v1233
    %1862 = vmatprep.subr.bf16.mxu0 %v1238
    %1863 = vmatpush1.bf16.msra.mxu0 %v1237
    %1864 = vmatprep.subr.bf16.mxu0 %v1242
    %1865 = vmatpush1.bf16.msra.mxu0 %v1241
    %1866 = vmatprep.subr.bf16.mxu0 %v1246
    %1867 = vmatpush1.bf16.msra.mxu0 %v1245
    %1868 = vmatprep.subr.bf16.mxu0 %v1250
    %1869 = vmatpush1.bf16.msra.mxu0 %v1249
    %1870 = vmatprep.subr.bf16.mxu0 %v1254
    %1871 = vmatpush1.bf16.msra.mxu0 %v1253
    %1872 = vmatprep.subr.bf16.mxu0 %v1258
    %1873 = vmatpush1.bf16.msra.mxu0 %v1257
    %1874 = vmatprep.subr.bf16.mxu0 %v1262
    %1875 = vmatpush1.bf16.msra.mxu0 %v1261
    %1876 = vmatprep.subr.bf16.mxu0 %v1266
    %1877 = vmatpush1.bf16.msra.mxu0 %v1265
    %1878 = vmatprep.subr.bf16.mxu0 %v1270
    %1879 = vmatpush1.bf16.msra.mxu0 %v1269
    %1880 = vmatprep.subr.bf16.mxu0 %v1274
    %1881 = vmatpush1.bf16.msra.mxu0 %v1273
    %1882 = vmatprep.mubr.bf16.mxu0 %v74
    %1883 = vmatmul.mubr.bf16.gmra.mrb[0].mxu0 %v73
    %v1884 = vpop.f32.mrb[0].mxu0
    %v1885 = vadd.f32 %v1842, %v1884
    %v1886 = vpop.f32.mrb[0].mxu0
    %v1887 = vadd.f32 %v1844, %v1886
    %v1888 = vpop.f32.mrb[0].mxu0
    %v1889 = vadd.f32 %v1846, %v1888
    %v1890 = vpop.f32.mrb[0].mxu0
    %v1891 = vadd.f32 %v1848, %v1890
    %1892 = vdwg.mxu0
    %1893 = vmatprep.subr.bf16.mxu0 %v1278
    %1894 = vmatpush1.bf16.msra.mxu0 %v1277
    %1895 = vmatprep.subr.bf16.mxu0 %v1282
    %1896 = vmatpush1.bf16.msra.mxu0 %v1281
    %1897 = vmatprep.subr.bf16.mxu0 %v1286
    %1898 = vmatpush1.bf16.msra.mxu0 %v1285
    %1899 = vmatprep.subr.bf16.mxu0 %v1290
    %1900 = vmatpush1.bf16.msra.mxu0 %v1289
    %1901 = vmatprep.subr.bf16.mxu0 %v1294
    %1902 = vmatpush1.bf16.msra.mxu0 %v1293
    %1903 = vmatprep.subr.bf16.mxu0 %v1298
    %1904 = vmatpush1.bf16.msra.mxu0 %v1297
    %1905 = vmatprep.subr.bf16.mxu0 %v1302
    %1906 = vmatpush1.bf16.msra.mxu0 %v1301
    %1907 = vmatprep.subr.bf16.mxu0 %v1306
    %1908 = vmatpush1.bf16.msra.mxu0 %v1305
    %1909 = vmatprep.subr.bf16.mxu0 %v1310
    %1910 = vmatpush1.bf16.msra.mxu0 %v1309
    %1911 = vmatprep.subr.bf16.mxu0 %v1314
    %1912 = vmatpush1.bf16.msra.mxu0 %v1313
    %1913 = vmatprep.subr.bf16.mxu0 %v1318
    %1914 = vmatpush1.bf16.msra.mxu0 %v1317
    %1915 = vmatprep.subr.bf16.mxu0 %v1322
    %1916 = vmatpush1.bf16.msra.mxu0 %v1321
    %1917 = vmatprep.subr.bf16.mxu0 %v1326
    %1918 = vmatpush1.bf16.msra.mxu0 %v1325
    %1919 = vmatprep.subr.bf16.mxu0 %v1590
    %1920 = vmatpush1.bf16.msra.mxu0 %v1587
    %1921 = vmatprep.subr.bf16.mxu0 0
    %1922 = vmatpush1.bf16.msra.mxu0 0
    %1923 = vmatprep.subr.bf16.mxu0 0
    %1924 = vmatpush1.bf16.msra.mxu0 0
    %1925 = vmatprep.mubr.bf16.mxu0 %v1577
    %1926 = vmatmul.mubr.bf16.gmra.mrb[0].mxu0 %v75
    %v1927 = vpop.f32.mrb[0].mxu0
    %v1928 = vadd.f32 %v1885, %v1927
    %v1929 = vpop.f32.mrb[0].mxu0
    %v1930 = vadd.f32 %v1887, %v1929
    %v1931 = vpop.f32.mrb[0].mxu0
    %v1932 = vadd.f32 %v1889, %v1931
    %v1933 = vpop.f32.mrb[0].mxu0
    %v1934 = vadd.f32 %v1891, %v1933
    %1935 = vdwg.mxu0
    %v1936 = vmax.f32 %v1756, 0.0
    %v1937 = vmax.f32 %v1758, 0.0
    %v1938 = vmax.f32 %v1928, 0.0
    %v1939 = vmax.f32 %v1930, 0.0
    %v1940 = vmax.f32 %v1760, 0.0
    %v1941 = vmax.f32 %v1762, 0.0
    %v1942 = vmax.f32 %v1932, 0.0
    %v1943 = vmax.f32 %v1934, 0.0
    %v1944 = vpack.c.bf16 %v1940, %v1936
    %v1945 = vpack.c.bf16 %v1941, %v1937
    %v1946 = vpack.c.bf16 %v1942, %v1938
    %v1947 = vpack.c.bf16 %v1943, %v1939
    %v1948 = vld [vmem:[%s4] sm:$0xff]
    %v1949 = vld [vmem:[%s4 + $0x8] sm:$0xff]
    %v1950 = vld [vmem:[%s4 + $0x10] sm:$0xff]
    %v1951 = vld [vmem:[%s4 + $0x18] sm:$0xff]
    %v1952 = vld [vmem:[%s4 + $0x20] sm:$0xff]
    %v1953 = vld [vmem:[%s4 + $0x28] sm:$0xff]
    %v1954 = vld [vmem:[%s4 + $0x30] sm:$0xff]
    %v1955 = vld [vmem:[%s4 + $0x38] sm:$0xff]
    %v1956 = vld [vmem:[%s4 + $0x40] sm:$0xff]
    %v1957 = vld [vmem:[%s4 + $0x48] sm:$0xff]
    %v1958 = vld [vmem:[%s4 + $0x50] sm:$0xff]
    %v1959 = vld [vmem:[%s4 + $0x58] sm:$0xff]
    %v1960 = vld [vmem:[%s4 + $0x60] sm:$0xff]
    %v1961 = vld [vmem:[%s4 + $0x68] sm:$0xff]
    %v1962 = vld [vmem:[%s4 + $0x70] sm:$0xff]
    %v1963 = vld [vmem:[%s4 + $0x78] sm:$0xff]
    %v1964 = vld [vmem:[%s4 + $0x80] sm:$0xff]
    %v1965 = vld [vmem:[%s4 + $0x88] sm:$0xff]
    %v1966 = vld [vmem:[%s4 + $0x90] sm:$0xff]
    %v1967 = vld [vmem:[%s4 + $0x98] sm:$0xff]
    %v1968 = vld [vmem:[%s4 + $0xa0] sm:$0xff]
    %v1969 = vld [vmem:[%s4 + $0xa8] sm:$0xff]
    %v1970 = vld [vmem:[%s4 + $0xb0] sm:$0xff]
    %v1971 = vld [vmem:[%s4 + $0xb8] sm:$0xff]
    %v1972 = vld [vmem:[%s4 + $0xc0] sm:$0xff]
    %v1973 = vld [vmem:[%s4 + $0xc8] sm:$0xff]
    %v1974 = vld [vmem:[%s4 + $0xd0] sm:$0xff]
    %v1975 = vld [vmem:[%s4 + $0xd8] sm:$0xff]
    %v1976 = vld [vmem:[%s4 + $0xe0] sm:$0xff]
    %v1977 = vld [vmem:[%s4 + $0xe8] sm:$0xff]
    %v1978 = vld [vmem:[%s4 + $0xf0] sm:$0xff]
    %v1979 = vld [vmem:[%s4 + $0xf8] sm:$0xff]
    %v1980 = vld [vmem:[%s4 + $0x100] sm:$0xff]
    %v1981 = vld [vmem:[%s4 + $0x108] sm:$0xff]
    %v1982 = vld [vmem:[%s4 + $0x110] sm:$0xff]
    %v1983 = vld [vmem:[%s4 + $0x118] sm:$0xff]
    %v1984 = vld [vmem:[%s4 + $0x120] sm:$0xff]
    %v1985 = vld [vmem:[%s4 + $0x128] sm:$0xff]
    %v1986 = vld [vmem:[%s4 + $0x130] sm:$0xff]
    %v1987 = vld [vmem:[%s4 + $0x138] sm:$0xff]
    %v1988 = vld [vmem:[%s4 + $0x140] sm:$0xff]
    %v1989 = vld [vmem:[%s4 + $0x148] sm:$0xff]
    %v1990 = vld [vmem:[%s4 + $0x150] sm:$0xff]
    %v1991 = vld [vmem:[%s4 + $0x158] sm:$0xff]
    %v1992 = vld [vmem:[%s4 + $0x160] sm:$0xff]
    %v1993 = vld [vmem:[%s4 + $0x168] sm:$0xff]
    %v1994 = vld [vmem:[%s4 + $0x170] sm:$0xff]
    %v1995 = vld [vmem:[%s4 + $0x178] sm:$0xff]
    %v1996 = vld [vmem:[%s4 + $0x180] sm:$0xff]
    %v1997 = vld [vmem:[%s4 + $0x188] sm:$0xff]
    %v1998 = vld [vmem:[%s4 + $0x190] sm:$0xff]
    %v1999 = vld [vmem:[%s4 + $0x198] sm:$0xff]
    %v2000 = vld [vmem:[%s4 + $0x1a0] sm:$0xff]
    %v2001 = vld [vmem:[%s4 + $0x1a8] sm:$0xff]
    %v2002 = vld [vmem:[%s4 + $0x1b0] sm:$0xff]
    %v2003 = vld [vmem:[%s4 + $0x1b8] sm:$0xff]
    %v2004 = vld [vmem:[%s4 + $0x1c0] sm:$0xff]
    %v2005 = vld [vmem:[%s4 + $0x1c8] sm:$0xff]
    %v2006 = vld [vmem:[%s4 + $0x1d0] sm:$0xff]
    %v2007 = vld [vmem:[%s4 + $0x1d8] sm:$0xff]
    %v2008 = vld [vmem:[%s4 + $0x1e0] sm:$0xff]
    %v2009 = vld [vmem:[%s4 + $0x1e8] sm:$0xff]
    %v2010 = vld [vmem:[%s4 + $0x1f0] sm:$0xff]
    %v2011 = vld [vmem:[%s4 + $0x1f8] sm:$0xff]
    %v2012 = vld [vmem:[%s5] sm:$0x3]
    %v2014 = vlaneseq
    %v2015 = vshrl.u32 %v2014, 7
    %v2016 = vsub.s32 0, %v2015
    %v2017 = vrot.slane %v2012, %v2016
    %v2018 = vlaneseq
    %v2019 = vshrl.u32 %v2018, 7
    %v2020 = vsub.s32 1, %v2019
    %v2021 = vrot.slane %v2012, %v2020
    %v2088 = vunpack.c.l.b16 %v1948
    %v2089 = vunpack.c.h.b16 %v1948
    %v2090 = vunpack.c.l.b16 %v1949
    %v2091 = vunpack.c.h.b16 %v1949
    %v2092 = vunpack.c.l.b16 %v1950
    %v2093 = vunpack.c.h.b16 %v1950
    %v2094 = vunpack.c.l.b16 %v1951
    %v2095 = vunpack.c.h.b16 %v1951
    %v2096 = vunpack.c.l.b16 %v1952
    %v2097 = vunpack.c.h.b16 %v1952
    %v2098 = vunpack.c.l.b16 %v1953
    %v2099 = vunpack.c.h.b16 %v1953
    %v2100 = vunpack.c.l.b16 %v1954
    %v2101 = vunpack.c.h.b16 %v1954
    %v2102 = vunpack.c.l.b16 %v1955
    %v2103 = vunpack.c.h.b16 %v1955
    %v2104 = vunpack.c.l.b16 %v1956
    %v2105 = vunpack.c.h.b16 %v1956
    %v2106 = vunpack.c.l.b16 %v1957
    %v2107 = vunpack.c.h.b16 %v1957
    %v2108 = vunpack.c.l.b16 %v1958
    %v2109 = vunpack.c.h.b16 %v1958
    %v2110 = vunpack.c.l.b16 %v1959
    %v2111 = vunpack.c.h.b16 %v1959
    %v2112 = vunpack.c.l.b16 %v1960
    %v2113 = vunpack.c.h.b16 %v1960
    %v2114 = vunpack.c.l.b16 %v1961
    %v2115 = vunpack.c.h.b16 %v1961
    %v2116 = vunpack.c.l.b16 %v1962
    %v2117 = vunpack.c.h.b16 %v1962
    %v2118 = vunpack.c.l.b16 %v1963
    %v2119 = vunpack.c.h.b16 %v1963
    %v2120 = vunpack.c.l.b16 %v1964
    %v2121 = vunpack.c.h.b16 %v1964
    %v2122 = vunpack.c.l.b16 %v1965
    %v2123 = vunpack.c.h.b16 %v1965
    %v2124 = vunpack.c.l.b16 %v1966
    %v2125 = vunpack.c.h.b16 %v1966
    %v2126 = vunpack.c.l.b16 %v1967
    %v2127 = vunpack.c.h.b16 %v1967
    %v2128 = vunpack.c.l.b16 %v1968
    %v2129 = vunpack.c.h.b16 %v1968
    %v2130 = vunpack.c.l.b16 %v1969
    %v2131 = vunpack.c.h.b16 %v1969
    %v2132 = vunpack.c.l.b16 %v1970
    %v2133 = vunpack.c.h.b16 %v1970
    %v2134 = vunpack.c.l.b16 %v1971
    %v2135 = vunpack.c.h.b16 %v1971
    %v2136 = vunpack.c.l.b16 %v1972
    %v2137 = vunpack.c.h.b16 %v1972
    %v2138 = vunpack.c.l.b16 %v1973
    %v2139 = vunpack.c.h.b16 %v1973
    %v2140 = vunpack.c.l.b16 %v1974
    %v2141 = vunpack.c.h.b16 %v1974
    %v2142 = vunpack.c.l.b16 %v1975
    %v2143 = vunpack.c.h.b16 %v1975
    %v2144 = vunpack.c.l.b16 %v1976
    %v2145 = vunpack.c.h.b16 %v1976
    %v2146 = vunpack.c.l.b16 %v1977
    %v2147 = vunpack.c.h.b16 %v1977
    %v2148 = vunpack.c.l.b16 %v1978
    %v2149 = vunpack.c.h.b16 %v1978
    %v2150 = vunpack.c.l.b16 %v1979
    %v2151 = vunpack.c.h.b16 %v1979
    %v2152 = vunpack.c.l.b16 %v1980
    %v2153 = vunpack.c.h.b16 %v1980
    %v2154 = vunpack.c.l.b16 %v1981
    %v2155 = vunpack.c.h.b16 %v1981
    %v2156 = vunpack.c.l.b16 %v1982
    %v2157 = vunpack.c.h.b16 %v1982
    %v2158 = vunpack.c.l.b16 %v1983
    %v2159 = vunpack.c.h.b16 %v1983
    %v2160 = vunpack.c.l.b16 %v1984
    %v2161 = vunpack.c.h.b16 %v1984
    %v2162 = vunpack.c.l.b16 %v1985
    %v2163 = vunpack.c.h.b16 %v1985
    %v2164 = vunpack.c.l.b16 %v1986
    %v2165 = vunpack.c.h.b16 %v1986
    %v2166 = vunpack.c.l.b16 %v1987
    %v2167 = vunpack.c.h.b16 %v1987
    %v2168 = vunpack.c.l.b16 %v1988
    %v2169 = vunpack.c.h.b16 %v1988
    %v2170 = vunpack.c.l.b16 %v1989
    %v2171 = vunpack.c.h.b16 %v1989
    %v2172 = vunpack.c.l.b16 %v1990
    %v2173 = vunpack.c.h.b16 %v1990
    %v2174 = vunpack.c.l.b16 %v1991
    %v2175 = vunpack.c.h.b16 %v1991
    %v2176 = vunpack.c.l.b16 %v1992
    %v2177 = vunpack.c.h.b16 %v1992
    %v2178 = vunpack.c.l.b16 %v1993
    %v2179 = vunpack.c.h.b16 %v1993
    %v2180 = vunpack.c.l.b16 %v1994
    %v2181 = vunpack.c.h.b16 %v1994
    %v2182 = vunpack.c.l.b16 %v1995
    %v2183 = vunpack.c.h.b16 %v1995
    %v2184 = vunpack.c.l.b16 %v1996
    %v2185 = vunpack.c.h.b16 %v1996
    %v2186 = vunpack.c.l.b16 %v1997
    %v2187 = vunpack.c.h.b16 %v1997
    %v2188 = vunpack.c.l.b16 %v1998
    %v2189 = vunpack.c.h.b16 %v1998
    %v2190 = vunpack.c.l.b16 %v1999
    %v2191 = vunpack.c.h.b16 %v1999
    %v2192 = vunpack.c.l.b16 %v2000
    %v2193 = vunpack.c.h.b16 %v2000
    %v2194 = vunpack.c.l.b16 %v2001
    %v2195 = vunpack.c.h.b16 %v2001
    %v2196 = vunpack.c.l.b16 %v2002
    %v2197 = vunpack.c.h.b16 %v2002
    %v2198 = vunpack.c.l.b16 %v2003
    %v2199 = vunpack.c.h.b16 %v2003
    %v2200 = vunpack.c.l.b16 %v2004
    %v2201 = vunpack.c.h.b16 %v2004
    %v2202 = vunpack.c.l.b16 %v2005
    %v2203 = vunpack.c.h.b16 %v2005
    %v2204 = vunpack.c.l.b16 %v2006
    %v2205 = vunpack.c.h.b16 %v2006
    %v2206 = vunpack.c.l.b16 %v2007
    %v2207 = vunpack.c.h.b16 %v2007
    %v2208 = vunpack.c.l.b16 %v2008
    %v2209 = vunpack.c.h.b16 %v2008
    %v2210 = vunpack.c.l.b16 %v2009
    %v2211 = vunpack.c.h.b16 %v2009
    %v2212 = vunpack.c.l.b16 %v2010
    %v2213 = vunpack.c.h.b16 %v2010
    %v2214 = vunpack.c.l.b16 %v2011
    %v2215 = vunpack.c.h.b16 %v2011
    %v2216 = vpack.c.b16 %v2090, %v2088
    %v2217 = vpack.c.b16 %v2091, %v2089
    %v2218 = vpack.c.b16 %v2094, %v2092
    %v2219 = vpack.c.b16 %v2095, %v2093
    %v2220 = vpack.c.b16 %v2098, %v2096
    %v2221 = vpack.c.b16 %v2099, %v2097
    %v2222 = vpack.c.b16 %v2102, %v2100
    %v2223 = vpack.c.b16 %v2103, %v2101
    %v2224 = vpack.c.b16 %v2106, %v2104
    %v2225 = vpack.c.b16 %v2107, %v2105
    %v2226 = vpack.c.b16 %v2110, %v2108
    %v2227 = vpack.c.b16 %v2111, %v2109
    %v2228 = vpack.c.b16 %v2114, %v2112
    %v2229 = vpack.c.b16 %v2115, %v2113
    %v2230 = vpack.c.b16 %v2118, %v2116
    %v2231 = vpack.c.b16 %v2119, %v2117
    %v2232 = vpack.c.b16 %v2122, %v2120
    %v2233 = vpack.c.b16 %v2123, %v2121
    %v2234 = vpack.c.b16 %v2126, %v2124
    %v2235 = vpack.c.b16 %v2127, %v2125
    %v2236 = vpack.c.b16 %v2130, %v2128
    %v2237 = vpack.c.b16 %v2131, %v2129
    %v2238 = vpack.c.b16 %v2134, %v2132
    %v2239 = vpack.c.b16 %v2135, %v2133
    %v2240 = vpack.c.b16 %v2138, %v2136
    %v2241 = vpack.c.b16 %v2139, %v2137
    %v2242 = vpack.c.b16 %v2142, %v2140
    %v2243 = vpack.c.b16 %v2143, %v2141
    %v2244 = vpack.c.b16 %v2146, %v2144
    %v2245 = vpack.c.b16 %v2147, %v2145
    %v2246 = vpack.c.b16 %v2150, %v2148
    %v2247 = vpack.c.b16 %v2151, %v2149
    %v2248 = vpack.c.b16 %v2154, %v2152
    %v2249 = vpack.c.b16 %v2155, %v2153
    %v2250 = vpack.c.b16 %v2158, %v2156
    %v2251 = vpack.c.b16 %v2159, %v2157
    %v2252 = vpack.c.b16 %v2162, %v2160
    %v2253 = vpack.c.b16 %v2163, %v2161
    %v2254 = vpack.c.b16 %v2166, %v2164
    %v2255 = vpack.c.b16 %v2167, %v2165
    %v2256 = vpack.c.b16 %v2170, %v2168
    %v2257 = vpack.c.b16 %v2171, %v2169
    %v2258 = vpack.c.b16 %v2174, %v2172
    %v2259 = vpack.c.b16 %v2175, %v2173
    %v2260 = vpack.c.b16 %v2178, %v2176
    %v2261 = vpack.c.b16 %v2179, %v2177
    %v2262 = vpack.c.b16 %v2182, %v2180
    %v2263 = vpack.c.b16 %v2183, %v2181
    %v2264 = vpack.c.b16 %v2186, %v2184
    %v2265 = vpack.c.b16 %v2187, %v2185
    %v2266 = vpack.c.b16 %v2190, %v2188
    %v2267 = vpack.c.b16 %v2191, %v2189
    %v2268 = vpack.c.b16 %v2194, %v2192
    %v2269 = vpack.c.b16 %v2195, %v2193
    %v2270 = vpack.c.b16 %v2198, %v2196
    %v2271 = vpack.c.b16 %v2199, %v2197
    %v2272 = vpack.c.b16 %v2202, %v2200
    %v2273 = vpack.c.b16 %v2203, %v2201
    %v2274 = vpack.c.b16 %v2206, %v2204
    %v2275 = vpack.c.b16 %v2207, %v2205
    %v2276 = vpack.c.b16 %v2210, %v2208
    %v2277 = vpack.c.b16 %v2211, %v2209
    %v2278 = vpack.c.b16 %v2214, %v2212
    %v2279 = vpack.c.b16 %v2215, %v2213
    %2344 = vmatprep.subr.bf16.mxu0 %v2217
    %2345 = vmatpush1.bf16.msra.mxu0 %v2216
    %2346 = vmatprep.subr.bf16.mxu0 %v2219
    %2347 = vmatpush1.bf16.msra.mxu0 %v2218
    %2348 = vmatprep.subr.bf16.mxu0 %v2221
    %2349 = vmatpush1.bf16.msra.mxu0 %v2220
    %2350 = vmatprep.subr.bf16.mxu0 %v2223
    %2351 = vmatpush1.bf16.msra.mxu0 %v2222
    %2352 = vmatprep.subr.bf16.mxu0 %v2225
    %2353 = vmatpush1.bf16.msra.mxu0 %v2224
    %2354 = vmatprep.subr.bf16.mxu0 %v2227
    %2355 = vmatpush1.bf16.msra.mxu0 %v2226
    %2356 = vmatprep.subr.bf16.mxu0 %v2229
    %2357 = vmatpush1.bf16.msra.mxu0 %v2228
    %2358 = vmatprep.subr.bf16.mxu0 %v2231
    %2359 = vmatpush1.bf16.msra.mxu0 %v2230
    %2360 = vmatprep.subr.bf16.mxu0 %v2233
    %2361 = vmatpush1.bf16.msra.mxu0 %v2232
    %2362 = vmatprep.subr.bf16.mxu0 %v2235
    %2363 = vmatpush1.bf16.msra.mxu0 %v2234
    %2364 = vmatprep.subr.bf16.mxu0 %v2237
    %2365 = vmatpush1.bf16.msra.mxu0 %v2236
    %2366 = vmatprep.subr.bf16.mxu0 %v2239
    %2367 = vmatpush1.bf16.msra.mxu0 %v2238
    %2368 = vmatprep.subr.bf16.mxu0 %v2241
    %2369 = vmatpush1.bf16.msra.mxu0 %v2240
    %2370 = vmatprep.subr.bf16.mxu0 %v2243
    %2371 = vmatpush1.bf16.msra.mxu0 %v2242
    %2372 = vmatprep.subr.bf16.mxu0 %v2245
    %2373 = vmatpush1.bf16.msra.mxu0 %v2244
    %2374 = vmatprep.subr.bf16.mxu0 %v2247
    %2375 = vmatpush1.bf16.msra.mxu0 %v2246
    %2376 = vmatprep.mubr.bf16.mxu0 %v1945
    %2377 = vmatmul.mubr.bf16.gmra.mrb[0].mxu0 %v1944
    %v2378 = vpop.f32.mrb[0].mxu0
    %v2379 = vadd.f32 %v2017, %v2378
    %v2380 = vpop.f32.mrb[0].mxu0
    %v2381 = vadd.f32 %v2021, %v2380
    %v2382 = vpop.f32.mrb[0].mxu0
    %v2383 = vadd.f32 %v2017, %v2382
    %v2384 = vpop.f32.mrb[0].mxu0
    %v2385 = vadd.f32 %v2021, %v2384
    %2386 = vdwg.mxu0
    %2387 = vmatprep.subr.bf16.mxu0 %v2249
    %2388 = vmatpush1.bf16.msra.mxu0 %v2248
    %2389 = vmatprep.subr.bf16.mxu0 %v2251
    %2390 = vmatpush1.bf16.msra.mxu0 %v2250
    %2391 = vmatprep.subr.bf16.mxu0 %v2253
    %2392 = vmatpush1.bf16.msra.mxu0 %v2252
    %2393 = vmatprep.subr.bf16.mxu0 %v2255
    %2394 = vmatpush1.bf16.msra.mxu0 %v2254
    %2395 = vmatprep.subr.bf16.mxu0 %v2257
    %2396 = vmatpush1.bf16.msra.mxu0 %v2256
    %2397 = vmatprep.subr.bf16.mxu0 %v2259
    %2398 = vmatpush1.bf16.msra.mxu0 %v2258
    %2399 = vmatprep.subr.bf16.mxu0 %v2261
    %2400 = vmatpush1.bf16.msra.mxu0 %v2260
    %2401 = vmatprep.subr.bf16.mxu0 %v2263
    %2402 = vmatpush1.bf16.msra.mxu0 %v2262
    %2403 = vmatprep.subr.bf16.mxu0 %v2265
    %2404 = vmatpush1.bf16.msra.mxu0 %v2264
    %2405 = vmatprep.subr.bf16.mxu0 %v2267
    %2406 = vmatpush1.bf16.msra.mxu0 %v2266
    %2407 = vmatprep.subr.bf16.mxu0 %v2269
    %2408 = vmatpush1.bf16.msra.mxu0 %v2268
    %2409 = vmatprep.subr.bf16.mxu0 %v2271
    %2410 = vmatpush1.bf16.msra.mxu0 %v2270
    %2411 = vmatprep.subr.bf16.mxu0 %v2273
    %2412 = vmatpush1.bf16.msra.mxu0 %v2272
    %2413 = vmatprep.subr.bf16.mxu0 %v2275
    %2414 = vmatpush1.bf16.msra.mxu0 %v2274
    %2415 = vmatprep.subr.bf16.mxu0 %v2277
    %2416 = vmatpush1.bf16.msra.mxu0 %v2276
    %2417 = vmatprep.subr.bf16.mxu0 %v2279
    %2418 = vmatpush1.bf16.msra.mxu0 %v2278
    %2419 = vmatprep.mubr.bf16.mxu0 %v1947
    %2420 = vmatmul.mubr.bf16.gmra.mrb[0].mxu0 %v1946
    %v2421 = vpop.f32.mrb[0].mxu0
    %v2422 = vadd.f32 %v2379, %v2421
    %v2423 = vpop.f32.mrb[0].mxu0
    %v2424 = vadd.f32 %v2381, %v2423
    %v2425 = vpop.f32.mrb[0].mxu0
    %v2426 = vadd.f32 %v2383, %v2425
    %v2427 = vpop.f32.mrb[0].mxu0
    %v2428 = vadd.f32 %v2385, %v2427
    %2429 = vdwg.mxu0
    %v2430 = vmax.f32 %v2422, 0.0
    %v2431 = vmax.f32 %v2424, 0.0
    %v2432 = vmax.f32 %v2426, 0.0
    %v2433 = vmax.f32 %v2428, 0.0
    %v2434 = vpack.c.bf16 %v2432, %v2430
    %v2435 = vpack.c.bf16 %v2433, %v2431
    %v2436 = vld [vmem:[%s6] sm:$0xff]
    %v2437 = vld [vmem:[%s6 + $0x8] sm:$0xff]
    %v2438 = vld [vmem:[%s6 + $0x10] sm:$0xff]
    %v2439 = vld [vmem:[%s6 + $0x18] sm:$0xff]
    %v2440 = vld [vmem:[%s6 + $0x20] sm:$0xff]
    %v2441 = vld [vmem:[%s6 + $0x28] sm:$0xff]
    %v2442 = vld [vmem:[%s6 + $0x30] sm:$0xff]
    %v2443 = vld [vmem:[%s6 + $0x38] sm:$0xff]
    %v2444 = vld [vmem:[%s6 + $0x40] sm:$0xff]
    %v2445 = vld [vmem:[%s6 + $0x48] sm:$0xff]
    %v2446 = vld [vmem:[%s6 + $0x50] sm:$0xff]
    %v2447 = vld [vmem:[%s6 + $0x58] sm:$0xff]
    %v2448 = vld [vmem:[%s6 + $0x60] sm:$0xff]
    %v2449 = vld [vmem:[%s6 + $0x68] sm:$0xff]
    %v2450 = vld [vmem:[%s6 + $0x70] sm:$0xff]
    %v2451 = vld [vmem:[%s6 + $0x78] sm:$0xff]
    %v2452 = vld [vmem:[%s6 + $0x80] sm:$0xff]
    %v2453 = vld [vmem:[%s6 + $0x88] sm:$0xff]
    %v2454 = vld [vmem:[%s6 + $0x90] sm:$0xff]
    %v2455 = vld [vmem:[%s6 + $0x98] sm:$0xff]
    %v2456 = vld [vmem:[%s6 + $0xa0] sm:$0xff]
    %v2457 = vld [vmem:[%s6 + $0xa8] sm:$0xff]
    %v2458 = vld [vmem:[%s6 + $0xb0] sm:$0xff]
    %v2459 = vld [vmem:[%s6 + $0xb8] sm:$0xff]
    %v2460 = vld [vmem:[%s6 + $0xc0] sm:$0xff]
    %v2461 = vld [vmem:[%s6 + $0xc8] sm:$0xff]
    %v2462 = vld [vmem:[%s6 + $0xd0] sm:$0xff]
    %v2463 = vld [vmem:[%s6 + $0xd8] sm:$0xff]
    %v2464 = vld [vmem:[%s6 + $0xe0] sm:$0xff]
    %v2465 = vld [vmem:[%s6 + $0xe8] sm:$0xff]
    %v2466 = vld [vmem:[%s6 + $0xf0] sm:$0xff]
    %v2467 = vld [vmem:[%s6 + $0xf8] sm:$0xff]
    %v2468 = vld [vmem:[%s7] sm:$0x3]
    %v2470 = vlaneseq
    %v2471 = vshrl.u32 %v2470, 7
    %v2472 = vsub.s32 0, %v2471
    %v2473 = vrot.slane %v2468, %v2472
    %v2474 = vlaneseq
    %v2475 = vshrl.u32 %v2474, 7
    %v2476 = vsub.s32 1, %v2475
    %v2477 = vrot.slane %v2468, %v2476
    %v2512 = vunpack.c.l.b16 %v2436
    %v2513 = vunpack.c.h.b16 %v2436
    %v2514 = vunpack.c.l.b16 %v2437
    %v2515 = vunpack.c.h.b16 %v2437
    %v2516 = vunpack.c.l.b16 %v2438
    %v2517 = vunpack.c.h.b16 %v2438
    %v2518 = vunpack.c.l.b16 %v2439
    %v2519 = vunpack.c.h.b16 %v2439
    %v2520 = vunpack.c.l.b16 %v2440
    %v2521 = vunpack.c.h.b16 %v2440
    %v2522 = vunpack.c.l.b16 %v2441
    %v2523 = vunpack.c.h.b16 %v2441
    %v2524 = vunpack.c.l.b16 %v2442
    %v2525 = vunpack.c.h.b16 %v2442
    %v2526 = vunpack.c.l.b16 %v2443
    %v2527 = vunpack.c.h.b16 %v2443
    %v2528 = vunpack.c.l.b16 %v2444
    %v2529 = vunpack.c.h.b16 %v2444
    %v2530 = vunpack.c.l.b16 %v2445
    %v2531 = vunpack.c.h.b16 %v2445
    %v2532 = vunpack.c.l.b16 %v2446
    %v2533 = vunpack.c.h.b16 %v2446
    %v2534 = vunpack.c.l.b16 %v2447
    %v2535 = vunpack.c.h.b16 %v2447
    %v2536 = vunpack.c.l.b16 %v2448
    %v2537 = vunpack.c.h.b16 %v2448
    %v2538 = vunpack.c.l.b16 %v2449
    %v2539 = vunpack.c.h.b16 %v2449
    %v2540 = vunpack.c.l.b16 %v2450
    %v2541 = vunpack.c.h.b16 %v2450
    %v2542 = vunpack.c.l.b16 %v2451
    %v2543 = vunpack.c.h.b16 %v2451
    %v2544 = vunpack.c.l.b16 %v2452
    %v2545 = vunpack.c.h.b16 %v2452
    %v2546 = vunpack.c.l.b16 %v2453
    %v2547 = vunpack.c.h.b16 %v2453
    %v2548 = vunpack.c.l.b16 %v2454
    %v2549 = vunpack.c.h.b16 %v2454
    %v2550 = vunpack.c.l.b16 %v2455
    %v2551 = vunpack.c.h.b16 %v2455
    %v2552 = vunpack.c.l.b16 %v2456
    %v2553 = vunpack.c.h.b16 %v2456
    %v2554 = vunpack.c.l.b16 %v2457
    %v2555 = vunpack.c.h.b16 %v2457
    %v2556 = vunpack.c.l.b16 %v2458
    %v2557 = vunpack.c.h.b16 %v2458
    %v2558 = vunpack.c.l.b16 %v2459
    %v2559 = vunpack.c.h.b16 %v2459
    %v2560 = vunpack.c.l.b16 %v2460
    %v2561 = vunpack.c.h.b16 %v2460
    %v2562 = vunpack.c.l.b16 %v2461
    %v2563 = vunpack.c.h.b16 %v2461
    %v2564 = vunpack.c.l.b16 %v2462
    %v2565 = vunpack.c.h.b16 %v2462
    %v2566 = vunpack.c.l.b16 %v2463
    %v2567 = vunpack.c.h.b16 %v2463
    %v2568 = vunpack.c.l.b16 %v2464
    %v2569 = vunpack.c.h.b16 %v2464
    %v2570 = vunpack.c.l.b16 %v2465
    %v2571 = vunpack.c.h.b16 %v2465
    %v2572 = vunpack.c.l.b16 %v2466
    %v2573 = vunpack.c.h.b16 %v2466
    %v2574 = vunpack.c.l.b16 %v2467
    %v2575 = vunpack.c.h.b16 %v2467
    %v2576 = vpack.c.b16 %v2514, %v2512
    %v2577 = vpack.c.b16 %v2515, %v2513
    %v2578 = vpack.c.b16 %v2518, %v2516
    %v2579 = vpack.c.b16 %v2519, %v2517
    %v2580 = vpack.c.b16 %v2522, %v2520
    %v2581 = vpack.c.b16 %v2523, %v2521
    %v2582 = vpack.c.b16 %v2526, %v2524
    %v2583 = vpack.c.b16 %v2527, %v2525
    %v2584 = vpack.c.b16 %v2530, %v2528
    %v2585 = vpack.c.b16 %v2531, %v2529
    %v2586 = vpack.c.b16 %v2534, %v2532
    %v2587 = vpack.c.b16 %v2535, %v2533
    %v2588 = vpack.c.b16 %v2538, %v2536
    %v2589 = vpack.c.b16 %v2539, %v2537
    %v2590 = vpack.c.b16 %v2542, %v2540
    %v2591 = vpack.c.b16 %v2543, %v2541
    %v2592 = vpack.c.b16 %v2546, %v2544
    %v2593 = vpack.c.b16 %v2547, %v2545
    %v2594 = vpack.c.b16 %v2550, %v2548
    %v2595 = vpack.c.b16 %v2551, %v2549
    %v2596 = vpack.c.b16 %v2554, %v2552
    %v2597 = vpack.c.b16 %v2555, %v2553
    %v2598 = vpack.c.b16 %v2558, %v2556
    %v2599 = vpack.c.b16 %v2559, %v2557
    %v2600 = vpack.c.b16 %v2562, %v2560
    %v2601 = vpack.c.b16 %v2563, %v2561
    %v2602 = vpack.c.b16 %v2566, %v2564
    %v2603 = vpack.c.b16 %v2567, %v2565
    %v2604 = vpack.c.b16 %v2570, %v2568
    %v2605 = vpack.c.b16 %v2571, %v2569
    %v2606 = vpack.c.b16 %v2574, %v2572
    %v2607 = vpack.c.b16 %v2575, %v2573
    %2640 = vmatprep.subr.bf16.mxu0 %v2577
    %2641 = vmatpush1.bf16.msra.mxu0 %v2576
    %2642 = vmatprep.subr.bf16.mxu0 %v2579
    %2643 = vmatpush1.bf16.msra.mxu0 %v2578
    %2644 = vmatprep.subr.bf16.mxu0 %v2581
    %2645 = vmatpush1.bf16.msra.mxu0 %v2580
    %2646 = vmatprep.subr.bf16.mxu0 %v2583
    %2647 = vmatpush1.bf16.msra.mxu0 %v2582
    %2648 = vmatprep.subr.bf16.mxu0 %v2585
    %2649 = vmatpush1.bf16.msra.mxu0 %v2584
    %2650 = vmatprep.subr.bf16.mxu0 %v2587
    %2651 = vmatpush1.bf16.msra.mxu0 %v2586
    %2652 = vmatprep.subr.bf16.mxu0 %v2589
    %2653 = vmatpush1.bf16.msra.mxu0 %v2588
    %2654 = vmatprep.subr.bf16.mxu0 %v2591
    %2655 = vmatpush1.bf16.msra.mxu0 %v2590
    %2656 = vmatprep.subr.bf16.mxu0 %v2593
    %2657 = vmatpush1.bf16.msra.mxu0 %v2592
    %2658 = vmatprep.subr.bf16.mxu0 %v2595
    %2659 = vmatpush1.bf16.msra.mxu0 %v2594
    %2660 = vmatprep.subr.bf16.mxu0 %v2597
    %2661 = vmatpush1.bf16.msra.mxu0 %v2596
    %2662 = vmatprep.subr.bf16.mxu0 %v2599
    %2663 = vmatpush1.bf16.msra.mxu0 %v2598
    %2664 = vmatprep.subr.bf16.mxu0 %v2601
    %2665 = vmatpush1.bf16.msra.mxu0 %v2600
    %2666 = vmatprep.subr.bf16.mxu0 %v2603
    %2667 = vmatpush1.bf16.msra.mxu0 %v2602
    %2668 = vmatprep.subr.bf16.mxu0 %v2605
    %2669 = vmatpush1.bf16.msra.mxu0 %v2604
    %2670 = vmatprep.subr.bf16.mxu0 %v2607
    %2671 = vmatpush1.bf16.msra.mxu0 %v2606
    %2672 = vmatprep.mubr.bf16.mxu0 %v2435
    %2673 = vmatmul.mubr.bf16.gmra.mrb[0].mxu0 %v2434
    %v2674 = vpop.f32.mrb[0].mxu0
    %v2675 = vadd.f32 %v2473, %v2674
    %v2676 = vpop.f32.mrb[0].mxu0
    %v2677 = vadd.f32 %v2477, %v2676
    %v2678 = vpop.f32.mrb[0].mxu0
    %v2679 = vadd.f32 %v2473, %v2678
    %v2680 = vpop.f32.mrb[0].mxu0
    %v2681 = vadd.f32 %v2477, %v2680
    %2682 = vdwg.mxu0
    %v2683 = vld [vmem:[%s1] sm:$0xff]
    %v2684 = vld [vmem:[%s1 + $0x8] sm:$0xff]
    %v2685 = vmul.f32 %v2677, 0.5
    %v2686 = vmul.f32 %v2681, 0.5
    %v2687 = vmul.f32 %v2685, 1.442695
    %v2688 = vpow.pop %v2687
    %v2689 = vmul.f32 %v2686, 1.442695
    %v2690 = vpow.pop %v2689
    %v2691 = vmul.f32 %v2683, %v2688
    %v2692 = vmul.f32 %v2684, %v2690
    %v2693 = vadd.f32 %v2675, %v2691
    %v2694 = vadd.f32 %v2679, %v2692
    %v2695 = vpack.c.bf16 %v2694, %v2693
    %v2696 = vld [vmem:[%s8] sm:$0xff]
    %v2697 = vld [vmem:[%s8 + $0x8] sm:$0xff]
    %v2698 = vld [vmem:[%s8 + $0x10] sm:$0xff]
    %v2699 = vld [vmem:[%s8 + $0x18] sm:$0xff]
    %v2700 = vld [vmem:[%s8 + $0x20] sm:$0xff]
    %v2701 = vld [vmem:[%s8 + $0x28] sm:$0xff]
    %v2702 = vld [vmem:[%s8 + $0x30] sm:$0xff]
    %v2703 = vld [vmem:[%s8 + $0x38] sm:$0xff]
    %v2704 = vld [vmem:[%s8 + $0x40] sm:$0xff]
    %v2705 = vld [vmem:[%s8 + $0x48] sm:$0xff]
    %v2706 = vld [vmem:[%s8 + $0x50] sm:$0xff]
    %v2707 = vld [vmem:[%s8 + $0x58] sm:$0xff]
    %v2708 = vld [vmem:[%s8 + $0x60] sm:$0xff]
    %v2709 = vld [vmem:[%s8 + $0x68] sm:$0xff]
    %v2710 = vld [vmem:[%s8 + $0x70] sm:$0xff]
    %v2711 = vld [vmem:[%s8 + $0x78] sm:$0xff]
    %v2712 = vld [vmem:[%s9] sm:$0x3]
    %v2714 = vlaneseq
    %v2715 = vshrl.u32 %v2714, 7
    %v2716 = vsub.s32 0, %v2715
    %v2717 = vrot.slane %v2712, %v2716
    %v2718 = vlaneseq
    %v2719 = vshrl.u32 %v2718, 7
    %v2720 = vsub.s32 1, %v2719
    %v2721 = vrot.slane %v2712, %v2720
    %v2740 = vunpack.c.l.b16 %v2696
    %v2741 = vunpack.c.h.b16 %v2696
    %v2742 = vunpack.c.l.b16 %v2697
    %v2743 = vunpack.c.h.b16 %v2697
    %v2744 = vunpack.c.l.b16 %v2698
    %v2745 = vunpack.c.h.b16 %v2698
    %v2746 = vunpack.c.l.b16 %v2699
    %v2747 = vunpack.c.h.b16 %v2699
    %v2748 = vunpack.c.l.b16 %v2700
    %v2749 = vunpack.c.h.b16 %v2700
    %v2750 = vunpack.c.l.b16 %v2701
    %v2751 = vunpack.c.h.b16 %v2701
    %v2752 = vunpack.c.l.b16 %v2702
    %v2753 = vunpack.c.h.b16 %v2702
    %v2754 = vunpack.c.l.b16 %v2703
    %v2755 = vunpack.c.h.b16 %v2703
    %v2756 = vunpack.c.l.b16 %v2704
    %v2757 = vunpack.c.h.b16 %v2704
    %v2758 = vunpack.c.l.b16 %v2705
    %v2759 = vunpack.c.h.b16 %v2705
    %v2760 = vunpack.c.l.b16 %v2706
    %v2761 = vunpack.c.h.b16 %v2706
    %v2762 = vunpack.c.l.b16 %v2707
    %v2763 = vunpack.c.h.b16 %v2707
    %v2764 = vunpack.c.l.b16 %v2708
    %v2765 = vunpack.c.h.b16 %v2708
    %v2766 = vunpack.c.l.b16 %v2709
    %v2767 = vunpack.c.h.b16 %v2709
    %v2768 = vunpack.c.l.b16 %v2710
    %v2769 = vunpack.c.h.b16 %v2710
    %v2770 = vunpack.c.l.b16 %v2711
    %v2771 = vunpack.c.h.b16 %v2711
    %v2772 = vpack.c.b16 %v2742, %v2740
    %v2773 = vpack.c.b16 %v2743, %v2741
    %v2774 = vpack.c.b16 %v2746, %v2744
    %v2775 = vpack.c.b16 %v2747, %v2745
    %v2776 = vpack.c.b16 %v2750, %v2748
    %v2777 = vpack.c.b16 %v2751, %v2749
    %v2778 = vpack.c.b16 %v2754, %v2752
    %v2779 = vpack.c.b16 %v2755, %v2753
    %v2780 = vpack.c.b16 %v2758, %v2756
    %v2781 = vpack.c.b16 %v2759, %v2757
    %v2782 = vpack.c.b16 %v2762, %v2760
    %v2783 = vpack.c.b16 %v2763, %v2761
    %v2784 = vpack.c.b16 %v2766, %v2764
    %v2785 = vpack.c.b16 %v2767, %v2765
    %v2786 = vpack.c.b16 %v2770, %v2768
    %v2787 = vpack.c.b16 %v2771, %v2769
    %2804 = vmatprep.subr.bf16.mxu0 %v2773
    %2805 = vmatpush1.bf16.msra.mxu0 %v2772
    %2806 = vmatprep.subr.bf16.mxu0 %v2775
    %2807 = vmatpush1.bf16.msra.mxu0 %v2774
    %2808 = vmatprep.subr.bf16.mxu0 %v2777
    %2809 = vmatpush1.bf16.msra.mxu0 %v2776
    %2810 = vmatprep.subr.bf16.mxu0 %v2779
    %2811 = vmatpush1.bf16.msra.mxu0 %v2778
    %2812 = vmatprep.subr.bf16.mxu0 %v2781
    %2813 = vmatpush1.bf16.msra.mxu0 %v2780
    %2814 = vmatprep.subr.bf16.mxu0 %v2783
    %2815 = vmatpush1.bf16.msra.mxu0 %v2782
    %2816 = vmatprep.subr.bf16.mxu0 %v2785
    %2817 = vmatpush1.bf16.msra.mxu0 %v2784
    %2818 = vmatprep.subr.bf16.mxu0 %v2787
    %2819 = vmatpush1.bf16.msra.mxu0 %v2786
    %2820 = vmatprep.subr.bf16.mxu0 0
    %2821 = vmatpush1.bf16.msra.mxu0 0
    %2822 = vmatprep.subr.bf16.mxu0 0
    %2823 = vmatpush1.bf16.msra.mxu0 0
    %2824 = vmatprep.subr.bf16.mxu0 0
    %2825 = vmatpush1.bf16.msra.mxu0 0
    %2826 = vmatprep.subr.bf16.mxu0 0
    %2827 = vmatpush1.bf16.msra.mxu0 0
    %2828 = vmatprep.subr.bf16.mxu0 0
    %2829 = vmatpush1.bf16.msra.mxu0 0
    %2830 = vmatprep.subr.bf16.mxu0 0
    %2831 = vmatpush1.bf16.msra.mxu0 0
    %2832 = vmatprep.subr.bf16.mxu0 0
    %2833 = vmatpush1.bf16.msra.mxu0 0
    %2834 = vmatprep.subr.bf16.mxu0 0
    %2835 = vmatpush1.bf16.msra.mxu0 0
    %2836 = vmatprep.mubr.bf16.mxu0 0
    %2837 = vmatmul.mubr.bf16.gmra.mrb[0].mxu0 %v2695
    %v2838 = vpop.f32.mrb[0].mxu0
    %v2839 = vadd.f32 %v2717, %v2838
    %v2840 = vpop.f32.mrb[0].mxu0
    %v2841 = vadd.f32 %v2721, %v2840
    %v2842 = vpop.f32.mrb[0].mxu0
    %v2843 = vadd.f32 %v2717, %v2842
    %v2844 = vpop.f32.mrb[0].mxu0
    %v2845 = vadd.f32 %v2721, %v2844
    %2846 = vdwg.mxu0
    %v2847 = vmax.f32 %v2839, 0.0
    %v2848 = vmax.f32 %v2841, 0.0
    %v2849 = vmax.f32 %v2843, 0.0
    %v2850 = vmax.f32 %v2845, 0.0
    %v2851 = vpack.c.bf16 %v2849, %v2847
    %v2852 = vpack.c.bf16 %v2850, %v2848
    %v2853 = vld [vmem:[%s10] sm:$0xff]
    %v2854 = vld [vmem:[%s10 + $0x8] sm:$0xff]
    %v2855 = vld [vmem:[%s10 + $0x10] sm:$0xff]
    %v2856 = vld [vmem:[%s10 + $0x18] sm:$0xff]
    %v2857 = vld [vmem:[%s10 + $0x20] sm:$0xff]
    %v2858 = vld [vmem:[%s10 + $0x28] sm:$0xff]
    %v2859 = vld [vmem:[%s10 + $0x30] sm:$0xff]
    %v2860 = vld [vmem:[%s10 + $0x38] sm:$0xff]
    %v2861 = vld [vmem:[%s10 + $0x40] sm:$0xff]
    %v2862 = vld [vmem:[%s10 + $0x48] sm:$0xff]
    %v2863 = vld [vmem:[%s10 + $0x50] sm:$0xff]
    %v2864 = vld [vmem:[%s10 + $0x58] sm:$0xff]
    %v2865 = vld [vmem:[%s10 + $0x60] sm:$0xff]
    %v2866 = vld [vmem:[%s10 + $0x68] sm:$0xff]
    %v2867 = vld [vmem:[%s10 + $0x70] sm:$0xff]
    %v2868 = vld [vmem:[%s10 + $0x78] sm:$0xff]
    %v2869 = vld [vmem:[%s10 + $0x80] sm:$0xff]
    %v2870 = vld [vmem:[%s10 + $0x88] sm:$0xff]
    %v2871 = vld [vmem:[%s10 + $0x90] sm:$0xff]
    %v2872 = vld [vmem:[%s10 + $0x98] sm:$0xff]
    %v2873 = vld [vmem:[%s10 + $0xa0] sm:$0xff]
    %v2874 = vld [vmem:[%s10 + $0xa8] sm:$0xff]
    %v2875 = vld [vmem:[%s10 + $0xb0] sm:$0xff]
    %v2876 = vld [vmem:[%s10 + $0xb8] sm:$0xff]
    %v2877 = vld [vmem:[%s10 + $0xc0] sm:$0xff]
    %v2878 = vld [vmem:[%s10 + $0xc8] sm:$0xff]
    %v2879 = vld [vmem:[%s10 + $0xd0] sm:$0xff]
    %v2880 = vld [vmem:[%s10 + $0xd8] sm:$0xff]
    %v2881 = vld [vmem:[%s10 + $0xe0] sm:$0xff]
    %v2882 = vld [vmem:[%s10 + $0xe8] sm:$0xff]
    %v2883 = vld [vmem:[%s10 + $0xf0] sm:$0xff]
    %v2884 = vld [vmem:[%s10 + $0xf8] sm:$0xff]
    %v2885 = vld [vmem:[%s10 + $0x100] sm:$0xff]
    %v2886 = vld [vmem:[%s10 + $0x108] sm:$0xff]
    %v2887 = vld [vmem:[%s10 + $0x110] sm:$0xff]
    %v2888 = vld [vmem:[%s10 + $0x118] sm:$0xff]
    %v2889 = vld [vmem:[%s10 + $0x120] sm:$0xff]
    %v2890 = vld [vmem:[%s10 + $0x128] sm:$0xff]
    %v2891 = vld [vmem:[%s10 + $0x130] sm:$0xff]
    %v2892 = vld [vmem:[%s10 + $0x138] sm:$0xff]
    %v2893 = vld [vmem:[%s10 + $0x140] sm:$0xff]
    %v2894 = vld [vmem:[%s10 + $0x148] sm:$0xff]
    %v2895 = vld [vmem:[%s10 + $0x150] sm:$0xff]
    %v2896 = vld [vmem:[%s10 + $0x158] sm:$0xff]
    %v2897 = vld [vmem:[%s10 + $0x160] sm:$0xff]
    %v2898 = vld [vmem:[%s10 + $0x168] sm:$0xff]
    %v2899 = vld [vmem:[%s10 + $0x170] sm:$0xff]
    %v2900 = vld [vmem:[%s10 + $0x178] sm:$0xff]
    %v2901 = vld [vmem:[%s10 + $0x180] sm:$0xff]
    %v2902 = vld [vmem:[%s10 + $0x188] sm:$0xff]
    %v2903 = vld [vmem:[%s10 + $0x190] sm:$0xff]
    %v2904 = vld [vmem:[%s10 + $0x198] sm:$0xff]
    %v2905 = vld [vmem:[%s10 + $0x1a0] sm:$0xff]
    %v2906 = vld [vmem:[%s10 + $0x1a8] sm:$0xff]
    %v2907 = vld [vmem:[%s10 + $0x1b0] sm:$0xff]
    %v2908 = vld [vmem:[%s10 + $0x1b8] sm:$0xff]
    %v2909 = vld [vmem:[%s10 + $0x1c0] sm:$0xff]
    %v2910 = vld [vmem:[%s10 + $0x1c8] sm:$0xff]
    %v2911 = vld [vmem:[%s10 + $0x1d0] sm:$0xff]
    %v2912 = vld [vmem:[%s10 + $0x1d8] sm:$0xff]
    %v2913 = vld [vmem:[%s10 + $0x1e0] sm:$0xff]
    %v2914 = vld [vmem:[%s10 + $0x1e8] sm:$0xff]
    %v2915 = vld [vmem:[%s10 + $0x1f0] sm:$0xff]
    %v2916 = vld [vmem:[%s10 + $0x1f8] sm:$0xff]
    %v2917 = vld [vmem:[%s11] sm:$0xf]
    %v2919 = vlaneseq
    %v2920 = vshrl.u32 %v2919, 7
    %v2921 = vsub.s32 0, %v2920
    %v2922 = vrot.slane %v2917, %v2921
    %v2923 = vlaneseq
    %v2924 = vshrl.u32 %v2923, 7
    %v2925 = vsub.s32 1, %v2924
    %v2926 = vrot.slane %v2917, %v2925
    %v2927 = vlaneseq
    %v2928 = vshrl.u32 %v2927, 7
    %v2929 = vsub.s32 2, %v2928
    %v2930 = vrot.slane %v2917, %v2929
    %v2931 = vlaneseq
    %v2932 = vshrl.u32 %v2931, 7
    %v2933 = vsub.s32 3, %v2932
    %v2934 = vrot.slane %v2917, %v2933
    %v3003 = vunpack.c.l.b16 %v2853
    %v3004 = vunpack.c.h.b16 %v2853
    %v3005 = vunpack.c.l.b16 %v2854
    %v3006 = vunpack.c.h.b16 %v2854
    %v3007 = vunpack.c.l.b16 %v2855
    %v3008 = vunpack.c.h.b16 %v2855
    %v3009 = vunpack.c.l.b16 %v2856
    %v3010 = vunpack.c.h.b16 %v2856
    %v3011 = vunpack.c.l.b16 %v2857
    %v3012 = vunpack.c.h.b16 %v2857
    %v3013 = vunpack.c.l.b16 %v2858
    %v3014 = vunpack.c.h.b16 %v2858
    %v3015 = vunpack.c.l.b16 %v2859
    %v3016 = vunpack.c.h.b16 %v2859
    %v3017 = vunpack.c.l.b16 %v2860
    %v3018 = vunpack.c.h.b16 %v2860
    %v3019 = vunpack.c.l.b16 %v2861
    %v3020 = vunpack.c.h.b16 %v2861
    %v3021 = vunpack.c.l.b16 %v2862
    %v3022 = vunpack.c.h.b16 %v2862
    %v3023 = vunpack.c.l.b16 %v2863
    %v3024 = vunpack.c.h.b16 %v2863
    %v3025 = vunpack.c.l.b16 %v2864
    %v3026 = vunpack.c.h.b16 %v2864
    %v3027 = vunpack.c.l.b16 %v2865
    %v3028 = vunpack.c.h.b16 %v2865
    %v3029 = vunpack.c.l.b16 %v2866
    %v3030 = vunpack.c.h.b16 %v2866
    %v3031 = vunpack.c.l.b16 %v2867
    %v3032 = vunpack.c.h.b16 %v2867
    %v3033 = vunpack.c.l.b16 %v2868
    %v3034 = vunpack.c.h.b16 %v2868
    %v3035 = vunpack.c.l.b16 %v2869
    %v3036 = vunpack.c.h.b16 %v2869
    %v3037 = vunpack.c.l.b16 %v2870
    %v3038 = vunpack.c.h.b16 %v2870
    %v3039 = vunpack.c.l.b16 %v2871
    %v3040 = vunpack.c.h.b16 %v2871
    %v3041 = vunpack.c.l.b16 %v2872
    %v3042 = vunpack.c.h.b16 %v2872
    %v3043 = vunpack.c.l.b16 %v2873
    %v3044 = vunpack.c.h.b16 %v2873
    %v3045 = vunpack.c.l.b16 %v2874
    %v3046 = vunpack.c.h.b16 %v2874
    %v3047 = vunpack.c.l.b16 %v2875
    %v3048 = vunpack.c.h.b16 %v2875
    %v3049 = vunpack.c.l.b16 %v2876
    %v3050 = vunpack.c.h.b16 %v2876
    %v3051 = vunpack.c.l.b16 %v2877
    %v3052 = vunpack.c.h.b16 %v2877
    %v3053 = vunpack.c.l.b16 %v2878
    %v3054 = vunpack.c.h.b16 %v2878
    %v3055 = vunpack.c.l.b16 %v2879
    %v3056 = vunpack.c.h.b16 %v2879
    %v3057 = vunpack.c.l.b16 %v2880
    %v3058 = vunpack.c.h.b16 %v2880
    %v3059 = vunpack.c.l.b16 %v2881
    %v3060 = vunpack.c.h.b16 %v2881
    %v3061 = vunpack.c.l.b16 %v2882
    %v3062 = vunpack.c.h.b16 %v2882
    %v3063 = vunpack.c.l.b16 %v2883
    %v3064 = vunpack.c.h.b16 %v2883
    %v3065 = vunpack.c.l.b16 %v2884
    %v3066 = vunpack.c.h.b16 %v2884
    %v3067 = vunpack.c.l.b16 %v2885
    %v3068 = vunpack.c.h.b16 %v2885
    %v3069 = vunpack.c.l.b16 %v2886
    %v3070 = vunpack.c.h.b16 %v2886
    %v3071 = vunpack.c.l.b16 %v2887
    %v3072 = vunpack.c.h.b16 %v2887
    %v3073 = vunpack.c.l.b16 %v2888
    %v3074 = vunpack.c.h.b16 %v2888
    %v3075 = vunpack.c.l.b16 %v2889
    %v3076 = vunpack.c.h.b16 %v2889
    %v3077 = vunpack.c.l.b16 %v2890
    %v3078 = vunpack.c.h.b16 %v2890
    %v3079 = vunpack.c.l.b16 %v2891
    %v3080 = vunpack.c.h.b16 %v2891
    %v3081 = vunpack.c.l.b16 %v2892
    %v3082 = vunpack.c.h.b16 %v2892
    %v3083 = vunpack.c.l.b16 %v2893
    %v3084 = vunpack.c.h.b16 %v2893
    %v3085 = vunpack.c.l.b16 %v2894
    %v3086 = vunpack.c.h.b16 %v2894
    %v3087 = vunpack.c.l.b16 %v2895
    %v3088 = vunpack.c.h.b16 %v2895
    %v3089 = vunpack.c.l.b16 %v2896
    %v3090 = vunpack.c.h.b16 %v2896
    %v3091 = vunpack.c.l.b16 %v2897
    %v3092 = vunpack.c.h.b16 %v2897
    %v3093 = vunpack.c.l.b16 %v2898
    %v3094 = vunpack.c.h.b16 %v2898
    %v3095 = vunpack.c.l.b16 %v2899
    %v3096 = vunpack.c.h.b16 %v2899
    %v3097 = vunpack.c.l.b16 %v2900
    %v3098 = vunpack.c.h.b16 %v2900
    %v3099 = vunpack.c.l.b16 %v2901
    %v3100 = vunpack.c.h.b16 %v2901
    %v3101 = vunpack.c.l.b16 %v2902
    %v3102 = vunpack.c.h.b16 %v2902
    %v3103 = vunpack.c.l.b16 %v2903
    %v3104 = vunpack.c.h.b16 %v2903
    %v3105 = vunpack.c.l.b16 %v2904
    %v3106 = vunpack.c.h.b16 %v2904
    %v3107 = vunpack.c.l.b16 %v2905
    %v3108 = vunpack.c.h.b16 %v2905
    %v3109 = vunpack.c.l.b16 %v2906
    %v3110 = vunpack.c.h.b16 %v2906
    %v3111 = vunpack.c.l.b16 %v2907
    %v3112 = vunpack.c.h.b16 %v2907
    %v3113 = vunpack.c.l.b16 %v2908
    %v3114 = vunpack.c.h.b16 %v2908
    %v3115 = vunpack.c.l.b16 %v2909
    %v3116 = vunpack.c.h.b16 %v2909
    %v3117 = vunpack.c.l.b16 %v2910
    %v3118 = vunpack.c.h.b16 %v2910
    %v3119 = vunpack.c.l.b16 %v2911
    %v3120 = vunpack.c.h.b16 %v2911
    %v3121 = vunpack.c.l.b16 %v2912
    %v3122 = vunpack.c.h.b16 %v2912
    %v3123 = vunpack.c.l.b16 %v2913
    %v3124 = vunpack.c.h.b16 %v2913
    %v3125 = vunpack.c.l.b16 %v2914
    %v3126 = vunpack.c.h.b16 %v2914
    %v3127 = vunpack.c.l.b16 %v2915
    %v3128 = vunpack.c.h.b16 %v2915
    %v3129 = vunpack.c.l.b16 %v2916
    %v3130 = vunpack.c.h.b16 %v2916
    %v3131 = vpack.c.b16 %v3007, %v3003
    %v3132 = vpack.c.b16 %v3008, %v3004
    %v3133 = vpack.c.b16 %v3009, %v3005
    %v3134 = vpack.c.b16 %v3010, %v3006
    %v3135 = vpack.c.b16 %v3015, %v3011
    %v3136 = vpack.c.b16 %v3016, %v3012
    %v3137 = vpack.c.b16 %v3017, %v3013
    %v3138 = vpack.c.b16 %v3018, %v3014
    %v3139 = vpack.c.b16 %v3023, %v3019
    %v3140 = vpack.c.b16 %v3024, %v3020
    %v3141 = vpack.c.b16 %v3025, %v3021
    %v3142 = vpack.c.b16 %v3026, %v3022
    %v3143 = vpack.c.b16 %v3031, %v3027
    %v3144 = vpack.c.b16 %v3032, %v3028
    %v3145 = vpack.c.b16 %v3033, %v3029
    %v3146 = vpack.c.b16 %v3034, %v3030
    %v3147 = vpack.c.b16 %v3039, %v3035
    %v3148 = vpack.c.b16 %v3040, %v3036
    %v3149 = vpack.c.b16 %v3041, %v3037
    %v3150 = vpack.c.b16 %v3042, %v3038
    %v3151 = vpack.c.b16 %v3047, %v3043
    %v3152 = vpack.c.b16 %v3048, %v3044
    %v3153 = vpack.c.b16 %v3049, %v3045
    %v3154 = vpack.c.b16 %v3050, %v3046
    %v3155 = vpack.c.b16 %v3055, %v3051
    %v3156 = vpack.c.b16 %v3056, %v3052
    %v3157 = vpack.c.b16 %v3057, %v3053
    %v3158 = vpack.c.b16 %v3058, %v3054
    %v3159 = vpack.c.b16 %v3063, %v3059
    %v3160 = vpack.c.b16 %v3064, %v3060
    %v3161 = vpack.c.b16 %v3065, %v3061
    %v3162 = vpack.c.b16 %v3066, %v3062
    %v3163 = vpack.c.b16 %v3071, %v3067
    %v3164 = vpack.c.b16 %v3072, %v3068
    %v3165 = vpack.c.b16 %v3073, %v3069
    %v3166 = vpack.c.b16 %v3074, %v3070
    %v3167 = vpack.c.b16 %v3079, %v3075
    %v3168 = vpack.c.b16 %v3080, %v3076
    %v3169 = vpack.c.b16 %v3081, %v3077
    %v3170 = vpack.c.b16 %v3082, %v3078
    %v3171 = vpack.c.b16 %v3087, %v3083
    %v3172 = vpack.c.b16 %v3088, %v3084
    %v3173 = vpack.c.b16 %v3089, %v3085
    %v3174 = vpack.c.b16 %v3090, %v3086
    %v3175 = vpack.c.b16 %v3095, %v3091
    %v3176 = vpack.c.b16 %v3096, %v3092
    %v3177 = vpack.c.b16 %v3097, %v3093
    %v3178 = vpack.c.b16 %v3098, %v3094
    %v3179 = vpack.c.b16 %v3103, %v3099
    %v3180 = vpack.c.b16 %v3104, %v3100
    %v3181 = vpack.c.b16 %v3105, %v3101
    %v3182 = vpack.c.b16 %v3106, %v3102
    %v3183 = vpack.c.b16 %v3111, %v3107
    %v3184 = vpack.c.b16 %v3112, %v3108
    %v3185 = vpack.c.b16 %v3113, %v3109
    %v3186 = vpack.c.b16 %v3114, %v3110
    %v3187 = vpack.c.b16 %v3119, %v3115
    %v3188 = vpack.c.b16 %v3120, %v3116
    %v3189 = vpack.c.b16 %v3121, %v3117
    %v3190 = vpack.c.b16 %v3122, %v3118
    %v3191 = vpack.c.b16 %v3127, %v3123
    %v3192 = vpack.c.b16 %v3128, %v3124
    %v3193 = vpack.c.b16 %v3129, %v3125
    %v3194 = vpack.c.b16 %v3130, %v3126
    %3259 = vmatprep.subr.bf16.mxu0 %v3132
    %3260 = vmatpush1.bf16.msra.mxu0 %v3131
    %3261 = vmatprep.subr.bf16.mxu0 %v3136
    %3262 = vmatpush1.bf16.msra.mxu0 %v3135
    %3263 = vmatprep.subr.bf16.mxu0 %v3140
    %3264 = vmatpush1.bf16.msra.mxu0 %v3139
    %3265 = vmatprep.subr.bf16.mxu0 %v3144
    %3266 = vmatpush1.bf16.msra.mxu0 %v3143
    %3267 = vmatprep.subr.bf16.mxu0 %v3148
    %3268 = vmatpush1.bf16.msra.mxu0 %v3147
    %3269 = vmatprep.subr.bf16.mxu0 %v3152
    %3270 = vmatpush1.bf16.msra.mxu0 %v3151
    %3271 = vmatprep.subr.bf16.mxu0 %v3156
    %3272 = vmatpush1.bf16.msra.mxu0 %v3155
    %3273 = vmatprep.subr.bf16.mxu0 %v3160
    %3274 = vmatpush1.bf16.msra.mxu0 %v3159
    %3275 = vmatprep.subr.bf16.mxu0 %v3164
    %3276 = vmatpush1.bf16.msra.mxu0 %v3163
    %3277 = vmatprep.subr.bf16.mxu0 %v3168
    %3278 = vmatpush1.bf16.msra.mxu0 %v3167
    %3279 = vmatprep.subr.bf16.mxu0 %v3172
    %3280 = vmatpush1.bf16.msra.mxu0 %v3171
    %3281 = vmatprep.subr.bf16.mxu0 %v3176
    %3282 = vmatpush1.bf16.msra.mxu0 %v3175
    %3283 = vmatprep.subr.bf16.mxu0 %v3180
    %3284 = vmatpush1.bf16.msra.mxu0 %v3179
    %3285 = vmatprep.subr.bf16.mxu0 %v3184
    %3286 = vmatpush1.bf16.msra.mxu0 %v3183
    %3287 = vmatprep.subr.bf16.mxu0 %v3188
    %3288 = vmatpush1.bf16.msra.mxu0 %v3187
    %3289 = vmatprep.subr.bf16.mxu0 %v3192
    %3290 = vmatpush1.bf16.msra.mxu0 %v3191
    %3291 = vmatprep.mubr.bf16.mxu0 %v2852
    %3292 = vmatmul.mubr.bf16.gmra.mrb[0].mxu0 %v2851
    %v3293 = vpop.f32.mrb[0].mxu0
    %v3294 = vadd.f32 %v2922, %v3293
    %v3295 = vpop.f32.mrb[0].mxu0
    %v3296 = vadd.f32 %v2926, %v3295
    %v3297 = vpop.f32.mrb[0].mxu0
    %v3298 = vadd.f32 %v2922, %v3297
    %v3299 = vpop.f32.mrb[0].mxu0
    %v3300 = vadd.f32 %v2926, %v3299
    %3301 = vdwg.mxu0
    %3302 = vmatprep.subr.bf16.mxu0 %v3134
    %3303 = vmatpush1.bf16.msra.mxu0 %v3133
    %3304 = vmatprep.subr.bf16.mxu0 %v3138
    %3305 = vmatpush1.bf16.msra.mxu0 %v3137
    %3306 = vmatprep.subr.bf16.mxu0 %v3142
    %3307 = vmatpush1.bf16.msra.mxu0 %v3141
    %3308 = vmatprep.subr.bf16.mxu0 %v3146
    %3309 = vmatpush1.bf16.msra.mxu0 %v3145
    %3310 = vmatprep.subr.bf16.mxu0 %v3150
    %3311 = vmatpush1.bf16.msra.mxu0 %v3149
    %3312 = vmatprep.subr.bf16.mxu0 %v3154
    %3313 = vmatpush1.bf16.msra.mxu0 %v3153
    %3314 = vmatprep.subr.bf16.mxu0 %v3158
    %3315 = vmatpush1.bf16.msra.mxu0 %v3157
    %3316 = vmatprep.subr.bf16.mxu0 %v3162
    %3317 = vmatpush1.bf16.msra.mxu0 %v3161
    %3318 = vmatprep.subr.bf16.mxu0 %v3166
    %3319 = vmatpush1.bf16.msra.mxu0 %v3165
    %3320 = vmatprep.subr.bf16.mxu0 %v3170
    %3321 = vmatpush1.bf16.msra.mxu0 %v3169
    %3322 = vmatprep.subr.bf16.mxu0 %v3174
    %3323 = vmatpush1.bf16.msra.mxu0 %v3173
    %3324 = vmatprep.subr.bf16.mxu0 %v3178
    %3325 = vmatpush1.bf16.msra.mxu0 %v3177
    %3326 = vmatprep.subr.bf16.mxu0 %v3182
    %3327 = vmatpush1.bf16.msra.mxu0 %v3181
    %3328 = vmatprep.subr.bf16.mxu0 %v3186
    %3329 = vmatpush1.bf16.msra.mxu0 %v3185
    %3330 = vmatprep.subr.bf16.mxu0 %v3190
    %3331 = vmatpush1.bf16.msra.mxu0 %v3189
    %3332 = vmatprep.subr.bf16.mxu0 %v3194
    %3333 = vmatpush1.bf16.msra.mxu0 %v3193
    %3334 = vmatprep.mubr.bf16.mxu0 %v2852
    %3335 = vmatmul.mubr.bf16.gmra.mrb[0].mxu0 %v2851
    %v3336 = vpop.f32.mrb[0].mxu0
    %v3337 = vadd.f32 %v2930, %v3336
    %v3338 = vpop.f32.mrb[0].mxu0
    %v3339 = vadd.f32 %v2934, %v3338
    %v3340 = vpop.f32.mrb[0].mxu0
    %v3341 = vadd.f32 %v2930, %v3340
    %v3342 = vpop.f32.mrb[0].mxu0
    %v3343 = vadd.f32 %v2934, %v3342
    %3344 = vdwg.mxu0
    %v3345 = vmax.f32 %v3294, 0.0
    %v3346 = vmax.f32 %v3296, 0.0
    %v3347 = vmax.f32 %v3337, 0.0
    %v3348 = vmax.f32 %v3339, 0.0
    %v3349 = vmax.f32 %v3298, 0.0
    %v3350 = vmax.f32 %v3300, 0.0
    %v3351 = vmax.f32 %v3341, 0.0
    %v3352 = vmax.f32 %v3343, 0.0
    %v3353 = vpack.c.bf16 %v3349, %v3345
    %v3354 = vpack.c.bf16 %v3350, %v3346
    %v3355 = vpack.c.bf16 %v3351, %v3347
    %v3356 = vpack.c.bf16 %v3352, %v3348
    %v3357 = vld [vmem:[%s12] sm:$0xff]
    %v3358 = vld [vmem:[%s12 + $0x8] sm:$0xff]
    %v3359 = vld [vmem:[%s12 + $0x10] sm:$0xff]
    %v3360 = vld [vmem:[%s12 + $0x18] sm:$0xff]
    %v3361 = vld [vmem:[%s12 + $0x20] sm:$0xff]
    %v3362 = vld [vmem:[%s12 + $0x28] sm:$0xff]
    %v3363 = vld [vmem:[%s12 + $0x30] sm:$0xff]
    %v3364 = vld [vmem:[%s12 + $0x38] sm:$0xff]
    %v3365 = vld [vmem:[%s12 + $0x40] sm:$0xff]
    %v3366 = vld [vmem:[%s12 + $0x48] sm:$0xff]
    %v3367 = vld [vmem:[%s12 + $0x50] sm:$0xff]
    %v3368 = vld [vmem:[%s12 + $0x58] sm:$0xff]
    %v3369 = vld [vmem:[%s12 + $0x60] sm:$0xff]
    %v3370 = vld [vmem:[%s12 + $0x68] sm:$0xff]
    %v3371 = vld [vmem:[%s12 + $0x70] sm:$0xff]
    %v3372 = vld [vmem:[%s12 + $0x78] sm:$0xff]
    %v3373 = vld [vmem:[%s12 + $0x80] sm:$0xff]
    %v3374 = vld [vmem:[%s12 + $0x88] sm:$0xff]
    %v3375 = vld [vmem:[%s12 + $0x90] sm:$0xff]
    %v3376 = vld [vmem:[%s12 + $0x98] sm:$0xff]
    %v3377 = vld [vmem:[%s12 + $0xa0] sm:$0xff]
    %v3378 = vld [vmem:[%s12 + $0xa8] sm:$0xff]
    %v3379 = vld [vmem:[%s12 + $0xb0] sm:$0xff]
    %v3380 = vld [vmem:[%s12 + $0xb8] sm:$0xff]
    %v3381 = vld [vmem:[%s12 + $0xc0] sm:$0xff]
    %v3382 = vld [vmem:[%s12 + $0xc8] sm:$0xff]
    %v3383 = vld [vmem:[%s12 + $0xd0] sm:$0xff]
    %v3384 = vld [vmem:[%s12 + $0xd8] sm:$0xff]
    %v3385 = vld [vmem:[%s12 + $0xe0] sm:$0xff]
    %v3386 = vld [vmem:[%s12 + $0xe8] sm:$0xff]
    %v3387 = vld [vmem:[%s12 + $0xf0] sm:$0xff]
    %v3388 = vld [vmem:[%s12 + $0xf8] sm:$0xff]
    %v3389 = vld [vmem:[%s12 + $0x100] sm:$0xff]
    %v3390 = vld [vmem:[%s12 + $0x108] sm:$0xff]
    %v3391 = vld [vmem:[%s12 + $0x110] sm:$0xff]
    %v3392 = vld [vmem:[%s12 + $0x118] sm:$0xff]
    %v3393 = vld [vmem:[%s12 + $0x120] sm:$0xff]
    %v3394 = vld [vmem:[%s12 + $0x128] sm:$0xff]
    %v3395 = vld [vmem:[%s12 + $0x130] sm:$0xff]
    %v3396 = vld [vmem:[%s12 + $0x138] sm:$0xff]
    %v3397 = vld [vmem:[%s12 + $0x140] sm:$0xff]
    %v3398 = vld [vmem:[%s12 + $0x148] sm:$0xff]
    %v3399 = vld [vmem:[%s12 + $0x150] sm:$0xff]
    %v3400 = vld [vmem:[%s12 + $0x158] sm:$0xff]
    %v3401 = vld [vmem:[%s12 + $0x160] sm:$0xff]
    %v3402 = vld [vmem:[%s12 + $0x168] sm:$0xff]
    %v3403 = vld [vmem:[%s12 + $0x170] sm:$0xff]
    %v3404 = vld [vmem:[%s12 + $0x178] sm:$0xff]
    %v3405 = vld [vmem:[%s12 + $0x180] sm:$0xff]
    %v3406 = vld [vmem:[%s12 + $0x188] sm:$0xff]
    %v3407 = vld [vmem:[%s12 + $0x190] sm:$0xff]
    %v3408 = vld [vmem:[%s12 + $0x198] sm:$0xff]
    %v3409 = vld [vmem:[%s12 + $0x1a0] sm:$0xff]
    %v3410 = vld [vmem:[%s12 + $0x1a8] sm:$0xff]
    %v3411 = vld [vmem:[%s12 + $0x1b0] sm:$0xff]
    %v3412 = vld [vmem:[%s12 + $0x1b8] sm:$0xff]
    %v3413 = vld [vmem:[%s12 + $0x1c0] sm:$0xff]
    %v3414 = vld [vmem:[%s12 + $0x1c8] sm:$0xff]
    %v3415 = vld [vmem:[%s12 + $0x1d0] sm:$0xff]
    %v3416 = vld [vmem:[%s12 + $0x1d8] sm:$0xff]
    %v3417 = vld [vmem:[%s12 + $0x1e0] sm:$0xff]
    %v3418 = vld [vmem:[%s12 + $0x1e8] sm:$0xff]
    %v3419 = vld [vmem:[%s12 + $0x1f0] sm:$0xff]
    %v3420 = vld [vmem:[%s12 + $0x1f8] sm:$0xff]
    %v3421 = vld [vmem:[%s12 + $0x200] sm:$0xff]
    %v3422 = vld [vmem:[%s12 + $0x208] sm:$0xff]
    %v3423 = vld [vmem:[%s12 + $0x210] sm:$0xff]
    %v3424 = vld [vmem:[%s12 + $0x218] sm:$0xff]
    %v3425 = vld [vmem:[%s12 + $0x220] sm:$0xff]
    %v3426 = vld [vmem:[%s12 + $0x228] sm:$0xff]
    %v3427 = vld [vmem:[%s12 + $0x230] sm:$0xff]
    %v3428 = vld [vmem:[%s12 + $0x238] sm:$0xff]
    %v3429 = vld [vmem:[%s12 + $0x240] sm:$0xff]
    %v3430 = vld [vmem:[%s12 + $0x248] sm:$0xff]
    %v3431 = vld [vmem:[%s12 + $0x250] sm:$0xff]
    %v3432 = vld [vmem:[%s12 + $0x258] sm:$0xff]
    %v3433 = vld [vmem:[%s12 + $0x260] sm:$0xff]
    %v3434 = vld [vmem:[%s12 + $0x268] sm:$0xff]
    %v3435 = vld [vmem:[%s12 + $0x270] sm:$0xff]
    %v3436 = vld [vmem:[%s12 + $0x278] sm:$0xff]
    %v3437 = vld [vmem:[%s12 + $0x280] sm:$0xff]
    %v3438 = vld [vmem:[%s12 + $0x288] sm:$0xff]
    %v3439 = vld [vmem:[%s12 + $0x290] sm:$0xff]
    %v3440 = vld [vmem:[%s12 + $0x298] sm:$0xff]
    %v3441 = vld [vmem:[%s12 + $0x2a0] sm:$0xff]
    %v3442 = vld [vmem:[%s12 + $0x2a8] sm:$0xff]
    %v3443 = vld [vmem:[%s12 + $0x2b0] sm:$0xff]
    %v3444 = vld [vmem:[%s12 + $0x2b8] sm:$0xff]
    %v3445 = vld [vmem:[%s12 + $0x2c0] sm:$0xff]
    %v3446 = vld [vmem:[%s12 + $0x2c8] sm:$0xff]
    %v3447 = vld [vmem:[%s12 + $0x2d0] sm:$0xff]
    %v3448 = vld [vmem:[%s12 + $0x2d8] sm:$0xff]
    %v3449 = vld [vmem:[%s12 + $0x2e0] sm:$0xff]
    %v3450 = vld [vmem:[%s12 + $0x2e8] sm:$0xff]
    %v3451 = vld [vmem:[%s12 + $0x2f0] sm:$0xff]
    %v3452 = vld [vmem:[%s12 + $0x2f8] sm:$0xff]
    %v3453 = vld [vmem:[%s12 + $0x300] sm:$0xff]
    %v3454 = vld [vmem:[%s12 + $0x308] sm:$0xff]
    %v3455 = vld [vmem:[%s12 + $0x310] sm:$0xff]
    %v3456 = vld [vmem:[%s12 + $0x318] sm:$0xff]
    %v3457 = vld [vmem:[%s12 + $0x320] sm:$0xff]
    %v3458 = vld [vmem:[%s12 + $0x328] sm:$0xff]
    %v3459 = vld [vmem:[%s12 + $0x330] sm:$0xff]
    %v3460 = vld [vmem:[%s12 + $0x338] sm:$0xff]
    %v3461 = vld [vmem:[%s12 + $0x340] sm:$0xff]
    %v3462 = vld [vmem:[%s12 + $0x348] sm:$0xff]
    %v3463 = vld [vmem:[%s12 + $0x350] sm:$0xff]
    %v3464 = vld [vmem:[%s12 + $0x358] sm:$0xff]
    %v3465 = vld [vmem:[%s12 + $0x360] sm:$0xff]
    %v3466 = vld [vmem:[%s12 + $0x368] sm:$0xff]
    %v3467 = vld [vmem:[%s12 + $0x370] sm:$0xff]
    %v3468 = vld [vmem:[%s12 + $0x378] sm:$0xff]
    %v3469 = vld [vmem:[%s12 + $0x380] sm:$0xff]
    %v3470 = vld [vmem:[%s12 + $0x388] sm:$0xff]
    %v3471 = vld [vmem:[%s12 + $0x390] sm:$0xff]
    %v3472 = vld [vmem:[%s12 + $0x398] sm:$0xff]
    %v3473 = vld [vmem:[%s12 + $0x3a0] sm:$0xff]
    %v3474 = vld [vmem:[%s12 + $0x3a8] sm:$0xff]
    %v3475 = vld [vmem:[%s12 + $0x3b0] sm:$0xff]
    %v3476 = vld [vmem:[%s12 + $0x3b8] sm:$0xff]
    %v3477 = vld [vmem:[%s12 + $0x3c0] sm:$0xff]
    %v3478 = vld [vmem:[%s12 + $0x3c8] sm:$0xff]
    %v3479 = vld [vmem:[%s12 + $0x3d0] sm:$0xff]
    %v3480 = vld [vmem:[%s12 + $0x3d8] sm:$0xff]
    %v3481 = vld [vmem:[%s12 + $0x3e0] sm:$0xff]
    %v3482 = vld [vmem:[%s12 + $0x3e8] sm:$0xff]
    %v3483 = vld [vmem:[%s12 + $0x3f0] sm:$0xff]
    %v3484 = vld [vmem:[%s12 + $0x3f8] sm:$0xff]
    %v3485 = vld [vmem:[%s12 + $0x400] sm:$0xff]
    %v3486 = vld [vmem:[%s12 + $0x408] sm:$0xff]
    %v3487 = vld [vmem:[%s12 + $0x410] sm:$0xff]
    %v3488 = vld [vmem:[%s12 + $0x418] sm:$0xff]
    %v3489 = vld [vmem:[%s12 + $0x420] sm:$0xff]
    %v3490 = vld [vmem:[%s12 + $0x428] sm:$0xff]
    %v3491 = vld [vmem:[%s12 + $0x430] sm:$0xff]
    %v3492 = vld [vmem:[%s12 + $0x438] sm:$0xff]
    %v3493 = vld [vmem:[%s12 + $0x440] sm:$0xff]
    %v3494 = vld [vmem:[%s12 + $0x448] sm:$0xff]
    %v3495 = vld [vmem:[%s12 + $0x450] sm:$0xff]
    %v3496 = vld [vmem:[%s12 + $0x458] sm:$0xff]
    %v3497 = vld [vmem:[%s12 + $0x460] sm:$0xff]
    %v3498 = vld [vmem:[%s12 + $0x468] sm:$0xff]
    %v3499 = vld [vmem:[%s12 + $0x470] sm:$0xff]
    %v3500 = vld [vmem:[%s12 + $0x478] sm:$0xff]
    %v3501 = vld [vmem:[%s12 + $0x480] sm:$0xff]
    %v3502 = vld [vmem:[%s12 + $0x488] sm:$0xff]
    %v3503 = vld [vmem:[%s12 + $0x490] sm:$0xff]
    %v3504 = vld [vmem:[%s12 + $0x498] sm:$0xff]
    %v3505 = vld [vmem:[%s12 + $0x4a0] sm:$0xff]
    %v3506 = vld [vmem:[%s12 + $0x4a8] sm:$0xff]
    %v3507 = vld [vmem:[%s12 + $0x4b0] sm:$0xff]
    %v3508 = vld [vmem:[%s12 + $0x4b8] sm:$0xff]
    %v3509 = vld [vmem:[%s12 + $0x4c0] sm:$0xff]
    %v3510 = vld [vmem:[%s12 + $0x4c8] sm:$0xff]
    %v3511 = vld [vmem:[%s12 + $0x4d0] sm:$0xff]
    %v3512 = vld [vmem:[%s12 + $0x4d8] sm:$0xff]
    %v3513 = vld [vmem:[%s12 + $0x4e0] sm:$0xff]
    %v3514 = vld [vmem:[%s12 + $0x4e8] sm:$0xff]
    %v3515 = vld [vmem:[%s12 + $0x4f0] sm:$0xff]
    %v3516 = vld [vmem:[%s12 + $0x4f8] sm:$0xff]
    %v3517 = vld [vmem:[%s12 + $0x500] sm:$0xff]
    %v3518 = vld [vmem:[%s12 + $0x508] sm:$0xff]
    %v3519 = vld [vmem:[%s12 + $0x510] sm:$0xff]
    %v3520 = vld [vmem:[%s12 + $0x518] sm:$0xff]
    %v3521 = vld [vmem:[%s12 + $0x520] sm:$0xff]
    %v3522 = vld [vmem:[%s12 + $0x528] sm:$0xff]
    %v3523 = vld [vmem:[%s12 + $0x530] sm:$0xff]
    %v3524 = vld [vmem:[%s12 + $0x538] sm:$0xff]
    %v3525 = vld [vmem:[%s12 + $0x540] sm:$0xff]
    %v3526 = vld [vmem:[%s12 + $0x548] sm:$0xff]
    %v3527 = vld [vmem:[%s12 + $0x550] sm:$0xff]
    %v3528 = vld [vmem:[%s12 + $0x558] sm:$0xff]
    %v3529 = vld [vmem:[%s12 + $0x560] sm:$0xff]
    %v3530 = vld [vmem:[%s12 + $0x568] sm:$0xff]
    %v3531 = vld [vmem:[%s12 + $0x570] sm:$0xff]
    %v3532 = vld [vmem:[%s12 + $0x578] sm:$0xff]
    %v3533 = vld [vmem:[%s12 + $0x580] sm:$0xff]
    %v3534 = vld [vmem:[%s12 + $0x588] sm:$0xff]
    %v3535 = vld [vmem:[%s12 + $0x590] sm:$0xff]
    %v3536 = vld [vmem:[%s12 + $0x598] sm:$0xff]
    %v3537 = vld [vmem:[%s12 + $0x5a0] sm:$0xff]
    %v3538 = vld [vmem:[%s12 + $0x5a8] sm:$0xff]
    %v3539 = vld [vmem:[%s12 + $0x5b0] sm:$0xff]
    %v3540 = vld [vmem:[%s12 + $0x5b8] sm:$0xff]
    %v3541 = vld [vmem:[%s12 + $0x5c0] sm:$0xff]
    %v3542 = vld [vmem:[%s12 + $0x5c8] sm:$0xff]
    %v3543 = vld [vmem:[%s12 + $0x5d0] sm:$0xff]
    %v3544 = vld [vmem:[%s12 + $0x5d8] sm:$0xff]
    %v3545 = vld [vmem:[%s12 + $0x5e0] sm:$0xff]
    %v3546 = vld [vmem:[%s12 + $0x5e8] sm:$0xff]
    %v3547 = vld [vmem:[%s12 + $0x5f0] sm:$0xff]
    %v3548 = vld [vmem:[%s12 + $0x5f8] sm:$0xff]
    %v3549 = vld [vmem:[%s12 + $0x600] sm:$0xff]
    %v3550 = vld [vmem:[%s12 + $0x608] sm:$0xff]
    %v3551 = vld [vmem:[%s12 + $0x610] sm:$0xff]
    %v3552 = vld [vmem:[%s12 + $0x618] sm:$0xff]
    %v3553 = vld [vmem:[%s12 + $0x620] sm:$0xff]
    %v3554 = vld [vmem:[%s12 + $0x628] sm:$0xff]
    %v3555 = vld [vmem:[%s12 + $0x630] sm:$0xff]
    %v3556 = vld [vmem:[%s12 + $0x638] sm:$0xff]
    %v3557 = vld [vmem:[%s12 + $0x640] sm:$0xff]
    %v3558 = vld [vmem:[%s12 + $0x648] sm:$0xff]
    %v3559 = vld [vmem:[%s12 + $0x650] sm:$0xff]
    %v3560 = vld [vmem:[%s12 + $0x658] sm:$0xff]
    %v3561 = vld [vmem:[%s12 + $0x660] sm:$0xff]
    %v3562 = vld [vmem:[%s12 + $0x668] sm:$0xff]
    %v3563 = vld [vmem:[%s12 + $0x670] sm:$0xff]
    %v3564 = vld [vmem:[%s12 + $0x678] sm:$0xff]
    %v3565 = vld [vmem:[%s12 + $0x680] sm:$0xff]
    %v3566 = vld [vmem:[%s12 + $0x688] sm:$0xff]
    %v3567 = vld [vmem:[%s12 + $0x690] sm:$0xff]
    %v3568 = vld [vmem:[%s12 + $0x698] sm:$0xff]
    %v3569 = vld [vmem:[%s12 + $0x6a0] sm:$0xff]
    %v3570 = vld [vmem:[%s12 + $0x6a8] sm:$0xff]
    %v3571 = vld [vmem:[%s12 + $0x6b0] sm:$0xff]
    %v3572 = vld [vmem:[%s12 + $0x6b8] sm:$0xff]
    %v3573 = vld [vmem:[%s12 + $0x6c0] sm:$0xff]
    %v3574 = vld [vmem:[%s12 + $0x6c8] sm:$0xff]
    %v3575 = vld [vmem:[%s12 + $0x6d0] sm:$0xff]
    %v3576 = vld [vmem:[%s12 + $0x6d8] sm:$0xff]
    %v3577 = vld [vmem:[%s12 + $0x6e0] sm:$0xff]
    %v3578 = vld [vmem:[%s12 + $0x6e8] sm:$0xff]
    %v3579 = vld [vmem:[%s12 + $0x6f0] sm:$0xff]
    %v3580 = vld [vmem:[%s12 + $0x6f8] sm:$0xff]
    %v3581 = vld [vmem:[%s12 + $0x700] sm:$0xff]
    %v3582 = vld [vmem:[%s12 + $0x708] sm:$0xff]
    %v3583 = vld [vmem:[%s12 + $0x710] sm:$0xff]
    %v3584 = vld [vmem:[%s12 + $0x718] sm:$0xff]
    %v3585 = vld [vmem:[%s12 + $0x720] sm:$0xff]
    %v3586 = vld [vmem:[%s12 + $0x728] sm:$0xff]
    %v3587 = vld [vmem:[%s12 + $0x730] sm:$0xff]
    %v3588 = vld [vmem:[%s12 + $0x738] sm:$0xff]
    %v3589 = vld [vmem:[%s12 + $0x740] sm:$0xff]
    %v3590 = vld [vmem:[%s12 + $0x748] sm:$0xff]
    %v3591 = vld [vmem:[%s12 + $0x750] sm:$0xff]
    %v3592 = vld [vmem:[%s12 + $0x758] sm:$0xff]
    %v3593 = vld [vmem:[%s12 + $0x760] sm:$0xff]
    %v3594 = vld [vmem:[%s12 + $0x768] sm:$0xff]
    %v3595 = vld [vmem:[%s12 + $0x770] sm:$0xff]
    %v3596 = vld [vmem:[%s12 + $0x778] sm:$0xff]
    %v3597 = vld [vmem:[%s12 + $0x780] sm:$0xff]
    %v3598 = vld [vmem:[%s12 + $0x788] sm:$0xff]
    %v3599 = vld [vmem:[%s12 + $0x790] sm:$0xff]
    %v3600 = vld [vmem:[%s12 + $0x798] sm:$0xff]
    %v3601 = vld [vmem:[%s12 + $0x7a0] sm:$0xff]
    %v3602 = vld [vmem:[%s12 + $0x7a8] sm:$0xff]
    %v3603 = vld [vmem:[%s12 + $0x7b0] sm:$0xff]
    %v3604 = vld [vmem:[%s12 + $0x7b8] sm:$0xff]
    %v3605 = vld [vmem:[%s12 + $0x7c0] sm:$0xff]
    %v3606 = vld [vmem:[%s12 + $0x7c8] sm:$0xff]
    %v3607 = vld [vmem:[%s12 + $0x7d0] sm:$0xff]
    %v3608 = vld [vmem:[%s12 + $0x7d8] sm:$0xff]
    %v3609 = vld [vmem:[%s12 + $0x7e0] sm:$0xff]
    %v3610 = vld [vmem:[%s12 + $0x7e8] sm:$0xff]
    %v3611 = vld [vmem:[%s12 + $0x7f0] sm:$0xff]
    %v3612 = vld [vmem:[%s12 + $0x7f8] sm:$0xff]
    %v3613 = vld [vmem:[%s13] sm:$0xff]
    %v3615 = vlaneseq
    %v3616 = vshrl.u32 %v3615, 7
    %v3617 = vsub.s32 0, %v3616
    %v3618 = vrot.slane %v3613, %v3617
    %v3619 = vlaneseq
    %v3620 = vshrl.u32 %v3619, 7
    %v3621 = vsub.s32 1, %v3620
    %v3622 = vrot.slane %v3613, %v3621
    %v3623 = vlaneseq
    %v3624 = vshrl.u32 %v3623, 7
    %v3625 = vsub.s32 2, %v3624
    %v3626 = vrot.slane %v3613, %v3625
    %v3627 = vlaneseq
    %v3628 = vshrl.u32 %v3627, 7
    %v3629 = vsub.s32 3, %v3628
    %v3630 = vrot.slane %v3613, %v3629
    %v3631 = vlaneseq
    %v3632 = vshrl.u32 %v3631, 7
    %v3633 = vsub.s32 4, %v3632
    %v3634 = vrot.slane %v3613, %v3633
    %v3635 = vlaneseq
    %v3636 = vshrl.u32 %v3635, 7
    %v3637 = vsub.s32 5, %v3636
    %v3638 = vrot.slane %v3613, %v3637
    %v3639 = vlaneseq
    %v3640 = vshrl.u32 %v3639, 7
    %v3641 = vsub.s32 6, %v3640
    %v3642 = vrot.slane %v3613, %v3641
    %v3643 = vlaneseq
    %v3644 = vshrl.u32 %v3643, 7
    %v3645 = vsub.s32 7, %v3644
    %v3646 = vrot.slane %v3613, %v3645
    %v3911 = vunpack.c.l.b16 %v3357
    %v3912 = vunpack.c.h.b16 %v3357
    %v3913 = vunpack.c.l.b16 %v3358
    %v3914 = vunpack.c.h.b16 %v3358
    %v3915 = vunpack.c.l.b16 %v3359
    %v3916 = vunpack.c.h.b16 %v3359
    %v3917 = vunpack.c.l.b16 %v3360
    %v3918 = vunpack.c.h.b16 %v3360
    %v3919 = vunpack.c.l.b16 %v3361
    %v3920 = vunpack.c.h.b16 %v3361
    %v3921 = vunpack.c.l.b16 %v3362
    %v3922 = vunpack.c.h.b16 %v3362
    %v3923 = vunpack.c.l.b16 %v3363
    %v3924 = vunpack.c.h.b16 %v3363
    %v3925 = vunpack.c.l.b16 %v3364
    %v3926 = vunpack.c.h.b16 %v3364
    %v3927 = vunpack.c.l.b16 %v3365
    %v3928 = vunpack.c.h.b16 %v3365
    %v3929 = vunpack.c.l.b16 %v3366
    %v3930 = vunpack.c.h.b16 %v3366
    %v3931 = vunpack.c.l.b16 %v3367
    %v3932 = vunpack.c.h.b16 %v3367
    %v3933 = vunpack.c.l.b16 %v3368
    %v3934 = vunpack.c.h.b16 %v3368
    %v3935 = vunpack.c.l.b16 %v3369
    %v3936 = vunpack.c.h.b16 %v3369
    %v3937 = vunpack.c.l.b16 %v3370
    %v3938 = vunpack.c.h.b16 %v3370
    %v3939 = vunpack.c.l.b16 %v3371
    %v3940 = vunpack.c.h.b16 %v3371
    %v3941 = vunpack.c.l.b16 %v3372
    %v3942 = vunpack.c.h.b16 %v3372
    %v3943 = vunpack.c.l.b16 %v3373
    %v3944 = vunpack.c.h.b16 %v3373
    %v3945 = vunpack.c.l.b16 %v3374
    %v3946 = vunpack.c.h.b16 %v3374
    %v3947 = vunpack.c.l.b16 %v3375
    %v3948 = vunpack.c.h.b16 %v3375
    %v3949 = vunpack.c.l.b16 %v3376
    %v3950 = vunpack.c.h.b16 %v3376
    %v3951 = vunpack.c.l.b16 %v3377
    %v3952 = vunpack.c.h.b16 %v3377
    %v3953 = vunpack.c.l.b16 %v3378
    %v3954 = vunpack.c.h.b16 %v3378
    %v3955 = vunpack.c.l.b16 %v3379
    %v3956 = vunpack.c.h.b16 %v3379
    %v3957 = vunpack.c.l.b16 %v3380
    %v3958 = vunpack.c.h.b16 %v3380
    %v3959 = vunpack.c.l.b16 %v3381
    %v3960 = vunpack.c.h.b16 %v3381
    %v3961 = vunpack.c.l.b16 %v3382
    %v3962 = vunpack.c.h.b16 %v3382
    %v3963 = vunpack.c.l.b16 %v3383
    %v3964 = vunpack.c.h.b16 %v3383
    %v3965 = vunpack.c.l.b16 %v3384
    %v3966 = vunpack.c.h.b16 %v3384
    %v3967 = vunpack.c.l.b16 %v3385
    %v3968 = vunpack.c.h.b16 %v3385
    %v3969 = vunpack.c.l.b16 %v3386
    %v3970 = vunpack.c.h.b16 %v3386
    %v3971 = vunpack.c.l.b16 %v3387
    %v3972 = vunpack.c.h.b16 %v3387
    %v3973 = vunpack.c.l.b16 %v3388
    %v3974 = vunpack.c.h.b16 %v3388
    %v3975 = vunpack.c.l.b16 %v3389
    %v3976 = vunpack.c.h.b16 %v3389
    %v3977 = vunpack.c.l.b16 %v3390
    %v3978 = vunpack.c.h.b16 %v3390
    %v3979 = vunpack.c.l.b16 %v3391
    %v3980 = vunpack.c.h.b16 %v3391
    %v3981 = vunpack.c.l.b16 %v3392
    %v3982 = vunpack.c.h.b16 %v3392
    %v3983 = vunpack.c.l.b16 %v3393
    %v3984 = vunpack.c.h.b16 %v3393
    %v3985 = vunpack.c.l.b16 %v3394
    %v3986 = vunpack.c.h.b16 %v3394
    %v3987 = vunpack.c.l.b16 %v3395
    %v3988 = vunpack.c.h.b16 %v3395
    %v3989 = vunpack.c.l.b16 %v3396
    %v3990 = vunpack.c.h.b16 %v3396
    %v3991 = vunpack.c.l.b16 %v3397
    %v3992 = vunpack.c.h.b16 %v3397
    %v3993 = vunpack.c.l.b16 %v3398
    %v3994 = vunpack.c.h.b16 %v3398
    %v3995 = vunpack.c.l.b16 %v3399
    %v3996 = vunpack.c.h.b16 %v3399
    %v3997 = vunpack.c.l.b16 %v3400
    %v3998 = vunpack.c.h.b16 %v3400
    %v3999 = vunpack.c.l.b16 %v3401
    %v4000 = vunpack.c.h.b16 %v3401
    %v4001 = vunpack.c.l.b16 %v3402
    %v4002 = vunpack.c.h.b16 %v3402
    %v4003 = vunpack.c.l.b16 %v3403
    %v4004 = vunpack.c.h.b16 %v3403
    %v4005 = vunpack.c.l.b16 %v3404
    %v4006 = vunpack.c.h.b16 %v3404
    %v4007 = vunpack.c.l.b16 %v3405
    %v4008 = vunpack.c.h.b16 %v3405
    %v4009 = vunpack.c.l.b16 %v3406
    %v4010 = vunpack.c.h.b16 %v3406
    %v4011 = vunpack.c.l.b16 %v3407
    %v4012 = vunpack.c.h.b16 %v3407
    %v4013 = vunpack.c.l.b16 %v3408
    %v4014 = vunpack.c.h.b16 %v3408
    %v4015 = vunpack.c.l.b16 %v3409
    %v4016 = vunpack.c.h.b16 %v3409
    %v4017 = vunpack.c.l.b16 %v3410
    %v4018 = vunpack.c.h.b16 %v3410
    %v4019 = vunpack.c.l.b16 %v3411
    %v4020 = vunpack.c.h.b16 %v3411
    %v4021 = vunpack.c.l.b16 %v3412
    %v4022 = vunpack.c.h.b16 %v3412
    %v4023 = vunpack.c.l.b16 %v3413
    %v4024 = vunpack.c.h.b16 %v3413
    %v4025 = vunpack.c.l.b16 %v3414
    %v4026 = vunpack.c.h.b16 %v3414
    %v4027 = vunpack.c.l.b16 %v3415
    %v4028 = vunpack.c.h.b16 %v3415
    %v4029 = vunpack.c.l.b16 %v3416
    %v4030 = vunpack.c.h.b16 %v3416
    %v4031 = vunpack.c.l.b16 %v3417
    %v4032 = vunpack.c.h.b16 %v3417
    %v4033 = vunpack.c.l.b16 %v3418
    %v4034 = vunpack.c.h.b16 %v3418
    %v4035 = vunpack.c.l.b16 %v3419
    %v4036 = vunpack.c.h.b16 %v3419
    %v4037 = vunpack.c.l.b16 %v3420
    %v4038 = vunpack.c.h.b16 %v3420
    %v4039 = vunpack.c.l.b16 %v3421
    %v4040 = vunpack.c.h.b16 %v3421
    %v4041 = vunpack.c.l.b16 %v3422
    %v4042 = vunpack.c.h.b16 %v3422
    %v4043 = vunpack.c.l.b16 %v3423
    %v4044 = vunpack.c.h.b16 %v3423
    %v4045 = vunpack.c.l.b16 %v3424
    %v4046 = vunpack.c.h.b16 %v3424
    %v4047 = vunpack.c.l.b16 %v3425
    %v4048 = vunpack.c.h.b16 %v3425
    %v4049 = vunpack.c.l.b16 %v3426
    %v4050 = vunpack.c.h.b16 %v3426
    %v4051 = vunpack.c.l.b16 %v3427
    %v4052 = vunpack.c.h.b16 %v3427
    %v4053 = vunpack.c.l.b16 %v3428
    %v4054 = vunpack.c.h.b16 %v3428
    %v4055 = vunpack.c.l.b16 %v3429
    %v4056 = vunpack.c.h.b16 %v3429
    %v4057 = vunpack.c.l.b16 %v3430
    %v4058 = vunpack.c.h.b16 %v3430
    %v4059 = vunpack.c.l.b16 %v3431
    %v4060 = vunpack.c.h.b16 %v3431
    %v4061 = vunpack.c.l.b16 %v3432
    %v4062 = vunpack.c.h.b16 %v3432
    %v4063 = vunpack.c.l.b16 %v3433
    %v4064 = vunpack.c.h.b16 %v3433
    %v4065 = vunpack.c.l.b16 %v3434
    %v4066 = vunpack.c.h.b16 %v3434
    %v4067 = vunpack.c.l.b16 %v3435
    %v4068 = vunpack.c.h.b16 %v3435
    %v4069 = vunpack.c.l.b16 %v3436
    %v4070 = vunpack.c.h.b16 %v3436
    %v4071 = vunpack.c.l.b16 %v3437
    %v4072 = vunpack.c.h.b16 %v3437
    %v4073 = vunpack.c.l.b16 %v3438
    %v4074 = vunpack.c.h.b16 %v3438
    %v4075 = vunpack.c.l.b16 %v3439
    %v4076 = vunpack.c.h.b16 %v3439
    %v4077 = vunpack.c.l.b16 %v3440
    %v4078 = vunpack.c.h.b16 %v3440
    %v4079 = vunpack.c.l.b16 %v3441
    %v4080 = vunpack.c.h.b16 %v3441
    %v4081 = vunpack.c.l.b16 %v3442
    %v4082 = vunpack.c.h.b16 %v3442
    %v4083 = vunpack.c.l.b16 %v3443
    %v4084 = vunpack.c.h.b16 %v3443
    %v4085 = vunpack.c.l.b16 %v3444
    %v4086 = vunpack.c.h.b16 %v3444
    %v4087 = vunpack.c.l.b16 %v3445
    %v4088 = vunpack.c.h.b16 %v3445
    %v4089 = vunpack.c.l.b16 %v3446
    %v4090 = vunpack.c.h.b16 %v3446
    %v4091 = vunpack.c.l.b16 %v3447
    %v4092 = vunpack.c.h.b16 %v3447
    %v4093 = vunpack.c.l.b16 %v3448
    %v4094 = vunpack.c.h.b16 %v3448
    %v4095 = vunpack.c.l.b16 %v3449
    %v4096 = vunpack.c.h.b16 %v3449
    %v4097 = vunpack.c.l.b16 %v3450
    %v4098 = vunpack.c.h.b16 %v3450
    %v4099 = vunpack.c.l.b16 %v3451
    %v4100 = vunpack.c.h.b16 %v3451
    %v4101 = vunpack.c.l.b16 %v3452
    %v4102 = vunpack.c.h.b16 %v3452
    %v4103 = vunpack.c.l.b16 %v3453
    %v4104 = vunpack.c.h.b16 %v3453
    %v4105 = vunpack.c.l.b16 %v3454
    %v4106 = vunpack.c.h.b16 %v3454
    %v4107 = vunpack.c.l.b16 %v3455
    %v4108 = vunpack.c.h.b16 %v3455
    %v4109 = vunpack.c.l.b16 %v3456
    %v4110 = vunpack.c.h.b16 %v3456
    %v4111 = vunpack.c.l.b16 %v3457
    %v4112 = vunpack.c.h.b16 %v3457
    %v4113 = vunpack.c.l.b16 %v3458
    %v4114 = vunpack.c.h.b16 %v3458
    %v4115 = vunpack.c.l.b16 %v3459
    %v4116 = vunpack.c.h.b16 %v3459
    %v4117 = vunpack.c.l.b16 %v3460
    %v4118 = vunpack.c.h.b16 %v3460
    %v4119 = vunpack.c.l.b16 %v3461
    %v4120 = vunpack.c.h.b16 %v3461
    %v4121 = vunpack.c.l.b16 %v3462
    %v4122 = vunpack.c.h.b16 %v3462
    %v4123 = vunpack.c.l.b16 %v3463
    %v4124 = vunpack.c.h.b16 %v3463
    %v4125 = vunpack.c.l.b16 %v3464
    %v4126 = vunpack.c.h.b16 %v3464
    %v4127 = vunpack.c.l.b16 %v3465
    %v4128 = vunpack.c.h.b16 %v3465
    %v4129 = vunpack.c.l.b16 %v3466
    %v4130 = vunpack.c.h.b16 %v3466
    %v4131 = vunpack.c.l.b16 %v3467
    %v4132 = vunpack.c.h.b16 %v3467
    %v4133 = vunpack.c.l.b16 %v3468
    %v4134 = vunpack.c.h.b16 %v3468
    %v4135 = vunpack.c.l.b16 %v3469
    %v4136 = vunpack.c.h.b16 %v3469
    %v4137 = vunpack.c.l.b16 %v3470
    %v4138 = vunpack.c.h.b16 %v3470
    %v4139 = vunpack.c.l.b16 %v3471
    %v4140 = vunpack.c.h.b16 %v3471
    %v4141 = vunpack.c.l.b16 %v3472
    %v4142 = vunpack.c.h.b16 %v3472
    %v4143 = vunpack.c.l.b16 %v3473
    %v4144 = vunpack.c.h.b16 %v3473
    %v4145 = vunpack.c.l.b16 %v3474
    %v4146 = vunpack.c.h.b16 %v3474
    %v4147 = vunpack.c.l.b16 %v3475
    %v4148 = vunpack.c.h.b16 %v3475
    %v4149 = vunpack.c.l.b16 %v3476
    %v4150 = vunpack.c.h.b16 %v3476
    %v4151 = vunpack.c.l.b16 %v3477
    %v4152 = vunpack.c.h.b16 %v3477
    %v4153 = vunpack.c.l.b16 %v3478
    %v4154 = vunpack.c.h.b16 %v3478
    %v4155 = vunpack.c.l.b16 %v3479
    %v4156 = vunpack.c.h.b16 %v3479
    %v4157 = vunpack.c.l.b16 %v3480
    %v4158 = vunpack.c.h.b16 %v3480
    %v4159 = vunpack.c.l.b16 %v3481
    %v4160 = vunpack.c.h.b16 %v3481
    %v4161 = vunpack.c.l.b16 %v3482
    %v4162 = vunpack.c.h.b16 %v3482
    %v4163 = vunpack.c.l.b16 %v3483
    %v4164 = vunpack.c.h.b16 %v3483
    %v4165 = vunpack.c.l.b16 %v3484
    %v4166 = vunpack.c.h.b16 %v3484
    %v4167 = vunpack.c.l.b16 %v3485
    %v4168 = vunpack.c.h.b16 %v3485
    %v4169 = vunpack.c.l.b16 %v3486
    %v4170 = vunpack.c.h.b16 %v3486
    %v4171 = vunpack.c.l.b16 %v3487
    %v4172 = vunpack.c.h.b16 %v3487
    %v4173 = vunpack.c.l.b16 %v3488
    %v4174 = vunpack.c.h.b16 %v3488
    %v4175 = vunpack.c.l.b16 %v3489
    %v4176 = vunpack.c.h.b16 %v3489
    %v4177 = vunpack.c.l.b16 %v3490
    %v4178 = vunpack.c.h.b16 %v3490
    %v4179 = vunpack.c.l.b16 %v3491
    %v4180 = vunpack.c.h.b16 %v3491
    %v4181 = vunpack.c.l.b16 %v3492
    %v4182 = vunpack.c.h.b16 %v3492
    %v4183 = vunpack.c.l.b16 %v3493
    %v4184 = vunpack.c.h.b16 %v3493
    %v4185 = vunpack.c.l.b16 %v3494
    %v4186 = vunpack.c.h.b16 %v3494
    %v4187 = vunpack.c.l.b16 %v3495
    %v4188 = vunpack.c.h.b16 %v3495
    %v4189 = vunpack.c.l.b16 %v3496
    %v4190 = vunpack.c.h.b16 %v3496
    %v4191 = vunpack.c.l.b16 %v3497
    %v4192 = vunpack.c.h.b16 %v3497
    %v4193 = vunpack.c.l.b16 %v3498
    %v4194 = vunpack.c.h.b16 %v3498
    %v4195 = vunpack.c.l.b16 %v3499
    %v4196 = vunpack.c.h.b16 %v3499
    %v4197 = vunpack.c.l.b16 %v3500
    %v4198 = vunpack.c.h.b16 %v3500
    %v4199 = vunpack.c.l.b16 %v3501
    %v4200 = vunpack.c.h.b16 %v3501
    %v4201 = vunpack.c.l.b16 %v3502
    %v4202 = vunpack.c.h.b16 %v3502
    %v4203 = vunpack.c.l.b16 %v3503
    %v4204 = vunpack.c.h.b16 %v3503
    %v4205 = vunpack.c.l.b16 %v3504
    %v4206 = vunpack.c.h.b16 %v3504
    %v4207 = vunpack.c.l.b16 %v3505
    %v4208 = vunpack.c.h.b16 %v3505
    %v4209 = vunpack.c.l.b16 %v3506
    %v4210 = vunpack.c.h.b16 %v3506
    %v4211 = vunpack.c.l.b16 %v3507
    %v4212 = vunpack.c.h.b16 %v3507
    %v4213 = vunpack.c.l.b16 %v3508
    %v4214 = vunpack.c.h.b16 %v3508
    %v4215 = vunpack.c.l.b16 %v3509
    %v4216 = vunpack.c.h.b16 %v3509
    %v4217 = vunpack.c.l.b16 %v3510
    %v4218 = vunpack.c.h.b16 %v3510
    %v4219 = vunpack.c.l.b16 %v3511
    %v4220 = vunpack.c.h.b16 %v3511
    %v4221 = vunpack.c.l.b16 %v3512
    %v4222 = vunpack.c.h.b16 %v3512
    %v4223 = vunpack.c.l.b16 %v3513
    %v4224 = vunpack.c.h.b16 %v3513
    %v4225 = vunpack.c.l.b16 %v3514
    %v4226 = vunpack.c.h.b16 %v3514
    %v4227 = vunpack.c.l.b16 %v3515
    %v4228 = vunpack.c.h.b16 %v3515
    %v4229 = vunpack.c.l.b16 %v3516
    %v4230 = vunpack.c.h.b16 %v3516
    %v4231 = vunpack.c.l.b16 %v3517
    %v4232 = vunpack.c.h.b16 %v3517
    %v4233 = vunpack.c.l.b16 %v3518
    %v4234 = vunpack.c.h.b16 %v3518
    %v4235 = vunpack.c.l.b16 %v3519
    %v4236 = vunpack.c.h.b16 %v3519
    %v4237 = vunpack.c.l.b16 %v3520
    %v4238 = vunpack.c.h.b16 %v3520
    %v4239 = vunpack.c.l.b16 %v3521
    %v4240 = vunpack.c.h.b16 %v3521
    %v4241 = vunpack.c.l.b16 %v3522
    %v4242 = vunpack.c.h.b16 %v3522
    %v4243 = vunpack.c.l.b16 %v3523
    %v4244 = vunpack.c.h.b16 %v3523
    %v4245 = vunpack.c.l.b16 %v3524
    %v4246 = vunpack.c.h.b16 %v3524
    %v4247 = vunpack.c.l.b16 %v3525
    %v4248 = vunpack.c.h.b16 %v3525
    %v4249 = vunpack.c.l.b16 %v3526
    %v4250 = vunpack.c.h.b16 %v3526
    %v4251 = vunpack.c.l.b16 %v3527
    %v4252 = vunpack.c.h.b16 %v3527
    %v4253 = vunpack.c.l.b16 %v3528
    %v4254 = vunpack.c.h.b16 %v3528
    %v4255 = vunpack.c.l.b16 %v3529
    %v4256 = vunpack.c.h.b16 %v3529
    %v4257 = vunpack.c.l.b16 %v3530
    %v4258 = vunpack.c.h.b16 %v3530
    %v4259 = vunpack.c.l.b16 %v3531
    %v4260 = vunpack.c.h.b16 %v3531
    %v4261 = vunpack.c.l.b16 %v3532
    %v4262 = vunpack.c.h.b16 %v3532
    %v4263 = vunpack.c.l.b16 %v3533
    %v4264 = vunpack.c.h.b16 %v3533
    %v4265 = vunpack.c.l.b16 %v3534
    %v4266 = vunpack.c.h.b16 %v3534
    %v4267 = vunpack.c.l.b16 %v3535
    %v4268 = vunpack.c.h.b16 %v3535
    %v4269 = vunpack.c.l.b16 %v3536
    %v4270 = vunpack.c.h.b16 %v3536
    %v4271 = vunpack.c.l.b16 %v3537
    %v4272 = vunpack.c.h.b16 %v3537
    %v4273 = vunpack.c.l.b16 %v3538
    %v4274 = vunpack.c.h.b16 %v3538
    %v4275 = vunpack.c.l.b16 %v3539
    %v4276 = vunpack.c.h.b16 %v3539
    %v4277 = vunpack.c.l.b16 %v3540
    %v4278 = vunpack.c.h.b16 %v3540
    %v4279 = vunpack.c.l.b16 %v3541
    %v4280 = vunpack.c.h.b16 %v3541
    %v4281 = vunpack.c.l.b16 %v3542
    %v4282 = vunpack.c.h.b16 %v3542
    %v4283 = vunpack.c.l.b16 %v3543
    %v4284 = vunpack.c.h.b16 %v3543
    %v4285 = vunpack.c.l.b16 %v3544
    %v4286 = vunpack.c.h.b16 %v3544
    %v4287 = vunpack.c.l.b16 %v3545
    %v4288 = vunpack.c.h.b16 %v3545
    %v4289 = vunpack.c.l.b16 %v3546
    %v4290 = vunpack.c.h.b16 %v3546
    %v4291 = vunpack.c.l.b16 %v3547
    %v4292 = vunpack.c.h.b16 %v3547
    %v4293 = vunpack.c.l.b16 %v3548
    %v4294 = vunpack.c.h.b16 %v3548
    %v4295 = vunpack.c.l.b16 %v3549
    %v4296 = vunpack.c.h.b16 %v3549
    %v4297 = vunpack.c.l.b16 %v3550
    %v4298 = vunpack.c.h.b16 %v3550
    %v4299 = vunpack.c.l.b16 %v3551
    %v4300 = vunpack.c.h.b16 %v3551
    %v4301 = vunpack.c.l.b16 %v3552
    %v4302 = vunpack.c.h.b16 %v3552
    %v4303 = vunpack.c.l.b16 %v3553
    %v4304 = vunpack.c.h.b16 %v3553
    %v4305 = vunpack.c.l.b16 %v3554
    %v4306 = vunpack.c.h.b16 %v3554
    %v4307 = vunpack.c.l.b16 %v3555
    %v4308 = vunpack.c.h.b16 %v3555
    %v4309 = vunpack.c.l.b16 %v3556
    %v4310 = vunpack.c.h.b16 %v3556
    %v4311 = vunpack.c.l.b16 %v3557
    %v4312 = vunpack.c.h.b16 %v3557
    %v4313 = vunpack.c.l.b16 %v3558
    %v4314 = vunpack.c.h.b16 %v3558
    %v4315 = vunpack.c.l.b16 %v3559
    %v4316 = vunpack.c.h.b16 %v3559
    %v4317 = vunpack.c.l.b16 %v3560
    %v4318 = vunpack.c.h.b16 %v3560
    %v4319 = vunpack.c.l.b16 %v3561
    %v4320 = vunpack.c.h.b16 %v3561
    %v4321 = vunpack.c.l.b16 %v3562
    %v4322 = vunpack.c.h.b16 %v3562
    %v4323 = vunpack.c.l.b16 %v3563
    %v4324 = vunpack.c.h.b16 %v3563
    %v4325 = vunpack.c.l.b16 %v3564
    %v4326 = vunpack.c.h.b16 %v3564
    %v4327 = vunpack.c.l.b16 %v3565
    %v4328 = vunpack.c.h.b16 %v3565
    %v4329 = vunpack.c.l.b16 %v3566
    %v4330 = vunpack.c.h.b16 %v3566
    %v4331 = vunpack.c.l.b16 %v3567
    %v4332 = vunpack.c.h.b16 %v3567
    %v4333 = vunpack.c.l.b16 %v3568
    %v4334 = vunpack.c.h.b16 %v3568
    %v4335 = vunpack.c.l.b16 %v3569
    %v4336 = vunpack.c.h.b16 %v3569
    %v4337 = vunpack.c.l.b16 %v3570
    %v4338 = vunpack.c.h.b16 %v3570
    %v4339 = vunpack.c.l.b16 %v3571
    %v4340 = vunpack.c.h.b16 %v3571
    %v4341 = vunpack.c.l.b16 %v3572
    %v4342 = vunpack.c.h.b16 %v3572
    %v4343 = vunpack.c.l.b16 %v3573
    %v4344 = vunpack.c.h.b16 %v3573
    %v4345 = vunpack.c.l.b16 %v3574
    %v4346 = vunpack.c.h.b16 %v3574
    %v4347 = vunpack.c.l.b16 %v3575
    %v4348 = vunpack.c.h.b16 %v3575
    %v4349 = vunpack.c.l.b16 %v3576
    %v4350 = vunpack.c.h.b16 %v3576
    %v4351 = vunpack.c.l.b16 %v3577
    %v4352 = vunpack.c.h.b16 %v3577
    %v4353 = vunpack.c.l.b16 %v3578
    %v4354 = vunpack.c.h.b16 %v3578
    %v4355 = vunpack.c.l.b16 %v3579
    %v4356 = vunpack.c.h.b16 %v3579
    %v4357 = vunpack.c.l.b16 %v3580
    %v4358 = vunpack.c.h.b16 %v3580
    %v4359 = vunpack.c.l.b16 %v3581
    %v4360 = vunpack.c.h.b16 %v3581
    %v4361 = vunpack.c.l.b16 %v3582
    %v4362 = vunpack.c.h.b16 %v3582
    %v4363 = vunpack.c.l.b16 %v3583
    %v4364 = vunpack.c.h.b16 %v3583
    %v4365 = vunpack.c.l.b16 %v3584
    %v4366 = vunpack.c.h.b16 %v3584
    %v4367 = vunpack.c.l.b16 %v3585
    %v4368 = vunpack.c.h.b16 %v3585
    %v4369 = vunpack.c.l.b16 %v3586
    %v4370 = vunpack.c.h.b16 %v3586
    %v4371 = vunpack.c.l.b16 %v3587
    %v4372 = vunpack.c.h.b16 %v3587
    %v4373 = vunpack.c.l.b16 %v3588
    %v4374 = vunpack.c.h.b16 %v3588
    %v4375 = vunpack.c.l.b16 %v3589
    %v4376 = vunpack.c.h.b16 %v3589
    %v4377 = vunpack.c.l.b16 %v3590
    %v4378 = vunpack.c.h.b16 %v3590
    %v4379 = vunpack.c.l.b16 %v3591
    %v4380 = vunpack.c.h.b16 %v3591
    %v4381 = vunpack.c.l.b16 %v3592
    %v4382 = vunpack.c.h.b16 %v3592
    %v4383 = vunpack.c.l.b16 %v3593
    %v4384 = vunpack.c.h.b16 %v3593
    %v4385 = vunpack.c.l.b16 %v3594
    %v4386 = vunpack.c.h.b16 %v3594
    %v4387 = vunpack.c.l.b16 %v3595
    %v4388 = vunpack.c.h.b16 %v3595
    %v4389 = vunpack.c.l.b16 %v3596
    %v4390 = vunpack.c.h.b16 %v3596
    %v4391 = vunpack.c.l.b16 %v3597
    %v4392 = vunpack.c.h.b16 %v3597
    %v4393 = vunpack.c.l.b16 %v3598
    %v4394 = vunpack.c.h.b16 %v3598
    %v4395 = vunpack.c.l.b16 %v3599
    %v4396 = vunpack.c.h.b16 %v3599
    %v4397 = vunpack.c.l.b16 %v3600
    %v4398 = vunpack.c.h.b16 %v3600
    %v4399 = vunpack.c.l.b16 %v3601
    %v4400 = vunpack.c.h.b16 %v3601
    %v4401 = vunpack.c.l.b16 %v3602
    %v4402 = vunpack.c.h.b16 %v3602
    %v4403 = vunpack.c.l.b16 %v3603
    %v4404 = vunpack.c.h.b16 %v3603
    %v4405 = vunpack.c.l.b16 %v3604
    %v4406 = vunpack.c.h.b16 %v3604
    %v4407 = vunpack.c.l.b16 %v3605
    %v4408 = vunpack.c.h.b16 %v3605
    %v4409 = vunpack.c.l.b16 %v3606
    %v4410 = vunpack.c.h.b16 %v3606
    %v4411 = vunpack.c.l.b16 %v3607
    %v4412 = vunpack.c.h.b16 %v3607
    %v4413 = vunpack.c.l.b16 %v3608
    %v4414 = vunpack.c.h.b16 %v3608
    %v4415 = vunpack.c.l.b16 %v3609
    %v4416 = vunpack.c.h.b16 %v3609
    %v4417 = vunpack.c.l.b16 %v3610
    %v4418 = vunpack.c.h.b16 %v3610
    %v4419 = vunpack.c.l.b16 %v3611
    %v4420 = vunpack.c.h.b16 %v3611
    %v4421 = vunpack.c.l.b16 %v3612
    %v4422 = vunpack.c.h.b16 %v3612
    %v4423 = vpack.c.b16 %v3919, %v3911
    %v4424 = vpack.c.b16 %v3920, %v3912
    %v4425 = vpack.c.b16 %v3921, %v3913
    %v4426 = vpack.c.b16 %v3922, %v3914
    %v4427 = vpack.c.b16 %v3923, %v3915
    %v4428 = vpack.c.b16 %v3924, %v3916
    %v4429 = vpack.c.b16 %v3925, %v3917
    %v4430 = vpack.c.b16 %v3926, %v3918
    %v4431 = vpack.c.b16 %v3935, %v3927
    %v4432 = vpack.c.b16 %v3936, %v3928
    %v4433 = vpack.c.b16 %v3937, %v3929
    %v4434 = vpack.c.b16 %v3938, %v3930
    %v4435 = vpack.c.b16 %v3939, %v3931
    %v4436 = vpack.c.b16 %v3940, %v3932
    %v4437 = vpack.c.b16 %v3941, %v3933
    %v4438 = vpack.c.b16 %v3942, %v3934
    %v4439 = vpack.c.b16 %v3951, %v3943
    %v4440 = vpack.c.b16 %v3952, %v3944
    %v4441 = vpack.c.b16 %v3953, %v3945
    %v4442 = vpack.c.b16 %v3954, %v3946
    %v4443 = vpack.c.b16 %v3955, %v3947
    %v4444 = vpack.c.b16 %v3956, %v3948
    %v4445 = vpack.c.b16 %v3957, %v3949
    %v4446 = vpack.c.b16 %v3958, %v3950
    %v4447 = vpack.c.b16 %v3967, %v3959
    %v4448 = vpack.c.b16 %v3968, %v3960
    %v4449 = vpack.c.b16 %v3969, %v3961
    %v4450 = vpack.c.b16 %v3970, %v3962
    %v4451 = vpack.c.b16 %v3971, %v3963
    %v4452 = vpack.c.b16 %v3972, %v3964
    %v4453 = vpack.c.b16 %v3973, %v3965
    %v4454 = vpack.c.b16 %v3974, %v3966
    %v4455 = vpack.c.b16 %v3983, %v3975
    %v4456 = vpack.c.b16 %v3984, %v3976
    %v4457 = vpack.c.b16 %v3985, %v3977
    %v4458 = vpack.c.b16 %v3986, %v3978
    %v4459 = vpack.c.b16 %v3987, %v3979
    %v4460 = vpack.c.b16 %v3988, %v3980
    %v4461 = vpack.c.b16 %v3989, %v3981
    %v4462 = vpack.c.b16 %v3990, %v3982
    %v4463 = vpack.c.b16 %v3999, %v3991
    %v4464 = vpack.c.b16 %v4000, %v3992
    %v4465 = vpack.c.b16 %v4001, %v3993
    %v4466 = vpack.c.b16 %v4002, %v3994
    %v4467 = vpack.c.b16 %v4003, %v3995
    %v4468 = vpack.c.b16 %v4004, %v3996
    %v4469 = vpack.c.b16 %v4005, %v3997
    %v4470 = vpack.c.b16 %v4006, %v3998
    %v4471 = vpack.c.b16 %v4015, %v4007
    %v4472 = vpack.c.b16 %v4016, %v4008
    %v4473 = vpack.c.b16 %v4017, %v4009
    %v4474 = vpack.c.b16 %v4018, %v4010
    %v4475 = vpack.c.b16 %v4019, %v4011
    %v4476 = vpack.c.b16 %v4020, %v4012
    %v4477 = vpack.c.b16 %v4021, %v4013
    %v4478 = vpack.c.b16 %v4022, %v4014
    %v4479 = vpack.c.b16 %v4031, %v4023
    %v4480 = vpack.c.b16 %v4032, %v4024
    %v4481 = vpack.c.b16 %v4033, %v4025
    %v4482 = vpack.c.b16 %v4034, %v4026
    %v4483 = vpack.c.b16 %v4035, %v4027
    %v4484 = vpack.c.b16 %v4036, %v4028
    %v4485 = vpack.c.b16 %v4037, %v4029
    %v4486 = vpack.c.b16 %v4038, %v4030
    %v4487 = vpack.c.b16 %v4047, %v4039
    %v4488 = vpack.c.b16 %v4048, %v4040
    %v4489 = vpack.c.b16 %v4049, %v4041
    %v4490 = vpack.c.b16 %v4050, %v4042
    %v4491 = vpack.c.b16 %v4051, %v4043
    %v4492 = vpack.c.b16 %v4052, %v4044
    %v4493 = vpack.c.b16 %v4053, %v4045
    %v4494 = vpack.c.b16 %v4054, %v4046
    %v4495 = vpack.c.b16 %v4063, %v4055
    %v4496 = vpack.c.b16 %v4064, %v4056
    %v4497 = vpack.c.b16 %v4065, %v4057
    %v4498 = vpack.c.b16 %v4066, %v4058
    %v4499 = vpack.c.b16 %v4067, %v4059
    %v4500 = vpack.c.b16 %v4068, %v4060
    %v4501 = vpack.c.b16 %v4069, %v4061
    %v4502 = vpack.c.b16 %v4070, %v4062
    %v4503 = vpack.c.b16 %v4079, %v4071
    %v4504 = vpack.c.b16 %v4080, %v4072
    %v4505 = vpack.c.b16 %v4081, %v4073
    %v4506 = vpack.c.b16 %v4082, %v4074
    %v4507 = vpack.c.b16 %v4083, %v4075
    %v4508 = vpack.c.b16 %v4084, %v4076
    %v4509 = vpack.c.b16 %v4085, %v4077
    %v4510 = vpack.c.b16 %v4086, %v4078
    %v4511 = vpack.c.b16 %v4095, %v4087
    %v4512 = vpack.c.b16 %v4096, %v4088
    %v4513 = vpack.c.b16 %v4097, %v4089
    %v4514 = vpack.c.b16 %v4098, %v4090
    %v4515 = vpack.c.b16 %v4099, %v4091
    %v4516 = vpack.c.b16 %v4100, %v4092
    %v4517 = vpack.c.b16 %v4101, %v4093
    %v4518 = vpack.c.b16 %v4102, %v4094
    %v4519 = vpack.c.b16 %v4111, %v4103
    %v4520 = vpack.c.b16 %v4112, %v4104
    %v4521 = vpack.c.b16 %v4113, %v4105
    %v4522 = vpack.c.b16 %v4114, %v4106
    %v4523 = vpack.c.b16 %v4115, %v4107
    %v4524 = vpack.c.b16 %v4116, %v4108
    %v4525 = vpack.c.b16 %v4117, %v4109
    %v4526 = vpack.c.b16 %v4118, %v4110
    %v4527 = vpack.c.b16 %v4127, %v4119
    %v4528 = vpack.c.b16 %v4128, %v4120
    %v4529 = vpack.c.b16 %v4129, %v4121
    %v4530 = vpack.c.b16 %v4130, %v4122
    %v4531 = vpack.c.b16 %v4131, %v4123
    %v4532 = vpack.c.b16 %v4132, %v4124
    %v4533 = vpack.c.b16 %v4133, %v4125
    %v4534 = vpack.c.b16 %v4134, %v4126
    %v4535 = vpack.c.b16 %v4143, %v4135
    %v4536 = vpack.c.b16 %v4144, %v4136
    %v4537 = vpack.c.b16 %v4145, %v4137
    %v4538 = vpack.c.b16 %v4146, %v4138
    %v4539 = vpack.c.b16 %v4147, %v4139
    %v4540 = vpack.c.b16 %v4148, %v4140
    %v4541 = vpack.c.b16 %v4149, %v4141
    %v4542 = vpack.c.b16 %v4150, %v4142
    %v4543 = vpack.c.b16 %v4159, %v4151
    %v4544 = vpack.c.b16 %v4160, %v4152
    %v4545 = vpack.c.b16 %v4161, %v4153
    %v4546 = vpack.c.b16 %v4162, %v4154
    %v4547 = vpack.c.b16 %v4163, %v4155
    %v4548 = vpack.c.b16 %v4164, %v4156
    %v4549 = vpack.c.b16 %v4165, %v4157
    %v4550 = vpack.c.b16 %v4166, %v4158
    %v4551 = vpack.c.b16 %v4175, %v4167
    %v4552 = vpack.c.b16 %v4176, %v4168
    %v4553 = vpack.c.b16 %v4177, %v4169
    %v4554 = vpack.c.b16 %v4178, %v4170
    %v4555 = vpack.c.b16 %v4179, %v4171
    %v4556 = vpack.c.b16 %v4180, %v4172
    %v4557 = vpack.c.b16 %v4181, %v4173
    %v4558 = vpack.c.b16 %v4182, %v4174
    %v4559 = vpack.c.b16 %v4191, %v4183
    %v4560 = vpack.c.b16 %v4192, %v4184
    %v4561 = vpack.c.b16 %v4193, %v4185
    %v4562 = vpack.c.b16 %v4194, %v4186
    %v4563 = vpack.c.b16 %v4195, %v4187
    %v4564 = vpack.c.b16 %v4196, %v4188
    %v4565 = vpack.c.b16 %v4197, %v4189
    %v4566 = vpack.c.b16 %v4198, %v4190
    %v4567 = vpack.c.b16 %v4207, %v4199
    %v4568 = vpack.c.b16 %v4208, %v4200
    %v4569 = vpack.c.b16 %v4209, %v4201
    %v4570 = vpack.c.b16 %v4210, %v4202
    %v4571 = vpack.c.b16 %v4211, %v4203
    %v4572 = vpack.c.b16 %v4212, %v4204
    %v4573 = vpack.c.b16 %v4213, %v4205
    %v4574 = vpack.c.b16 %v4214, %v4206
    %v4575 = vpack.c.b16 %v4223, %v4215
    %v4576 = vpack.c.b16 %v4224, %v4216
    %v4577 = vpack.c.b16 %v4225, %v4217
    %v4578 = vpack.c.b16 %v4226, %v4218
    %v4579 = vpack.c.b16 %v4227, %v4219
    %v4580 = vpack.c.b16 %v4228, %v4220
    %v4581 = vpack.c.b16 %v4229, %v4221
    %v4582 = vpack.c.b16 %v4230, %v4222
    %v4583 = vpack.c.b16 %v4239, %v4231
    %v4584 = vpack.c.b16 %v4240, %v4232
    %v4585 = vpack.c.b16 %v4241, %v4233
    %v4586 = vpack.c.b16 %v4242, %v4234
    %v4587 = vpack.c.b16 %v4243, %v4235
    %v4588 = vpack.c.b16 %v4244, %v4236
    %v4589 = vpack.c.b16 %v4245, %v4237
    %v4590 = vpack.c.b16 %v4246, %v4238
    %v4591 = vpack.c.b16 %v4255, %v4247
    %v4592 = vpack.c.b16 %v4256, %v4248
    %v4593 = vpack.c.b16 %v4257, %v4249
    %v4594 = vpack.c.b16 %v4258, %v4250
    %v4595 = vpack.c.b16 %v4259, %v4251
    %v4596 = vpack.c.b16 %v4260, %v4252
    %v4597 = vpack.c.b16 %v4261, %v4253
    %v4598 = vpack.c.b16 %v4262, %v4254
    %v4599 = vpack.c.b16 %v4271, %v4263
    %v4600 = vpack.c.b16 %v4272, %v4264
    %v4601 = vpack.c.b16 %v4273, %v4265
    %v4602 = vpack.c.b16 %v4274, %v4266
    %v4603 = vpack.c.b16 %v4275, %v4267
    %v4604 = vpack.c.b16 %v4276, %v4268
    %v4605 = vpack.c.b16 %v4277, %v4269
    %v4606 = vpack.c.b16 %v4278, %v4270
    %v4607 = vpack.c.b16 %v4287, %v4279
    %v4608 = vpack.c.b16 %v4288, %v4280
    %v4609 = vpack.c.b16 %v4289, %v4281
    %v4610 = vpack.c.b16 %v4290, %v4282
    %v4611 = vpack.c.b16 %v4291, %v4283
    %v4612 = vpack.c.b16 %v4292, %v4284
    %v4613 = vpack.c.b16 %v4293, %v4285
    %v4614 = vpack.c.b16 %v4294, %v4286
    %v4615 = vpack.c.b16 %v4303, %v4295
    %v4616 = vpack.c.b16 %v4304, %v4296
    %v4617 = vpack.c.b16 %v4305, %v4297
    %v4618 = vpack.c.b16 %v4306, %v4298
    %v4619 = vpack.c.b16 %v4307, %v4299
    %v4620 = vpack.c.b16 %v4308, %v4300
    %v4621 = vpack.c.b16 %v4309, %v4301
    %v4622 = vpack.c.b16 %v4310, %v4302
    %v4623 = vpack.c.b16 %v4319, %v4311
    %v4624 = vpack.c.b16 %v4320, %v4312
    %v4625 = vpack.c.b16 %v4321, %v4313
    %v4626 = vpack.c.b16 %v4322, %v4314
    %v4627 = vpack.c.b16 %v4323, %v4315
    %v4628 = vpack.c.b16 %v4324, %v4316
    %v4629 = vpack.c.b16 %v4325, %v4317
    %v4630 = vpack.c.b16 %v4326, %v4318
    %v4631 = vpack.c.b16 %v4335, %v4327
    %v4632 = vpack.c.b16 %v4336, %v4328
    %v4633 = vpack.c.b16 %v4337, %v4329
    %v4634 = vpack.c.b16 %v4338, %v4330
    %v4635 = vpack.c.b16 %v4339, %v4331
    %v4636 = vpack.c.b16 %v4340, %v4332
    %v4637 = vpack.c.b16 %v4341, %v4333
    %v4638 = vpack.c.b16 %v4342, %v4334
    %v4639 = vpack.c.b16 %v4351, %v4343
    %v4640 = vpack.c.b16 %v4352, %v4344
    %v4641 = vpack.c.b16 %v4353, %v4345
    %v4642 = vpack.c.b16 %v4354, %v4346
    %v4643 = vpack.c.b16 %v4355, %v4347
    %v4644 = vpack.c.b16 %v4356, %v4348
    %v4645 = vpack.c.b16 %v4357, %v4349
    %v4646 = vpack.c.b16 %v4358, %v4350
    %v4647 = vpack.c.b16 %v4367, %v4359
    %v4648 = vpack.c.b16 %v4368, %v4360
    %v4649 = vpack.c.b16 %v4369, %v4361
    %v4650 = vpack.c.b16 %v4370, %v4362
    %v4651 = vpack.c.b16 %v4371, %v4363
    %v4652 = vpack.c.b16 %v4372, %v4364
    %v4653 = vpack.c.b16 %v4373, %v4365
    %v4654 = vpack.c.b16 %v4374, %v4366
    %v4655 = vpack.c.b16 %v4383, %v4375
    %v4656 = vpack.c.b16 %v4384, %v4376
    %v4657 = vpack.c.b16 %v4385, %v4377
    %v4658 = vpack.c.b16 %v4386, %v4378
    %v4659 = vpack.c.b16 %v4387, %v4379
    %v4660 = vpack.c.b16 %v4388, %v4380
    %v4661 = vpack.c.b16 %v4389, %v4381
    %v4662 = vpack.c.b16 %v4390, %v4382
    %v4663 = vpack.c.b16 %v4399, %v4391
    %v4664 = vpack.c.b16 %v4400, %v4392
    %v4665 = vpack.c.b16 %v4401, %v4393
    %v4666 = vpack.c.b16 %v4402, %v4394
    %v4667 = vpack.c.b16 %v4403, %v4395
    %v4668 = vpack.c.b16 %v4404, %v4396
    %v4669 = vpack.c.b16 %v4405, %v4397
    %v4670 = vpack.c.b16 %v4406, %v4398
    %v4671 = vpack.c.b16 %v4415, %v4407
    %v4672 = vpack.c.b16 %v4416, %v4408
    %v4673 = vpack.c.b16 %v4417, %v4409
    %v4674 = vpack.c.b16 %v4418, %v4410
    %v4675 = vpack.c.b16 %v4419, %v4411
    %v4676 = vpack.c.b16 %v4420, %v4412
    %v4677 = vpack.c.b16 %v4421, %v4413
    %v4678 = vpack.c.b16 %v4422, %v4414
    %4935 = vmatprep.subr.bf16.mxu0 %v4424
    %4936 = vmatpush1.bf16.msra.mxu0 %v4423
    %4937 = vmatprep.subr.bf16.mxu0 %v4432
    %4938 = vmatpush1.bf16.msra.mxu0 %v4431
    %4939 = vmatprep.subr.bf16.mxu0 %v4440
    %4940 = vmatpush1.bf16.msra.mxu0 %v4439
    %4941 = vmatprep.subr.bf16.mxu0 %v4448
    %4942 = vmatpush1.bf16.msra.mxu0 %v4447
    %4943 = vmatprep.subr.bf16.mxu0 %v4456
    %4944 = vmatpush1.bf16.msra.mxu0 %v4455
    %4945 = vmatprep.subr.bf16.mxu0 %v4464
    %4946 = vmatpush1.bf16.msra.mxu0 %v4463
    %4947 = vmatprep.subr.bf16.mxu0 %v4472
    %4948 = vmatpush1.bf16.msra.mxu0 %v4471
    %4949 = vmatprep.subr.bf16.mxu0 %v4480
    %4950 = vmatpush1.bf16.msra.mxu0 %v4479
    %4951 = vmatprep.subr.bf16.mxu0 %v4488
    %4952 = vmatpush1.bf16.msra.mxu0 %v4487
    %4953 = vmatprep.subr.bf16.mxu0 %v4496
    %4954 = vmatpush1.bf16.msra.mxu0 %v4495
    %4955 = vmatprep.subr.bf16.mxu0 %v4504
    %4956 = vmatpush1.bf16.msra.mxu0 %v4503
    %4957 = vmatprep.subr.bf16.mxu0 %v4512
    %4958 = vmatpush1.bf16.msra.mxu0 %v4511
    %4959 = vmatprep.subr.bf16.mxu0 %v4520
    %4960 = vmatpush1.bf16.msra.mxu0 %v4519
    %4961 = vmatprep.subr.bf16.mxu0 %v4528
    %4962 = vmatpush1.bf16.msra.mxu0 %v4527
    %4963 = vmatprep.subr.bf16.mxu0 %v4536
    %4964 = vmatpush1.bf16.msra.mxu0 %v4535
    %4965 = vmatprep.subr.bf16.mxu0 %v4544
    %4966 = vmatpush1.bf16.msra.mxu0 %v4543
    %4967 = vmatprep.mubr.bf16.mxu0 %v3354
    %4968 = vmatmul.mubr.bf16.gmra.mrb[0].mxu0 %v3353
    %v4969 = vpop.f32.mrb[0].mxu0
    %v4970 = vadd.f32 %v3618, %v4969
    %v4971 = vpop.f32.mrb[0].mxu0
    %v4972 = vadd.f32 %v3622, %v4971
    %v4973 = vpop.f32.mrb[0].mxu0
    %v4974 = vadd.f32 %v3618, %v4973
    %v4975 = vpop.f32.mrb[0].mxu0
    %v4976 = vadd.f32 %v3622, %v4975
    %4977 = vdwg.mxu0
    %4978 = vmatprep.subr.bf16.mxu0 %v4552
    %4979 = vmatpush1.bf16.msra.mxu0 %v4551
    %4980 = vmatprep.subr.bf16.mxu0 %v4560
    %4981 = vmatpush1.bf16.msra.mxu0 %v4559
    %4982 = vmatprep.subr.bf16.mxu0 %v4568
    %4983 = vmatpush1.bf16.msra.mxu0 %v4567
    %4984 = vmatprep.subr.bf16.mxu0 %v4576
    %4985 = vmatpush1.bf16.msra.mxu0 %v4575
    %4986 = vmatprep.subr.bf16.mxu0 %v4584
    %4987 = vmatpush1.bf16.msra.mxu0 %v4583
    %4988 = vmatprep.subr.bf16.mxu0 %v4592
    %4989 = vmatpush1.bf16.msra.mxu0 %v4591
    %4990 = vmatprep.subr.bf16.mxu0 %v4600
    %4991 = vmatpush1.bf16.msra.mxu0 %v4599
    %4992 = vmatprep.subr.bf16.mxu0 %v4608
    %4993 = vmatpush1.bf16.msra.mxu0 %v4607
    %4994 = vmatprep.subr.bf16.mxu0 %v4616
    %4995 = vmatpush1.bf16.msra.mxu0 %v4615
    %4996 = vmatprep.subr.bf16.mxu0 %v4624
    %4997 = vmatpush1.bf16.msra.mxu0 %v4623
    %4998 = vmatprep.subr.bf16.mxu0 %v4632
    %4999 = vmatpush1.bf16.msra.mxu0 %v4631
    %5000 = vmatprep.subr.bf16.mxu0 %v4640
    %5001 = vmatpush1.bf16.msra.mxu0 %v4639
    %5002 = vmatprep.subr.bf16.mxu0 %v4648
    %5003 = vmatpush1.bf16.msra.mxu0 %v4647
    %5004 = vmatprep.subr.bf16.mxu0 %v4656
    %5005 = vmatpush1.bf16.msra.mxu0 %v4655
    %5006 = vmatprep.subr.bf16.mxu0 %v4664
    %5007 = vmatpush1.bf16.msra.mxu0 %v4663
    %5008 = vmatprep.subr.bf16.mxu0 %v4672
    %5009 = vmatpush1.bf16.msra.mxu0 %v4671
    %5010 = vmatprep.mubr.bf16.mxu0 %v3356
    %5011 = vmatmul.mubr.bf16.gmra.mrb[0].mxu0 %v3355
    %v5012 = vpop.f32.mrb[0].mxu0
    %v5013 = vadd.f32 %v4970, %v5012
    %v5014 = vpop.f32.mrb[0].mxu0
    %v5015 = vadd.f32 %v4972, %v5014
    %v5016 = vpop.f32.mrb[0].mxu0
    %v5017 = vadd.f32 %v4974, %v5016
    %v5018 = vpop.f32.mrb[0].mxu0
    %v5019 = vadd.f32 %v4976, %v5018
    %5020 = vdwg.mxu0
    %5021 = vmatprep.subr.bf16.mxu0 %v4426
    %5022 = vmatpush1.bf16.msra.mxu0 %v4425
    %5023 = vmatprep.subr.bf16.mxu0 %v4434
    %5024 = vmatpush1.bf16.msra.mxu0 %v4433
    %5025 = vmatprep.subr.bf16.mxu0 %v4442
    %5026 = vmatpush1.bf16.msra.mxu0 %v4441
    %5027 = vmatprep.subr.bf16.mxu0 %v4450
    %5028 = vmatpush1.bf16.msra.mxu0 %v4449
    %5029 = vmatprep.subr.bf16.mxu0 %v4458
    %5030 = vmatpush1.bf16.msra.mxu0 %v4457
    %5031 = vmatprep.subr.bf16.mxu0 %v4466
    %5032 = vmatpush1.bf16.msra.mxu0 %v4465
    %5033 = vmatprep.subr.bf16.mxu0 %v4474
    %5034 = vmatpush1.bf16.msra.mxu0 %v4473
    %5035 = vmatprep.subr.bf16.mxu0 %v4482
    %5036 = vmatpush1.bf16.msra.mxu0 %v4481
    %5037 = vmatprep.subr.bf16.mxu0 %v4490
    %5038 = vmatpush1.bf16.msra.mxu0 %v4489
    %5039 = vmatprep.subr.bf16.mxu0 %v4498
    %5040 = vmatpush1.bf16.msra.mxu0 %v4497
    %5041 = vmatprep.subr.bf16.mxu0 %v4506
    %5042 = vmatpush1.bf16.msra.mxu0 %v4505
    %5043 = vmatprep.subr.bf16.mxu0 %v4514
    %5044 = vmatpush1.bf16.msra.mxu0 %v4513
    %5045 = vmatprep.subr.bf16.mxu0 %v4522
    %5046 = vmatpush1.bf16.msra.mxu0 %v4521
    %5047 = vmatprep.subr.bf16.mxu0 %v4530
    %5048 = vmatpush1.bf16.msra.mxu0 %v4529
    %5049 = vmatprep.subr.bf16.mxu0 %v4538
    %5050 = vmatpush1.bf16.msra.mxu0 %v4537
    %5051 = vmatprep.subr.bf16.mxu0 %v4546
    %5052 = vmatpush1.bf16.msra.mxu0 %v4545
    %5053 = vmatprep.mubr.bf16.mxu0 %v3354
    %5054 = vmatmul.mubr.bf16.gmra.mrb[0].mxu0 %v3353
    %v5055 = vpop.f32.mrb[0].mxu0
    %v5056 = vadd.f32 %v3626, %v5055
    %v5057 = vpop.f32.mrb[0].mxu0
    %v5058 = vadd.f32 %v3630, %v5057
    %v5059 = vpop.f32.mrb[0].mxu0
    %v5060 = vadd.f32 %v3626, %v5059
    %v5061 = vpop.f32.mrb[0].mxu0
    %v5062 = vadd.f32 %v3630, %v5061
    %5063 = vdwg.mxu0
    %5064 = vmatprep.subr.bf16.mxu0 %v4554
    %5065 = vmatpush1.bf16.msra.mxu0 %v4553
    %5066 = vmatprep.subr.bf16.mxu0 %v4562
    %5067 = vmatpush1.bf16.msra.mxu0 %v4561
    %5068 = vmatprep.subr.bf16.mxu0 %v4570
    %5069 = vmatpush1.bf16.msra.mxu0 %v4569
    %5070 = vmatprep.subr.bf16.mxu0 %v4578
    %5071 = vmatpush1.bf16.msra.mxu0 %v4577
    %5072 = vmatprep.subr.bf16.mxu0 %v4586
    %5073 = vmatpush1.bf16.msra.mxu0 %v4585
    %5074 = vmatprep.subr.bf16.mxu0 %v4594
    %5075 = vmatpush1.bf16.msra.mxu0 %v4593
    %5076 = vmatprep.subr.bf16.mxu0 %v4602
    %5077 = vmatpush1.bf16.msra.mxu0 %v4601
    %5078 = vmatprep.subr.bf16.mxu0 %v4610
    %5079 = vmatpush1.bf16.msra.mxu0 %v4609
    %5080 = vmatprep.subr.bf16.mxu0 %v4618
    %5081 = vmatpush1.bf16.msra.mxu0 %v4617
    %5082 = vmatprep.subr.bf16.mxu0 %v4626
    %5083 = vmatpush1.bf16.msra.mxu0 %v4625
    %5084 = vmatprep.subr.bf16.mxu0 %v4634
    %5085 = vmatpush1.bf16.msra.mxu0 %v4633
    %5086 = vmatprep.subr.bf16.mxu0 %v4642
    %5087 = vmatpush1.bf16.msra.mxu0 %v4641
    %5088 = vmatprep.subr.bf16.mxu0 %v4650
    %5089 = vmatpush1.bf16.msra.mxu0 %v4649
    %5090 = vmatprep.subr.bf16.mxu0 %v4658
    %5091 = vmatpush1.bf16.msra.mxu0 %v4657
    %5092 = vmatprep.subr.bf16.mxu0 %v4666
    %5093 = vmatpush1.bf16.msra.mxu0 %v4665
    %5094 = vmatprep.subr.bf16.mxu0 %v4674
    %5095 = vmatpush1.bf16.msra.mxu0 %v4673
    %5096 = vmatprep.mubr.bf16.mxu0 %v3356
    %5097 = vmatmul.mubr.bf16.gmra.mrb[0].mxu0 %v3355
    %v5098 = vpop.f32.mrb[0].mxu0
    %v5099 = vadd.f32 %v5056, %v5098
    %v5100 = vpop.f32.mrb[0].mxu0
    %v5101 = vadd.f32 %v5058, %v5100
    %v5102 = vpop.f32.mrb[0].mxu0
    %v5103 = vadd.f32 %v5060, %v5102
    %v5104 = vpop.f32.mrb[0].mxu0
    %v5105 = vadd.f32 %v5062, %v5104
    %5106 = vdwg.mxu0
    %5107 = vmatprep.subr.bf16.mxu0 %v4428
    %5108 = vmatpush1.bf16.msra.mxu0 %v4427
    %5109 = vmatprep.subr.bf16.mxu0 %v4436
    %5110 = vmatpush1.bf16.msra.mxu0 %v4435
    %5111 = vmatprep.subr.bf16.mxu0 %v4444
    %5112 = vmatpush1.bf16.msra.mxu0 %v4443
    %5113 = vmatprep.subr.bf16.mxu0 %v4452
    %5114 = vmatpush1.bf16.msra.mxu0 %v4451
    %5115 = vmatprep.subr.bf16.mxu0 %v4460
    %5116 = vmatpush1.bf16.msra.mxu0 %v4459
    %5117 = vmatprep.subr.bf16.mxu0 %v4468
    %5118 = vmatpush1.bf16.msra.mxu0 %v4467
    %5119 = vmatprep.subr.bf16.mxu0 %v4476
    %5120 = vmatpush1.bf16.msra.mxu0 %v4475
    %5121 = vmatprep.subr.bf16.mxu0 %v4484
    %5122 = vmatpush1.bf16.msra.mxu0 %v4483
    %5123 = vmatprep.subr.bf16.mxu0 %v4492
    %5124 = vmatpush1.bf16.msra.mxu0 %v4491
    %5125 = vmatprep.subr.bf16.mxu0 %v4500
    %5126 = vmatpush1.bf16.msra.mxu0 %v4499
    %5127 = vmatprep.subr.bf16.mxu0 %v4508
    %5128 = vmatpush1.bf16.msra.mxu0 %v4507
    %5129 = vmatprep.subr.bf16.mxu0 %v4516
    %5130 = vmatpush1.bf16.msra.mxu0 %v4515
    %5131 = vmatprep.subr.bf16.mxu0 %v4524
    %5132 = vmatpush1.bf16.msra.mxu0 %v4523
    %5133 = vmatprep.subr.bf16.mxu0 %v4532
    %5134 = vmatpush1.bf16.msra.mxu0 %v4531
    %5135 = vmatprep.subr.bf16.mxu0 %v4540
    %5136 = vmatpush1.bf16.msra.mxu0 %v4539
    %5137 = vmatprep.subr.bf16.mxu0 %v4548
    %5138 = vmatpush1.bf16.msra.mxu0 %v4547
    %5139 = vmatprep.mubr.bf16.mxu0 %v3354
    %5140 = vmatmul.mubr.bf16.gmra.mrb[0].mxu0 %v3353
    %v5141 = vpop.f32.mrb[0].mxu0
    %v5142 = vadd.f32 %v3634, %v5141
    %v5143 = vpop.f32.mrb[0].mxu0
    %v5144 = vadd.f32 %v3638, %v5143
    %v5145 = vpop.f32.mrb[0].mxu0
    %v5146 = vadd.f32 %v3634, %v5145
    %v5147 = vpop.f32.mrb[0].mxu0
    %v5148 = vadd.f32 %v3638, %v5147
    %5149 = vdwg.mxu0
    %5150 = vmatprep.subr.bf16.mxu0 %v4556
    %5151 = vmatpush1.bf16.msra.mxu0 %v4555
    %5152 = vmatprep.subr.bf16.mxu0 %v4564
    %5153 = vmatpush1.bf16.msra.mxu0 %v4563
    %5154 = vmatprep.subr.bf16.mxu0 %v4572
    %5155 = vmatpush1.bf16.msra.mxu0 %v4571
    %5156 = vmatprep.subr.bf16.mxu0 %v4580
    %5157 = vmatpush1.bf16.msra.mxu0 %v4579
    %5158 = vmatprep.subr.bf16.mxu0 %v4588
    %5159 = vmatpush1.bf16.msra.mxu0 %v4587
    %5160 = vmatprep.subr.bf16.mxu0 %v4596
    %5161 = vmatpush1.bf16.msra.mxu0 %v4595
    %5162 = vmatprep.subr.bf16.mxu0 %v4604
    %5163 = vmatpush1.bf16.msra.mxu0 %v4603
    %5164 = vmatprep.subr.bf16.mxu0 %v4612
    %5165 = vmatpush1.bf16.msra.mxu0 %v4611
    %5166 = vmatprep.subr.bf16.mxu0 %v4620
    %5167 = vmatpush1.bf16.msra.mxu0 %v4619
    %5168 = vmatprep.subr.bf16.mxu0 %v4628
    %5169 = vmatpush1.bf16.msra.mxu0 %v4627
    %5170 = vmatprep.subr.bf16.mxu0 %v4636
    %5171 = vmatpush1.bf16.msra.mxu0 %v4635
    %5172 = vmatprep.subr.bf16.mxu0 %v4644
    %5173 = vmatpush1.bf16.msra.mxu0 %v4643
    %5174 = vmatprep.subr.bf16.mxu0 %v4652
    %5175 = vmatpush1.bf16.msra.mxu0 %v4651
    %5176 = vmatprep.subr.bf16.mxu0 %v4660
    %5177 = vmatpush1.bf16.msra.mxu0 %v4659
    %5178 = vmatprep.subr.bf16.mxu0 %v4668
    %5179 = vmatpush1.bf16.msra.mxu0 %v4667
    %5180 = vmatprep.subr.bf16.mxu0 %v4676
    %5181 = vmatpush1.bf16.msra.mxu0 %v4675
    %5182 = vmatprep.mubr.bf16.mxu0 %v3356
    %5183 = vmatmul.mubr.bf16.gmra.mrb[0].mxu0 %v3355
    %v5184 = vpop.f32.mrb[0].mxu0
    %v5185 = vadd.f32 %v5142, %v5184
    %v5186 = vpop.f32.mrb[0].mxu0
    %v5187 = vadd.f32 %v5144, %v5186
    %v5188 = vpop.f32.mrb[0].mxu0
    %v5189 = vadd.f32 %v5146, %v5188
    %v5190 = vpop.f32.mrb[0].mxu0
    %v5191 = vadd.f32 %v5148, %v5190
    %5192 = vdwg.mxu0
    %5193 = vmatprep.subr.bf16.mxu0 %v4430
    %5194 = vmatpush1.bf16.msra.mxu0 %v4429
    %5195 = vmatprep.subr.bf16.mxu0 %v4438
    %5196 = vmatpush1.bf16.msra.mxu0 %v4437
    %5197 = vmatprep.subr.bf16.mxu0 %v4446
    %5198 = vmatpush1.bf16.msra.mxu0 %v4445
    %5199 = vmatprep.subr.bf16.mxu0 %v4454
    %5200 = vmatpush1.bf16.msra.mxu0 %v4453
    %5201 = vmatprep.subr.bf16.mxu0 %v4462
    %5202 = vmatpush1.bf16.msra.mxu0 %v4461
    %5203 = vmatprep.subr.bf16.mxu0 %v4470
    %5204 = vmatpush1.bf16.msra.mxu0 %v4469
    %5205 = vmatprep.subr.bf16.mxu0 %v4478
    %5206 = vmatpush1.bf16.msra.mxu0 %v4477
    %5207 = vmatprep.subr.bf16.mxu0 %v4486
    %5208 = vmatpush1.bf16.msra.mxu0 %v4485
    %5209 = vmatprep.subr.bf16.mxu0 %v4494
    %5210 = vmatpush1.bf16.msra.mxu0 %v4493
    %5211 = vmatprep.subr.bf16.mxu0 %v4502
    %5212 = vmatpush1.bf16.msra.mxu0 %v4501
    %5213 = vmatprep.subr.bf16.mxu0 %v4510
    %5214 = vmatpush1.bf16.msra.mxu0 %v4509
    %5215 = vmatprep.subr.bf16.mxu0 %v4518
    %5216 = vmatpush1.bf16.msra.mxu0 %v4517
    %5217 = vmatprep.subr.bf16.mxu0 %v4526
    %5218 = vmatpush1.bf16.msra.mxu0 %v4525
    %5219 = vmatprep.subr.bf16.mxu0 %v4534
    %5220 = vmatpush1.bf16.msra.mxu0 %v4533
    %5221 = vmatprep.subr.bf16.mxu0 %v4542
    %5222 = vmatpush1.bf16.msra.mxu0 %v4541
    %5223 = vmatprep.subr.bf16.mxu0 %v4550
    %5224 = vmatpush1.bf16.msra.mxu0 %v4549
    %5225 = vmatprep.mubr.bf16.mxu0 %v3354
    %5226 = vmatmul.mubr.bf16.gmra.mrb[0].mxu0 %v3353
    %v5227 = vpop.f32.mrb[0].mxu0
    %v5228 = vadd.f32 %v3642, %v5227
    %v5229 = vpop.f32.mrb[0].mxu0
    %v5230 = vadd.f32 %v3646, %v5229
    %v5231 = vpop.f32.mrb[0].mxu0
    %v5232 = vadd.f32 %v3642, %v5231
    %v5233 = vpop.f32.mrb[0].mxu0
    %v5234 = vadd.f32 %v3646, %v5233
    %5235 = vdwg.mxu0
    %5236 = vmatprep.subr.bf16.mxu0 %v4558
    %5237 = vmatpush1.bf16.msra.mxu0 %v4557
    %5238 = vmatprep.subr.bf16.mxu0 %v4566
    %5239 = vmatpush1.bf16.msra.mxu0 %v4565
    %5240 = vmatprep.subr.bf16.mxu0 %v4574
    %5241 = vmatpush1.bf16.msra.mxu0 %v4573
    %5242 = vmatprep.subr.bf16.mxu0 %v4582
    %5243 = vmatpush1.bf16.msra.mxu0 %v4581
    %5244 = vmatprep.subr.bf16.mxu0 %v4590
    %5245 = vmatpush1.bf16.msra.mxu0 %v4589
    %5246 = vmatprep.subr.bf16.mxu0 %v4598
    %5247 = vmatpush1.bf16.msra.mxu0 %v4597
    %5248 = vmatprep.subr.bf16.mxu0 %v4606
    %5249 = vmatpush1.bf16.msra.mxu0 %v4605
    %5250 = vmatprep.subr.bf16.mxu0 %v4614
    %5251 = vmatpush1.bf16.msra.mxu0 %v4613
    %5252 = vmatprep.subr.bf16.mxu0 %v4622
    %5253 = vmatpush1.bf16.msra.mxu0 %v4621
    %5254 = vmatprep.subr.bf16.mxu0 %v4630
    %5255 = vmatpush1.bf16.msra.mxu0 %v4629
    %5256 = vmatprep.subr.bf16.mxu0 %v4638
    %5257 = vmatpush1.bf16.msra.mxu0 %v4637
    %5258 = vmatprep.subr.bf16.mxu0 %v4646
    %5259 = vmatpush1.bf16.msra.mxu0 %v4645
    %5260 = vmatprep.subr.bf16.mxu0 %v4654
    %5261 = vmatpush1.bf16.msra.mxu0 %v4653
    %5262 = vmatprep.subr.bf16.mxu0 %v4662
    %5263 = vmatpush1.bf16.msra.mxu0 %v4661
    %5264 = vmatprep.subr.bf16.mxu0 %v4670
    %5265 = vmatpush1.bf16.msra.mxu0 %v4669
    %5266 = vmatprep.subr.bf16.mxu0 %v4678
    %5267 = vmatpush1.bf16.msra.mxu0 %v4677
    %5268 = vmatprep.mubr.bf16.mxu0 %v3356
    %5269 = vmatmul.mubr.bf16.gmra.mrb[0].mxu0 %v3355
    %v5270 = vpop.f32.mrb[0].mxu0
    %v5271 = vadd.f32 %v5228, %v5270
    %v5272 = vpop.f32.mrb[0].mxu0
    %v5273 = vadd.f32 %v5230, %v5272
    %v5274 = vpop.f32.mrb[0].mxu0
    %v5275 = vadd.f32 %v5232, %v5274
    %v5276 = vpop.f32.mrb[0].mxu0
    %v5277 = vadd.f32 %v5234, %v5276
    %5278 = vdwg.mxu0
    %v5279 = vmax.f32 %v5013, 0.0
    %v5280 = vmax.f32 %v5015, 0.0
    %v5281 = vmax.f32 %v5099, 0.0
    %v5282 = vmax.f32 %v5101, 0.0
    %v5283 = vmax.f32 %v5185, 0.0
    %v5284 = vmax.f32 %v5187, 0.0
    %v5285 = vmax.f32 %v5271, 0.0
    %v5286 = vmax.f32 %v5273, 0.0
    %v5287 = vmax.f32 %v5017, 0.0
    %v5288 = vmax.f32 %v5019, 0.0
    %v5289 = vmax.f32 %v5103, 0.0
    %v5290 = vmax.f32 %v5105, 0.0
    %v5291 = vmax.f32 %v5189, 0.0
    %v5292 = vmax.f32 %v5191, 0.0
    %v5293 = vmax.f32 %v5275, 0.0
    %v5294 = vmax.f32 %v5277, 0.0
    %5295 = vst [vmem:[#allocation2] sm:$0xff] %v2675
    %5296 = vst [vmem:[#allocation2 + $0x8] sm:$0xff] %v2679
    %5297 = vst [vmem:[#allocation4] sm:$0xff] %v2677
    %5298 = vst [vmem:[#allocation4 + $0x8] sm:$0xff] %v2681
    %5299 = vst [vmem:[#allocation6] sm:$0xff] %v5279
    %5300 = vst [vmem:[#allocation6 + $0x8] sm:$0xff] %v5280
    %5301 = vst [vmem:[#allocation6 + $0x10] sm:$0xff] %v5281
    %5302 = vst [vmem:[#allocation6 + $0x18] sm:$0xff] %v5282
    %5303 = vst [vmem:[#allocation6 + $0x20] sm:$0xff] %v5283
    %5304 = vst [vmem:[#allocation6 + $0x28] sm:$0xff] %v5284
    %5305 = vst [vmem:[#allocation6 + $0x30] sm:$0xff] %v5285
    %5306 = vst.msk [vmem:[#allocation6 + $0x38] sm:$0xff] %vm1575, %v5286
    %5307 = vst [vmem:[#allocation6 + $0x40] sm:$0xff] %v5287
    %5308 = vst [vmem:[#allocation6 + $0x48] sm:$0xff] %v5288
    %5309 = vst [vmem:[#allocation6 + $0x50] sm:$0xff] %v5289
    %5310 = vst [vmem:[#allocation6 + $0x58] sm:$0xff] %v5290
    %5311 = vst [vmem:[#allocation6 + $0x60] sm:$0xff] %v5291
    %5312 = vst [vmem:[#allocation6 + $0x68] sm:$0xff] %v5292
    %5313 = vst [vmem:[#allocation6 + $0x70] sm:$0xff] %v5293
    %5314 = vst.msk [vmem:[#allocation6 + $0x78] sm:$0xff] %vm1575, %v5294
    // Predicated region
    $region58: #{tpu_custom_call.1} parent=1 // pred_check
      _
    $region59: #{tpu_custom_call.1} parent=1 // pred_check_branch
      %5316 = sbr.rel (0) target = $region61
    $region60: #{tpu_custom_call.1} parent=1 // pred_region
      %s5318 = ssub.s32 256, 256
      %5319 = vsyncadd [#allocation3], %s5318
      %s5320 = sshll.u32 [#allocation2], 4
      %s5321 = int_to_ptr.vmem [resolvable:$true] %s5320
      %5326 = dma.vmem_to_hbm [thread:$0]  %s5321, 256, %s14, [#allocation3], 128, 128, 8
    $region61: #{tpu_custom_call.1} parent=1 // pred_fallthru
      _
    // Predicated region
    $region62: #{tpu_custom_call.1} parent=1 // pred_check
      _
    $region63: #{tpu_custom_call.1} parent=1 // pred_check_branch
      %5328 = sbr.rel (0) target = $region65
    $region64: #{tpu_custom_call.1} parent=1 // pred_region
      %s5330 = ssub.s32 256, 256
      %5331 = vsyncadd [#allocation5], %s5330
      %s5332 = sshll.u32 [#allocation4], 4
      %s5333 = int_to_ptr.vmem [resolvable:$true] %s5332
      %5338 = dma.vmem_to_hbm [thread:$0]  %s5333, 256, %s15, [#allocation5], 128, 128, 8
    $region65: #{tpu_custom_call.1} parent=1 // pred_fallthru
      _
    // Predicated region
    $region66: #{tpu_custom_call.1} parent=1 // pred_check
      _
    $region67: #{tpu_custom_call.1} parent=1 // pred_check_branch
      %5340 = sbr.rel (0) target = $region69
    $region68: #{tpu_custom_call.1} parent=1 // pred_region
      %s5342 = ssub.s32 2048, 2048
      %5343 = vsyncadd [#allocation5], %s5342
      %s5344 = sshll.u32 [#allocation6], 4
      %s5345 = int_to_ptr.vmem [resolvable:$true] %s5344
      %5350 = dma.vmem_to_hbm [thread:$0]  %s5345, 2048, %s16, [#allocation5], 1024, 1024, 64
    $region69: #{tpu_custom_call.1} parent=1 // pred_fallthru
      _
    // Predicated region
    $region70: #{tpu_custom_call.1} parent=1 // pred_check
      _
    $region71: #{tpu_custom_call.1} parent=1 // pred_check_branch
      %5352 = sbr.rel (0) target = $region73
    $region72: #{tpu_custom_call.1} parent=1 // pred_region
      %5353 = dma.done [#allocation3], 256
    $region73: #{tpu_custom_call.1} parent=1 // pred_fallthru
      _
    // Predicated region
    $region74: #{tpu_custom_call.1} parent=1 // pred_check
      _
    $region75: #{tpu_custom_call.1} parent=1 // pred_check_branch
      %5355 = sbr.rel (0) target = $region77
    $region76: #{tpu_custom_call.1} parent=1 // pred_region
      %5356 = dma.done [#allocation5], 256
    $region77: #{tpu_custom_call.1} parent=1 // pred_fallthru
      _
    // Predicated region
    $region78: #{tpu_custom_call.1} parent=1 // pred_check
      _
    $region79: #{tpu_custom_call.1} parent=1 // pred_check_branch
      %5358 = sbr.rel (0) target = $region81
    $region80: #{tpu_custom_call.1} parent=1 // pred_region
      %5359 = dma.done [#allocation5], 2048
    $region81: #{tpu_custom_call.1} parent=1 // pred_fallthru
      _
    %5360 = vsyncpa [#allocation3], 1
    %5361 = vsyncpa [#allocation5], 1

// kernel: tpu_custom_call.1
$region0: #{tpu_custom_call.1}
  #allocation0 [shape = 'u32[]', space=smem, size = 0x4, offset = 0x4, fixed_abs, tag = 'smem constant byte address 0x4 - core index']
  #allocation1 [shape = 'u32[144,128]{1,0:T(1,128)}', space=vmem, size = 0x12000, scoped, tag = 'internal scratch']
  %s0 = inlined_call_operand.vmem [shape: f32[16,978], index: 0, kind: input, shape index: {}]
  %s1 = inlined_call_operand.vmem [shape: f32[16,128], index: 1, kind: input, shape index: {}]
  %s2 = inlined_call_operand.vmem [shape: bf16[978,512], index: 2, kind: input, shape index: {}]
  %s3 = inlined_call_operand.vmem [shape: f32[1,512], index: 3, kind: input, shape index: {}]
  %s4 = inlined_call_operand.vmem [shape: bf16[512,256], index: 4, kind: input, shape index: {}]
  %s5 = inlined_call_operand.vmem [shape: f32[1,256], index: 5, kind: input, shape index: {}]
  %s6 = inlined_call_operand.vmem [shape: bf16[256,256], index: 6, kind: input, shape index: {}]
  %s7 = inlined_call_operand.vmem [shape: f32[1,256], index: 7, kind: input, shape index: {}]
  %s8 = inlined_call_operand.vmem [shape: bf16[128,256], index: 8, kind: input, shape index: {}]
  %s9 = inlined_call_operand.vmem [shape: f32[1,256], index: 9, kind: input, shape index: {}]
  %s10 = inlined_call_operand.vmem [shape: bf16[256,512], index: 10, kind: input, shape index: {}]
  %s11 = inlined_call_operand.vmem [shape: f32[1,512], index: 11, kind: input, shape index: {}]
  %s12 = inlined_call_operand.vmem [shape: bf16[512,978], index: 12, kind: input, shape index: {}]
  %s13 = inlined_call_operand.vmem [shape: f32[1,978], index: 13, kind: input, shape index: {}]
  %s14 = inlined_call_operand.hbm [shape: f32[16,128], index: 14, kind: output, shape index: {0}]
  %s15 = inlined_call_operand.hbm [shape: f32[16,128], index: 15, kind: output, shape index: {1}]
  %s16 = inlined_call_operand.hbm [shape: f32[16,978], index: 16, kind: output, shape index: {2}]
  %17 = xla_tuple %s14, %s15, %s16
  %s18 = sld [smem:[#allocation0]]
  $region82: #{tpu_custom_call.1} parent=0
    _
  %s20 = ssub.s32 1, %s18
  %s21 = scalar_select 0, %s20, %s18
  $region1: #{tpu_custom_call.1} parent=0
    #allocation2 [shape = 'u8[8192]{0}', space=vmem, size = 0x2000, scoped, tag = 'output window, operand 0, single buffered']
    #allocation3 [shape = 's32[1]{0}', space=sflag, size = 0x4, scoped, tag = 'scoped memory for tpu_custom_call.1']
    #allocation4 [shape = 'u8[8192]{0}', space=vmem, size = 0x2000, scoped, tag = 'output window, operand 1, single buffered']
    #allocation5 [shape = 's32[1]{0}', space=sflag, size = 0x4, scoped, tag = 'scoped memory for tpu_custom_call.1']
    #allocation6 [shape = 'u8[65536]{0}', space=vmem, size = 0x10000, scoped, tag = 'output window, operand 2, single buffered']
    %22 = vsyncpa [#allocation3], 0
    %23 = vsyncpa [#allocation5], 0
    // Predicated region
    $region2: #{tpu_custom_call.1} parent=1 // pred_check
      _
    $region3: #{tpu_custom_call.1} parent=1 // pred_check_branch
      %25 = sbr.rel (0) target = $region5
    $region4: #{tpu_custom_call.1} parent=1 // pred_region
      _
    $region5: #{tpu_custom_call.1} parent=1 // pred_fallthru
      _
    // Predicated region
    $region6: #{tpu_custom_call.1} parent=1 // pred_check
      _
    $region7: #{tpu_custom_call.1} parent=1 // pred_check_branch
      %27 = sbr.rel (0) target = $region9
    $region8: #{tpu_custom_call.1} parent=1 // pred_region
      _
    $region9: #{tpu_custom_call.1} parent=1 // pred_fallthru
      _
    // Predicated region
    $region10: #{tpu_custom_call.1} parent=1 // pred_check
      _
    $region11: #{tpu_custom_call.1} parent=1 // pred_check_branch
      %29 = sbr.rel (0) target = $region13
    $region12: #{tpu_custom_call.1} parent=1 // pred_region
      _
    $region13: #{tpu_custom_call.1} parent=1 // pred_fallthru
      _
    // Predicated region
    $region14: #{tpu_custom_call.1} parent=1 // pred_check
      _
    $region15: #{tpu_custom_call.1} parent=1 // pred_check_branch
      %31 = sbr.rel (0) target = $region17
    $region16: #{tpu_custom_call.1} parent=1 // pred_region
      _
    $region17: #{tpu_custom_call.1} parent=1 // pred_fallthru
      _
    // Predicated region
    $region18: #{tpu_custom_call.1} parent=1 // pred_check
      _
    $region19: #{tpu_custom_call.1} parent=1 // pred_check_branch
      %33 = sbr.rel (0) target = $region21
    $region20: #{tpu_custom_call.1} parent=1 // pred_region
      _
    $region21: #{tpu_custom_call.1} parent=1 // pred_fallthru
      _
    // Predicated region
    $region22: #{tpu_custom_call.1} parent=1 // pred_check
      _
    $region23: #{tpu_custom_call.1} parent=1 // pred_check_branch
      %35 = sbr.rel (0) target = $region25
    $region24: #{tpu_custom_call.1} parent=1 // pred_region
      _
    $region25: #{tpu_custom_call.1} parent=1 // pred_fallthru
      _
    // Predicated region
    $region26: #{tpu_custom_call.1} parent=1 // pred_check
      _
    $region27: #{tpu_custom_call.1} parent=1 // pred_check_branch
      %37 = sbr.rel (0) target = $region29
    $region28: #{tpu_custom_call.1} parent=1 // pred_region
      _
    $region29: #{tpu_custom_call.1} parent=1 // pred_fallthru
      _
    // Predicated region
    $region30: #{tpu_custom_call.1} parent=1 // pred_check
      _
    $region31: #{tpu_custom_call.1} parent=1 // pred_check_branch
      %39 = sbr.rel (0) target = $region33
    $region32: #{tpu_custom_call.1} parent=1 // pred_region
      _
    $region33: #{tpu_custom_call.1} parent=1 // pred_fallthru
      _
    // Predicated region
    $region34: #{tpu_custom_call.1} parent=1 // pred_check
      _
    $region35: #{tpu_custom_call.1} parent=1 // pred_check_branch
      %41 = sbr.rel (0) target = $region37
    $region36: #{tpu_custom_call.1} parent=1 // pred_region
      _
    $region37: #{tpu_custom_call.1} parent=1 // pred_fallthru
      _
    // Predicated region
    $region38: #{tpu_custom_call.1} parent=1 // pred_check
      _
    $region39: #{tpu_custom_call.1} parent=1 // pred_check_branch
      %43 = sbr.rel (0) target = $region41
    $region40: #{tpu_custom_call.1} parent=1 // pred_region
      _
    $region41: #{tpu_custom_call.1} parent=1 // pred_fallthru
      _
    // Predicated region
    $region42: #{tpu_custom_call.1} parent=1 // pred_check
      _
    $region43: #{tpu_custom_call.1} parent=1 // pred_check_branch
      %45 = sbr.rel (0) target = $region45
    $region44: #{tpu_custom_call.1} parent=1 // pred_region
      _
    $region45: #{tpu_custom_call.1} parent=1 // pred_fallthru
      _
    // Predicated region
    $region46: #{tpu_custom_call.1} parent=1 // pred_check
      _
    $region47: #{tpu_custom_call.1} parent=1 // pred_check_branch
      %47 = sbr.rel (0) target = $region49
    $region48: #{tpu_custom_call.1} parent=1 // pred_region
      _
    $region49: #{tpu_custom_call.1} parent=1 // pred_fallthru
      _
    // Predicated region
    $region50: #{tpu_custom_call.1} parent=1 // pred_check
      _
    $region51: #{tpu_custom_call.1} parent=1 // pred_check_branch
      %49 = sbr.rel (0) target = $region53
    $region52: #{tpu_custom_call.1} parent=1 // pred_region
      _
    $region53: #{tpu_custom_call.1} parent=1 // pred_fallthru
      _
    // Predicated region
    $region54: #{tpu_custom_call.1} parent=1 // pred_check
      _
    $region55: #{tpu_custom_call.1} parent=1 // pred_check_branch
      %51 = sbr.rel (0) target = $region57
    $region56: #{tpu_custom_call.1} parent=1 // pred_region
      _
    $region57: #{tpu_custom_call.1} parent=1 // pred_fallthru
      _
    %v53 = vld [vmem:[%s0] sm:$0xff]
    %v54 = vld [vmem:[%s0 + $0x8] sm:$0xff]
    %v55 = vld [vmem:[%s0 + $0x10] sm:$0xff]
    %v56 = vld [vmem:[%s0 + $0x18] sm:$0xff]
    %v57 = vld [vmem:[%s0 + $0x20] sm:$0xff]
    %v58 = vld [vmem:[%s0 + $0x28] sm:$0xff]
    %v59 = vld [vmem:[%s0 + $0x30] sm:$0xff]
    %v60 = vld [vmem:[%s0 + $0x38] sm:$0xff]
    %v61 = vld [vmem:[%s0 + $0x40] sm:$0xff]
    %v62 = vld [vmem:[%s0 + $0x48] sm:$0xff]
    %v63 = vld [vmem:[%s0 + $0x50] sm:$0xff]
    %v64 = vld [vmem:[%s0 + $0x58] sm:$0xff]
    %v65 = vld [vmem:[%s0 + $0x60] sm:$0xff]
    %v66 = vld [vmem:[%s0 + $0x68] sm:$0xff]
    %v67 = vld [vmem:[%s0 + $0x70] sm:$0xff]
    %v68 = vld [vmem:[%s0 + $0x78] sm:$0xff]
    %v69 = vpack.c.bf16 %v61, %v53
    %v70 = vpack.c.bf16 %v62, %v54
    %v71 = vpack.c.bf16 %v63, %v55
    %v72 = vpack.c.bf16 %v64, %v56
    %v73 = vpack.c.bf16 %v65, %v57
    %v74 = vpack.c.bf16 %v66, %v58
    %v75 = vpack.c.bf16 %v67, %v59
    %v76 = vpack.c.bf16 %v68, %v60
    %v77 = vld [vmem:[%s2] sm:$0xff]
    %v78 = vld [vmem:[%s2 + $0x8] sm:$0xff]
    %v79 = vld [vmem:[%s2 + $0x10] sm:$0xff]
    %v80 = vld [vmem:[%s2 + $0x18] sm:$0xff]
    %v81 = vld [vmem:[%s2 + $0x20] sm:$0xff]
    %v82 = vld [vmem:[%s2 + $0x28] sm:$0xff]
    %v83 = vld [vmem:[%s2 + $0x30] sm:$0xff]
    %v84 = vld [vmem:[%s2 + $0x38] sm:$0xff]
    %v85 = vld [vmem:[%s2 + $0x40] sm:$0xff]
    %v86 = vld [vmem:[%s2 + $0x48] sm:$0xff]
    %v87 = vld [vmem:[%s2 + $0x50] sm:$0xff]
    %v88 = vld [vmem:[%s2 + $0x58] sm:$0xff]
    %v89 = vld [vmem:[%s2 + $0x60] sm:$0xff]
    %v90 = vld [vmem:[%s2 + $0x68] sm:$0xff]
    %v91 = vld [vmem:[%s2 + $0x70] sm:$0xff]
    %v92 = vld [vmem:[%s2 + $0x78] sm:$0xff]
    %v93 = vld [vmem:[%s2 + $0x80] sm:$0xff]
    %v94 = vld [vmem:[%s2 + $0x88] sm:$0xff]
    %v95 = vld [vmem:[%s2 + $0x90] sm:$0xff]
    %v96 = vld [vmem:[%s2 + $0x98] sm:$0xff]
    %v97 = vld [vmem:[%s2 + $0xa0] sm:$0xff]
    %v98 = vld [vmem:[%s2 + $0xa8] sm:$0xff]
    %v99 = vld [vmem:[%s2 + $0xb0] sm:$0xff]
    %v100 = vld [vmem:[%s2 + $0xb8] sm:$0xff]
    %v101 = vld [vmem:[%s2 + $0xc0] sm:$0xff]
    %v102 = vld [vmem:[%s2 + $0xc8] sm:$0xff]
    %v103 = vld [vmem:[%s2 + $0xd0] sm:$0xff]
    %v104 = vld [vmem:[%s2 + $0xd8] sm:$0xff]
    %v105 = vld [vmem:[%s2 + $0xe0] sm:$0xff]
    %v106 = vld [vmem:[%s2 + $0xe8] sm:$0xff]
    %v107 = vld [vmem:[%s2 + $0xf0] sm:$0xff]
    %v108 = vld [vmem:[%s2 + $0xf8] sm:$0xff]
    %v109 = vld [vmem:[%s2 + $0x100] sm:$0xff]
    %v110 = vld [vmem:[%s2 + $0x108] sm:$0xff]
    %v111 = vld [vmem:[%s2 + $0x110] sm:$0xff]
    %v112 = vld [vmem:[%s2 + $0x118] sm:$0xff]
    %v113 = vld [vmem:[%s2 + $0x120] sm:$0xff]
    %v114 = vld [vmem:[%s2 + $0x128] sm:$0xff]
    %v115 = vld [vmem:[%s2 + $0x130] sm:$0xff]
    %v116 = vld [vmem:[%s2 + $0x138] sm:$0xff]
    %v117 = vld [vmem:[%s2 + $0x140] sm:$0xff]
    %v118 = vld [vmem:[%s2 + $0x148] sm:$0xff]
    %v119 = vld [vmem:[%s2 + $0x150] sm:$0xff]
    %v120 = vld [vmem:[%s2 + $0x158] sm:$0xff]
    %v121 = vld [vmem:[%s2 + $0x160] sm:$0xff]
    %v122 = vld [vmem:[%s2 + $0x168] sm:$0xff]
    %v123 = vld [vmem:[%s2 + $0x170] sm:$0xff]
    %v124 = vld [vmem:[%s2 + $0x178] sm:$0xff]
    %v125 = vld [vmem:[%s2 + $0x180] sm:$0xff]
    %v126 = vld [vmem:[%s2 + $0x188] sm:$0xff]
    %v127 = vld [vmem:[%s2 + $0x190] sm:$0xff]
    %v128 = vld [vmem:[%s2 + $0x198] sm:$0xff]
    %v129 = vld [vmem:[%s2 + $0x1a0] sm:$0xff]
    %v130 = vld [vmem:[%s2 + $0x1a8] sm:$0xff]
    %v131 = vld [vmem:[%s2 + $0x1b0] sm:$0xff]
    %v132 = vld [vmem:[%s2 + $0x1b8] sm:$0xff]
    %v133 = vld [vmem:[%s2 + $0x1c0] sm:$0xff]
    %v134 = vld [vmem:[%s2 + $0x1c8] sm:$0xff]
    %v135 = vld [vmem:[%s2 + $0x1d0] sm:$0xff]
    %v136 = vld [vmem:[%s2 + $0x1d8] sm:$0xff]
    %v137 = vld [vmem:[%s2 + $0x1e0] sm:$0xff]
    %v138 = vld [vmem:[%s2 + $0x1e8] sm:$0xff]
    %v139 = vld [vmem:[%s2 + $0x1f0] sm:$0xff]
    %v140 = vld [vmem:[%s2 + $0x1f8] sm:$0xff]
    %v141 = vld [vmem:[%s2 + $0x200] sm:$0xff]
    %v142 = vld [vmem:[%s2 + $0x208] sm:$0xff]
    %v143 = vld [vmem:[%s2 + $0x210] sm:$0xff]
    %v144 = vld [vmem:[%s2 + $0x218] sm:$0xff]
    %v145 = vld [vmem:[%s2 + $0x220] sm:$0xff]
    %v146 = vld [vmem:[%s2 + $0x228] sm:$0xff]
    %v147 = vld [vmem:[%s2 + $0x230] sm:$0xff]
    %v148 = vld [vmem:[%s2 + $0x238] sm:$0xff]
    %v149 = vld [vmem:[%s2 + $0x240] sm:$0xff]
    %v150 = vld [vmem:[%s2 + $0x248] sm:$0xff]
    %v151 = vld [vmem:[%s2 + $0x250] sm:$0xff]
    %v152 = vld [vmem:[%s2 + $0x258] sm:$0xff]
    %v153 = vld [vmem:[%s2 + $0x260] sm:$0xff]
    %v154 = vld [vmem:[%s2 + $0x268] sm:$0xff]
    %v155 = vld [vmem:[%s2 + $0x270] sm:$0xff]
    %v156 = vld [vmem:[%s2 + $0x278] sm:$0xff]
    %v157 = vld [vmem:[%s2 + $0x280] sm:$0xff]
    %v158 = vld [vmem:[%s2 + $0x288] sm:$0xff]
    %v159 = vld [vmem:[%s2 + $0x290] sm:$0xff]
    %v160 = vld [vmem:[%s2 + $0x298] sm:$0xff]
    %v161 = vld [vmem:[%s2 + $0x2a0] sm:$0xff]
    %v162 = vld [vmem:[%s2 + $0x2a8] sm:$0xff]
    %v163 = vld [vmem:[%s2 + $0x2b0] sm:$0xff]
    %v164 = vld [vmem:[%s2 + $0x2b8] sm:$0xff]
    %v165 = vld [vmem:[%s2 + $0x2c0] sm:$0xff]
    %v166 = vld [vmem:[%s2 + $0x2c8] sm:$0xff]
    %v167 = vld [vmem:[%s2 + $0x2d0] sm:$0xff]
    %v168 = vld [vmem:[%s2 + $0x2d8] sm:$0xff]
    %v169 = vld [vmem:[%s2 + $0x2e0] sm:$0xff]
    %v170 = vld [vmem:[%s2 + $0x2e8] sm:$0xff]
    %v171 = vld [vmem:[%s2 + $0x2f0] sm:$0xff]
    %v172 = vld [vmem:[%s2 + $0x2f8] sm:$0xff]
    %v173 = vld [vmem:[%s2 + $0x300] sm:$0xff]
    %v174 = vld [vmem:[%s2 + $0x308] sm:$0xff]
    %v175 = vld [vmem:[%s2 + $0x310] sm:$0xff]
    %v176 = vld [vmem:[%s2 + $0x318] sm:$0xff]
    %v177 = vld [vmem:[%s2 + $0x320] sm:$0xff]
    %v178 = vld [vmem:[%s2 + $0x328] sm:$0xff]
    %v179 = vld [vmem:[%s2 + $0x330] sm:$0xff]
    %v180 = vld [vmem:[%s2 + $0x338] sm:$0xff]
    %v181 = vld [vmem:[%s2 + $0x340] sm:$0xff]
    %v182 = vld [vmem:[%s2 + $0x348] sm:$0xff]
    %v183 = vld [vmem:[%s2 + $0x350] sm:$0xff]
    %v184 = vld [vmem:[%s2 + $0x358] sm:$0xff]
    %v185 = vld [vmem:[%s2 + $0x360] sm:$0xff]
    %v186 = vld [vmem:[%s2 + $0x368] sm:$0xff]
    %v187 = vld [vmem:[%s2 + $0x370] sm:$0xff]
    %v188 = vld [vmem:[%s2 + $0x378] sm:$0xff]
    %v189 = vld [vmem:[%s2 + $0x380] sm:$0xff]
    %v190 = vld [vmem:[%s2 + $0x388] sm:$0xff]
    %v191 = vld [vmem:[%s2 + $0x390] sm:$0xff]
    %v192 = vld [vmem:[%s2 + $0x398] sm:$0xff]
    %v193 = vld [vmem:[%s2 + $0x3a0] sm:$0xff]
    %v194 = vld [vmem:[%s2 + $0x3a8] sm:$0xff]
    %v195 = vld [vmem:[%s2 + $0x3b0] sm:$0xff]
    %v196 = vld [vmem:[%s2 + $0x3b8] sm:$0xff]
    %v197 = vld [vmem:[%s2 + $0x3c0] sm:$0xff]
    %v198 = vld [vmem:[%s2 + $0x3c8] sm:$0xff]
    %v199 = vld [vmem:[%s2 + $0x3d0] sm:$0xff]
    %v200 = vld [vmem:[%s2 + $0x3d8] sm:$0xff]
    %v201 = vld [vmem:[%s2 + $0x3e0] sm:$0xff]
    %v202 = vld [vmem:[%s2 + $0x3e8] sm:$0xff]
    %v203 = vld [vmem:[%s2 + $0x3f0] sm:$0xff]
    %v204 = vld [vmem:[%s2 + $0x3f8] sm:$0xff]
    %v205 = vld [vmem:[%s2 + $0x400] sm:$0xff]
    %v206 = vld [vmem:[%s2 + $0x408] sm:$0xff]
    %v207 = vld [vmem:[%s2 + $0x410] sm:$0xff]
    %v208 = vld [vmem:[%s2 + $0x418] sm:$0xff]
    %v209 = vld [vmem:[%s2 + $0x420] sm:$0xff]
    %v210 = vld [vmem:[%s2 + $0x428] sm:$0xff]
    %v211 = vld [vmem:[%s2 + $0x430] sm:$0xff]
    %v212 = vld [vmem:[%s2 + $0x438] sm:$0xff]
    %v213 = vld [vmem:[%s2 + $0x440] sm:$0xff]
    %v214 = vld [vmem:[%s2 + $0x448] sm:$0xff]
    %v215 = vld [vmem:[%s2 + $0x450] sm:$0xff]
    %v216 = vld [vmem:[%s2 + $0x458] sm:$0xff]
    %v217 = vld [vmem:[%s2 + $0x460] sm:$0xff]
    %v218 = vld [vmem:[%s2 + $0x468] sm:$0xff]
    %v219 = vld [vmem:[%s2 + $0x470] sm:$0xff]
    %v220 = vld [vmem:[%s2 + $0x478] sm:$0xff]
    %v221 = vld [vmem:[%s2 + $0x480] sm:$0xff]
    %v222 = vld [vmem:[%s2 + $0x488] sm:$0xff]
    %v223 = vld [vmem:[%s2 + $0x490] sm:$0xff]
    %v224 = vld [vmem:[%s2 + $0x498] sm:$0xff]
    %v225 = vld [vmem:[%s2 + $0x4a0] sm:$0xff]
    %v226 = vld [vmem:[%s2 + $0x4a8] sm:$0xff]
    %v227 = vld [vmem:[%s2 + $0x4b0] sm:$0xff]
    %v228 = vld [vmem:[%s2 + $0x4b8] sm:$0xff]
    %v229 = vld [vmem:[%s2 + $0x4c0] sm:$0xff]
    %v230 = vld [vmem:[%s2 + $0x4c8] sm:$0xff]
    %v231 = vld [vmem:[%s2 + $0x4d0] sm:$0xff]
    %v232 = vld [vmem:[%s2 + $0x4d8] sm:$0xff]
    %v233 = vld [vmem:[%s2 + $0x4e0] sm:$0xff]
    %v234 = vld [vmem:[%s2 + $0x4e8] sm:$0xff]
    %v235 = vld [vmem:[%s2 + $0x4f0] sm:$0xff]
    %v236 = vld [vmem:[%s2 + $0x4f8] sm:$0xff]
    %v237 = vld [vmem:[%s2 + $0x500] sm:$0xff]
    %v238 = vld [vmem:[%s2 + $0x508] sm:$0xff]
    %v239 = vld [vmem:[%s2 + $0x510] sm:$0xff]
    %v240 = vld [vmem:[%s2 + $0x518] sm:$0xff]
    %v241 = vld [vmem:[%s2 + $0x520] sm:$0xff]
    %v242 = vld [vmem:[%s2 + $0x528] sm:$0xff]
    %v243 = vld [vmem:[%s2 + $0x530] sm:$0xff]
    %v244 = vld [vmem:[%s2 + $0x538] sm:$0xff]
    %v245 = vld [vmem:[%s2 + $0x540] sm:$0xff]
    %v246 = vld [vmem:[%s2 + $0x548] sm:$0xff]
    %v247 = vld [vmem:[%s2 + $0x550] sm:$0xff]
    %v248 = vld [vmem:[%s2 + $0x558] sm:$0xff]
    %v249 = vld [vmem:[%s2 + $0x560] sm:$0xff]
    %v250 = vld [vmem:[%s2 + $0x568] sm:$0xff]
    %v251 = vld [vmem:[%s2 + $0x570] sm:$0xff]
    %v252 = vld [vmem:[%s2 + $0x578] sm:$0xff]
    %v253 = vld [vmem:[%s2 + $0x580] sm:$0xff]
    %v254 = vld [vmem:[%s2 + $0x588] sm:$0xff]
    %v255 = vld [vmem:[%s2 + $0x590] sm:$0xff]
    %v256 = vld [vmem:[%s2 + $0x598] sm:$0xff]
    %v257 = vld [vmem:[%s2 + $0x5a0] sm:$0xff]
    %v258 = vld [vmem:[%s2 + $0x5a8] sm:$0xff]
    %v259 = vld [vmem:[%s2 + $0x5b0] sm:$0xff]
    %v260 = vld [vmem:[%s2 + $0x5b8] sm:$0xff]
    %v261 = vld [vmem:[%s2 + $0x5c0] sm:$0xff]
    %v262 = vld [vmem:[%s2 + $0x5c8] sm:$0xff]
    %v263 = vld [vmem:[%s2 + $0x5d0] sm:$0xff]
    %v264 = vld [vmem:[%s2 + $0x5d8] sm:$0xff]
    %v265 = vld [vmem:[%s2 + $0x5e0] sm:$0xff]
    %v266 = vld [vmem:[%s2 + $0x5e8] sm:$0xff]
    %v267 = vld [vmem:[%s2 + $0x5f0] sm:$0xff]
    %v268 = vld [vmem:[%s2 + $0x5f8] sm:$0xff]
    %v269 = vld [vmem:[%s2 + $0x600] sm:$0xff]
    %v270 = vld [vmem:[%s2 + $0x608] sm:$0xff]
    %v271 = vld [vmem:[%s2 + $0x610] sm:$0xff]
    %v272 = vld [vmem:[%s2 + $0x618] sm:$0xff]
    %v273 = vld [vmem:[%s2 + $0x620] sm:$0xff]
    %v274 = vld [vmem:[%s2 + $0x628] sm:$0xff]
    %v275 = vld [vmem:[%s2 + $0x630] sm:$0xff]
    %v276 = vld [vmem:[%s2 + $0x638] sm:$0xff]
    %v277 = vld [vmem:[%s2 + $0x640] sm:$0xff]
    %v278 = vld [vmem:[%s2 + $0x648] sm:$0xff]
    %v279 = vld [vmem:[%s2 + $0x650] sm:$0xff]
    %v280 = vld [vmem:[%s2 + $0x658] sm:$0xff]
    %v281 = vld [vmem:[%s2 + $0x660] sm:$0xff]
    %v282 = vld [vmem:[%s2 + $0x668] sm:$0xff]
    %v283 = vld [vmem:[%s2 + $0x670] sm:$0xff]
    %v284 = vld [vmem:[%s2 + $0x678] sm:$0xff]
    %v285 = vld [vmem:[%s2 + $0x680] sm:$0xff]
    %v286 = vld [vmem:[%s2 + $0x688] sm:$0xff]
    %v287 = vld [vmem:[%s2 + $0x690] sm:$0xff]
    %v288 = vld [vmem:[%s2 + $0x698] sm:$0xff]
    %v289 = vld [vmem:[%s2 + $0x6a0] sm:$0xff]
    %v290 = vld [vmem:[%s2 + $0x6a8] sm:$0xff]
    %v291 = vld [vmem:[%s2 + $0x6b0] sm:$0xff]
    %v292 = vld [vmem:[%s2 + $0x6b8] sm:$0xff]
    %v293 = vld [vmem:[%s2 + $0x6c0] sm:$0xff]
    %v294 = vld [vmem:[%s2 + $0x6c8] sm:$0xff]
    %v295 = vld [vmem:[%s2 + $0x6d0] sm:$0xff]
    %v296 = vld [vmem:[%s2 + $0x6d8] sm:$0xff]
    %v297 = vld [vmem:[%s2 + $0x6e0] sm:$0xff]
    %v298 = vld [vmem:[%s2 + $0x6e8] sm:$0xff]
    %v299 = vld [vmem:[%s2 + $0x6f0] sm:$0xff]
    %v300 = vld [vmem:[%s2 + $0x6f8] sm:$0xff]
    %v301 = vld [vmem:[%s2 + $0x700] sm:$0xff]
    %v302 = vld [vmem:[%s2 + $0x708] sm:$0xff]
    %v303 = vld [vmem:[%s2 + $0x710] sm:$0xff]
    %v304 = vld [vmem:[%s2 + $0x718] sm:$0xff]
    %v305 = vld [vmem:[%s2 + $0x720] sm:$0xff]
    %v306 = vld [vmem:[%s2 + $0x728] sm:$0xff]
    %v307 = vld [vmem:[%s2 + $0x730] sm:$0xff]
    %v308 = vld [vmem:[%s2 + $0x738] sm:$0xff]
    %v309 = vld [vmem:[%s2 + $0x740] sm:$0xff]
    %v310 = vld [vmem:[%s2 + $0x748] sm:$0xff]
    %v311 = vld [vmem:[%s2 + $0x750] sm:$0xff]
    %v312 = vld [vmem:[%s2 + $0x758] sm:$0xff]
    %v313 = vld [vmem:[%s2 + $0x760] sm:$0xff]
    %v314 = vld [vmem:[%s2 + $0x768] sm:$0xff]
    %v315 = vld [vmem:[%s2 + $0x770] sm:$0xff]
    %v316 = vld [vmem:[%s2 + $0x778] sm:$0xff]
    %v317 = vld [vmem:[%s2 + $0x780] sm:$0xff]
    %v318 = vld [vmem:[%s2 + $0x788] sm:$0xff]
    %v319 = vld [vmem:[%s2 + $0x790] sm:$0xff]
    %v320 = vld [vmem:[%s2 + $0x798] sm:$0xff]
    %v321 = vld [vmem:[%s2 + $0x7a0] sm:$0x11]
    %v322 = vld [vmem:[%s2 + $0x7a8] sm:$0x11]
    %v323 = vld [vmem:[%s3] sm:$0xf]
    %v325 = vlaneseq
    %v326 = vshrl.u32 %v325, 7
    %v327 = vsub.s32 0, %v326
    %v328 = vrot.slane %v323, %v327
    %v329 = vlaneseq
    %v330 = vshrl.u32 %v329, 7
    %v331 = vsub.s32 1, %v330
    %v332 = vrot.slane %v323, %v331
    %v333 = vlaneseq
    %v334 = vshrl.u32 %v333, 7
    %v335 = vsub.s32 2, %v334
    %v336 = vrot.slane %v323, %v335
    %v337 = vlaneseq
    %v338 = vshrl.u32 %v337, 7
    %v339 = vsub.s32 3, %v338
    %v340 = vrot.slane %v323, %v339
    %v591 = vunpack.c.l.b16 %v77
    %v592 = vunpack.c.h.b16 %v77
    %v593 = vunpack.c.l.b16 %v78
    %v594 = vunpack.c.h.b16 %v78
    %v595 = vunpack.c.l.b16 %v79
    %v596 = vunpack.c.h.b16 %v79
    %v597 = vunpack.c.l.b16 %v80
    %v598 = vunpack.c.h.b16 %v80
    %v599 = vunpack.c.l.b16 %v81
    %v600 = vunpack.c.h.b16 %v81
    %v601 = vunpack.c.l.b16 %v82
    %v602 = vunpack.c.h.b16 %v82
    %v603 = vunpack.c.l.b16 %v83
    %v604 = vunpack.c.h.b16 %v83
    %v605 = vunpack.c.l.b16 %v84
    %v606 = vunpack.c.h.b16 %v84
    %v607 = vunpack.c.l.b16 %v85
    %v608 = vunpack.c.h.b16 %v85
    %v609 = vunpack.c.l.b16 %v86
    %v610 = vunpack.c.h.b16 %v86
    %v611 = vunpack.c.l.b16 %v87
    %v612 = vunpack.c.h.b16 %v87
    %v613 = vunpack.c.l.b16 %v88
    %v614 = vunpack.c.h.b16 %v88
    %v615 = vunpack.c.l.b16 %v89
    %v616 = vunpack.c.h.b16 %v89
    %v617 = vunpack.c.l.b16 %v90
    %v618 = vunpack.c.h.b16 %v90
    %v619 = vunpack.c.l.b16 %v91
    %v620 = vunpack.c.h.b16 %v91
    %v621 = vunpack.c.l.b16 %v92
    %v622 = vunpack.c.h.b16 %v92
    %v623 = vunpack.c.l.b16 %v93
    %v624 = vunpack.c.h.b16 %v93
    %v625 = vunpack.c.l.b16 %v94
    %v626 = vunpack.c.h.b16 %v94
    %v627 = vunpack.c.l.b16 %v95
    %v628 = vunpack.c.h.b16 %v95
    %v629 = vunpack.c.l.b16 %v96
    %v630 = vunpack.c.h.b16 %v96
    %v631 = vunpack.c.l.b16 %v97
    %v632 = vunpack.c.h.b16 %v97
    %v633 = vunpack.c.l.b16 %v98
    %v634 = vunpack.c.h.b16 %v98
    %v635 = vunpack.c.l.b16 %v99
    %v636 = vunpack.c.h.b16 %v99
    %v637 = vunpack.c.l.b16 %v100
    %v638 = vunpack.c.h.b16 %v100
    %v639 = vunpack.c.l.b16 %v101
    %v640 = vunpack.c.h.b16 %v101
    %v641 = vunpack.c.l.b16 %v102
    %v642 = vunpack.c.h.b16 %v102
    %v643 = vunpack.c.l.b16 %v103
    %v644 = vunpack.c.h.b16 %v103
    %v645 = vunpack.c.l.b16 %v104
    %v646 = vunpack.c.h.b16 %v104
    %v647 = vunpack.c.l.b16 %v105
    %v648 = vunpack.c.h.b16 %v105
    %v649 = vunpack.c.l.b16 %v106
    %v650 = vunpack.c.h.b16 %v106
    %v651 = vunpack.c.l.b16 %v107
    %v652 = vunpack.c.h.b16 %v107
    %v653 = vunpack.c.l.b16 %v108
    %v654 = vunpack.c.h.b16 %v108
    %v655 = vunpack.c.l.b16 %v109
    %v656 = vunpack.c.h.b16 %v109
    %v657 = vunpack.c.l.b16 %v110
    %v658 = vunpack.c.h.b16 %v110
    %v659 = vunpack.c.l.b16 %v111
    %v660 = vunpack.c.h.b16 %v111
    %v661 = vunpack.c.l.b16 %v112
    %v662 = vunpack.c.h.b16 %v112
    %v663 = vunpack.c.l.b16 %v113
    %v664 = vunpack.c.h.b16 %v113
    %v665 = vunpack.c.l.b16 %v114
    %v666 = vunpack.c.h.b16 %v114
    %v667 = vunpack.c.l.b16 %v115
    %v668 = vunpack.c.h.b16 %v115
    %v669 = vunpack.c.l.b16 %v116
    %v670 = vunpack.c.h.b16 %v116
    %v671 = vunpack.c.l.b16 %v117
    %v672 = vunpack.c.h.b16 %v117
    %v673 = vunpack.c.l.b16 %v118
    %v674 = vunpack.c.h.b16 %v118
    %v675 = vunpack.c.l.b16 %v119
    %v676 = vunpack.c.h.b16 %v119
    %v677 = vunpack.c.l.b16 %v120
    %v678 = vunpack.c.h.b16 %v120
    %v679 = vunpack.c.l.b16 %v121
    %v680 = vunpack.c.h.b16 %v121
    %v681 = vunpack.c.l.b16 %v122
    %v682 = vunpack.c.h.b16 %v122
    %v683 = vunpack.c.l.b16 %v123
    %v684 = vunpack.c.h.b16 %v123
    %v685 = vunpack.c.l.b16 %v124
    %v686 = vunpack.c.h.b16 %v124
    %v687 = vunpack.c.l.b16 %v125
    %v688 = vunpack.c.h.b16 %v125
    %v689 = vunpack.c.l.b16 %v126
    %v690 = vunpack.c.h.b16 %v126
    %v691 = vunpack.c.l.b16 %v127
    %v692 = vunpack.c.h.b16 %v127
    %v693 = vunpack.c.l.b16 %v128
    %v694 = vunpack.c.h.b16 %v128
    %v695 = vunpack.c.l.b16 %v129
    %v696 = vunpack.c.h.b16 %v129
    %v697 = vunpack.c.l.b16 %v130
    %v698 = vunpack.c.h.b16 %v130
    %v699 = vunpack.c.l.b16 %v131
    %v700 = vunpack.c.h.b16 %v131
    %v701 = vunpack.c.l.b16 %v132
    %v702 = vunpack.c.h.b16 %v132
    %v703 = vunpack.c.l.b16 %v133
    %v704 = vunpack.c.h.b16 %v133
    %v705 = vunpack.c.l.b16 %v134
    %v706 = vunpack.c.h.b16 %v134
    %v707 = vunpack.c.l.b16 %v135
    %v708 = vunpack.c.h.b16 %v135
    %v709 = vunpack.c.l.b16 %v136
    %v710 = vunpack.c.h.b16 %v136
    %v711 = vunpack.c.l.b16 %v137
    %v712 = vunpack.c.h.b16 %v137
    %v713 = vunpack.c.l.b16 %v138
    %v714 = vunpack.c.h.b16 %v138
    %v715 = vunpack.c.l.b16 %v139
    %v716 = vunpack.c.h.b16 %v139
    %v717 = vunpack.c.l.b16 %v140
    %v718 = vunpack.c.h.b16 %v140
    %v719 = vunpack.c.l.b16 %v141
    %v720 = vunpack.c.h.b16 %v141
    %v721 = vunpack.c.l.b16 %v142
    %v722 = vunpack.c.h.b16 %v142
    %v723 = vunpack.c.l.b16 %v143
    %v724 = vunpack.c.h.b16 %v143
    %v725 = vunpack.c.l.b16 %v144
    %v726 = vunpack.c.h.b16 %v144
    %v727 = vunpack.c.l.b16 %v145
    %v728 = vunpack.c.h.b16 %v145
    %v729 = vunpack.c.l.b16 %v146
    %v730 = vunpack.c.h.b16 %v146
    %v731 = vunpack.c.l.b16 %v147
    %v732 = vunpack.c.h.b16 %v147
    %v733 = vunpack.c.l.b16 %v148
    %v734 = vunpack.c.h.b16 %v148
    %v735 = vunpack.c.l.b16 %v149
    %v736 = vunpack.c.h.b16 %v149
    %v737 = vunpack.c.l.b16 %v150
    %v738 = vunpack.c.h.b16 %v150
    %v739 = vunpack.c.l.b16 %v151
    %v740 = vunpack.c.h.b16 %v151
    %v741 = vunpack.c.l.b16 %v152
    %v742 = vunpack.c.h.b16 %v152
    %v743 = vunpack.c.l.b16 %v153
    %v744 = vunpack.c.h.b16 %v153
    %v745 = vunpack.c.l.b16 %v154
    %v746 = vunpack.c.h.b16 %v154
    %v747 = vunpack.c.l.b16 %v155
    %v748 = vunpack.c.h.b16 %v155
    %v749 = vunpack.c.l.b16 %v156
    %v750 = vunpack.c.h.b16 %v156
    %v751 = vunpack.c.l.b16 %v157
    %v752 = vunpack.c.h.b16 %v157
    %v753 = vunpack.c.l.b16 %v158
    %v754 = vunpack.c.h.b16 %v158
    %v755 = vunpack.c.l.b16 %v159
    %v756 = vunpack.c.h.b16 %v159
    %v757 = vunpack.c.l.b16 %v160
    %v758 = vunpack.c.h.b16 %v160
    %v759 = vunpack.c.l.b16 %v161
    %v760 = vunpack.c.h.b16 %v161
    %v761 = vunpack.c.l.b16 %v162
    %v762 = vunpack.c.h.b16 %v162
    %v763 = vunpack.c.l.b16 %v163
    %v764 = vunpack.c.h.b16 %v163
    %v765 = vunpack.c.l.b16 %v164
    %v766 = vunpack.c.h.b16 %v164
    %v767 = vunpack.c.l.b16 %v165
    %v768 = vunpack.c.h.b16 %v165
    %v769 = vunpack.c.l.b16 %v166
    %v770 = vunpack.c.h.b16 %v166
    %v771 = vunpack.c.l.b16 %v167
    %v772 = vunpack.c.h.b16 %v167
    %v773 = vunpack.c.l.b16 %v168
    %v774 = vunpack.c.h.b16 %v168
    %v775 = vunpack.c.l.b16 %v169
    %v776 = vunpack.c.h.b16 %v169
    %v777 = vunpack.c.l.b16 %v170
    %v778 = vunpack.c.h.b16 %v170
    %v779 = vunpack.c.l.b16 %v171
    %v780 = vunpack.c.h.b16 %v171
    %v781 = vunpack.c.l.b16 %v172
    %v782 = vunpack.c.h.b16 %v172
    %v783 = vunpack.c.l.b16 %v173
    %v784 = vunpack.c.h.b16 %v173
    %v785 = vunpack.c.l.b16 %v174
    %v786 = vunpack.c.h.b16 %v174
    %v787 = vunpack.c.l.b16 %v175
    %v788 = vunpack.c.h.b16 %v175
    %v789 = vunpack.c.l.b16 %v176
    %v790 = vunpack.c.h.b16 %v176
    %v791 = vunpack.c.l.b16 %v177
    %v792 = vunpack.c.h.b16 %v177
    %v793 = vunpack.c.l.b16 %v178
    %v794 = vunpack.c.h.b16 %v178
    %v795 = vunpack.c.l.b16 %v179
    %v796 = vunpack.c.h.b16 %v179
    %v797 = vunpack.c.l.b16 %v180
    %v798 = vunpack.c.h.b16 %v180
    %v799 = vunpack.c.l.b16 %v181
    %v800 = vunpack.c.h.b16 %v181
    %v801 = vunpack.c.l.b16 %v182
    %v802 = vunpack.c.h.b16 %v182
    %v803 = vunpack.c.l.b16 %v183
    %v804 = vunpack.c.h.b16 %v183
    %v805 = vunpack.c.l.b16 %v184
    %v806 = vunpack.c.h.b16 %v184
    %v807 = vunpack.c.l.b16 %v185
    %v808 = vunpack.c.h.b16 %v185
    %v809 = vunpack.c.l.b16 %v186
    %v810 = vunpack.c.h.b16 %v186
    %v811 = vunpack.c.l.b16 %v187
    %v812 = vunpack.c.h.b16 %v187
    %v813 = vunpack.c.l.b16 %v188
    %v814 = vunpack.c.h.b16 %v188
    %v815 = vunpack.c.l.b16 %v189
    %v816 = vunpack.c.h.b16 %v189
    %v817 = vunpack.c.l.b16 %v190
    %v818 = vunpack.c.h.b16 %v190
    %v819 = vunpack.c.l.b16 %v191
    %v820 = vunpack.c.h.b16 %v191
    %v821 = vunpack.c.l.b16 %v192
    %v822 = vunpack.c.h.b16 %v192
    %v823 = vunpack.c.l.b16 %v193
    %v824 = vunpack.c.h.b16 %v193
    %v825 = vunpack.c.l.b16 %v194
    %v826 = vunpack.c.h.b16 %v194
    %v827 = vunpack.c.l.b16 %v195
    %v828 = vunpack.c.h.b16 %v195
    %v829 = vunpack.c.l.b16 %v196
    %v830 = vunpack.c.h.b16 %v196
    %v831 = vunpack.c.l.b16 %v197
    %v832 = vunpack.c.h.b16 %v197
    %v833 = vunpack.c.l.b16 %v198
    %v834 = vunpack.c.h.b16 %v198
    %v835 = vunpack.c.l.b16 %v199
    %v836 = vunpack.c.h.b16 %v199
    %v837 = vunpack.c.l.b16 %v200
    %v838 = vunpack.c.h.b16 %v200
    %v839 = vunpack.c.l.b16 %v201
    %v840 = vunpack.c.h.b16 %v201
    %v841 = vunpack.c.l.b16 %v202
    %v842 = vunpack.c.h.b16 %v202
    %v843 = vunpack.c.l.b16 %v203
    %v844 = vunpack.c.h.b16 %v203
    %v845 = vunpack.c.l.b16 %v204
    %v846 = vunpack.c.h.b16 %v204
    %v847 = vunpack.c.l.b16 %v205
    %v848 = vunpack.c.h.b16 %v205
    %v849 = vunpack.c.l.b16 %v206
    %v850 = vunpack.c.h.b16 %v206
    %v851 = vunpack.c.l.b16 %v207
    %v852 = vunpack.c.h.b16 %v207
    %v853 = vunpack.c.l.b16 %v208
    %v854 = vunpack.c.h.b16 %v208
    %v855 = vunpack.c.l.b16 %v209
    %v856 = vunpack.c.h.b16 %v209
    %v857 = vunpack.c.l.b16 %v210
    %v858 = vunpack.c.h.b16 %v210
    %v859 = vunpack.c.l.b16 %v211
    %v860 = vunpack.c.h.b16 %v211
    %v861 = vunpack.c.l.b16 %v212
    %v862 = vunpack.c.h.b16 %v212
    %v863 = vunpack.c.l.b16 %v213
    %v864 = vunpack.c.h.b16 %v213
    %v865 = vunpack.c.l.b16 %v214
    %v866 = vunpack.c.h.b16 %v214
    %v867 = vunpack.c.l.b16 %v215
    %v868 = vunpack.c.h.b16 %v215
    %v869 = vunpack.c.l.b16 %v216
    %v870 = vunpack.c.h.b16 %v216
    %v871 = vunpack.c.l.b16 %v217
    %v872 = vunpack.c.h.b16 %v217
    %v873 = vunpack.c.l.b16 %v218
    %v874 = vunpack.c.h.b16 %v218
    %v875 = vunpack.c.l.b16 %v219
    %v876 = vunpack.c.h.b16 %v219
    %v877 = vunpack.c.l.b16 %v220
    %v878 = vunpack.c.h.b16 %v220
    %v879 = vunpack.c.l.b16 %v221
    %v880 = vunpack.c.h.b16 %v221
    %v881 = vunpack.c.l.b16 %v222
    %v882 = vunpack.c.h.b16 %v222
    %v883 = vunpack.c.l.b16 %v223
    %v884 = vunpack.c.h.b16 %v223
    %v885 = vunpack.c.l.b16 %v224
    %v886 = vunpack.c.h.b16 %v224
    %v887 = vunpack.c.l.b16 %v225
    %v888 = vunpack.c.h.b16 %v225
    %v889 = vunpack.c.l.b16 %v226
    %v890 = vunpack.c.h.b16 %v226
    %v891 = vunpack.c.l.b16 %v227
    %v892 = vunpack.c.h.b16 %v227
    %v893 = vunpack.c.l.b16 %v228
    %v894 = vunpack.c.h.b16 %v228
    %v895 = vunpack.c.l.b16 %v229
    %v896 = vunpack.c.h.b16 %v229
    %v897 = vunpack.c.l.b16 %v230
    %v898 = vunpack.c.h.b16 %v230
    %v899 = vunpack.c.l.b16 %v231
    %v900 = vunpack.c.h.b16 %v231
    %v901 = vunpack.c.l.b16 %v232
    %v902 = vunpack.c.h.b16 %v232
    %v903 = vunpack.c.l.b16 %v233
    %v904 = vunpack.c.h.b16 %v233
    %v905 = vunpack.c.l.b16 %v234
    %v906 = vunpack.c.h.b16 %v234
    %v907 = vunpack.c.l.b16 %v235
    %v908 = vunpack.c.h.b16 %v235
    %v909 = vunpack.c.l.b16 %v236
    %v910 = vunpack.c.h.b16 %v236
    %v911 = vunpack.c.l.b16 %v237
    %v912 = vunpack.c.h.b16 %v237
    %v913 = vunpack.c.l.b16 %v238
    %v914 = vunpack.c.h.b16 %v238
    %v915 = vunpack.c.l.b16 %v239
    %v916 = vunpack.c.h.b16 %v239
    %v917 = vunpack.c.l.b16 %v240
    %v918 = vunpack.c.h.b16 %v240
    %v919 = vunpack.c.l.b16 %v241
    %v920 = vunpack.c.h.b16 %v241
    %v921 = vunpack.c.l.b16 %v242
    %v922 = vunpack.c.h.b16 %v242
    %v923 = vunpack.c.l.b16 %v243
    %v924 = vunpack.c.h.b16 %v243
    %v925 = vunpack.c.l.b16 %v244
    %v926 = vunpack.c.h.b16 %v244
    %v927 = vunpack.c.l.b16 %v245
    %v928 = vunpack.c.h.b16 %v245
    %v929 = vunpack.c.l.b16 %v246
    %v930 = vunpack.c.h.b16 %v246
    %v931 = vunpack.c.l.b16 %v247
    %v932 = vunpack.c.h.b16 %v247
    %v933 = vunpack.c.l.b16 %v248
    %v934 = vunpack.c.h.b16 %v248
    %v935 = vunpack.c.l.b16 %v249
    %v936 = vunpack.c.h.b16 %v249
    %v937 = vunpack.c.l.b16 %v250
    %v938 = vunpack.c.h.b16 %v250
    %v939 = vunpack.c.l.b16 %v251
    %v940 = vunpack.c.h.b16 %v251
    %v941 = vunpack.c.l.b16 %v252
    %v942 = vunpack.c.h.b16 %v252
    %v943 = vunpack.c.l.b16 %v253
    %v944 = vunpack.c.h.b16 %v253
    %v945 = vunpack.c.l.b16 %v254
    %v946 = vunpack.c.h.b16 %v254
    %v947 = vunpack.c.l.b16 %v255
    %v948 = vunpack.c.h.b16 %v255
    %v949 = vunpack.c.l.b16 %v256
    %v950 = vunpack.c.h.b16 %v256
    %v951 = vunpack.c.l.b16 %v257
    %v952 = vunpack.c.h.b16 %v257
    %v953 = vunpack.c.l.b16 %v258
    %v954 = vunpack.c.h.b16 %v258
    %v955 = vunpack.c.l.b16 %v259
    %v956 = vunpack.c.h.b16 %v259
    %v957 = vunpack.c.l.b16 %v260
    %v958 = vunpack.c.h.b16 %v260
    %v959 = vunpack.c.l.b16 %v261
    %v960 = vunpack.c.h.b16 %v261
    %v961 = vunpack.c.l.b16 %v262
    %v962 = vunpack.c.h.b16 %v262
    %v963 = vunpack.c.l.b16 %v263
    %v964 = vunpack.c.h.b16 %v263
    %v965 = vunpack.c.l.b16 %v264
    %v966 = vunpack.c.h.b16 %v264
    %v967 = vunpack.c.l.b16 %v265
    %v968 = vunpack.c.h.b16 %v265
    %v969 = vunpack.c.l.b16 %v266
    %v970 = vunpack.c.h.b16 %v266
    %v971 = vunpack.c.l.b16 %v267
    %v972 = vunpack.c.h.b16 %v267
    %v973 = vunpack.c.l.b16 %v268
    %v974 = vunpack.c.h.b16 %v268
    %v975 = vunpack.c.l.b16 %v269
    %v976 = vunpack.c.h.b16 %v269
    %v977 = vunpack.c.l.b16 %v270
    %v978 = vunpack.c.h.b16 %v270
    %v979 = vunpack.c.l.b16 %v271
    %v980 = vunpack.c.h.b16 %v271
    %v981 = vunpack.c.l.b16 %v272
    %v982 = vunpack.c.h.b16 %v272
    %v983 = vunpack.c.l.b16 %v273
    %v984 = vunpack.c.h.b16 %v273
    %v985 = vunpack.c.l.b16 %v274
    %v986 = vunpack.c.h.b16 %v274
    %v987 = vunpack.c.l.b16 %v275
    %v988 = vunpack.c.h.b16 %v275
    %v989 = vunpack.c.l.b16 %v276
    %v990 = vunpack.c.h.b16 %v276
    %v991 = vunpack.c.l.b16 %v277
    %v992 = vunpack.c.h.b16 %v277
    %v993 = vunpack.c.l.b16 %v278
    %v994 = vunpack.c.h.b16 %v278
    %v995 = vunpack.c.l.b16 %v279
    %v996 = vunpack.c.h.b16 %v279
    %v997 = vunpack.c.l.b16 %v280
    %v998 = vunpack.c.h.b16 %v280
    %v999 = vunpack.c.l.b16 %v281
    %v1000 = vunpack.c.h.b16 %v281
    %v1001 = vunpack.c.l.b16 %v282
    %v1002 = vunpack.c.h.b16 %v282
    %v1003 = vunpack.c.l.b16 %v283
    %v1004 = vunpack.c.h.b16 %v283
    %v1005 = vunpack.c.l.b16 %v284
    %v1006 = vunpack.c.h.b16 %v284
    %v1007 = vunpack.c.l.b16 %v285
    %v1008 = vunpack.c.h.b16 %v285
    %v1009 = vunpack.c.l.b16 %v286
    %v1010 = vunpack.c.h.b16 %v286
    %v1011 = vunpack.c.l.b16 %v287
    %v1012 = vunpack.c.h.b16 %v287
    %v1013 = vunpack.c.l.b16 %v288
    %v1014 = vunpack.c.h.b16 %v288
    %v1015 = vunpack.c.l.b16 %v289
    %v1016 = vunpack.c.h.b16 %v289
    %v1017 = vunpack.c.l.b16 %v290
    %v1018 = vunpack.c.h.b16 %v290
    %v1019 = vunpack.c.l.b16 %v291
    %v1020 = vunpack.c.h.b16 %v291
    %v1021 = vunpack.c.l.b16 %v292
    %v1022 = vunpack.c.h.b16 %v292
    %v1023 = vunpack.c.l.b16 %v293
    %v1024 = vunpack.c.h.b16 %v293
    %v1025 = vunpack.c.l.b16 %v294
    %v1026 = vunpack.c.h.b16 %v294
    %v1027 = vunpack.c.l.b16 %v295
    %v1028 = vunpack.c.h.b16 %v295
    %v1029 = vunpack.c.l.b16 %v296
    %v1030 = vunpack.c.h.b16 %v296
    %v1031 = vunpack.c.l.b16 %v297
    %v1032 = vunpack.c.h.b16 %v297
    %v1033 = vunpack.c.l.b16 %v298
    %v1034 = vunpack.c.h.b16 %v298
    %v1035 = vunpack.c.l.b16 %v299
    %v1036 = vunpack.c.h.b16 %v299
    %v1037 = vunpack.c.l.b16 %v300
    %v1038 = vunpack.c.h.b16 %v300
    %v1039 = vunpack.c.l.b16 %v301
    %v1040 = vunpack.c.h.b16 %v301
    %v1041 = vunpack.c.l.b16 %v302
    %v1042 = vunpack.c.h.b16 %v302
    %v1043 = vunpack.c.l.b16 %v303
    %v1044 = vunpack.c.h.b16 %v303
    %v1045 = vunpack.c.l.b16 %v304
    %v1046 = vunpack.c.h.b16 %v304
    %v1047 = vunpack.c.l.b16 %v305
    %v1048 = vunpack.c.h.b16 %v305
    %v1049 = vunpack.c.l.b16 %v306
    %v1050 = vunpack.c.h.b16 %v306
    %v1051 = vunpack.c.l.b16 %v307
    %v1052 = vunpack.c.h.b16 %v307
    %v1053 = vunpack.c.l.b16 %v308
    %v1054 = vunpack.c.h.b16 %v308
    %v1055 = vunpack.c.l.b16 %v309
    %v1056 = vunpack.c.h.b16 %v309
    %v1057 = vunpack.c.l.b16 %v310
    %v1058 = vunpack.c.h.b16 %v310
    %v1059 = vunpack.c.l.b16 %v311
    %v1060 = vunpack.c.h.b16 %v311
    %v1061 = vunpack.c.l.b16 %v312
    %v1062 = vunpack.c.h.b16 %v312
    %v1063 = vunpack.c.l.b16 %v313
    %v1064 = vunpack.c.h.b16 %v313
    %v1065 = vunpack.c.l.b16 %v314
    %v1066 = vunpack.c.h.b16 %v314
    %v1067 = vunpack.c.l.b16 %v315
    %v1068 = vunpack.c.h.b16 %v315
    %v1069 = vunpack.c.l.b16 %v316
    %v1070 = vunpack.c.h.b16 %v316
    %v1071 = vunpack.c.l.b16 %v317
    %v1072 = vunpack.c.h.b16 %v317
    %v1073 = vunpack.c.l.b16 %v318
    %v1074 = vunpack.c.h.b16 %v318
    %v1075 = vunpack.c.l.b16 %v319
    %v1076 = vunpack.c.h.b16 %v319
    %v1077 = vunpack.c.l.b16 %v320
    %v1078 = vunpack.c.h.b16 %v320
    %v1079 = vunpack.c.l.b16 %v321
    %v1080 = vunpack.c.h.b16 %v321
    %v1081 = vunpack.c.l.b16 %v322
    %v1082 = vunpack.c.h.b16 %v322
    %v1083 = vpack.c.b16 %v595, %v591
    %v1084 = vpack.c.b16 %v596, %v592
    %v1085 = vpack.c.b16 %v597, %v593
    %v1086 = vpack.c.b16 %v598, %v594
    %v1087 = vpack.c.b16 %v603, %v599
    %v1088 = vpack.c.b16 %v604, %v600
    %v1089 = vpack.c.b16 %v605, %v601
    %v1090 = vpack.c.b16 %v606, %v602
    %v1091 = vpack.c.b16 %v611, %v607
    %v1092 = vpack.c.b16 %v612, %v608
    %v1093 = vpack.c.b16 %v613, %v609
    %v1094 = vpack.c.b16 %v614, %v610
    %v1095 = vpack.c.b16 %v619, %v615
    %v1096 = vpack.c.b16 %v620, %v616
    %v1097 = vpack.c.b16 %v621, %v617
    %v1098 = vpack.c.b16 %v622, %v618
    %v1099 = vpack.c.b16 %v627, %v623
    %v1100 = vpack.c.b16 %v628, %v624
    %v1101 = vpack.c.b16 %v629, %v625
    %v1102 = vpack.c.b16 %v630, %v626
    %v1103 = vpack.c.b16 %v635, %v631
    %v1104 = vpack.c.b16 %v636, %v632
    %v1105 = vpack.c.b16 %v637, %v633
    %v1106 = vpack.c.b16 %v638, %v634
    %v1107 = vpack.c.b16 %v643, %v639
    %v1108 = vpack.c.b16 %v644, %v640
    %v1109 = vpack.c.b16 %v645, %v641
    %v1110 = vpack.c.b16 %v646, %v642
    %v1111 = vpack.c.b16 %v651, %v647
    %v1112 = vpack.c.b16 %v652, %v648
    %v1113 = vpack.c.b16 %v653, %v649
    %v1114 = vpack.c.b16 %v654, %v650
    %v1115 = vpack.c.b16 %v659, %v655
    %v1116 = vpack.c.b16 %v660, %v656
    %v1117 = vpack.c.b16 %v661, %v657
    %v1118 = vpack.c.b16 %v662, %v658
    %v1119 = vpack.c.b16 %v667, %v663
    %v1120 = vpack.c.b16 %v668, %v664
    %v1121 = vpack.c.b16 %v669, %v665
    %v1122 = vpack.c.b16 %v670, %v666
    %v1123 = vpack.c.b16 %v675, %v671
    %v1124 = vpack.c.b16 %v676, %v672
    %v1125 = vpack.c.b16 %v677, %v673
    %v1126 = vpack.c.b16 %v678, %v674
    %v1127 = vpack.c.b16 %v683, %v679
    %v1128 = vpack.c.b16 %v684, %v680
    %v1129 = vpack.c.b16 %v685, %v681
    %v1130 = vpack.c.b16 %v686, %v682
    %v1131 = vpack.c.b16 %v691, %v687
    %v1132 = vpack.c.b16 %v692, %v688
    %v1133 = vpack.c.b16 %v693, %v689
    %v1134 = vpack.c.b16 %v694, %v690
    %v1135 = vpack.c.b16 %v699, %v695
    %v1136 = vpack.c.b16 %v700, %v696
    %v1137 = vpack.c.b16 %v701, %v697
    %v1138 = vpack.c.b16 %v702, %v698
    %v1139 = vpack.c.b16 %v707, %v703
    %v1140 = vpack.c.b16 %v708, %v704
    %v1141 = vpack.c.b16 %v709, %v705
    %v1142 = vpack.c.b16 %v710, %v706
    %v1143 = vpack.c.b16 %v715, %v711
    %v1144 = vpack.c.b16 %v716, %v712
    %v1145 = vpack.c.b16 %v717, %v713
    %v1146 = vpack.c.b16 %v718, %v714
    %v1147 = vpack.c.b16 %v723, %v719
    %v1148 = vpack.c.b16 %v724, %v720
    %v1149 = vpack.c.b16 %v725, %v721
    %v1150 = vpack.c.b16 %v726, %v722
    %v1151 = vpack.c.b16 %v731, %v727
    %v1152 = vpack.c.b16 %v732, %v728
    %v1153 = vpack.c.b16 %v733, %v729
    %v1154 = vpack.c.b16 %v734, %v730
    %v1155 = vpack.c.b16 %v739, %v735
    %v1156 = vpack.c.b16 %v740, %v736
    %v1157 = vpack.c.b16 %v741, %v737
    %v1158 = vpack.c.b16 %v742, %v738
    %v1159 = vpack.c.b16 %v747, %v743
    %v1160 = vpack.c.b16 %v748, %v744
    %v1161 = vpack.c.b16 %v749, %v745
    %v1162 = vpack.c.b16 %v750, %v746
    %v1163 = vpack.c.b16 %v755, %v751
    %v1164 = vpack.c.b16 %v756, %v752
    %v1165 = vpack.c.b16 %v757, %v753
    %v1166 = vpack.c.b16 %v758, %v754
    %v1167 = vpack.c.b16 %v763, %v759
    %v1168 = vpack.c.b16 %v764, %v760
    %v1169 = vpack.c.b16 %v765, %v761
    %v1170 = vpack.c.b16 %v766, %v762
    %v1171 = vpack.c.b16 %v771, %v767
    %v1172 = vpack.c.b16 %v772, %v768
    %v1173 = vpack.c.b16 %v773, %v769
    %v1174 = vpack.c.b16 %v774, %v770
    %v1175 = vpack.c.b16 %v779, %v775
    %v1176 = vpack.c.b16 %v780, %v776
    %v1177 = vpack.c.b16 %v781, %v777
    %v1178 = vpack.c.b16 %v782, %v778
    %v1179 = vpack.c.b16 %v787, %v783
    %v1180 = vpack.c.b16 %v788, %v784
    %v1181 = vpack.c.b16 %v789, %v785
    %v1182 = vpack.c.b16 %v790, %v786
    %v1183 = vpack.c.b16 %v795, %v791
    %v1184 = vpack.c.b16 %v796, %v792
    %v1185 = vpack.c.b16 %v797, %v793
    %v1186 = vpack.c.b16 %v798, %v794
    %v1187 = vpack.c.b16 %v803, %v799
    %v1188 = vpack.c.b16 %v804, %v800
    %v1189 = vpack.c.b16 %v805, %v801
    %v1190 = vpack.c.b16 %v806, %v802
    %v1191 = vpack.c.b16 %v811, %v807
    %v1192 = vpack.c.b16 %v812, %v808
    %v1193 = vpack.c.b16 %v813, %v809
    %v1194 = vpack.c.b16 %v814, %v810
    %v1195 = vpack.c.b16 %v819, %v815
    %v1196 = vpack.c.b16 %v820, %v816
    %v1197 = vpack.c.b16 %v821, %v817
    %v1198 = vpack.c.b16 %v822, %v818
    %v1199 = vpack.c.b16 %v827, %v823
    %v1200 = vpack.c.b16 %v828, %v824
    %v1201 = vpack.c.b16 %v829, %v825
    %v1202 = vpack.c.b16 %v830, %v826
    %v1203 = vpack.c.b16 %v835, %v831
    %v1204 = vpack.c.b16 %v836, %v832
    %v1205 = vpack.c.b16 %v837, %v833
    %v1206 = vpack.c.b16 %v838, %v834
    %v1207 = vpack.c.b16 %v843, %v839
    %v1208 = vpack.c.b16 %v844, %v840
    %v1209 = vpack.c.b16 %v845, %v841
    %v1210 = vpack.c.b16 %v846, %v842
    %v1211 = vpack.c.b16 %v851, %v847
    %v1212 = vpack.c.b16 %v852, %v848
    %v1213 = vpack.c.b16 %v853, %v849
    %v1214 = vpack.c.b16 %v854, %v850
    %v1215 = vpack.c.b16 %v859, %v855
    %v1216 = vpack.c.b16 %v860, %v856
    %v1217 = vpack.c.b16 %v861, %v857
    %v1218 = vpack.c.b16 %v862, %v858
    %v1219 = vpack.c.b16 %v867, %v863
    %v1220 = vpack.c.b16 %v868, %v864
    %v1221 = vpack.c.b16 %v869, %v865
    %v1222 = vpack.c.b16 %v870, %v866
    %v1223 = vpack.c.b16 %v875, %v871
    %v1224 = vpack.c.b16 %v876, %v872
    %v1225 = vpack.c.b16 %v877, %v873
    %v1226 = vpack.c.b16 %v878, %v874
    %v1227 = vpack.c.b16 %v883, %v879
    %v1228 = vpack.c.b16 %v884, %v880
    %v1229 = vpack.c.b16 %v885, %v881
    %v1230 = vpack.c.b16 %v886, %v882
    %v1231 = vpack.c.b16 %v891, %v887
    %v1232 = vpack.c.b16 %v892, %v888
    %v1233 = vpack.c.b16 %v893, %v889
    %v1234 = vpack.c.b16 %v894, %v890
    %v1235 = vpack.c.b16 %v899, %v895
    %v1236 = vpack.c.b16 %v900, %v896
    %v1237 = vpack.c.b16 %v901, %v897
    %v1238 = vpack.c.b16 %v902, %v898
    %v1239 = vpack.c.b16 %v907, %v903
    %v1240 = vpack.c.b16 %v908, %v904
    %v1241 = vpack.c.b16 %v909, %v905
    %v1242 = vpack.c.b16 %v910, %v906
    %v1243 = vpack.c.b16 %v915, %v911
    %v1244 = vpack.c.b16 %v916, %v912
    %v1245 = vpack.c.b16 %v917, %v913
    %v1246 = vpack.c.b16 %v918, %v914
    %v1247 = vpack.c.b16 %v923, %v919
    %v1248 = vpack.c.b16 %v924, %v920
    %v1249 = vpack.c.b16 %v925, %v921
    %v1250 = vpack.c.b16 %v926, %v922
    %v1251 = vpack.c.b16 %v931, %v927
    %v1252 = vpack.c.b16 %v932, %v928
    %v1253 = vpack.c.b16 %v933, %v929
    %v1254 = vpack.c.b16 %v934, %v930
    %v1255 = vpack.c.b16 %v939, %v935
    %v1256 = vpack.c.b16 %v940, %v936
    %v1257 = vpack.c.b16 %v941, %v937
    %v1258 = vpack.c.b16 %v942, %v938
    %v1259 = vpack.c.b16 %v947, %v943
    %v1260 = vpack.c.b16 %v948, %v944
    %v1261 = vpack.c.b16 %v949, %v945
    %v1262 = vpack.c.b16 %v950, %v946
    %v1263 = vpack.c.b16 %v955, %v951
    %v1264 = vpack.c.b16 %v956, %v952
    %v1265 = vpack.c.b16 %v957, %v953
    %v1266 = vpack.c.b16 %v958, %v954
    %v1267 = vpack.c.b16 %v963, %v959
    %v1268 = vpack.c.b16 %v964, %v960
    %v1269 = vpack.c.b16 %v965, %v961
    %v1270 = vpack.c.b16 %v966, %v962
    %v1271 = vpack.c.b16 %v971, %v967
    %v1272 = vpack.c.b16 %v972, %v968
    %v1273 = vpack.c.b16 %v973, %v969
    %v1274 = vpack.c.b16 %v974, %v970
    %v1275 = vpack.c.b16 %v979, %v975
    %v1276 = vpack.c.b16 %v980, %v976
    %v1277 = vpack.c.b16 %v981, %v977
    %v1278 = vpack.c.b16 %v982, %v978
    %v1279 = vpack.c.b16 %v987, %v983
    %v1280 = vpack.c.b16 %v988, %v984
    %v1281 = vpack.c.b16 %v989, %v985
    %v1282 = vpack.c.b16 %v990, %v986
    %v1283 = vpack.c.b16 %v995, %v991
    %v1284 = vpack.c.b16 %v996, %v992
    %v1285 = vpack.c.b16 %v997, %v993
    %v1286 = vpack.c.b16 %v998, %v994
    %v1287 = vpack.c.b16 %v1003, %v999
    %v1288 = vpack.c.b16 %v1004, %v1000
    %v1289 = vpack.c.b16 %v1005, %v1001
    %v1290 = vpack.c.b16 %v1006, %v1002
    %v1291 = vpack.c.b16 %v1011, %v1007
    %v1292 = vpack.c.b16 %v1012, %v1008
    %v1293 = vpack.c.b16 %v1013, %v1009
    %v1294 = vpack.c.b16 %v1014, %v1010
    %v1295 = vpack.c.b16 %v1019, %v1015
    %v1296 = vpack.c.b16 %v1020, %v1016
    %v1297 = vpack.c.b16 %v1021, %v1017
    %v1298 = vpack.c.b16 %v1022, %v1018
    %v1299 = vpack.c.b16 %v1027, %v1023
    %v1300 = vpack.c.b16 %v1028, %v1024
    %v1301 = vpack.c.b16 %v1029, %v1025
    %v1302 = vpack.c.b16 %v1030, %v1026
    %v1303 = vpack.c.b16 %v1035, %v1031
    %v1304 = vpack.c.b16 %v1036, %v1032
    %v1305 = vpack.c.b16 %v1037, %v1033
    %v1306 = vpack.c.b16 %v1038, %v1034
    %v1307 = vpack.c.b16 %v1043, %v1039
    %v1308 = vpack.c.b16 %v1044, %v1040
    %v1309 = vpack.c.b16 %v1045, %v1041
    %v1310 = vpack.c.b16 %v1046, %v1042
    %v1311 = vpack.c.b16 %v1051, %v1047
    %v1312 = vpack.c.b16 %v1052, %v1048
    %v1313 = vpack.c.b16 %v1053, %v1049
    %v1314 = vpack.c.b16 %v1054, %v1050
    %v1315 = vpack.c.b16 %v1059, %v1055
    %v1316 = vpack.c.b16 %v1060, %v1056
    %v1317 = vpack.c.b16 %v1061, %v1057
    %v1318 = vpack.c.b16 %v1062, %v1058
    %v1319 = vpack.c.b16 %v1067, %v1063
    %v1320 = vpack.c.b16 %v1068, %v1064
    %v1321 = vpack.c.b16 %v1069, %v1065
    %v1322 = vpack.c.b16 %v1070, %v1066
    %v1323 = vpack.c.b16 %v1075, %v1071
    %v1324 = vpack.c.b16 %v1076, %v1072
    %v1325 = vpack.c.b16 %v1077, %v1073
    %v1326 = vpack.c.b16 %v1078, %v1074
    %v1327 = vpack.c.b16 %v1079, %v1079
    %v1328 = vpack.c.b16 %v1080, %v1080
    %v1329 = vpack.c.b16 %v1081, %v1081
    %v1330 = vpack.c.b16 %v1082, %v1082
    %vm1575 = vcmask 670720
    %v1577 = vsel %vm1575, %v76, 0
    %vm1579 = vcmask 1040384
    %v1581 = vsel %vm1579, %v1327, 0
    %v1584 = vsel %vm1579, %v1328, 0
    %v1587 = vsel %vm1579, %v1329, 0
    %v1590 = vsel %vm1579, %v1330, 0
    %1592 = vmatprep.subr.bf16.mxu0 %v1084
    %1593 = vmatpush1.bf16.msra.mxu0 %v1083
    %1594 = vmatprep.subr.bf16.mxu0 %v1088
    %1595 = vmatpush1.bf16.msra.mxu0 %v1087
    %1596 = vmatprep.subr.bf16.mxu0 %v1092
    %1597 = vmatpush1.bf16.msra.mxu0 %v1091
    %1598 = vmatprep.subr.bf16.mxu0 %v1096
    %1599 = vmatpush1.bf16.msra.mxu0 %v1095
    %1600 = vmatprep.subr.bf16.mxu0 %v1100
    %1601 = vmatpush1.bf16.msra.mxu0 %v1099
    %1602 = vmatprep.subr.bf16.mxu0 %v1104
    %1603 = vmatpush1.bf16.msra.mxu0 %v1103
    %1604 = vmatprep.subr.bf16.mxu0 %v1108
    %1605 = vmatpush1.bf16.msra.mxu0 %v1107
    %1606 = vmatprep.subr.bf16.mxu0 %v1112
    %1607 = vmatpush1.bf16.msra.mxu0 %v1111
    %1608 = vmatprep.subr.bf16.mxu0 %v1116
    %1609 = vmatpush1.bf16.msra.mxu0 %v1115
    %1610 = vmatprep.subr.bf16.mxu0 %v1120
    %1611 = vmatpush1.bf16.msra.mxu0 %v1119
    %1612 = vmatprep.subr.bf16.mxu0 %v1124
    %1613 = vmatpush1.bf16.msra.mxu0 %v1123
    %1614 = vmatprep.subr.bf16.mxu0 %v1128
    %1615 = vmatpush1.bf16.msra.mxu0 %v1127
    %1616 = vmatprep.subr.bf16.mxu0 %v1132
    %1617 = vmatpush1.bf16.msra.mxu0 %v1131
    %1618 = vmatprep.subr.bf16.mxu0 %v1136
    %1619 = vmatpush1.bf16.msra.mxu0 %v1135
    %1620 = vmatprep.subr.bf16.mxu0 %v1140
    %1621 = vmatpush1.bf16.msra.mxu0 %v1139
    %1622 = vmatprep.subr.bf16.mxu0 %v1144
    %1623 = vmatpush1.bf16.msra.mxu0 %v1143
    %1624 = vmatprep.mubr.bf16.mxu0 %v70
    %1625 = vmatmul.mubr.bf16.gmra.mrb[0].mxu0 %v69
    %v1626 = vpop.f32.mrb[0].mxu0
    %v1627 = vadd.f32 %v328, %v1626
    %v1628 = vpop.f32.mrb[0].mxu0
    %v1629 = vadd.f32 %v332, %v1628
    %v1630 = vpop.f32.mrb[0].mxu0
    %v1631 = vadd.f32 %v328, %v1630
    %v1632 = vpop.f32.mrb[0].mxu0
    %v1633 = vadd.f32 %v332, %v1632
    %1634 = vdwg.mxu0
    %1635 = vmatprep.subr.bf16.mxu0 %v1148
    %1636 = vmatpush1.bf16.msra.mxu0 %v1147
    %1637 = vmatprep.subr.bf16.mxu0 %v1152
    %1638 = vmatpush1.bf16.msra.mxu0 %v1151
    %1639 = vmatprep.subr.bf16.mxu0 %v1156
    %1640 = vmatpush1.bf16.msra.mxu0 %v1155
    %1641 = vmatprep.subr.bf16.mxu0 %v1160
    %1642 = vmatpush1.bf16.msra.mxu0 %v1159
    %1643 = vmatprep.subr.bf16.mxu0 %v1164
    %1644 = vmatpush1.bf16.msra.mxu0 %v1163
    %1645 = vmatprep.subr.bf16.mxu0 %v1168
    %1646 = vmatpush1.bf16.msra.mxu0 %v1167
    %1647 = vmatprep.subr.bf16.mxu0 %v1172
    %1648 = vmatpush1.bf16.msra.mxu0 %v1171
    %1649 = vmatprep.subr.bf16.mxu0 %v1176
    %1650 = vmatpush1.bf16.msra.mxu0 %v1175
    %1651 = vmatprep.subr.bf16.mxu0 %v1180
    %1652 = vmatpush1.bf16.msra.mxu0 %v1179
    %1653 = vmatprep.subr.bf16.mxu0 %v1184
    %1654 = vmatpush1.bf16.msra.mxu0 %v1183
    %1655 = vmatprep.subr.bf16.mxu0 %v1188
    %1656 = vmatpush1.bf16.msra.mxu0 %v1187
    %1657 = vmatprep.subr.bf16.mxu0 %v1192
    %1658 = vmatpush1.bf16.msra.mxu0 %v1191
    %1659 = vmatprep.subr.bf16.mxu0 %v1196
    %1660 = vmatpush1.bf16.msra.mxu0 %v1195
    %1661 = vmatprep.subr.bf16.mxu0 %v1200
    %1662 = vmatpush1.bf16.msra.mxu0 %v1199
    %1663 = vmatprep.subr.bf16.mxu0 %v1204
    %1664 = vmatpush1.bf16.msra.mxu0 %v1203
    %1665 = vmatprep.subr.bf16.mxu0 %v1208
    %1666 = vmatpush1.bf16.msra.mxu0 %v1207
    %1667 = vmatprep.mubr.bf16.mxu0 %v72
    %1668 = vmatmul.mubr.bf16.gmra.mrb[0].mxu0 %v71
    %v1669 = vpop.f32.mrb[0].mxu0
    %v1670 = vadd.f32 %v1627, %v1669
    %v1671 = vpop.f32.mrb[0].mxu0
    %v1672 = vadd.f32 %v1629, %v1671
    %v1673 = vpop.f32.mrb[0].mxu0
    %v1674 = vadd.f32 %v1631, %v1673
    %v1675 = vpop.f32.mrb[0].mxu0
    %v1676 = vadd.f32 %v1633, %v1675
    %1677 = vdwg.mxu0
    %1678 = vmatprep.subr.bf16.mxu0 %v1212
    %1679 = vmatpush1.bf16.msra.mxu0 %v1211
    %1680 = vmatprep.subr.bf16.mxu0 %v1216
    %1681 = vmatpush1.bf16.msra.mxu0 %v1215
    %1682 = vmatprep.subr.bf16.mxu0 %v1220
    %1683 = vmatpush1.bf16.msra.mxu0 %v1219
    %1684 = vmatprep.subr.bf16.mxu0 %v1224
    %1685 = vmatpush1.bf16.msra.mxu0 %v1223
    %1686 = vmatprep.subr.bf16.mxu0 %v1228
    %1687 = vmatpush1.bf16.msra.mxu0 %v1227
    %1688 = vmatprep.subr.bf16.mxu0 %v1232
    %1689 = vmatpush1.bf16.msra.mxu0 %v1231
    %1690 = vmatprep.subr.bf16.mxu0 %v1236
    %1691 = vmatpush1.bf16.msra.mxu0 %v1235
    %1692 = vmatprep.subr.bf16.mxu0 %v1240
    %1693 = vmatpush1.bf16.msra.mxu0 %v1239
    %1694 = vmatprep.subr.bf16.mxu0 %v1244
    %1695 = vmatpush1.bf16.msra.mxu0 %v1243
    %1696 = vmatprep.subr.bf16.mxu0 %v1248
    %1697 = vmatpush1.bf16.msra.mxu0 %v1247
    %1698 = vmatprep.subr.bf16.mxu0 %v1252
    %1699 = vmatpush1.bf16.msra.mxu0 %v1251
    %1700 = vmatprep.subr.bf16.mxu0 %v1256
    %1701 = vmatpush1.bf16.msra.mxu0 %v1255
    %1702 = vmatprep.subr.bf16.mxu0 %v1260
    %1703 = vmatpush1.bf16.msra.mxu0 %v1259
    %1704 = vmatprep.subr.bf16.mxu0 %v1264
    %1705 = vmatpush1.bf16.msra.mxu0 %v1263
    %1706 = vmatprep.subr.bf16.mxu0 %v1268
    %1707 = vmatpush1.bf16.msra.mxu0 %v1267
    %1708 = vmatprep.subr.bf16.mxu0 %v1272
    %1709 = vmatpush1.bf16.msra.mxu0 %v1271
    %1710 = vmatprep.mubr.bf16.mxu0 %v74
    %1711 = vmatmul.mubr.bf16.gmra.mrb[0].mxu0 %v73
    %v1712 = vpop.f32.mrb[0].mxu0
    %v1713 = vadd.f32 %v1670, %v1712
    %v1714 = vpop.f32.mrb[0].mxu0
    %v1715 = vadd.f32 %v1672, %v1714
    %v1716 = vpop.f32.mrb[0].mxu0
    %v1717 = vadd.f32 %v1674, %v1716
    %v1718 = vpop.f32.mrb[0].mxu0
    %v1719 = vadd.f32 %v1676, %v1718
    %1720 = vdwg.mxu0
    %1721 = vmatprep.subr.bf16.mxu0 %v1276
    %1722 = vmatpush1.bf16.msra.mxu0 %v1275
    %1723 = vmatprep.subr.bf16.mxu0 %v1280
    %1724 = vmatpush1.bf16.msra.mxu0 %v1279
    %1725 = vmatprep.subr.bf16.mxu0 %v1284
    %1726 = vmatpush1.bf16.msra.mxu0 %v1283
    %1727 = vmatprep.subr.bf16.mxu0 %v1288
    %1728 = vmatpush1.bf16.msra.mxu0 %v1287
    %1729 = vmatprep.subr.bf16.mxu0 %v1292
    %1730 = vmatpush1.bf16.msra.mxu0 %v1291
    %1731 = vmatprep.subr.bf16.mxu0 %v1296
    %1732 = vmatpush1.bf16.msra.mxu0 %v1295
    %1733 = vmatprep.subr.bf16.mxu0 %v1300
    %1734 = vmatpush1.bf16.msra.mxu0 %v1299
    %1735 = vmatprep.subr.bf16.mxu0 %v1304
    %1736 = vmatpush1.bf16.msra.mxu0 %v1303
    %1737 = vmatprep.subr.bf16.mxu0 %v1308
    %1738 = vmatpush1.bf16.msra.mxu0 %v1307
    %1739 = vmatprep.subr.bf16.mxu0 %v1312
    %1740 = vmatpush1.bf16.msra.mxu0 %v1311
    %1741 = vmatprep.subr.bf16.mxu0 %v1316
    %1742 = vmatpush1.bf16.msra.mxu0 %v1315
    %1743 = vmatprep.subr.bf16.mxu0 %v1320
    %1744 = vmatpush1.bf16.msra.mxu0 %v1319
    %1745 = vmatprep.subr.bf16.mxu0 %v1324
    %1746 = vmatpush1.bf16.msra.mxu0 %v1323
    %1747 = vmatprep.subr.bf16.mxu0 %v1584
    %1748 = vmatpush1.bf16.msra.mxu0 %v1581
    %1749 = vmatprep.subr.bf16.mxu0 0
    %1750 = vmatpush1.bf16.msra.mxu0 0
    %1751 = vmatprep.subr.bf16.mxu0 0
    %1752 = vmatpush1.bf16.msra.mxu0 0
    %1753 = vmatprep.mubr.bf16.mxu0 %v1577
    %1754 = vmatmul.mubr.bf16.gmra.mrb[0].mxu0 %v75
    %v1755 = vpop.f32.mrb[0].mxu0
    %v1756 = vadd.f32 %v1713, %v1755
    %v1757 = vpop.f32.mrb[0].mxu0
    %v1758 = vadd.f32 %v1715, %v1757
    %v1759 = vpop.f32.mrb[0].mxu0
    %v1760 = vadd.f32 %v1717, %v1759
    %v1761 = vpop.f32.mrb[0].mxu0
    %v1762 = vadd.f32 %v1719, %v1761
    %1763 = vdwg.mxu0
    %1764 = vmatprep.subr.bf16.mxu0 %v1086
    %1765 = vmatpush1.bf16.msra.mxu0 %v1085
    %1766 = vmatprep.subr.bf16.mxu0 %v1090
    %1767 = vmatpush1.bf16.msra.mxu0 %v1089
    %1768 = vmatprep.subr.bf16.mxu0 %v1094
    %1769 = vmatpush1.bf16.msra.mxu0 %v1093
    %1770 = vmatprep.subr.bf16.mxu0 %v1098
    %1771 = vmatpush1.bf16.msra.mxu0 %v1097
    %1772 = vmatprep.subr.bf16.mxu0 %v1102
    %1773 = vmatpush1.bf16.msra.mxu0 %v1101
    %1774 = vmatprep.subr.bf16.mxu0 %v1106
    %1775 = vmatpush1.bf16.msra.mxu0 %v1105
    %1776 = vmatprep.subr.bf16.mxu0 %v1110
    %1777 = vmatpush1.bf16.msra.mxu0 %v1109
    %1778 = vmatprep.subr.bf16.mxu0 %v1114
    %1779 = vmatpush1.bf16.msra.mxu0 %v1113
    %1780 = vmatprep.subr.bf16.mxu0 %v1118
    %1781 = vmatpush1.bf16.msra.mxu0 %v1117
    %1782 = vmatprep.subr.bf16.mxu0 %v1122
    %1783 = vmatpush1.bf16.msra.mxu0 %v1121
    %1784 = vmatprep.subr.bf16.mxu0 %v1126
    %1785 = vmatpush1.bf16.msra.mxu0 %v1125
    %1786 = vmatprep.subr.bf16.mxu0 %v1130
    %1787 = vmatpush1.bf16.msra.mxu0 %v1129
    %1788 = vmatprep.subr.bf16.mxu0 %v1134
    %1789 = vmatpush1.bf16.msra.mxu0 %v1133
    %1790 = vmatprep.subr.bf16.mxu0 %v1138
    %1791 = vmatpush1.bf16.msra.mxu0 %v1137
    %1792 = vmatprep.subr.bf16.mxu0 %v1142
    %1793 = vmatpush1.bf16.msra.mxu0 %v1141
    %1794 = vmatprep.subr.bf16.mxu0 %v1146
    %1795 = vmatpush1.bf16.msra.mxu0 %v1145
    %1796 = vmatprep.mubr.bf16.mxu0 %v70
    %1797 = vmatmul.mubr.bf16.gmra.mrb[0].mxu0 %v69
    %v1798 = vpop.f32.mrb[0].mxu0
    %v1799 = vadd.f32 %v336, %v1798
    %v1800 = vpop.f32.mrb[0].mxu0
    %v1801 = vadd.f32 %v340, %v1800
    %v1802 = vpop.f32.mrb[0].mxu0
    %v1803 = vadd.f32 %v336, %v1802
    %v1804 = vpop.f32.mrb[0].mxu0
    %v1805 = vadd.f32 %v340, %v1804
    %1806 = vdwg.mxu0
    %1807 = vmatprep.subr.bf16.mxu0 %v1150
    %1808 = vmatpush1.bf16.msra.mxu0 %v1149
    %1809 = vmatprep.subr.bf16.mxu0 %v1154
    %1810 = vmatpush1.bf16.msra.mxu0 %v1153
    %1811 = vmatprep.subr.bf16.mxu0 %v1158
    %1812 = vmatpush1.bf16.msra.mxu0 %v1157
    %1813 = vmatprep.subr.bf16.mxu0 %v1162
    %1814 = vmatpush1.bf16.msra.mxu0 %v1161
    %1815 = vmatprep.subr.bf16.mxu0 %v1166
    %1816 = vmatpush1.bf16.msra.mxu0 %v1165
    %1817 = vmatprep.subr.bf16.mxu0 %v1170
    %1818 = vmatpush1.bf16.msra.mxu0 %v1169
    %1819 = vmatprep.subr.bf16.mxu0 %v1174
    %1820 = vmatpush1.bf16.msra.mxu0 %v1173
    %1821 = vmatprep.subr.bf16.mxu0 %v1178
    %1822 = vmatpush1.bf16.msra.mxu0 %v1177
    %1823 = vmatprep.subr.bf16.mxu0 %v1182
    %1824 = vmatpush1.bf16.msra.mxu0 %v1181
    %1825 = vmatprep.subr.bf16.mxu0 %v1186
    %1826 = vmatpush1.bf16.msra.mxu0 %v1185
    %1827 = vmatprep.subr.bf16.mxu0 %v1190
    %1828 = vmatpush1.bf16.msra.mxu0 %v1189
    %1829 = vmatprep.subr.bf16.mxu0 %v1194
    %1830 = vmatpush1.bf16.msra.mxu0 %v1193
    %1831 = vmatprep.subr.bf16.mxu0 %v1198
    %1832 = vmatpush1.bf16.msra.mxu0 %v1197
    %1833 = vmatprep.subr.bf16.mxu0 %v1202
    %1834 = vmatpush1.bf16.msra.mxu0 %v1201
    %1835 = vmatprep.subr.bf16.mxu0 %v1206
    %1836 = vmatpush1.bf16.msra.mxu0 %v1205
    %1837 = vmatprep.subr.bf16.mxu0 %v1210
    %1838 = vmatpush1.bf16.msra.mxu0 %v1209
    %1839 = vmatprep.mubr.bf16.mxu0 %v72
    %1840 = vmatmul.mubr.bf16.gmra.mrb[0].mxu0 %v71
    %v1841 = vpop.f32.mrb[0].mxu0
    %v1842 = vadd.f32 %v1799, %v1841
    %v1843 = vpop.f32.mrb[0].mxu0
    %v1844 = vadd.f32 %v1801, %v1843
    %v1845 = vpop.f32.mrb[0].mxu0
    %v1846 = vadd.f32 %v1803, %v1845
    %v1847 = vpop.f32.mrb[0].mxu0
    %v1848 = vadd.f32 %v1805, %v1847
    %1849 = vdwg.mxu0
    %1850 = vmatprep.subr.bf16.mxu0 %v1214
    %1851 = vmatpush1.bf16.msra.mxu0 %v1213
    %1852 = vmatprep.subr.bf16.mxu0 %v1218
    %1853 = vmatpush1.bf16.msra.mxu0 %v1217
    %1854 = vmatprep.subr.bf16.mxu0 %v1222
    %1855 = vmatpush1.bf16.msra.mxu0 %v1221
    %1856 = vmatprep.subr.bf16.mxu0 %v1226
    %1857 = vmatpush1.bf16.msra.mxu0 %v1225
    %1858 = vmatprep.subr.bf16.mxu0 %v1230
    %1859 = vmatpush1.bf16.msra.mxu0 %v1229
    %1860 = vmatprep.subr.bf16.mxu0 %v1234
    %1861 = vmatpush1.bf16.msra.mxu0 %v1233
    %1862 = vmatprep.subr.bf16.mxu0 %v1238
    %1863 = vmatpush1.bf16.msra.mxu0 %v1237
    %1864 = vmatprep.subr.bf16.mxu0 %v1242
    %1865 = vmatpush1.bf16.msra.mxu0 %v1241
    %1866 = vmatprep.subr.bf16.mxu0 %v1246
    %1867 = vmatpush1.bf16.msra.mxu0 %v1245
    %1868 = vmatprep.subr.bf16.mxu0 %v1250
    %1869 = vmatpush1.bf16.msra.mxu0 %v1249
    %1870 = vmatprep.subr.bf16.mxu0 %v1254
    %1871 = vmatpush1.bf16.msra.mxu0 %v1253
    %1872 = vmatprep.subr.bf16.mxu0 %v1258
    %1873 = vmatpush1.bf16.msra.mxu0 %v1257
    %1874 = vmatprep.subr.bf16.mxu0 %v1262
    %1875 = vmatpush1.bf16.msra.mxu0 %v1261
    %1876 = vmatprep.subr.bf16.mxu0 %v1266
    %1877 = vmatpush1.bf16.msra.mxu0 %v1265
    %1878 = vmatprep.subr.bf16.mxu0 %v1270
    %1879 = vmatpush1.bf16.msra.mxu0 %v1269
    %1880 = vmatprep.subr.bf16.mxu0 %v1274
    %1881 = vmatpush1.bf16.msra.mxu0 %v1273
    %1882 = vmatprep.mubr.bf16.mxu0 %v74
    %1883 = vmatmul.mubr.bf16.gmra.mrb[0].mxu0 %v73
    %v1884 = vpop.f32.mrb[0].mxu0
    %v1885 = vadd.f32 %v1842, %v1884
    %v1886 = vpop.f32.mrb[0].mxu0
    %v1887 = vadd.f32 %v1844, %v1886
    %v1888 = vpop.f32.mrb[0].mxu0
    %v1889 = vadd.f32 %v1846, %v1888
    %v1890 = vpop.f32.mrb[0].mxu0
    %v1891 = vadd.f32 %v1848, %v1890
    %1892 = vdwg.mxu0
    %1893 = vmatprep.subr.bf16.mxu0 %v1278
    %1894 = vmatpush1.bf16.msra.mxu0 %v1277
    %1895 = vmatprep.subr.bf16.mxu0 %v1282
    %1896 = vmatpush1.bf16.msra.mxu0 %v1281
    %1897 = vmatprep.subr.bf16.mxu0 %v1286
    %1898 = vmatpush1.bf16.msra.mxu0 %v1285
    %1899 = vmatprep.subr.bf16.mxu0 %v1290
    %1900 = vmatpush1.bf16.msra.mxu0 %v1289
    %1901 = vmatprep.subr.bf16.mxu0 %v1294
    %1902 = vmatpush1.bf16.msra.mxu0 %v1293
    %1903 = vmatprep.subr.bf16.mxu0 %v1298
    %1904 = vmatpush1.bf16.msra.mxu0 %v1297
    %1905 = vmatprep.subr.bf16.mxu0 %v1302
    %1906 = vmatpush1.bf16.msra.mxu0 %v1301
    %1907 = vmatprep.subr.bf16.mxu0 %v1306
    %1908 = vmatpush1.bf16.msra.mxu0 %v1305
    %1909 = vmatprep.subr.bf16.mxu0 %v1310
    %1910 = vmatpush1.bf16.msra.mxu0 %v1309
    %1911 = vmatprep.subr.bf16.mxu0 %v1314
    %1912 = vmatpush1.bf16.msra.mxu0 %v1313
    %1913 = vmatprep.subr.bf16.mxu0 %v1318
    %1914 = vmatpush1.bf16.msra.mxu0 %v1317
    %1915 = vmatprep.subr.bf16.mxu0 %v1322
    %1916 = vmatpush1.bf16.msra.mxu0 %v1321
    %1917 = vmatprep.subr.bf16.mxu0 %v1326
    %1918 = vmatpush1.bf16.msra.mxu0 %v1325
    %1919 = vmatprep.subr.bf16.mxu0 %v1590
    %1920 = vmatpush1.bf16.msra.mxu0 %v1587
    %1921 = vmatprep.subr.bf16.mxu0 0
    %1922 = vmatpush1.bf16.msra.mxu0 0
    %1923 = vmatprep.subr.bf16.mxu0 0
    %1924 = vmatpush1.bf16.msra.mxu0 0
    %1925 = vmatprep.mubr.bf16.mxu0 %v1577
    %1926 = vmatmul.mubr.bf16.gmra.mrb[0].mxu0 %v75
    %v1927 = vpop.f32.mrb[0].mxu0
    %v1928 = vadd.f32 %v1885, %v1927
    %v1929 = vpop.f32.mrb[0].mxu0
    %v1930 = vadd.f32 %v1887, %v1929
    %v1931 = vpop.f32.mrb[0].mxu0
    %v1932 = vadd.f32 %v1889, %v1931
    %v1933 = vpop.f32.mrb[0].mxu0
    %v1934 = vadd.f32 %v1891, %v1933
    %1935 = vdwg.mxu0
    %v1936 = vmax.f32 %v1756, 0.0
    %v1937 = vmax.f32 %v1758, 0.0
    %v1938 = vmax.f32 %v1928, 0.0
    %v1939 = vmax.f32 %v1930, 0.0
    %v1940 = vmax.f32 %v1760, 0.0
    %v1941 = vmax.f32 %v1762, 0.0
    %v1942 = vmax.f32 %v1932, 0.0
    %v1943 = vmax.f32 %v1934, 0.0
    %v1944 = vpack.c.bf16 %v1940, %v1936
    %v1945 = vpack.c.bf16 %v1941, %v1937
    %v1946 = vpack.c.bf16 %v1942, %v1938
    %v1947 = vpack.c.bf16 %v1943, %v1939
    %v1948 = vld [vmem:[%s4] sm:$0xff]
    %v1949 = vld [vmem:[%s4 + $0x8] sm:$0xff]
    %v1950 = vld [vmem:[%s4 + $0x10] sm:$0xff]
    %v1951 = vld [vmem:[%s4 + $0x18] sm:$0xff]
    %v1952 = vld [vmem:[%s4 + $0x20] sm:$0xff]
    %v1953 = vld [vmem:[%s4 + $0x28] sm:$0xff]
    %v1954 = vld [vmem:[%s4 + $0x30] sm:$0xff]
    %v1955 = vld [vmem:[%s4 + $0x38] sm:$0xff]
    %v1956 = vld [vmem:[%s4 + $0x40] sm:$0xff]
    %v1957 = vld [vmem:[%s4 + $0x48] sm:$0xff]
    %v1958 = vld [vmem:[%s4 + $0x50] sm:$0xff]
    %v1959 = vld [vmem:[%s4 + $0x58] sm:$0xff]
    %v1960 = vld [vmem:[%s4 + $0x60] sm:$0xff]
    %v1961 = vld [vmem:[%s4 + $0x68] sm:$0xff]
    %v1962 = vld [vmem:[%s4 + $0x70] sm:$0xff]
    %v1963 = vld [vmem:[%s4 + $0x78] sm:$0xff]
    %v1964 = vld [vmem:[%s4 + $0x80] sm:$0xff]
    %v1965 = vld [vmem:[%s4 + $0x88] sm:$0xff]
    %v1966 = vld [vmem:[%s4 + $0x90] sm:$0xff]
    %v1967 = vld [vmem:[%s4 + $0x98] sm:$0xff]
    %v1968 = vld [vmem:[%s4 + $0xa0] sm:$0xff]
    %v1969 = vld [vmem:[%s4 + $0xa8] sm:$0xff]
    %v1970 = vld [vmem:[%s4 + $0xb0] sm:$0xff]
    %v1971 = vld [vmem:[%s4 + $0xb8] sm:$0xff]
    %v1972 = vld [vmem:[%s4 + $0xc0] sm:$0xff]
    %v1973 = vld [vmem:[%s4 + $0xc8] sm:$0xff]
    %v1974 = vld [vmem:[%s4 + $0xd0] sm:$0xff]
    %v1975 = vld [vmem:[%s4 + $0xd8] sm:$0xff]
    %v1976 = vld [vmem:[%s4 + $0xe0] sm:$0xff]
    %v1977 = vld [vmem:[%s4 + $0xe8] sm:$0xff]
    %v1978 = vld [vmem:[%s4 + $0xf0] sm:$0xff]
    %v1979 = vld [vmem:[%s4 + $0xf8] sm:$0xff]
    %v1980 = vld [vmem:[%s4 + $0x100] sm:$0xff]
    %v1981 = vld [vmem:[%s4 + $0x108] sm:$0xff]
    %v1982 = vld [vmem:[%s4 + $0x110] sm:$0xff]
    %v1983 = vld [vmem:[%s4 + $0x118] sm:$0xff]
    %v1984 = vld [vmem:[%s4 + $0x120] sm:$0xff]
    %v1985 = vld [vmem:[%s4 + $0x128] sm:$0xff]
    %v1986 = vld [vmem:[%s4 + $0x130] sm:$0xff]
    %v1987 = vld [vmem:[%s4 + $0x138] sm:$0xff]
    %v1988 = vld [vmem:[%s4 + $0x140] sm:$0xff]
    %v1989 = vld [vmem:[%s4 + $0x148] sm:$0xff]
    %v1990 = vld [vmem:[%s4 + $0x150] sm:$0xff]
    %v1991 = vld [vmem:[%s4 + $0x158] sm:$0xff]
    %v1992 = vld [vmem:[%s4 + $0x160] sm:$0xff]
    %v1993 = vld [vmem:[%s4 + $0x168] sm:$0xff]
    %v1994 = vld [vmem:[%s4 + $0x170] sm:$0xff]
    %v1995 = vld [vmem:[%s4 + $0x178] sm:$0xff]
    %v1996 = vld [vmem:[%s4 + $0x180] sm:$0xff]
    %v1997 = vld [vmem:[%s4 + $0x188] sm:$0xff]
    %v1998 = vld [vmem:[%s4 + $0x190] sm:$0xff]
    %v1999 = vld [vmem:[%s4 + $0x198] sm:$0xff]
    %v2000 = vld [vmem:[%s4 + $0x1a0] sm:$0xff]
    %v2001 = vld [vmem:[%s4 + $0x1a8] sm:$0xff]
    %v2002 = vld [vmem:[%s4 + $0x1b0] sm:$0xff]
    %v2003 = vld [vmem:[%s4 + $0x1b8] sm:$0xff]
    %v2004 = vld [vmem:[%s4 + $0x1c0] sm:$0xff]
    %v2005 = vld [vmem:[%s4 + $0x1c8] sm:$0xff]
    %v2006 = vld [vmem:[%s4 + $0x1d0] sm:$0xff]
    %v2007 = vld [vmem:[%s4 + $0x1d8] sm:$0xff]
    %v2008 = vld [vmem:[%s4 + $0x1e0] sm:$0xff]
    %v2009 = vld [vmem:[%s4 + $0x1e8] sm:$0xff]
    %v2010 = vld [vmem:[%s4 + $0x1f0] sm:$0xff]
    %v2011 = vld [vmem:[%s4 + $0x1f8] sm:$0xff]
    %v2012 = vld [vmem:[%s5] sm:$0x3]
    %v2014 = vlaneseq
    %v2015 = vshrl.u32 %v2014, 7
    %v2016 = vsub.s32 0, %v2015
    %v2017 = vrot.slane %v2012, %v2016
    %v2018 = vlaneseq
    %v2019 = vshrl.u32 %v2018, 7
    %v2020 = vsub.s32 1, %v2019
    %v2021 = vrot.slane %v2012, %v2020
    %v2088 = vunpack.c.l.b16 %v1948
    %v2089 = vunpack.c.h.b16 %v1948
    %v2090 = vunpack.c.l.b16 %v1949
    %v2091 = vunpack.c.h.b16 %v1949
    %v2092 = vunpack.c.l.b16 %v1950
    %v2093 = vunpack.c.h.b16 %v1950
    %v2094 = vunpack.c.l.b16 %v1951
    %v2095 = vunpack.c.h.b16 %v1951
    %v2096 = vunpack.c.l.b16 %v1952
    %v2097 = vunpack.c.h.b16 %v1952
    %v2098 = vunpack.c.l.b16 %v1953
    %v2099 = vunpack.c.h.b16 %v1953
    %v2100 = vunpack.c.l.b16 %v1954
    %v2101 = vunpack.c.h.b16 %v1954
    %v2102 = vunpack.c.l.b16 %v1955
    %v2103 = vunpack.c.h.b16 %v1955
    %v2104 = vunpack.c.l.b16 %v1956
    %v2105 = vunpack.c.h.b16 %v1956
    %v2106 = vunpack.c.l.b16 %v1957
    %v2107 = vunpack.c.h.b16 %v1957
    %v2108 = vunpack.c.l.b16 %v1958
    %v2109 = vunpack.c.h.b16 %v1958
    %v2110 = vunpack.c.l.b16 %v1959
    %v2111 = vunpack.c.h.b16 %v1959
    %v2112 = vunpack.c.l.b16 %v1960
    %v2113 = vunpack.c.h.b16 %v1960
    %v2114 = vunpack.c.l.b16 %v1961
    %v2115 = vunpack.c.h.b16 %v1961
    %v2116 = vunpack.c.l.b16 %v1962
    %v2117 = vunpack.c.h.b16 %v1962
    %v2118 = vunpack.c.l.b16 %v1963
    %v2119 = vunpack.c.h.b16 %v1963
    %v2120 = vunpack.c.l.b16 %v1964
    %v2121 = vunpack.c.h.b16 %v1964
    %v2122 = vunpack.c.l.b16 %v1965
    %v2123 = vunpack.c.h.b16 %v1965
    %v2124 = vunpack.c.l.b16 %v1966
    %v2125 = vunpack.c.h.b16 %v1966
    %v2126 = vunpack.c.l.b16 %v1967
    %v2127 = vunpack.c.h.b16 %v1967
    %v2128 = vunpack.c.l.b16 %v1968
    %v2129 = vunpack.c.h.b16 %v1968
    %v2130 = vunpack.c.l.b16 %v1969
    %v2131 = vunpack.c.h.b16 %v1969
    %v2132 = vunpack.c.l.b16 %v1970
    %v2133 = vunpack.c.h.b16 %v1970
    %v2134 = vunpack.c.l.b16 %v1971
    %v2135 = vunpack.c.h.b16 %v1971
    %v2136 = vunpack.c.l.b16 %v1972
    %v2137 = vunpack.c.h.b16 %v1972
    %v2138 = vunpack.c.l.b16 %v1973
    %v2139 = vunpack.c.h.b16 %v1973
    %v2140 = vunpack.c.l.b16 %v1974
    %v2141 = vunpack.c.h.b16 %v1974
    %v2142 = vunpack.c.l.b16 %v1975
    %v2143 = vunpack.c.h.b16 %v1975
    %v2144 = vunpack.c.l.b16 %v1976
    %v2145 = vunpack.c.h.b16 %v1976
    %v2146 = vunpack.c.l.b16 %v1977
    %v2147 = vunpack.c.h.b16 %v1977
    %v2148 = vunpack.c.l.b16 %v1978
    %v2149 = vunpack.c.h.b16 %v1978
    %v2150 = vunpack.c.l.b16 %v1979
    %v2151 = vunpack.c.h.b16 %v1979
    %v2152 = vunpack.c.l.b16 %v1980
    %v2153 = vunpack.c.h.b16 %v1980
    %v2154 = vunpack.c.l.b16 %v1981
    %v2155 = vunpack.c.h.b16 %v1981
    %v2156 = vunpack.c.l.b16 %v1982
    %v2157 = vunpack.c.h.b16 %v1982
    %v2158 = vunpack.c.l.b16 %v1983
    %v2159 = vunpack.c.h.b16 %v1983
    %v2160 = vunpack.c.l.b16 %v1984
    %v2161 = vunpack.c.h.b16 %v1984
    %v2162 = vunpack.c.l.b16 %v1985
    %v2163 = vunpack.c.h.b16 %v1985
    %v2164 = vunpack.c.l.b16 %v1986
    %v2165 = vunpack.c.h.b16 %v1986
    %v2166 = vunpack.c.l.b16 %v1987
    %v2167 = vunpack.c.h.b16 %v1987
    %v2168 = vunpack.c.l.b16 %v1988
    %v2169 = vunpack.c.h.b16 %v1988
    %v2170 = vunpack.c.l.b16 %v1989
    %v2171 = vunpack.c.h.b16 %v1989
    %v2172 = vunpack.c.l.b16 %v1990
    %v2173 = vunpack.c.h.b16 %v1990
    %v2174 = vunpack.c.l.b16 %v1991
    %v2175 = vunpack.c.h.b16 %v1991
    %v2176 = vunpack.c.l.b16 %v1992
    %v2177 = vunpack.c.h.b16 %v1992
    %v2178 = vunpack.c.l.b16 %v1993
    %v2179 = vunpack.c.h.b16 %v1993
    %v2180 = vunpack.c.l.b16 %v1994
    %v2181 = vunpack.c.h.b16 %v1994
    %v2182 = vunpack.c.l.b16 %v1995
    %v2183 = vunpack.c.h.b16 %v1995
    %v2184 = vunpack.c.l.b16 %v1996
    %v2185 = vunpack.c.h.b16 %v1996
    %v2186 = vunpack.c.l.b16 %v1997
    %v2187 = vunpack.c.h.b16 %v1997
    %v2188 = vunpack.c.l.b16 %v1998
    %v2189 = vunpack.c.h.b16 %v1998
    %v2190 = vunpack.c.l.b16 %v1999
    %v2191 = vunpack.c.h.b16 %v1999
    %v2192 = vunpack.c.l.b16 %v2000
    %v2193 = vunpack.c.h.b16 %v2000
    %v2194 = vunpack.c.l.b16 %v2001
    %v2195 = vunpack.c.h.b16 %v2001
    %v2196 = vunpack.c.l.b16 %v2002
    %v2197 = vunpack.c.h.b16 %v2002
    %v2198 = vunpack.c.l.b16 %v2003
    %v2199 = vunpack.c.h.b16 %v2003
    %v2200 = vunpack.c.l.b16 %v2004
    %v2201 = vunpack.c.h.b16 %v2004
    %v2202 = vunpack.c.l.b16 %v2005
    %v2203 = vunpack.c.h.b16 %v2005
    %v2204 = vunpack.c.l.b16 %v2006
    %v2205 = vunpack.c.h.b16 %v2006
    %v2206 = vunpack.c.l.b16 %v2007
    %v2207 = vunpack.c.h.b16 %v2007
    %v2208 = vunpack.c.l.b16 %v2008
    %v2209 = vunpack.c.h.b16 %v2008
    %v2210 = vunpack.c.l.b16 %v2009
    %v2211 = vunpack.c.h.b16 %v2009
    %v2212 = vunpack.c.l.b16 %v2010
    %v2213 = vunpack.c.h.b16 %v2010
    %v2214 = vunpack.c.l.b16 %v2011
    %v2215 = vunpack.c.h.b16 %v2011
    %v2216 = vpack.c.b16 %v2090, %v2088
    %v2217 = vpack.c.b16 %v2091, %v2089
    %v2218 = vpack.c.b16 %v2094, %v2092
    %v2219 = vpack.c.b16 %v2095, %v2093
    %v2220 = vpack.c.b16 %v2098, %v2096
    %v2221 = vpack.c.b16 %v2099, %v2097
    %v2222 = vpack.c.b16 %v2102, %v2100
    %v2223 = vpack.c.b16 %v2103, %v2101
    %v2224 = vpack.c.b16 %v2106, %v2104
    %v2225 = vpack.c.b16 %v2107, %v2105
    %v2226 = vpack.c.b16 %v2110, %v2108
    %v2227 = vpack.c.b16 %v2111, %v2109
    %v2228 = vpack.c.b16 %v2114, %v2112
    %v2229 = vpack.c.b16 %v2115, %v2113
    %v2230 = vpack.c.b16 %v2118, %v2116
    %v2231 = vpack.c.b16 %v2119, %v2117
    %v2232 = vpack.c.b16 %v2122, %v2120
    %v2233 = vpack.c.b16 %v2123, %v2121
    %v2234 = vpack.c.b16 %v2126, %v2124
    %v2235 = vpack.c.b16 %v2127, %v2125
    %v2236 = vpack.c.b16 %v2130, %v2128
    %v2237 = vpack.c.b16 %v2131, %v2129
    %v2238 = vpack.c.b16 %v2134, %v2132
    %v2239 = vpack.c.b16 %v2135, %v2133
    %v2240 = vpack.c.b16 %v2138, %v2136
    %v2241 = vpack.c.b16 %v2139, %v2137
    %v2242 = vpack.c.b16 %v2142, %v2140
    %v2243 = vpack.c.b16 %v2143, %v2141
    %v2244 = vpack.c.b16 %v2146, %v2144
    %v2245 = vpack.c.b16 %v2147, %v2145
    %v2246 = vpack.c.b16 %v2150, %v2148
    %v2247 = vpack.c.b16 %v2151, %v2149
    %v2248 = vpack.c.b16 %v2154, %v2152
    %v2249 = vpack.c.b16 %v2155, %v2153
    %v2250 = vpack.c.b16 %v2158, %v2156
    %v2251 = vpack.c.b16 %v2159, %v2157
    %v2252 = vpack.c.b16 %v2162, %v2160
    %v2253 = vpack.c.b16 %v2163, %v2161
    %v2254 = vpack.c.b16 %v2166, %v2164
    %v2255 = vpack.c.b16 %v2167, %v2165
    %v2256 = vpack.c.b16 %v2170, %v2168
    %v2257 = vpack.c.b16 %v2171, %v2169
    %v2258 = vpack.c.b16 %v2174, %v2172
    %v2259 = vpack.c.b16 %v2175, %v2173
    %v2260 = vpack.c.b16 %v2178, %v2176
    %v2261 = vpack.c.b16 %v2179, %v2177
    %v2262 = vpack.c.b16 %v2182, %v2180
    %v2263 = vpack.c.b16 %v2183, %v2181
    %v2264 = vpack.c.b16 %v2186, %v2184
    %v2265 = vpack.c.b16 %v2187, %v2185
    %v2266 = vpack.c.b16 %v2190, %v2188
    %v2267 = vpack.c.b16 %v2191, %v2189
    %v2268 = vpack.c.b16 %v2194, %v2192
    %v2269 = vpack.c.b16 %v2195, %v2193
    %v2270 = vpack.c.b16 %v2198, %v2196
    %v2271 = vpack.c.b16 %v2199, %v2197
    %v2272 = vpack.c.b16 %v2202, %v2200
    %v2273 = vpack.c.b16 %v2203, %v2201
    %v2274 = vpack.c.b16 %v2206, %v2204
    %v2275 = vpack.c.b16 %v2207, %v2205
    %v2276 = vpack.c.b16 %v2210, %v2208
    %v2277 = vpack.c.b16 %v2211, %v2209
    %v2278 = vpack.c.b16 %v2214, %v2212
    %v2279 = vpack.c.b16 %v2215, %v2213
    %2344 = vmatprep.subr.bf16.mxu0 %v2217
    %2345 = vmatpush1.bf16.msra.mxu0 %v2216
    %2346 = vmatprep.subr.bf16.mxu0 %v2219
    %2347 = vmatpush1.bf16.msra.mxu0 %v2218
    %2348 = vmatprep.subr.bf16.mxu0 %v2221
    %2349 = vmatpush1.bf16.msra.mxu0 %v2220
    %2350 = vmatprep.subr.bf16.mxu0 %v2223
    %2351 = vmatpush1.bf16.msra.mxu0 %v2222
    %2352 = vmatprep.subr.bf16.mxu0 %v2225
    %2353 = vmatpush1.bf16.msra.mxu0 %v2224
    %2354 = vmatprep.subr.bf16.mxu0 %v2227
    %2355 = vmatpush1.bf16.msra.mxu0 %v2226
    %2356 = vmatprep.subr.bf16.mxu0 %v2229
    %2357 = vmatpush1.bf16.msra.mxu0 %v2228
    %2358 = vmatprep.subr.bf16.mxu0 %v2231
    %2359 = vmatpush1.bf16.msra.mxu0 %v2230
    %2360 = vmatprep.subr.bf16.mxu0 %v2233
    %2361 = vmatpush1.bf16.msra.mxu0 %v2232
    %2362 = vmatprep.subr.bf16.mxu0 %v2235
    %2363 = vmatpush1.bf16.msra.mxu0 %v2234
    %2364 = vmatprep.subr.bf16.mxu0 %v2237
    %2365 = vmatpush1.bf16.msra.mxu0 %v2236
    %2366 = vmatprep.subr.bf16.mxu0 %v2239
    %2367 = vmatpush1.bf16.msra.mxu0 %v2238
    %2368 = vmatprep.subr.bf16.mxu0 %v2241
    %2369 = vmatpush1.bf16.msra.mxu0 %v2240
    %2370 = vmatprep.subr.bf16.mxu0 %v2243
    %2371 = vmatpush1.bf16.msra.mxu0 %v2242
    %2372 = vmatprep.subr.bf16.mxu0 %v2245
    %2373 = vmatpush1.bf16.msra.mxu0 %v2244
    %2374 = vmatprep.subr.bf16.mxu0 %v2247
    %2375 = vmatpush1.bf16.msra.mxu0 %v2246
    %2376 = vmatprep.mubr.bf16.mxu0 %v1945
    %2377 = vmatmul.mubr.bf16.gmra.mrb[0].mxu0 %v1944
    %v2378 = vpop.f32.mrb[0].mxu0
    %v2379 = vadd.f32 %v2017, %v2378
    %v2380 = vpop.f32.mrb[0].mxu0
    %v2381 = vadd.f32 %v2021, %v2380
    %v2382 = vpop.f32.mrb[0].mxu0
    %v2383 = vadd.f32 %v2017, %v2382
    %v2384 = vpop.f32.mrb[0].mxu0
    %v2385 = vadd.f32 %v2021, %v2384
    %2386 = vdwg.mxu0
    %2387 = vmatprep.subr.bf16.mxu0 %v2249
    %2388 = vmatpush1.bf16.msra.mxu0 %v2248
    %2389 = vmatprep.subr.bf16.mxu0 %v2251
    %2390 = vmatpush1.bf16.msra.mxu0 %v2250
    %2391 = vmatprep.subr.bf16.mxu0 %v2253
    %2392 = vmatpush1.bf16.msra.mxu0 %v2252
    %2393 = vmatprep.subr.bf16.mxu0 %v2255
    %2394 = vmatpush1.bf16.msra.mxu0 %v2254
    %2395 = vmatprep.subr.bf16.mxu0 %v2257
    %2396 = vmatpush1.bf16.msra.mxu0 %v2256
    %2397 = vmatprep.subr.bf16.mxu0 %v2259
    %2398 = vmatpush1.bf16.msra.mxu0 %v2258
    %2399 = vmatprep.subr.bf16.mxu0 %v2261
    %2400 = vmatpush1.bf16.msra.mxu0 %v2260
    %2401 = vmatprep.subr.bf16.mxu0 %v2263
    %2402 = vmatpush1.bf16.msra.mxu0 %v2262
    %2403 = vmatprep.subr.bf16.mxu0 %v2265
    %2404 = vmatpush1.bf16.msra.mxu0 %v2264
    %2405 = vmatprep.subr.bf16.mxu0 %v2267
    %2406 = vmatpush1.bf16.msra.mxu0 %v2266
    %2407 = vmatprep.subr.bf16.mxu0 %v2269
    %2408 = vmatpush1.bf16.msra.mxu0 %v2268
    %2409 = vmatprep.subr.bf16.mxu0 %v2271
    %2410 = vmatpush1.bf16.msra.mxu0 %v2270
    %2411 = vmatprep.subr.bf16.mxu0 %v2273
    %2412 = vmatpush1.bf16.msra.mxu0 %v2272
    %2413 = vmatprep.subr.bf16.mxu0 %v2275
    %2414 = vmatpush1.bf16.msra.mxu0 %v2274
    %2415 = vmatprep.subr.bf16.mxu0 %v2277
    %2416 = vmatpush1.bf16.msra.mxu0 %v2276
    %2417 = vmatprep.subr.bf16.mxu0 %v2279
    %2418 = vmatpush1.bf16.msra.mxu0 %v2278
    %2419 = vmatprep.mubr.bf16.mxu0 %v1947
    %2420 = vmatmul.mubr.bf16.gmra.mrb[0].mxu0 %v1946
    %v2421 = vpop.f32.mrb[0].mxu0
    %v2422 = vadd.f32 %v2379, %v2421
    %v2423 = vpop.f32.mrb[0].mxu0
    %v2424 = vadd.f32 %v2381, %v2423
    %v2425 = vpop.f32.mrb[0].mxu0
    %v2426 = vadd.f32 %v2383, %v2425
    %v2427 = vpop.f32.mrb[0].mxu0
    %v2428 = vadd.f32 %v2385, %v2427
    %2429 = vdwg.mxu0
    %v2430 = vmax.f32 %v2422, 0.0
    %v2431 = vmax.f32 %v2424, 0.0
    %v2432 = vmax.f32 %v2426, 0.0
    %v2433 = vmax.f32 %v2428, 0.0
    %v2434 = vpack.c.bf16 %v2432, %v2430
    %v2435 = vpack.c.bf16 %v2433, %v2431
    %v2436 = vld [vmem:[%s6] sm:$0xff]
    %v2437 = vld [vmem:[%s6 + $0x8] sm:$0xff]
    %v2438 = vld [vmem:[%s6 + $0x10] sm:$0xff]
    %v2439 = vld [vmem:[%s6 + $0x18] sm:$0xff]
    %v2440 = vld [vmem:[%s6 + $0x20] sm:$0xff]
    %v2441 = vld [vmem:[%s6 + $0x28] sm:$0xff]
    %v2442 = vld [vmem:[%s6 + $0x30] sm:$0xff]
    %v2443 = vld [vmem:[%s6 + $0x38] sm:$0xff]
    %v2444 = vld [vmem:[%s6 + $0x40] sm:$0xff]
    %v2445 = vld [vmem:[%s6 + $0x48] sm:$0xff]
    %v2446 = vld [vmem:[%s6 + $0x50] sm:$0xff]
    %v2447 = vld [vmem:[%s6 + $0x58] sm:$0xff]
    %v2448 = vld [vmem:[%s6 + $0x60] sm:$0xff]
    %v2449 = vld [vmem:[%s6 + $0x68] sm:$0xff]
    %v2450 = vld [vmem:[%s6 + $0x70] sm:$0xff]
    %v2451 = vld [vmem:[%s6 + $0x78] sm:$0xff]
    %v2452 = vld [vmem:[%s6 + $0x80] sm:$0xff]
    %v2453 = vld [vmem:[%s6 + $0x88] sm:$0xff]
    %v2454 = vld [vmem:[%s6 + $0x90] sm:$0xff]
    %v2455 = vld [vmem:[%s6 + $0x98] sm:$0xff]
    %v2456 = vld [vmem:[%s6 + $0xa0] sm:$0xff]
    %v2457 = vld [vmem:[%s6 + $0xa8] sm:$0xff]
    %v2458 = vld [vmem:[%s6 + $0xb0] sm:$0xff]
    %v2459 = vld [vmem:[%s6 + $0xb8] sm:$0xff]
    %v2460 = vld [vmem:[%s6 + $0xc0] sm:$0xff]
    %v2461 = vld [vmem:[%s6 + $0xc8] sm:$0xff]
    %v2462 = vld [vmem:[%s6 + $0xd0] sm:$0xff]
    %v2463 = vld [vmem:[%s6 + $0xd8] sm:$0xff]
    %v2464 = vld [vmem:[%s6 + $0xe0] sm:$0xff]
    %v2465 = vld [vmem:[%s6 + $0xe8] sm:$0xff]
    %v2466 = vld [vmem:[%s6 + $0xf0] sm:$0xff]
    %v2467 = vld [vmem:[%s6 + $0xf8] sm:$0xff]
    %v2468 = vld [vmem:[%s7] sm:$0x3]
    %v2470 = vlaneseq
    %v2471 = vshrl.u32 %v2470, 7
    %v2472 = vsub.s32 0, %v2471
    %v2473 = vrot.slane %v2468, %v2472
    %v2474 = vlaneseq
    %v2475 = vshrl.u32 %v2474, 7
    %v2476 = vsub.s32 1, %v2475
    %v2477 = vrot.slane %v2468, %v2476
    %v2512 = vunpack.c.l.b16 %v2436
    %v2513 = vunpack.c.h.b16 %v2436
    %v2514 = vunpack.c.l.b16 %v2437
    %v2515 = vunpack.c.h.b16 %v2437
    %v2516 = vunpack.c.l.b16 %v2438
    %v2517 = vunpack.c.h.b16 %v2438
    %v2518 = vunpack.c.l.b16 %v2439
    %v2519 = vunpack.c.h.b16 %v2439
    %v2520 = vunpack.c.l.b16 %v2440
    %v2521 = vunpack.c.h.b16 %v2440
    %v2522 = vunpack.c.l.b16 %v2441
    %v2523 = vunpack.c.h.b16 %v2441
    %v2524 = vunpack.c.l.b16 %v2442
    %v2525 = vunpack.c.h.b16 %v2442
    %v2526 = vunpack.c.l.b16 %v2443
    %v2527 = vunpack.c.h.b16 %v2443
    %v2528 = vunpack.c.l.b16 %v2444
    %v2529 = vunpack.c.h.b16 %v2444
    %v2530 = vunpack.c.l.b16 %v2445
    %v2531 = vunpack.c.h.b16 %v2445
    %v2532 = vunpack.c.l.b16 %v2446
    %v2533 = vunpack.c.h.b16 %v2446
    %v2534 = vunpack.c.l.b16 %v2447
    %v2535 = vunpack.c.h.b16 %v2447
    %v2536 = vunpack.c.l.b16 %v2448
    %v2537 = vunpack.c.h.b16 %v2448
    %v2538 = vunpack.c.l.b16 %v2449
    %v2539 = vunpack.c.h.b16 %v2449
    %v2540 = vunpack.c.l.b16 %v2450
    %v2541 = vunpack.c.h.b16 %v2450
    %v2542 = vunpack.c.l.b16 %v2451
    %v2543 = vunpack.c.h.b16 %v2451
    %v2544 = vunpack.c.l.b16 %v2452
    %v2545 = vunpack.c.h.b16 %v2452
    %v2546 = vunpack.c.l.b16 %v2453
    %v2547 = vunpack.c.h.b16 %v2453
    %v2548 = vunpack.c.l.b16 %v2454
    %v2549 = vunpack.c.h.b16 %v2454
    %v2550 = vunpack.c.l.b16 %v2455
    %v2551 = vunpack.c.h.b16 %v2455
    %v2552 = vunpack.c.l.b16 %v2456
    %v2553 = vunpack.c.h.b16 %v2456
    %v2554 = vunpack.c.l.b16 %v2457
    %v2555 = vunpack.c.h.b16 %v2457
    %v2556 = vunpack.c.l.b16 %v2458
    %v2557 = vunpack.c.h.b16 %v2458
    %v2558 = vunpack.c.l.b16 %v2459
    %v2559 = vunpack.c.h.b16 %v2459
    %v2560 = vunpack.c.l.b16 %v2460
    %v2561 = vunpack.c.h.b16 %v2460
    %v2562 = vunpack.c.l.b16 %v2461
    %v2563 = vunpack.c.h.b16 %v2461
    %v2564 = vunpack.c.l.b16 %v2462
    %v2565 = vunpack.c.h.b16 %v2462
    %v2566 = vunpack.c.l.b16 %v2463
    %v2567 = vunpack.c.h.b16 %v2463
    %v2568 = vunpack.c.l.b16 %v2464
    %v2569 = vunpack.c.h.b16 %v2464
    %v2570 = vunpack.c.l.b16 %v2465
    %v2571 = vunpack.c.h.b16 %v2465
    %v2572 = vunpack.c.l.b16 %v2466
    %v2573 = vunpack.c.h.b16 %v2466
    %v2574 = vunpack.c.l.b16 %v2467
    %v2575 = vunpack.c.h.b16 %v2467
    %v2576 = vpack.c.b16 %v2514, %v2512
    %v2577 = vpack.c.b16 %v2515, %v2513
    %v2578 = vpack.c.b16 %v2518, %v2516
    %v2579 = vpack.c.b16 %v2519, %v2517
    %v2580 = vpack.c.b16 %v2522, %v2520
    %v2581 = vpack.c.b16 %v2523, %v2521
    %v2582 = vpack.c.b16 %v2526, %v2524
    %v2583 = vpack.c.b16 %v2527, %v2525
    %v2584 = vpack.c.b16 %v2530, %v2528
    %v2585 = vpack.c.b16 %v2531, %v2529
    %v2586 = vpack.c.b16 %v2534, %v2532
    %v2587 = vpack.c.b16 %v2535, %v2533
    %v2588 = vpack.c.b16 %v2538, %v2536
    %v2589 = vpack.c.b16 %v2539, %v2537
    %v2590 = vpack.c.b16 %v2542, %v2540
    %v2591 = vpack.c.b16 %v2543, %v2541
    %v2592 = vpack.c.b16 %v2546, %v2544
    %v2593 = vpack.c.b16 %v2547, %v2545
    %v2594 = vpack.c.b16 %v2550, %v2548
    %v2595 = vpack.c.b16 %v2551, %v2549
    %v2596 = vpack.c.b16 %v2554, %v2552
    %v2597 = vpack.c.b16 %v2555, %v2553
    %v2598 = vpack.c.b16 %v2558, %v2556
    %v2599 = vpack.c.b16 %v2559, %v2557
    %v2600 = vpack.c.b16 %v2562, %v2560
    %v2601 = vpack.c.b16 %v2563, %v2561
    %v2602 = vpack.c.b16 %v2566, %v2564
    %v2603 = vpack.c.b16 %v2567, %v2565
    %v2604 = vpack.c.b16 %v2570, %v2568
    %v2605 = vpack.c.b16 %v2571, %v2569
    %v2606 = vpack.c.b16 %v2574, %v2572
    %v2607 = vpack.c.b16 %v2575, %v2573
    %2640 = vmatprep.subr.bf16.mxu0 %v2577
    %2641 = vmatpush1.bf16.msra.mxu0 %v2576
    %2642 = vmatprep.subr.bf16.mxu0 %v2579
    %2643 = vmatpush1.bf16.msra.mxu0 %v2578
    %2644 = vmatprep.subr.bf16.mxu0 %v2581
    %2645 = vmatpush1.bf16.msra.mxu0 %v2580
    %2646 = vmatprep.subr.bf16.mxu0 %v2583
    %2647 = vmatpush1.bf16.msra.mxu0 %v2582
    %2648 = vmatprep.subr.bf16.mxu0 %v2585
    %2649 = vmatpush1.bf16.msra.mxu0 %v2584
    %2650 = vmatprep.subr.bf16.mxu0 %v2587
    %2651 = vmatpush1.bf16.msra.mxu0 %v2586
    %2652 = vmatprep.subr.bf16.mxu0 %v2589
    %2653 = vmatpush1.bf16.msra.mxu0 %v2588
    %2654 = vmatprep.subr.bf16.mxu0 %v2591
    %2655 = vmatpush1.bf16.msra.mxu0 %v2590
    %2656 = vmatprep.subr.bf16.mxu0 %v2593
    %2657 = vmatpush1.bf16.msra.mxu0 %v2592
    %2658 = vmatprep.subr.bf16.mxu0 %v2595
    %2659 = vmatpush1.bf16.msra.mxu0 %v2594
    %2660 = vmatprep.subr.bf16.mxu0 %v2597
    %2661 = vmatpush1.bf16.msra.mxu0 %v2596
    %2662 = vmatprep.subr.bf16.mxu0 %v2599
    %2663 = vmatpush1.bf16.msra.mxu0 %v2598
    %2664 = vmatprep.subr.bf16.mxu0 %v2601
    %2665 = vmatpush1.bf16.msra.mxu0 %v2600
    %2666 = vmatprep.subr.bf16.mxu0 %v2603
    %2667 = vmatpush1.bf16.msra.mxu0 %v2602
    %2668 = vmatprep.subr.bf16.mxu0 %v2605
    %2669 = vmatpush1.bf16.msra.mxu0 %v2604
    %2670 = vmatprep.subr.bf16.mxu0 %v2607
    %2671 = vmatpush1.bf16.msra.mxu0 %v2606
    %2672 = vmatprep.mubr.bf16.mxu0 %v2435
    %2673 = vmatmul.mubr.bf16.gmra.mrb[0].mxu0 %v2434
    %v2674 = vpop.f32.mrb[0].mxu0
    %v2675 = vadd.f32 %v2473, %v2674
    %v2676 = vpop.f32.mrb[0].mxu0
    %v2677 = vadd.f32 %v2477, %v2676
    %v2678 = vpop.f32.mrb[0].mxu0
    %v2679 = vadd.f32 %v2473, %v2678
    %v2680 = vpop.f32.mrb[0].mxu0
    %v2681 = vadd.f32 %v2477, %v2680
    %2682 = vdwg.mxu0
    %v2683 = vld [vmem:[%s1] sm:$0xff]
    %v2684 = vld [vmem:[%s1 + $0x8] sm:$0xff]
    %v2685 = vmul.f32 %v2677, 0.5
    %v2686 = vmul.f32 %v2681, 0.5
    %v2687 = vmul.f32 %v2685, 1.442695
    %v2688 = vpow.pop %v2687
    %v2689 = vmul.f32 %v2686, 1.442695
    %v2690 = vpow.pop %v2689
    %v2691 = vmul.f32 %v2683, %v2688
    %v2692 = vmul.f32 %v2684, %v2690
    %v2693 = vadd.f32 %v2675, %v2691
    %v2694 = vadd.f32 %v2679, %v2692
    %v2695 = vpack.c.bf16 %v2694, %v2693
    %v2696 = vld [vmem:[%s8] sm:$0xff]
    %v2697 = vld [vmem:[%s8 + $0x8] sm:$0xff]
    %v2698 = vld [vmem:[%s8 + $0x10] sm:$0xff]
    %v2699 = vld [vmem:[%s8 + $0x18] sm:$0xff]
    %v2700 = vld [vmem:[%s8 + $0x20] sm:$0xff]
    %v2701 = vld [vmem:[%s8 + $0x28] sm:$0xff]
    %v2702 = vld [vmem:[%s8 + $0x30] sm:$0xff]
    %v2703 = vld [vmem:[%s8 + $0x38] sm:$0xff]
    %v2704 = vld [vmem:[%s8 + $0x40] sm:$0xff]
    %v2705 = vld [vmem:[%s8 + $0x48] sm:$0xff]
    %v2706 = vld [vmem:[%s8 + $0x50] sm:$0xff]
    %v2707 = vld [vmem:[%s8 + $0x58] sm:$0xff]
    %v2708 = vld [vmem:[%s8 + $0x60] sm:$0xff]
    %v2709 = vld [vmem:[%s8 + $0x68] sm:$0xff]
    %v2710 = vld [vmem:[%s8 + $0x70] sm:$0xff]
    %v2711 = vld [vmem:[%s8 + $0x78] sm:$0xff]
    %v2712 = vld [vmem:[%s9] sm:$0x3]
    %v2714 = vlaneseq
    %v2715 = vshrl.u32 %v2714, 7
    %v2716 = vsub.s32 0, %v2715
    %v2717 = vrot.slane %v2712, %v2716
    %v2718 = vlaneseq
    %v2719 = vshrl.u32 %v2718, 7
    %v2720 = vsub.s32 1, %v2719
    %v2721 = vrot.slane %v2712, %v2720
    %v2740 = vunpack.c.l.b16 %v2696
    %v2741 = vunpack.c.h.b16 %v2696
    %v2742 = vunpack.c.l.b16 %v2697
    %v2743 = vunpack.c.h.b16 %v2697
    %v2744 = vunpack.c.l.b16 %v2698
    %v2745 = vunpack.c.h.b16 %v2698
    %v2746 = vunpack.c.l.b16 %v2699
    %v2747 = vunpack.c.h.b16 %v2699
    %v2748 = vunpack.c.l.b16 %v2700
    %v2749 = vunpack.c.h.b16 %v2700
    %v2750 = vunpack.c.l.b16 %v2701
    %v2751 = vunpack.c.h.b16 %v2701
    %v2752 = vunpack.c.l.b16 %v2702
    %v2753 = vunpack.c.h.b16 %v2702
    %v2754 = vunpack.c.l.b16 %v2703
    %v2755 = vunpack.c.h.b16 %v2703
    %v2756 = vunpack.c.l.b16 %v2704
    %v2757 = vunpack.c.h.b16 %v2704
    %v2758 = vunpack.c.l.b16 %v2705
    %v2759 = vunpack.c.h.b16 %v2705
    %v2760 = vunpack.c.l.b16 %v2706
    %v2761 = vunpack.c.h.b16 %v2706
    %v2762 = vunpack.c.l.b16 %v2707
    %v2763 = vunpack.c.h.b16 %v2707
    %v2764 = vunpack.c.l.b16 %v2708
    %v2765 = vunpack.c.h.b16 %v2708
    %v2766 = vunpack.c.l.b16 %v2709
    %v2767 = vunpack.c.h.b16 %v2709
    %v2768 = vunpack.c.l.b16 %v2710
    %v2769 = vunpack.c.h.b16 %v2710
    %v2770 = vunpack.c.l.b16 %v2711
    %v2771 = vunpack.c.h.b16 %v2711
    %v2772 = vpack.c.b16 %v2742, %v2740
    %v2773 = vpack.c.b16 %v2743, %v2741
    %v2774 = vpack.c.b16 %v2746, %v2744
    %v2775 = vpack.c.b16 %v2747, %v2745
    %v2776 = vpack.c.b16 %v2750, %v2748
    %v2777 = vpack.c.b16 %v2751, %v2749
    %v2778 = vpack.c.b16 %v2754, %v2752
    %v2779 = vpack.c.b16 %v2755, %v2753
    %v2780 = vpack.c.b16 %v2758, %v2756
    %v2781 = vpack.c.b16 %v2759, %v2757
    %v2782 = vpack.c.b16 %v2762, %v2760
    %v2783 = vpack.c.b16 %v2763, %v2761
    %v2784 = vpack.c.b16 %v2766, %v2764
    %v2785 = vpack.c.b16 %v2767, %v2765
    %v2786 = vpack.c.b16 %v2770, %v2768
    %v2787 = vpack.c.b16 %v2771, %v2769
    %2804 = vmatprep.subr.bf16.mxu0 %v2773
    %2805 = vmatpush1.bf16.msra.mxu0 %v2772
    %2806 = vmatprep.subr.bf16.mxu0 %v2775
    %2807 = vmatpush1.bf16.msra.mxu0 %v2774
    %2808 = vmatprep.subr.bf16.mxu0 %v2777
    %2809 = vmatpush1.bf16.msra.mxu0 %v2776
    %2810 = vmatprep.subr.bf16.mxu0 %v2779
    %2811 = vmatpush1.bf16.msra.mxu0 %v2778
    %2812 = vmatprep.subr.bf16.mxu0 %v2781
    %2813 = vmatpush1.bf16.msra.mxu0 %v2780
    %2814 = vmatprep.subr.bf16.mxu0 %v2783
    %2815 = vmatpush1.bf16.msra.mxu0 %v2782
    %2816 = vmatprep.subr.bf16.mxu0 %v2785
    %2817 = vmatpush1.bf16.msra.mxu0 %v2784
    %2818 = vmatprep.subr.bf16.mxu0 %v2787
    %2819 = vmatpush1.bf16.msra.mxu0 %v2786
    %2820 = vmatprep.subr.bf16.mxu0 0
    %2821 = vmatpush1.bf16.msra.mxu0 0
    %2822 = vmatprep.subr.bf16.mxu0 0
    %2823 = vmatpush1.bf16.msra.mxu0 0
    %2824 = vmatprep.subr.bf16.mxu0 0
    %2825 = vmatpush1.bf16.msra.mxu0 0
    %2826 = vmatprep.subr.bf16.mxu0 0
    %2827 = vmatpush1.bf16.msra.mxu0 0
    %2828 = vmatprep.subr.bf16.mxu0 0
    %2829 = vmatpush1.bf16.msra.mxu0 0
    %2830 = vmatprep.subr.bf16.mxu0 0
    %2831 = vmatpush1.bf16.msra.mxu0 0
    %2832 = vmatprep.subr.bf16.mxu0 0
    %2833 = vmatpush1.bf16.msra.mxu0 0
    %2834 = vmatprep.subr.bf16.mxu0 0
    %2835 = vmatpush1.bf16.msra.mxu0 0
    %2836 = vmatprep.mubr.bf16.mxu0 0
    %2837 = vmatmul.mubr.bf16.gmra.mrb[0].mxu0 %v2695
    %v2838 = vpop.f32.mrb[0].mxu0
    %v2839 = vadd.f32 %v2717, %v2838
    %v2840 = vpop.f32.mrb[0].mxu0
    %v2841 = vadd.f32 %v2721, %v2840
    %v2842 = vpop.f32.mrb[0].mxu0
    %v2843 = vadd.f32 %v2717, %v2842
    %v2844 = vpop.f32.mrb[0].mxu0
    %v2845 = vadd.f32 %v2721, %v2844
    %2846 = vdwg.mxu0
    %v2847 = vmax.f32 %v2839, 0.0
    %v2848 = vmax.f32 %v2841, 0.0
    %v2849 = vmax.f32 %v2843, 0.0
    %v2850 = vmax.f32 %v2845, 0.0
    %v2851 = vpack.c.bf16 %v2849, %v2847
    %v2852 = vpack.c.bf16 %v2850, %v2848
    %v2853 = vld [vmem:[%s10] sm:$0xff]
    %v2854 = vld [vmem:[%s10 + $0x8] sm:$0xff]
    %v2855 = vld [vmem:[%s10 + $0x10] sm:$0xff]
    %v2856 = vld [vmem:[%s10 + $0x18] sm:$0xff]
    %v2857 = vld [vmem:[%s10 + $0x20] sm:$0xff]
    %v2858 = vld [vmem:[%s10 + $0x28] sm:$0xff]
    %v2859 = vld [vmem:[%s10 + $0x30] sm:$0xff]
    %v2860 = vld [vmem:[%s10 + $0x38] sm:$0xff]
    %v2861 = vld [vmem:[%s10 + $0x40] sm:$0xff]
    %v2862 = vld [vmem:[%s10 + $0x48] sm:$0xff]
    %v2863 = vld [vmem:[%s10 + $0x50] sm:$0xff]
    %v2864 = vld [vmem:[%s10 + $0x58] sm:$0xff]
    %v2865 = vld [vmem:[%s10 + $0x60] sm:$0xff]
    %v2866 = vld [vmem:[%s10 + $0x68] sm:$0xff]
    %v2867 = vld [vmem:[%s10 + $0x70] sm:$0xff]
    %v2868 = vld [vmem:[%s10 + $0x78] sm:$0xff]
    %v2869 = vld [vmem:[%s10 + $0x80] sm:$0xff]
    %v2870 = vld [vmem:[%s10 + $0x88] sm:$0xff]
    %v2871 = vld [vmem:[%s10 + $0x90] sm:$0xff]
    %v2872 = vld [vmem:[%s10 + $0x98] sm:$0xff]
    %v2873 = vld [vmem:[%s10 + $0xa0] sm:$0xff]
    %v2874 = vld [vmem:[%s10 + $0xa8] sm:$0xff]
    %v2875 = vld [vmem:[%s10 + $0xb0] sm:$0xff]
    %v2876 = vld [vmem:[%s10 + $0xb8] sm:$0xff]
    %v2877 = vld [vmem:[%s10 + $0xc0] sm:$0xff]
    %v2878 = vld [vmem:[%s10 + $0xc8] sm:$0xff]
    %v2879 = vld [vmem:[%s10 + $0xd0] sm:$0xff]
    %v2880 = vld [vmem:[%s10 + $0xd8] sm:$0xff]
    %v2881 = vld [vmem:[%s10 + $0xe0] sm:$0xff]
    %v2882 = vld [vmem:[%s10 + $0xe8] sm:$0xff]
    %v2883 = vld [vmem:[%s10 + $0xf0] sm:$0xff]
    %v2884 = vld [vmem:[%s10 + $0xf8] sm:$0xff]
    %v2885 = vld [vmem:[%s10 + $0x100] sm:$0xff]
    %v2886 = vld [vmem:[%s10 + $0x108] sm:$0xff]
    %v2887 = vld [vmem:[%s10 + $0x110] sm:$0xff]
    %v2888 = vld [vmem:[%s10 + $0x118] sm:$0xff]
    %v2889 = vld [vmem:[%s10 + $0x120] sm:$0xff]
    %v2890 = vld [vmem:[%s10 + $0x128] sm:$0xff]
    %v2891 = vld [vmem:[%s10 + $0x130] sm:$0xff]
    %v2892 = vld [vmem:[%s10 + $0x138] sm:$0xff]
    %v2893 = vld [vmem:[%s10 + $0x140] sm:$0xff]
    %v2894 = vld [vmem:[%s10 + $0x148] sm:$0xff]
    %v2895 = vld [vmem:[%s10 + $0x150] sm:$0xff]
    %v2896 = vld [vmem:[%s10 + $0x158] sm:$0xff]
    %v2897 = vld [vmem:[%s10 + $0x160] sm:$0xff]
    %v2898 = vld [vmem:[%s10 + $0x168] sm:$0xff]
    %v2899 = vld [vmem:[%s10 + $0x170] sm:$0xff]
    %v2900 = vld [vmem:[%s10 + $0x178] sm:$0xff]
    %v2901 = vld [vmem:[%s10 + $0x180] sm:$0xff]
    %v2902 = vld [vmem:[%s10 + $0x188] sm:$0xff]
    %v2903 = vld [vmem:[%s10 + $0x190] sm:$0xff]
    %v2904 = vld [vmem:[%s10 + $0x198] sm:$0xff]
    %v2905 = vld [vmem:[%s10 + $0x1a0] sm:$0xff]
    %v2906 = vld [vmem:[%s10 + $0x1a8] sm:$0xff]
    %v2907 = vld [vmem:[%s10 + $0x1b0] sm:$0xff]
    %v2908 = vld [vmem:[%s10 + $0x1b8] sm:$0xff]
    %v2909 = vld [vmem:[%s10 + $0x1c0] sm:$0xff]
    %v2910 = vld [vmem:[%s10 + $0x1c8] sm:$0xff]
    %v2911 = vld [vmem:[%s10 + $0x1d0] sm:$0xff]
    %v2912 = vld [vmem:[%s10 + $0x1d8] sm:$0xff]
    %v2913 = vld [vmem:[%s10 + $0x1e0] sm:$0xff]
    %v2914 = vld [vmem:[%s10 + $0x1e8] sm:$0xff]
    %v2915 = vld [vmem:[%s10 + $0x1f0] sm:$0xff]
    %v2916 = vld [vmem:[%s10 + $0x1f8] sm:$0xff]
    %v2917 = vld [vmem:[%s11] sm:$0xf]
    %v2919 = vlaneseq
    %v2920 = vshrl.u32 %v2919, 7
    %v2921 = vsub.s32 0, %v2920
    %v2922 = vrot.slane %v2917, %v2921
    %v2923 = vlaneseq
    %v2924 = vshrl.u32 %v2923, 7
    %v2925 = vsub.s32 1, %v2924
    %v2926 = vrot.slane %v2917, %v2925
    %v2927 = vlaneseq
    %v2928 = vshrl.u32 %v2927, 7
    %v2929 = vsub.s32 2, %v2928
    %v2930 = vrot.slane %v2917, %v2929
    %v2931 = vlaneseq
    %v2932 = vshrl.u32 %v2931, 7
    %v2933 = vsub.s32 3, %v2932
    %v2934 = vrot.slane %v2917, %v2933
    %v3003 = vunpack.c.l.b16 %v2853
    %v3004 = vunpack.c.h.b16 %v2853
    %v3005 = vunpack.c.l.b16 %v2854
    %v3006 = vunpack.c.h.b16 %v2854
    %v3007 = vunpack.c.l.b16 %v2855
    %v3008 = vunpack.c.h.b16 %v2855
    %v3009 = vunpack.c.l.b16 %v2856
    %v3010 = vunpack.c.h.b16 %v2856
    %v3011 = vunpack.c.l.b16 %v2857
    %v3012 = vunpack.c.h.b16 %v2857
    %v3013 = vunpack.c.l.b16 %v2858
    %v3014 = vunpack.c.h.b16 %v2858
    %v3015 = vunpack.c.l.b16 %v2859
    %v3016 = vunpack.c.h.b16 %v2859
    %v3017 = vunpack.c.l.b16 %v2860
    %v3018 = vunpack.c.h.b16 %v2860
    %v3019 = vunpack.c.l.b16 %v2861
    %v3020 = vunpack.c.h.b16 %v2861
    %v3021 = vunpack.c.l.b16 %v2862
    %v3022 = vunpack.c.h.b16 %v2862
    %v3023 = vunpack.c.l.b16 %v2863
    %v3024 = vunpack.c.h.b16 %v2863
    %v3025 = vunpack.c.l.b16 %v2864
    %v3026 = vunpack.c.h.b16 %v2864
    %v3027 = vunpack.c.l.b16 %v2865
    %v3028 = vunpack.c.h.b16 %v2865
    %v3029 = vunpack.c.l.b16 %v2866
    %v3030 = vunpack.c.h.b16 %v2866
    %v3031 = vunpack.c.l.b16 %v2867
    %v3032 = vunpack.c.h.b16 %v2867
    %v3033 = vunpack.c.l.b16 %v2868
    %v3034 = vunpack.c.h.b16 %v2868
    %v3035 = vunpack.c.l.b16 %v2869
    %v3036 = vunpack.c.h.b16 %v2869
    %v3037 = vunpack.c.l.b16 %v2870
    %v3038 = vunpack.c.h.b16 %v2870
    %v3039 = vunpack.c.l.b16 %v2871
    %v3040 = vunpack.c.h.b16 %v2871
    %v3041 = vunpack.c.l.b16 %v2872
    %v3042 = vunpack.c.h.b16 %v2872
    %v3043 = vunpack.c.l.b16 %v2873
    %v3044 = vunpack.c.h.b16 %v2873
    %v3045 = vunpack.c.l.b16 %v2874
    %v3046 = vunpack.c.h.b16 %v2874
    %v3047 = vunpack.c.l.b16 %v2875
    %v3048 = vunpack.c.h.b16 %v2875
    %v3049 = vunpack.c.l.b16 %v2876
    %v3050 = vunpack.c.h.b16 %v2876
    %v3051 = vunpack.c.l.b16 %v2877
    %v3052 = vunpack.c.h.b16 %v2877
    %v3053 = vunpack.c.l.b16 %v2878
    %v3054 = vunpack.c.h.b16 %v2878
    %v3055 = vunpack.c.l.b16 %v2879
    %v3056 = vunpack.c.h.b16 %v2879
    %v3057 = vunpack.c.l.b16 %v2880
    %v3058 = vunpack.c.h.b16 %v2880
    %v3059 = vunpack.c.l.b16 %v2881
    %v3060 = vunpack.c.h.b16 %v2881
    %v3061 = vunpack.c.l.b16 %v2882
    %v3062 = vunpack.c.h.b16 %v2882
    %v3063 = vunpack.c.l.b16 %v2883
    %v3064 = vunpack.c.h.b16 %v2883
    %v3065 = vunpack.c.l.b16 %v2884
    %v3066 = vunpack.c.h.b16 %v2884
    %v3067 = vunpack.c.l.b16 %v2885
    %v3068 = vunpack.c.h.b16 %v2885
    %v3069 = vunpack.c.l.b16 %v2886
    %v3070 = vunpack.c.h.b16 %v2886
    %v3071 = vunpack.c.l.b16 %v2887
    %v3072 = vunpack.c.h.b16 %v2887
    %v3073 = vunpack.c.l.b16 %v2888
    %v3074 = vunpack.c.h.b16 %v2888
    %v3075 = vunpack.c.l.b16 %v2889
    %v3076 = vunpack.c.h.b16 %v2889
    %v3077 = vunpack.c.l.b16 %v2890
    %v3078 = vunpack.c.h.b16 %v2890
    %v3079 = vunpack.c.l.b16 %v2891
    %v3080 = vunpack.c.h.b16 %v2891
    %v3081 = vunpack.c.l.b16 %v2892
    %v3082 = vunpack.c.h.b16 %v2892
    %v3083 = vunpack.c.l.b16 %v2893
    %v3084 = vunpack.c.h.b16 %v2893
    %v3085 = vunpack.c.l.b16 %v2894
    %v3086 = vunpack.c.h.b16 %v2894
    %v3087 = vunpack.c.l.b16 %v2895
    %v3088 = vunpack.c.h.b16 %v2895
    %v3089 = vunpack.c.l.b16 %v2896
    %v3090 = vunpack.c.h.b16 %v2896
    %v3091 = vunpack.c.l.b16 %v2897
    %v3092 = vunpack.c.h.b16 %v2897
    %v3093 = vunpack.c.l.b16 %v2898
    %v3094 = vunpack.c.h.b16 %v2898
    %v3095 = vunpack.c.l.b16 %v2899
    %v3096 = vunpack.c.h.b16 %v2899
    %v3097 = vunpack.c.l.b16 %v2900
    %v3098 = vunpack.c.h.b16 %v2900
    %v3099 = vunpack.c.l.b16 %v2901
    %v3100 = vunpack.c.h.b16 %v2901
    %v3101 = vunpack.c.l.b16 %v2902
    %v3102 = vunpack.c.h.b16 %v2902
    %v3103 = vunpack.c.l.b16 %v2903
    %v3104 = vunpack.c.h.b16 %v2903
    %v3105 = vunpack.c.l.b16 %v2904
    %v3106 = vunpack.c.h.b16 %v2904
    %v3107 = vunpack.c.l.b16 %v2905
    %v3108 = vunpack.c.h.b16 %v2905
    %v3109 = vunpack.c.l.b16 %v2906
    %v3110 = vunpack.c.h.b16 %v2906
    %v3111 = vunpack.c.l.b16 %v2907
    %v3112 = vunpack.c.h.b16 %v2907
    %v3113 = vunpack.c.l.b16 %v2908
    %v3114 = vunpack.c.h.b16 %v2908
    %v3115 = vunpack.c.l.b16 %v2909
    %v3116 = vunpack.c.h.b16 %v2909
    %v3117 = vunpack.c.l.b16 %v2910
    %v3118 = vunpack.c.h.b16 %v2910
    %v3119 = vunpack.c.l.b16 %v2911
    %v3120 = vunpack.c.h.b16 %v2911
    %v3121 = vunpack.c.l.b16 %v2912
    %v3122 = vunpack.c.h.b16 %v2912
    %v3123 = vunpack.c.l.b16 %v2913
    %v3124 = vunpack.c.h.b16 %v2913
    %v3125 = vunpack.c.l.b16 %v2914
    %v3126 = vunpack.c.h.b16 %v2914
    %v3127 = vunpack.c.l.b16 %v2915
    %v3128 = vunpack.c.h.b16 %v2915
    %v3129 = vunpack.c.l.b16 %v2916
    %v3130 = vunpack.c.h.b16 %v2916
    %v3131 = vpack.c.b16 %v3007, %v3003
    %v3132 = vpack.c.b16 %v3008, %v3004
    %v3133 = vpack.c.b16 %v3009, %v3005
    %v3134 = vpack.c.b16 %v3010, %v3006
    %v3135 = vpack.c.b16 %v3015, %v3011
    %v3136 = vpack.c.b16 %v3016, %v3012
    %v3137 = vpack.c.b16 %v3017, %v3013
    %v3138 = vpack.c.b16 %v3018, %v3014
    %v3139 = vpack.c.b16 %v3023, %v3019
    %v3140 = vpack.c.b16 %v3024, %v3020
    %v3141 = vpack.c.b16 %v3025, %v3021
    %v3142 = vpack.c.b16 %v3026, %v3022
    %v3143 = vpack.c.b16 %v3031, %v3027
    %v3144 = vpack.c.b16 %v3032, %v3028
    %v3145 = vpack.c.b16 %v3033, %v3029
    %v3146 = vpack.c.b16 %v3034, %v3030
    %v3147 = vpack.c.b16 %v3039, %v3035
    %v3148 = vpack.c.b16 %v3040, %v3036
    %v3149 = vpack.c.b16 %v3041, %v3037
    %v3150 = vpack.c.b16 %v3042, %v3038
    %v3151 = vpack.c.b16 %v3047, %v3043
    %v3152 = vpack.c.b16 %v3048, %v3044
    %v3153 = vpack.c.b16 %v3049, %v3045
    %v3154 = vpack.c.b16 %v3050, %v3046
    %v3155 = vpack.c.b16 %v3055, %v3051
    %v3156 = vpack.c.b16 %v3056, %v3052
    %v3157 = vpack.c.b16 %v3057, %v3053
    %v3158 = vpack.c.b16 %v3058, %v3054
    %v3159 = vpack.c.b16 %v3063, %v3059
    %v3160 = vpack.c.b16 %v3064, %v3060
    %v3161 = vpack.c.b16 %v3065, %v3061
    %v3162 = vpack.c.b16 %v3066, %v3062
    %v3163 = vpack.c.b16 %v3071, %v3067
    %v3164 = vpack.c.b16 %v3072, %v3068
    %v3165 = vpack.c.b16 %v3073, %v3069
    %v3166 = vpack.c.b16 %v3074, %v3070
    %v3167 = vpack.c.b16 %v3079, %v3075
    %v3168 = vpack.c.b16 %v3080, %v3076
    %v3169 = vpack.c.b16 %v3081, %v3077
    %v3170 = vpack.c.b16 %v3082, %v3078
    %v3171 = vpack.c.b16 %v3087, %v3083
    %v3172 = vpack.c.b16 %v3088, %v3084
    %v3173 = vpack.c.b16 %v3089, %v3085
    %v3174 = vpack.c.b16 %v3090, %v3086
    %v3175 = vpack.c.b16 %v3095, %v3091
    %v3176 = vpack.c.b16 %v3096, %v3092
    %v3177 = vpack.c.b16 %v3097, %v3093
    %v3178 = vpack.c.b16 %v3098, %v3094
    %v3179 = vpack.c.b16 %v3103, %v3099
    %v3180 = vpack.c.b16 %v3104, %v3100
    %v3181 = vpack.c.b16 %v3105, %v3101
    %v3182 = vpack.c.b16 %v3106, %v3102
    %v3183 = vpack.c.b16 %v3111, %v3107
    %v3184 = vpack.c.b16 %v3112, %v3108
    %v3185 = vpack.c.b16 %v3113, %v3109
    %v3186 = vpack.c.b16 %v3114, %v3110
    %v3187 = vpack.c.b16 %v3119, %v3115
    %v3188 = vpack.c.b16 %v3120, %v3116
    %v3189 = vpack.c.b16 %v3121, %v3117
    %v3190 = vpack.c.b16 %v3122, %v3118
    %v3191 = vpack.c.b16 %v3127, %v3123
    %v3192 = vpack.c.b16 %v3128, %v3124
    %v3193 = vpack.c.b16 %v3129, %v3125
    %v3194 = vpack.c.b16 %v3130, %v3126
    %3259 = vmatprep.subr.bf16.mxu0 %v3132
    %3260 = vmatpush1.bf16.msra.mxu0 %v3131
    %3261 = vmatprep.subr.bf16.mxu0 %v3136
    %3262 = vmatpush1.bf16.msra.mxu0 %v3135
    %3263 = vmatprep.subr.bf16.mxu0 %v3140
    %3264 = vmatpush1.bf16.msra.mxu0 %v3139
    %3265 = vmatprep.subr.bf16.mxu0 %v3144
    %3266 = vmatpush1.bf16.msra.mxu0 %v3143
    %3267 = vmatprep.subr.bf16.mxu0 %v3148
    %3268 = vmatpush1.bf16.msra.mxu0 %v3147
    %3269 = vmatprep.subr.bf16.mxu0 %v3152
    %3270 = vmatpush1.bf16.msra.mxu0 %v3151
    %3271 = vmatprep.subr.bf16.mxu0 %v3156
    %3272 = vmatpush1.bf16.msra.mxu0 %v3155
    %3273 = vmatprep.subr.bf16.mxu0 %v3160
    %3274 = vmatpush1.bf16.msra.mxu0 %v3159
    %3275 = vmatprep.subr.bf16.mxu0 %v3164
    %3276 = vmatpush1.bf16.msra.mxu0 %v3163
    %3277 = vmatprep.subr.bf16.mxu0 %v3168
    %3278 = vmatpush1.bf16.msra.mxu0 %v3167
    %3279 = vmatprep.subr.bf16.mxu0 %v3172
    %3280 = vmatpush1.bf16.msra.mxu0 %v3171
    %3281 = vmatprep.subr.bf16.mxu0 %v3176
    %3282 = vmatpush1.bf16.msra.mxu0 %v3175
    %3283 = vmatprep.subr.bf16.mxu0 %v3180
    %3284 = vmatpush1.bf16.msra.mxu0 %v3179
    %3285 = vmatprep.subr.bf16.mxu0 %v3184
    %3286 = vmatpush1.bf16.msra.mxu0 %v3183
    %3287 = vmatprep.subr.bf16.mxu0 %v3188
    %3288 = vmatpush1.bf16.msra.mxu0 %v3187
    %3289 = vmatprep.subr.bf16.mxu0 %v3192
    %3290 = vmatpush1.bf16.msra.mxu0 %v3191
    %3291 = vmatprep.mubr.bf16.mxu0 %v2852
    %3292 = vmatmul.mubr.bf16.gmra.mrb[0].mxu0 %v2851
    %v3293 = vpop.f32.mrb[0].mxu0
    %v3294 = vadd.f32 %v2922, %v3293
    %v3295 = vpop.f32.mrb[0].mxu0
    %v3296 = vadd.f32 %v2926, %v3295
    %v3297 = vpop.f32.mrb[0].mxu0
    %v3298 = vadd.f32 %v2922, %v3297
    %v3299 = vpop.f32.mrb[0].mxu0
    %v3300 = vadd.f32 %v2926, %v3299
    %3301 = vdwg.mxu0
    %3302 = vmatprep.subr.bf16.mxu0 %v3134
    %3303 = vmatpush1.bf16.msra.mxu0 %v3133
    %3304 = vmatprep.subr.bf16.mxu0 %v3138
    %3305 = vmatpush1.bf16.msra.mxu0 %v3137
    %3306 = vmatprep.subr.bf16.mxu0 %v3142
    %3307 = vmatpush1.bf16.msra.mxu0 %v3141
    %3308 = vmatprep.subr.bf16.mxu0 %v3146
    %3309 = vmatpush1.bf16.msra.mxu0 %v3145
    %3310 = vmatprep.subr.bf16.mxu0 %v3150
    %3311 = vmatpush1.bf16.msra.mxu0 %v3149
    %3312 = vmatprep.subr.bf16.mxu0 %v3154
    %3313 = vmatpush1.bf16.msra.mxu0 %v3153
    %3314 = vmatprep.subr.bf16.mxu0 %v3158
    %3315 = vmatpush1.bf16.msra.mxu0 %v3157
    %3316 = vmatprep.subr.bf16.mxu0 %v3162
    %3317 = vmatpush1.bf16.msra.mxu0 %v3161
    %3318 = vmatprep.subr.bf16.mxu0 %v3166
    %3319 = vmatpush1.bf16.msra.mxu0 %v3165
    %3320 = vmatprep.subr.bf16.mxu0 %v3170
    %3321 = vmatpush1.bf16.msra.mxu0 %v3169
    %3322 = vmatprep.subr.bf16.mxu0 %v3174
    %3323 = vmatpush1.bf16.msra.mxu0 %v3173
    %3324 = vmatprep.subr.bf16.mxu0 %v3178
    %3325 = vmatpush1.bf16.msra.mxu0 %v3177
    %3326 = vmatprep.subr.bf16.mxu0 %v3182
    %3327 = vmatpush1.bf16.msra.mxu0 %v3181
    %3328 = vmatprep.subr.bf16.mxu0 %v3186
    %3329 = vmatpush1.bf16.msra.mxu0 %v3185
    %3330 = vmatprep.subr.bf16.mxu0 %v3190
    %3331 = vmatpush1.bf16.msra.mxu0 %v3189
    %3332 = vmatprep.subr.bf16.mxu0 %v3194
    %3333 = vmatpush1.bf16.msra.mxu0 %v3193
    %3334 = vmatprep.mubr.bf16.mxu0 %v2852
    %3335 = vmatmul.mubr.bf16.gmra.mrb[0].mxu0 %v2851
    %v3336 = vpop.f32.mrb[0].mxu0
    %v3337 = vadd.f32 %v2930, %v3336
    %v3338 = vpop.f32.mrb[0].mxu0
    %v3339 = vadd.f32 %v2934, %v3338
    %v3340 = vpop.f32.mrb[0].mxu0
    %v3341 = vadd.f32 %v2930, %v3340
    %v3342 = vpop.f32.mrb[0].mxu0
    %v3343 = vadd.f32 %v2934, %v3342
    %3344 = vdwg.mxu0
    %v3345 = vmax.f32 %v3294, 0.0
    %v3346 = vmax.f32 %v3296, 0.0
    %v3347 = vmax.f32 %v3337, 0.0
    %v3348 = vmax.f32 %v3339, 0.0
    %v3349 = vmax.f32 %v3298, 0.0
    %v3350 = vmax.f32 %v3300, 0.0
    %v3351 = vmax.f32 %v3341, 0.0
    %v3352 = vmax.f32 %v3343, 0.0
    %v3353 = vpack.c.bf16 %v3349, %v3345
    %v3354 = vpack.c.bf16 %v3350, %v3346
    %v3355 = vpack.c.bf16 %v3351, %v3347
    %v3356 = vpack.c.bf16 %v3352, %v3348
    %v3357 = vld [vmem:[%s12] sm:$0xff]
    %v3358 = vld [vmem:[%s12 + $0x8] sm:$0xff]
    %v3359 = vld [vmem:[%s12 + $0x10] sm:$0xff]
    %v3360 = vld [vmem:[%s12 + $0x18] sm:$0xff]
    %v3361 = vld [vmem:[%s12 + $0x20] sm:$0xff]
    %v3362 = vld [vmem:[%s12 + $0x28] sm:$0xff]
    %v3363 = vld [vmem:[%s12 + $0x30] sm:$0xff]
    %v3364 = vld [vmem:[%s12 + $0x38] sm:$0xff]
    %v3365 = vld [vmem:[%s12 + $0x40] sm:$0xff]
    %v3366 = vld [vmem:[%s12 + $0x48] sm:$0xff]
    %v3367 = vld [vmem:[%s12 + $0x50] sm:$0xff]
    %v3368 = vld [vmem:[%s12 + $0x58] sm:$0xff]
    %v3369 = vld [vmem:[%s12 + $0x60] sm:$0xff]
    %v3370 = vld [vmem:[%s12 + $0x68] sm:$0xff]
    %v3371 = vld [vmem:[%s12 + $0x70] sm:$0xff]
    %v3372 = vld [vmem:[%s12 + $0x78] sm:$0xff]
    %v3373 = vld [vmem:[%s12 + $0x80] sm:$0xff]
    %v3374 = vld [vmem:[%s12 + $0x88] sm:$0xff]
    %v3375 = vld [vmem:[%s12 + $0x90] sm:$0xff]
    %v3376 = vld [vmem:[%s12 + $0x98] sm:$0xff]
    %v3377 = vld [vmem:[%s12 + $0xa0] sm:$0xff]
    %v3378 = vld [vmem:[%s12 + $0xa8] sm:$0xff]
    %v3379 = vld [vmem:[%s12 + $0xb0] sm:$0xff]
    %v3380 = vld [vmem:[%s12 + $0xb8] sm:$0xff]
    %v3381 = vld [vmem:[%s12 + $0xc0] sm:$0xff]
    %v3382 = vld [vmem:[%s12 + $0xc8] sm:$0xff]
    %v3383 = vld [vmem:[%s12 + $0xd0] sm:$0xff]
    %v3384 = vld [vmem:[%s12 + $0xd8] sm:$0xff]
    %v3385 = vld [vmem:[%s12 + $0xe0] sm:$0xff]
    %v3386 = vld [vmem:[%s12 + $0xe8] sm:$0xff]
    %v3387 = vld [vmem:[%s12 + $0xf0] sm:$0xff]
    %v3388 = vld [vmem:[%s12 + $0xf8] sm:$0xff]
    %v3389 = vld [vmem:[%s12 + $0x100] sm:$0xff]
    %v3390 = vld [vmem:[%s12 + $0x108] sm:$0xff]
    %v3391 = vld [vmem:[%s12 + $0x110] sm:$0xff]
    %v3392 = vld [vmem:[%s12 + $0x118] sm:$0xff]
    %v3393 = vld [vmem:[%s12 + $0x120] sm:$0xff]
    %v3394 = vld [vmem:[%s12 + $0x128] sm:$0xff]
    %v3395 = vld [vmem:[%s12 + $0x130] sm:$0xff]
    %v3396 = vld [vmem:[%s12 + $0x138] sm:$0xff]
    %v3397 = vld [vmem:[%s12 + $0x140] sm:$0xff]
    %v3398 = vld [vmem:[%s12 + $0x148] sm:$0xff]
    %v3399 = vld [vmem:[%s12 + $0x150] sm:$0xff]
    %v3400 = vld [vmem:[%s12 + $0x158] sm:$0xff]
    %v3401 = vld [vmem:[%s12 + $0x160] sm:$0xff]
    %v3402 = vld [vmem:[%s12 + $0x168] sm:$0xff]
    %v3403 = vld [vmem:[%s12 + $0x170] sm:$0xff]
    %v3404 = vld [vmem:[%s12 + $0x178] sm:$0xff]
    %v3405 = vld [vmem:[%s12 + $0x180] sm:$0xff]
    %v3406 = vld [vmem:[%s12 + $0x188] sm:$0xff]
    %v3407 = vld [vmem:[%s12 + $0x190] sm:$0xff]
    %v3408 = vld [vmem:[%s12 + $0x198] sm:$0xff]
    %v3409 = vld [vmem:[%s12 + $0x1a0] sm:$0xff]
    %v3410 = vld [vmem:[%s12 + $0x1a8] sm:$0xff]
    %v3411 = vld [vmem:[%s12 + $0x1b0] sm:$0xff]
    %v3412 = vld [vmem:[%s12 + $0x1b8] sm:$0xff]
    %v3413 = vld [vmem:[%s12 + $0x1c0] sm:$0xff]
    %v3414 = vld [vmem:[%s12 + $0x1c8] sm:$0xff]
    %v3415 = vld [vmem:[%s12 + $0x1d0] sm:$0xff]
    %v3416 = vld [vmem:[%s12 + $0x1d8] sm:$0xff]
    %v3417 = vld [vmem:[%s12 + $0x1e0] sm:$0xff]
    %v3418 = vld [vmem:[%s12 + $0x1e8] sm:$0xff]
    %v3419 = vld [vmem:[%s12 + $0x1f0] sm:$0xff]
    %v3420 = vld [vmem:[%s12 + $0x1f8] sm:$0xff]
    %v3421 = vld [vmem:[%s12 + $0x200] sm:$0xff]
    %v3422 = vld [vmem:[%s12 + $0x208] sm:$0xff]
    %v3423 = vld [vmem:[%s12 + $0x210] sm:$0xff]
    %v3424 = vld [vmem:[%s12 + $0x218] sm:$0xff]
    %v3425 = vld [vmem:[%s12 + $0x220] sm:$0xff]
    %v3426 = vld [vmem:[%s12 + $0x228] sm:$0xff]
    %v3427 = vld [vmem:[%s12 + $0x230] sm:$0xff]
    %v3428 = vld [vmem:[%s12 + $0x238] sm:$0xff]
    %v3429 = vld [vmem:[%s12 + $0x240] sm:$0xff]
    %v3430 = vld [vmem:[%s12 + $0x248] sm:$0xff]
    %v3431 = vld [vmem:[%s12 + $0x250] sm:$0xff]
    %v3432 = vld [vmem:[%s12 + $0x258] sm:$0xff]
    %v3433 = vld [vmem:[%s12 + $0x260] sm:$0xff]
    %v3434 = vld [vmem:[%s12 + $0x268] sm:$0xff]
    %v3435 = vld [vmem:[%s12 + $0x270] sm:$0xff]
    %v3436 = vld [vmem:[%s12 + $0x278] sm:$0xff]
    %v3437 = vld [vmem:[%s12 + $0x280] sm:$0xff]
    %v3438 = vld [vmem:[%s12 + $0x288] sm:$0xff]
    %v3439 = vld [vmem:[%s12 + $0x290] sm:$0xff]
    %v3440 = vld [vmem:[%s12 + $0x298] sm:$0xff]
    %v3441 = vld [vmem:[%s12 + $0x2a0] sm:$0xff]
    %v3442 = vld [vmem:[%s12 + $0x2a8] sm:$0xff]
    %v3443 = vld [vmem:[%s12 + $0x2b0] sm:$0xff]
    %v3444 = vld [vmem:[%s12 + $0x2b8] sm:$0xff]
    %v3445 = vld [vmem:[%s12 + $0x2c0] sm:$0xff]
    %v3446 = vld [vmem:[%s12 + $0x2c8] sm:$0xff]
    %v3447 = vld [vmem:[%s12 + $0x2d0] sm:$0xff]
    %v3448 = vld [vmem:[%s12 + $0x2d8] sm:$0xff]
    %v3449 = vld [vmem:[%s12 + $0x2e0] sm:$0xff]
    %v3450 = vld [vmem:[%s12 + $0x2e8] sm:$0xff]
    %v3451 = vld [vmem:[%s12 + $0x2f0] sm:$0xff]
    %v3452 = vld [vmem:[%s12 + $0x2f8] sm:$0xff]
    %v3453 = vld [vmem:[%s12 + $0x300] sm:$0xff]
    %v3454 = vld [vmem:[%s12 + $0x308] sm:$0xff]
    %v3455 = vld [vmem:[%s12 + $0x310] sm:$0xff]
    %v3456 = vld [vmem:[%s12 + $0x318] sm:$0xff]
    %v3457 = vld [vmem:[%s12 + $0x320] sm:$0xff]
    %v3458 = vld [vmem:[%s12 + $0x328] sm:$0xff]
    %v3459 = vld [vmem:[%s12 + $0x330] sm:$0xff]
    %v3460 = vld [vmem:[%s12 + $0x338] sm:$0xff]
    %v3461 = vld [vmem:[%s12 + $0x340] sm:$0xff]
    %v3462 = vld [vmem:[%s12 + $0x348] sm:$0xff]
    %v3463 = vld [vmem:[%s12 + $0x350] sm:$0xff]
    %v3464 = vld [vmem:[%s12 + $0x358] sm:$0xff]
    %v3465 = vld [vmem:[%s12 + $0x360] sm:$0xff]
    %v3466 = vld [vmem:[%s12 + $0x368] sm:$0xff]
    %v3467 = vld [vmem:[%s12 + $0x370] sm:$0xff]
    %v3468 = vld [vmem:[%s12 + $0x378] sm:$0xff]
    %v3469 = vld [vmem:[%s12 + $0x380] sm:$0xff]
    %v3470 = vld [vmem:[%s12 + $0x388] sm:$0xff]
    %v3471 = vld [vmem:[%s12 + $0x390] sm:$0xff]
    %v3472 = vld [vmem:[%s12 + $0x398] sm:$0xff]
    %v3473 = vld [vmem:[%s12 + $0x3a0] sm:$0xff]
    %v3474 = vld [vmem:[%s12 + $0x3a8] sm:$0xff]
    %v3475 = vld [vmem:[%s12 + $0x3b0] sm:$0xff]
    %v3476 = vld [vmem:[%s12 + $0x3b8] sm:$0xff]
    %v3477 = vld [vmem:[%s12 + $0x3c0] sm:$0xff]
    %v3478 = vld [vmem:[%s12 + $0x3c8] sm:$0xff]
    %v3479 = vld [vmem:[%s12 + $0x3d0] sm:$0xff]
    %v3480 = vld [vmem:[%s12 + $0x3d8] sm:$0xff]
    %v3481 = vld [vmem:[%s12 + $0x3e0] sm:$0xff]
    %v3482 = vld [vmem:[%s12 + $0x3e8] sm:$0xff]
    %v3483 = vld [vmem:[%s12 + $0x3f0] sm:$0xff]
    %v3484 = vld [vmem:[%s12 + $0x3f8] sm:$0xff]
    %v3485 = vld [vmem:[%s12 + $0x400] sm:$0xff]
    %v3486 = vld [vmem:[%s12 + $0x408] sm:$0xff]
    %v3487 = vld [vmem:[%s12 + $0x410] sm:$0xff]
    %v3488 = vld [vmem:[%s12 + $0x418] sm:$0xff]
    %v3489 = vld [vmem:[%s12 + $0x420] sm:$0xff]
    %v3490 = vld [vmem:[%s12 + $0x428] sm:$0xff]
    %v3491 = vld [vmem:[%s12 + $0x430] sm:$0xff]
    %v3492 = vld [vmem:[%s12 + $0x438] sm:$0xff]
    %v3493 = vld [vmem:[%s12 + $0x440] sm:$0xff]
    %v3494 = vld [vmem:[%s12 + $0x448] sm:$0xff]
    %v3495 = vld [vmem:[%s12 + $0x450] sm:$0xff]
    %v3496 = vld [vmem:[%s12 + $0x458] sm:$0xff]
    %v3497 = vld [vmem:[%s12 + $0x460] sm:$0xff]
    %v3498 = vld [vmem:[%s12 + $0x468] sm:$0xff]
    %v3499 = vld [vmem:[%s12 + $0x470] sm:$0xff]
    %v3500 = vld [vmem:[%s12 + $0x478] sm:$0xff]
    %v3501 = vld [vmem:[%s12 + $0x480] sm:$0xff]
    %v3502 = vld [vmem:[%s12 + $0x488] sm:$0xff]
    %v3503 = vld [vmem:[%s12 + $0x490] sm:$0xff]
    %v3504 = vld [vmem:[%s12 + $0x498] sm:$0xff]
    %v3505 = vld [vmem:[%s12 + $0x4a0] sm:$0xff]
    %v3506 = vld [vmem:[%s12 + $0x4a8] sm:$0xff]
    %v3507 = vld [vmem:[%s12 + $0x4b0] sm:$0xff]
    %v3508 = vld [vmem:[%s12 + $0x4b8] sm:$0xff]
    %v3509 = vld [vmem:[%s12 + $0x4c0] sm:$0xff]
    %v3510 = vld [vmem:[%s12 + $0x4c8] sm:$0xff]
    %v3511 = vld [vmem:[%s12 + $0x4d0] sm:$0xff]
    %v3512 = vld [vmem:[%s12 + $0x4d8] sm:$0xff]
    %v3513 = vld [vmem:[%s12 + $0x4e0] sm:$0xff]
    %v3514 = vld [vmem:[%s12 + $0x4e8] sm:$0xff]
    %v3515 = vld [vmem:[%s12 + $0x4f0] sm:$0xff]
    %v3516 = vld [vmem:[%s12 + $0x4f8] sm:$0xff]
    %v3517 = vld [vmem:[%s12 + $0x500] sm:$0xff]
    %v3518 = vld [vmem:[%s12 + $0x508] sm:$0xff]
    %v3519 = vld [vmem:[%s12 + $0x510] sm:$0xff]
    %v3520 = vld [vmem:[%s12 + $0x518] sm:$0xff]
    %v3521 = vld [vmem:[%s12 + $0x520] sm:$0xff]
    %v3522 = vld [vmem:[%s12 + $0x528] sm:$0xff]
    %v3523 = vld [vmem:[%s12 + $0x530] sm:$0xff]
    %v3524 = vld [vmem:[%s12 + $0x538] sm:$0xff]
    %v3525 = vld [vmem:[%s12 + $0x540] sm:$0xff]
    %v3526 = vld [vmem:[%s12 + $0x548] sm:$0xff]
    %v3527 = vld [vmem:[%s12 + $0x550] sm:$0xff]
    %v3528 = vld [vmem:[%s12 + $0x558] sm:$0xff]
    %v3529 = vld [vmem:[%s12 + $0x560] sm:$0xff]
    %v3530 = vld [vmem:[%s12 + $0x568] sm:$0xff]
    %v3531 = vld [vmem:[%s12 + $0x570] sm:$0xff]
    %v3532 = vld [vmem:[%s12 + $0x578] sm:$0xff]
    %v3533 = vld [vmem:[%s12 + $0x580] sm:$0xff]
    %v3534 = vld [vmem:[%s12 + $0x588] sm:$0xff]
    %v3535 = vld [vmem:[%s12 + $0x590] sm:$0xff]
    %v3536 = vld [vmem:[%s12 + $0x598] sm:$0xff]
    %v3537 = vld [vmem:[%s12 + $0x5a0] sm:$0xff]
    %v3538 = vld [vmem:[%s12 + $0x5a8] sm:$0xff]
    %v3539 = vld [vmem:[%s12 + $0x5b0] sm:$0xff]
    %v3540 = vld [vmem:[%s12 + $0x5b8] sm:$0xff]
    %v3541 = vld [vmem:[%s12 + $0x5c0] sm:$0xff]
    %v3542 = vld [vmem:[%s12 + $0x5c8] sm:$0xff]
    %v3543 = vld [vmem:[%s12 + $0x5d0] sm:$0xff]
    %v3544 = vld [vmem:[%s12 + $0x5d8] sm:$0xff]
    %v3545 = vld [vmem:[%s12 + $0x5e0] sm:$0xff]
    %v3546 = vld [vmem:[%s12 + $0x5e8] sm:$0xff]
    %v3547 = vld [vmem:[%s12 + $0x5f0] sm:$0xff]
    %v3548 = vld [vmem:[%s12 + $0x5f8] sm:$0xff]
    %v3549 = vld [vmem:[%s12 + $0x600] sm:$0xff]
    %v3550 = vld [vmem:[%s12 + $0x608] sm:$0xff]
    %v3551 = vld [vmem:[%s12 + $0x610] sm:$0xff]
    %v3552 = vld [vmem:[%s12 + $0x618] sm:$0xff]
    %v3553 = vld [vmem:[%s12 + $0x620] sm:$0xff]
    %v3554 = vld [vmem:[%s12 + $0x628] sm:$0xff]
    %v3555 = vld [vmem:[%s12 + $0x630] sm:$0xff]
    %v3556 = vld [vmem:[%s12 + $0x638] sm:$0xff]
    %v3557 = vld [vmem:[%s12 + $0x640] sm:$0xff]
    %v3558 = vld [vmem:[%s12 + $0x648] sm:$0xff]
    %v3559 = vld [vmem:[%s12 + $0x650] sm:$0xff]
    %v3560 = vld [vmem:[%s12 + $0x658] sm:$0xff]
    %v3561 = vld [vmem:[%s12 + $0x660] sm:$0xff]
    %v3562 = vld [vmem:[%s12 + $0x668] sm:$0xff]
    %v3563 = vld [vmem:[%s12 + $0x670] sm:$0xff]
    %v3564 = vld [vmem:[%s12 + $0x678] sm:$0xff]
    %v3565 = vld [vmem:[%s12 + $0x680] sm:$0xff]
    %v3566 = vld [vmem:[%s12 + $0x688] sm:$0xff]
    %v3567 = vld [vmem:[%s12 + $0x690] sm:$0xff]
    %v3568 = vld [vmem:[%s12 + $0x698] sm:$0xff]
    %v3569 = vld [vmem:[%s12 + $0x6a0] sm:$0xff]
    %v3570 = vld [vmem:[%s12 + $0x6a8] sm:$0xff]
    %v3571 = vld [vmem:[%s12 + $0x6b0] sm:$0xff]
    %v3572 = vld [vmem:[%s12 + $0x6b8] sm:$0xff]
    %v3573 = vld [vmem:[%s12 + $0x6c0] sm:$0xff]
    %v3574 = vld [vmem:[%s12 + $0x6c8] sm:$0xff]
    %v3575 = vld [vmem:[%s12 + $0x6d0] sm:$0xff]
    %v3576 = vld [vmem:[%s12 + $0x6d8] sm:$0xff]
    %v3577 = vld [vmem:[%s12 + $0x6e0] sm:$0xff]
    %v3578 = vld [vmem:[%s12 + $0x6e8] sm:$0xff]
    %v3579 = vld [vmem:[%s12 + $0x6f0] sm:$0xff]
    %v3580 = vld [vmem:[%s12 + $0x6f8] sm:$0xff]
    %v3581 = vld [vmem:[%s12 + $0x700] sm:$0xff]
    %v3582 = vld [vmem:[%s12 + $0x708] sm:$0xff]
    %v3583 = vld [vmem:[%s12 + $0x710] sm:$0xff]
    %v3584 = vld [vmem:[%s12 + $0x718] sm:$0xff]
    %v3585 = vld [vmem:[%s12 + $0x720] sm:$0xff]
    %v3586 = vld [vmem:[%s12 + $0x728] sm:$0xff]
    %v3587 = vld [vmem:[%s12 + $0x730] sm:$0xff]
    %v3588 = vld [vmem:[%s12 + $0x738] sm:$0xff]
    %v3589 = vld [vmem:[%s12 + $0x740] sm:$0xff]
    %v3590 = vld [vmem:[%s12 + $0x748] sm:$0xff]
    %v3591 = vld [vmem:[%s12 + $0x750] sm:$0xff]
    %v3592 = vld [vmem:[%s12 + $0x758] sm:$0xff]
    %v3593 = vld [vmem:[%s12 + $0x760] sm:$0xff]
    %v3594 = vld [vmem:[%s12 + $0x768] sm:$0xff]
    %v3595 = vld [vmem:[%s12 + $0x770] sm:$0xff]
    %v3596 = vld [vmem:[%s12 + $0x778] sm:$0xff]
    %v3597 = vld [vmem:[%s12 + $0x780] sm:$0xff]
    %v3598 = vld [vmem:[%s12 + $0x788] sm:$0xff]
    %v3599 = vld [vmem:[%s12 + $0x790] sm:$0xff]
    %v3600 = vld [vmem:[%s12 + $0x798] sm:$0xff]
    %v3601 = vld [vmem:[%s12 + $0x7a0] sm:$0xff]
    %v3602 = vld [vmem:[%s12 + $0x7a8] sm:$0xff]
    %v3603 = vld [vmem:[%s12 + $0x7b0] sm:$0xff]
    %v3604 = vld [vmem:[%s12 + $0x7b8] sm:$0xff]
    %v3605 = vld [vmem:[%s12 + $0x7c0] sm:$0xff]
    %v3606 = vld [vmem:[%s12 + $0x7c8] sm:$0xff]
    %v3607 = vld [vmem:[%s12 + $0x7d0] sm:$0xff]
    %v3608 = vld [vmem:[%s12 + $0x7d8] sm:$0xff]
    %v3609 = vld [vmem:[%s12 + $0x7e0] sm:$0xff]
    %v3610 = vld [vmem:[%s12 + $0x7e8] sm:$0xff]
    %v3611 = vld [vmem:[%s12 + $0x7f0] sm:$0xff]
    %v3612 = vld [vmem:[%s12 + $0x7f8] sm:$0xff]
    %v3613 = vld [vmem:[%s13] sm:$0xff]
    %v3615 = vlaneseq
    %v3616 = vshrl.u32 %v3615, 7
    %v3617 = vsub.s32 0, %v3616
    %v3618 = vrot.slane %v3613, %v3617
    %v3619 = vlaneseq
    %v3620 = vshrl.u32 %v3619, 7
    %v3621 = vsub.s32 1, %v3620
    %v3622 = vrot.slane %v3613, %v3621
    %v3623 = vlaneseq
    %v3624 = vshrl.u32 %v3623, 7
    %v3625 = vsub.s32 2, %v3624
    %v3626 = vrot.slane %v3613, %v3625
    %v3627 = vlaneseq
    %v3628 = vshrl.u32 %v3627, 7
    %v3629 = vsub.s32 3, %v3628
    %v3630 = vrot.slane %v3613, %v3629
    %v3631 = vlaneseq
    %v3632 = vshrl.u32 %v3631, 7
    %v3633 = vsub.s32 4, %v3632
    %v3634 = vrot.slane %v3613, %v3633
    %v3635 = vlaneseq
    %v3636 = vshrl.u32 %v3635, 7
    %v3637 = vsub.s32 5, %v3636
    %v3638 = vrot.slane %v3613, %v3637
    %v3639 = vlaneseq
    %v3640 = vshrl.u32 %v3639, 7
    %v3641 = vsub.s32 6, %v3640
    %v3642 = vrot.slane %v3613, %v3641
    %v3643 = vlaneseq
    %v3644 = vshrl.u32 %v3643, 7
    %v3645 = vsub.s32 7, %v3644
    %v3646 = vrot.slane %v3613, %v3645
    %v3911 = vunpack.c.l.b16 %v3357
    %v3912 = vunpack.c.h.b16 %v3357
    %v3913 = vunpack.c.l.b16 %v3358
    %v3914 = vunpack.c.h.b16 %v3358
    %v3915 = vunpack.c.l.b16 %v3359
    %v3916 = vunpack.c.h.b16 %v3359
    %v3917 = vunpack.c.l.b16 %v3360
    %v3918 = vunpack.c.h.b16 %v3360
    %v3919 = vunpack.c.l.b16 %v3361
    %v3920 = vunpack.c.h.b16 %v3361
    %v3921 = vunpack.c.l.b16 %v3362
    %v3922 = vunpack.c.h.b16 %v3362
    %v3923 = vunpack.c.l.b16 %v3363
    %v3924 = vunpack.c.h.b16 %v3363
    %v3925 = vunpack.c.l.b16 %v3364
    %v3926 = vunpack.c.h.b16 %v3364
    %v3927 = vunpack.c.l.b16 %v3365
    %v3928 = vunpack.c.h.b16 %v3365
    %v3929 = vunpack.c.l.b16 %v3366
    %v3930 = vunpack.c.h.b16 %v3366
    %v3931 = vunpack.c.l.b16 %v3367
    %v3932 = vunpack.c.h.b16 %v3367
    %v3933 = vunpack.c.l.b16 %v3368
    %v3934 = vunpack.c.h.b16 %v3368
    %v3935 = vunpack.c.l.b16 %v3369
    %v3936 = vunpack.c.h.b16 %v3369
    %v3937 = vunpack.c.l.b16 %v3370
    %v3938 = vunpack.c.h.b16 %v3370
    %v3939 = vunpack.c.l.b16 %v3371
    %v3940 = vunpack.c.h.b16 %v3371
    %v3941 = vunpack.c.l.b16 %v3372
    %v3942 = vunpack.c.h.b16 %v3372
    %v3943 = vunpack.c.l.b16 %v3373
    %v3944 = vunpack.c.h.b16 %v3373
    %v3945 = vunpack.c.l.b16 %v3374
    %v3946 = vunpack.c.h.b16 %v3374
    %v3947 = vunpack.c.l.b16 %v3375
    %v3948 = vunpack.c.h.b16 %v3375
    %v3949 = vunpack.c.l.b16 %v3376
    %v3950 = vunpack.c.h.b16 %v3376
    %v3951 = vunpack.c.l.b16 %v3377
    %v3952 = vunpack.c.h.b16 %v3377
    %v3953 = vunpack.c.l.b16 %v3378
    %v3954 = vunpack.c.h.b16 %v3378
    %v3955 = vunpack.c.l.b16 %v3379
    %v3956 = vunpack.c.h.b16 %v3379
    %v3957 = vunpack.c.l.b16 %v3380
    %v3958 = vunpack.c.h.b16 %v3380
    %v3959 = vunpack.c.l.b16 %v3381
    %v3960 = vunpack.c.h.b16 %v3381
    %v3961 = vunpack.c.l.b16 %v3382
    %v3962 = vunpack.c.h.b16 %v3382
    %v3963 = vunpack.c.l.b16 %v3383
    %v3964 = vunpack.c.h.b16 %v3383
    %v3965 = vunpack.c.l.b16 %v3384
    %v3966 = vunpack.c.h.b16 %v3384
    %v3967 = vunpack.c.l.b16 %v3385
    %v3968 = vunpack.c.h.b16 %v3385
    %v3969 = vunpack.c.l.b16 %v3386
    %v3970 = vunpack.c.h.b16 %v3386
    %v3971 = vunpack.c.l.b16 %v3387
    %v3972 = vunpack.c.h.b16 %v3387
    %v3973 = vunpack.c.l.b16 %v3388
    %v3974 = vunpack.c.h.b16 %v3388
    %v3975 = vunpack.c.l.b16 %v3389
    %v3976 = vunpack.c.h.b16 %v3389
    %v3977 = vunpack.c.l.b16 %v3390
    %v3978 = vunpack.c.h.b16 %v3390
    %v3979 = vunpack.c.l.b16 %v3391
    %v3980 = vunpack.c.h.b16 %v3391
    %v3981 = vunpack.c.l.b16 %v3392
    %v3982 = vunpack.c.h.b16 %v3392
    %v3983 = vunpack.c.l.b16 %v3393
    %v3984 = vunpack.c.h.b16 %v3393
    %v3985 = vunpack.c.l.b16 %v3394
    %v3986 = vunpack.c.h.b16 %v3394
    %v3987 = vunpack.c.l.b16 %v3395
    %v3988 = vunpack.c.h.b16 %v3395
    %v3989 = vunpack.c.l.b16 %v3396
    %v3990 = vunpack.c.h.b16 %v3396
    %v3991 = vunpack.c.l.b16 %v3397
    %v3992 = vunpack.c.h.b16 %v3397
    %v3993 = vunpack.c.l.b16 %v3398
    %v3994 = vunpack.c.h.b16 %v3398
    %v3995 = vunpack.c.l.b16 %v3399
    %v3996 = vunpack.c.h.b16 %v3399
    %v3997 = vunpack.c.l.b16 %v3400
    %v3998 = vunpack.c.h.b16 %v3400
    %v3999 = vunpack.c.l.b16 %v3401
    %v4000 = vunpack.c.h.b16 %v3401
    %v4001 = vunpack.c.l.b16 %v3402
    %v4002 = vunpack.c.h.b16 %v3402
    %v4003 = vunpack.c.l.b16 %v3403
    %v4004 = vunpack.c.h.b16 %v3403
    %v4005 = vunpack.c.l.b16 %v3404
    %v4006 = vunpack.c.h.b16 %v3404
    %v4007 = vunpack.c.l.b16 %v3405
    %v4008 = vunpack.c.h.b16 %v3405
    %v4009 = vunpack.c.l.b16 %v3406
    %v4010 = vunpack.c.h.b16 %v3406
    %v4011 = vunpack.c.l.b16 %v3407
    %v4012 = vunpack.c.h.b16 %v3407
    %v4013 = vunpack.c.l.b16 %v3408
    %v4014 = vunpack.c.h.b16 %v3408
    %v4015 = vunpack.c.l.b16 %v3409
    %v4016 = vunpack.c.h.b16 %v3409
    %v4017 = vunpack.c.l.b16 %v3410
    %v4018 = vunpack.c.h.b16 %v3410
    %v4019 = vunpack.c.l.b16 %v3411
    %v4020 = vunpack.c.h.b16 %v3411
    %v4021 = vunpack.c.l.b16 %v3412
    %v4022 = vunpack.c.h.b16 %v3412
    %v4023 = vunpack.c.l.b16 %v3413
    %v4024 = vunpack.c.h.b16 %v3413
    %v4025 = vunpack.c.l.b16 %v3414
    %v4026 = vunpack.c.h.b16 %v3414
    %v4027 = vunpack.c.l.b16 %v3415
    %v4028 = vunpack.c.h.b16 %v3415
    %v4029 = vunpack.c.l.b16 %v3416
    %v4030 = vunpack.c.h.b16 %v3416
    %v4031 = vunpack.c.l.b16 %v3417
    %v4032 = vunpack.c.h.b16 %v3417
    %v4033 = vunpack.c.l.b16 %v3418
    %v4034 = vunpack.c.h.b16 %v3418
    %v4035 = vunpack.c.l.b16 %v3419
    %v4036 = vunpack.c.h.b16 %v3419
    %v4037 = vunpack.c.l.b16 %v3420
    %v4038 = vunpack.c.h.b16 %v3420
    %v4039 = vunpack.c.l.b16 %v3421
    %v4040 = vunpack.c.h.b16 %v3421
    %v4041 = vunpack.c.l.b16 %v3422
    %v4042 = vunpack.c.h.b16 %v3422
    %v4043 = vunpack.c.l.b16 %v3423
    %v4044 = vunpack.c.h.b16 %v3423
    %v4045 = vunpack.c.l.b16 %v3424
    %v4046 = vunpack.c.h.b16 %v3424
    %v4047 = vunpack.c.l.b16 %v3425
    %v4048 = vunpack.c.h.b16 %v3425
    %v4049 = vunpack.c.l.b16 %v3426
    %v4050 = vunpack.c.h.b16 %v3426
    %v4051 = vunpack.c.l.b16 %v3427
    %v4052 = vunpack.c.h.b16 %v3427
    %v4053 = vunpack.c.l.b16 %v3428
    %v4054 = vunpack.c.h.b16 %v3428
    %v4055 = vunpack.c.l.b16 %v3429
    %v4056 = vunpack.c.h.b16 %v3429
    %v4057 = vunpack.c.l.b16 %v3430
    %v4058 = vunpack.c.h.b16 %v3430
    %v4059 = vunpack.c.l.b16 %v3431
    %v4060 = vunpack.c.h.b16 %v3431
    %v4061 = vunpack.c.l.b16 %v3432
    %v4062 = vunpack.c.h.b16 %v3432
    %v4063 = vunpack.c.l.b16 %v3433
    %v4064 = vunpack.c.h.b16 %v3433
    %v4065 = vunpack.c.l.b16 %v3434
    %v4066 = vunpack.c.h.b16 %v3434
    %v4067 = vunpack.c.l.b16 %v3435
    %v4068 = vunpack.c.h.b16 %v3435
    %v4069 = vunpack.c.l.b16 %v3436
    %v4070 = vunpack.c.h.b16 %v3436
    %v4071 = vunpack.c.l.b16 %v3437
    %v4072 = vunpack.c.h.b16 %v3437
    %v4073 = vunpack.c.l.b16 %v3438
    %v4074 = vunpack.c.h.b16 %v3438
    %v4075 = vunpack.c.l.b16 %v3439
    %v4076 = vunpack.c.h.b16 %v3439
    %v4077 = vunpack.c.l.b16 %v3440
    %v4078 = vunpack.c.h.b16 %v3440
    %v4079 = vunpack.c.l.b16 %v3441
    %v4080 = vunpack.c.h.b16 %v3441
    %v4081 = vunpack.c.l.b16 %v3442
    %v4082 = vunpack.c.h.b16 %v3442
    %v4083 = vunpack.c.l.b16 %v3443
    %v4084 = vunpack.c.h.b16 %v3443
    %v4085 = vunpack.c.l.b16 %v3444
    %v4086 = vunpack.c.h.b16 %v3444
    %v4087 = vunpack.c.l.b16 %v3445
    %v4088 = vunpack.c.h.b16 %v3445
    %v4089 = vunpack.c.l.b16 %v3446
    %v4090 = vunpack.c.h.b16 %v3446
    %v4091 = vunpack.c.l.b16 %v3447
    %v4092 = vunpack.c.h.b16 %v3447
    %v4093 = vunpack.c.l.b16 %v3448
    %v4094 = vunpack.c.h.b16 %v3448
    %v4095 = vunpack.c.l.b16 %v3449
    %v4096 = vunpack.c.h.b16 %v3449
    %v4097 = vunpack.c.l.b16 %v3450
    %v4098 = vunpack.c.h.b16 %v3450
    %v4099 = vunpack.c.l.b16 %v3451
    %v4100 = vunpack.c.h.b16 %v3451
    %v4101 = vunpack.c.l.b16 %v3452
    %v4102 = vunpack.c.h.b16 %v3452
    %v4103 = vunpack.c.l.b16 %v3453
    %v4104 = vunpack.c.h.b16 %v3453
    %v4105 = vunpack.c.l.b16 %v3454
    %v4106 = vunpack.c.h.b16 %v3454
    %v4107 = vunpack.c.l.b16 %v3455
    %v4108 = vunpack.c.h.b16 %v3455
    %v4109 = vunpack.c.l.b16 %v3456
    %v4110 = vunpack.c.h.b16 %v3456
    %v4111 = vunpack.c.l.b16 %v3457
    %v4112 = vunpack.c.h.b16 %v3457
    %v4113 = vunpack.c.l.b16 %v3458
    %v4114 = vunpack.c.h.b16 %v3458
    %v4115 = vunpack.c.l.b16 %v3459
    %v4116 = vunpack.c.h.b16 %v3459
    %v4117 = vunpack.c.l.b16 %v3460
    %v4118 = vunpack.c.h.b16 %v3460
    %v4119 = vunpack.c.l.b16 %v3461
    %v4120 = vunpack.c.h.b16 %v3461
    %v4121 = vunpack.c.l.b16 %v3462
    %v4122 = vunpack.c.h.b16 %v3462
    %v4123 = vunpack.c.l.b16 %v3463
    %v4124 = vunpack.c.h.b16 %v3463
    %v4125 = vunpack.c.l.b16 %v3464
    %v4126 = vunpack.c.h.b16 %v3464
    %v4127 = vunpack.c.l.b16 %v3465
    %v4128 = vunpack.c.h.b16 %v3465
    %v4129 = vunpack.c.l.b16 %v3466
    %v4130 = vunpack.c.h.b16 %v3466
    %v4131 = vunpack.c.l.b16 %v3467
    %v4132 = vunpack.c.h.b16 %v3467
    %v4133 = vunpack.c.l.b16 %v3468
    %v4134 = vunpack.c.h.b16 %v3468
    %v4135 = vunpack.c.l.b16 %v3469
    %v4136 = vunpack.c.h.b16 %v3469
    %v4137 = vunpack.c.l.b16 %v3470
    %v4138 = vunpack.c.h.b16 %v3470
    %v4139 = vunpack.c.l.b16 %v3471
    %v4140 = vunpack.c.h.b16 %v3471
    %v4141 = vunpack.c.l.b16 %v3472
    %v4142 = vunpack.c.h.b16 %v3472
    %v4143 = vunpack.c.l.b16 %v3473
    %v4144 = vunpack.c.h.b16 %v3473
    %v4145 = vunpack.c.l.b16 %v3474
    %v4146 = vunpack.c.h.b16 %v3474
    %v4147 = vunpack.c.l.b16 %v3475
    %v4148 = vunpack.c.h.b16 %v3475
    %v4149 = vunpack.c.l.b16 %v3476
    %v4150 = vunpack.c.h.b16 %v3476
    %v4151 = vunpack.c.l.b16 %v3477
    %v4152 = vunpack.c.h.b16 %v3477
    %v4153 = vunpack.c.l.b16 %v3478
    %v4154 = vunpack.c.h.b16 %v3478
    %v4155 = vunpack.c.l.b16 %v3479
    %v4156 = vunpack.c.h.b16 %v3479
    %v4157 = vunpack.c.l.b16 %v3480
    %v4158 = vunpack.c.h.b16 %v3480
    %v4159 = vunpack.c.l.b16 %v3481
    %v4160 = vunpack.c.h.b16 %v3481
    %v4161 = vunpack.c.l.b16 %v3482
    %v4162 = vunpack.c.h.b16 %v3482
    %v4163 = vunpack.c.l.b16 %v3483
    %v4164 = vunpack.c.h.b16 %v3483
    %v4165 = vunpack.c.l.b16 %v3484
    %v4166 = vunpack.c.h.b16 %v3484
    %v4167 = vunpack.c.l.b16 %v3485
    %v4168 = vunpack.c.h.b16 %v3485
    %v4169 = vunpack.c.l.b16 %v3486
    %v4170 = vunpack.c.h.b16 %v3486
    %v4171 = vunpack.c.l.b16 %v3487
    %v4172 = vunpack.c.h.b16 %v3487
    %v4173 = vunpack.c.l.b16 %v3488
    %v4174 = vunpack.c.h.b16 %v3488
    %v4175 = vunpack.c.l.b16 %v3489
    %v4176 = vunpack.c.h.b16 %v3489
    %v4177 = vunpack.c.l.b16 %v3490
    %v4178 = vunpack.c.h.b16 %v3490
    %v4179 = vunpack.c.l.b16 %v3491
    %v4180 = vunpack.c.h.b16 %v3491
    %v4181 = vunpack.c.l.b16 %v3492
    %v4182 = vunpack.c.h.b16 %v3492
    %v4183 = vunpack.c.l.b16 %v3493
    %v4184 = vunpack.c.h.b16 %v3493
    %v4185 = vunpack.c.l.b16 %v3494
    %v4186 = vunpack.c.h.b16 %v3494
    %v4187 = vunpack.c.l.b16 %v3495
    %v4188 = vunpack.c.h.b16 %v3495
    %v4189 = vunpack.c.l.b16 %v3496
    %v4190 = vunpack.c.h.b16 %v3496
    %v4191 = vunpack.c.l.b16 %v3497
    %v4192 = vunpack.c.h.b16 %v3497
    %v4193 = vunpack.c.l.b16 %v3498
    %v4194 = vunpack.c.h.b16 %v3498
    %v4195 = vunpack.c.l.b16 %v3499
    %v4196 = vunpack.c.h.b16 %v3499
    %v4197 = vunpack.c.l.b16 %v3500
    %v4198 = vunpack.c.h.b16 %v3500
    %v4199 = vunpack.c.l.b16 %v3501
    %v4200 = vunpack.c.h.b16 %v3501
    %v4201 = vunpack.c.l.b16 %v3502
    %v4202 = vunpack.c.h.b16 %v3502
    %v4203 = vunpack.c.l.b16 %v3503
    %v4204 = vunpack.c.h.b16 %v3503
    %v4205 = vunpack.c.l.b16 %v3504
    %v4206 = vunpack.c.h.b16 %v3504
    %v4207 = vunpack.c.l.b16 %v3505
    %v4208 = vunpack.c.h.b16 %v3505
    %v4209 = vunpack.c.l.b16 %v3506
    %v4210 = vunpack.c.h.b16 %v3506
    %v4211 = vunpack.c.l.b16 %v3507
    %v4212 = vunpack.c.h.b16 %v3507
    %v4213 = vunpack.c.l.b16 %v3508
    %v4214 = vunpack.c.h.b16 %v3508
    %v4215 = vunpack.c.l.b16 %v3509
    %v4216 = vunpack.c.h.b16 %v3509
    %v4217 = vunpack.c.l.b16 %v3510
    %v4218 = vunpack.c.h.b16 %v3510
    %v4219 = vunpack.c.l.b16 %v3511
    %v4220 = vunpack.c.h.b16 %v3511
    %v4221 = vunpack.c.l.b16 %v3512
    %v4222 = vunpack.c.h.b16 %v3512
    %v4223 = vunpack.c.l.b16 %v3513
    %v4224 = vunpack.c.h.b16 %v3513
    %v4225 = vunpack.c.l.b16 %v3514
    %v4226 = vunpack.c.h.b16 %v3514
    %v4227 = vunpack.c.l.b16 %v3515
    %v4228 = vunpack.c.h.b16 %v3515
    %v4229 = vunpack.c.l.b16 %v3516
    %v4230 = vunpack.c.h.b16 %v3516
    %v4231 = vunpack.c.l.b16 %v3517
    %v4232 = vunpack.c.h.b16 %v3517
    %v4233 = vunpack.c.l.b16 %v3518
    %v4234 = vunpack.c.h.b16 %v3518
    %v4235 = vunpack.c.l.b16 %v3519
    %v4236 = vunpack.c.h.b16 %v3519
    %v4237 = vunpack.c.l.b16 %v3520
    %v4238 = vunpack.c.h.b16 %v3520
    %v4239 = vunpack.c.l.b16 %v3521
    %v4240 = vunpack.c.h.b16 %v3521
    %v4241 = vunpack.c.l.b16 %v3522
    %v4242 = vunpack.c.h.b16 %v3522
    %v4243 = vunpack.c.l.b16 %v3523
    %v4244 = vunpack.c.h.b16 %v3523
    %v4245 = vunpack.c.l.b16 %v3524
    %v4246 = vunpack.c.h.b16 %v3524
    %v4247 = vunpack.c.l.b16 %v3525
    %v4248 = vunpack.c.h.b16 %v3525
    %v4249 = vunpack.c.l.b16 %v3526
    %v4250 = vunpack.c.h.b16 %v3526
    %v4251 = vunpack.c.l.b16 %v3527
    %v4252 = vunpack.c.h.b16 %v3527
    %v4253 = vunpack.c.l.b16 %v3528
    %v4254 = vunpack.c.h.b16 %v3528
    %v4255 = vunpack.c.l.b16 %v3529
    %v4256 = vunpack.c.h.b16 %v3529
    %v4257 = vunpack.c.l.b16 %v3530
    %v4258 = vunpack.c.h.b16 %v3530
    %v4259 = vunpack.c.l.b16 %v3531
    %v4260 = vunpack.c.h.b16 %v3531
    %v4261 = vunpack.c.l.b16 %v3532
    %v4262 = vunpack.c.h.b16 %v3532
    %v4263 = vunpack.c.l.b16 %v3533
    %v4264 = vunpack.c.h.b16 %v3533
    %v4265 = vunpack.c.l.b16 %v3534
    %v4266 = vunpack.c.h.b16 %v3534
    %v4267 = vunpack.c.l.b16 %v3535
    %v4268 = vunpack.c.h.b16 %v3535
    %v4269 = vunpack.c.l.b16 %v3536
    %v4270 = vunpack.c.h.b16 %v3536
    %v4271 = vunpack.c.l.b16 %v3537
    %v4272 = vunpack.c.h.b16 %v3537
    %v4273 = vunpack.c.l.b16 %v3538
    %v4274 = vunpack.c.h.b16 %v3538
    %v4275 = vunpack.c.l.b16 %v3539
    %v4276 = vunpack.c.h.b16 %v3539
    %v4277 = vunpack.c.l.b16 %v3540
    %v4278 = vunpack.c.h.b16 %v3540
    %v4279 = vunpack.c.l.b16 %v3541
    %v4280 = vunpack.c.h.b16 %v3541
    %v4281 = vunpack.c.l.b16 %v3542
    %v4282 = vunpack.c.h.b16 %v3542
    %v4283 = vunpack.c.l.b16 %v3543
    %v4284 = vunpack.c.h.b16 %v3543
    %v4285 = vunpack.c.l.b16 %v3544
    %v4286 = vunpack.c.h.b16 %v3544
    %v4287 = vunpack.c.l.b16 %v3545
    %v4288 = vunpack.c.h.b16 %v3545
    %v4289 = vunpack.c.l.b16 %v3546
    %v4290 = vunpack.c.h.b16 %v3546
    %v4291 = vunpack.c.l.b16 %v3547
    %v4292 = vunpack.c.h.b16 %v3547
    %v4293 = vunpack.c.l.b16 %v3548
    %v4294 = vunpack.c.h.b16 %v3548
    %v4295 = vunpack.c.l.b16 %v3549
    %v4296 = vunpack.c.h.b16 %v3549
    %v4297 = vunpack.c.l.b16 %v3550
    %v4298 = vunpack.c.h.b16 %v3550
    %v4299 = vunpack.c.l.b16 %v3551
    %v4300 = vunpack.c.h.b16 %v3551
    %v4301 = vunpack.c.l.b16 %v3552
    %v4302 = vunpack.c.h.b16 %v3552
    %v4303 = vunpack.c.l.b16 %v3553
    %v4304 = vunpack.c.h.b16 %v3553
    %v4305 = vunpack.c.l.b16 %v3554
    %v4306 = vunpack.c.h.b16 %v3554
    %v4307 = vunpack.c.l.b16 %v3555
    %v4308 = vunpack.c.h.b16 %v3555
    %v4309 = vunpack.c.l.b16 %v3556
    %v4310 = vunpack.c.h.b16 %v3556
    %v4311 = vunpack.c.l.b16 %v3557
    %v4312 = vunpack.c.h.b16 %v3557
    %v4313 = vunpack.c.l.b16 %v3558
    %v4314 = vunpack.c.h.b16 %v3558
    %v4315 = vunpack.c.l.b16 %v3559
    %v4316 = vunpack.c.h.b16 %v3559
    %v4317 = vunpack.c.l.b16 %v3560
    %v4318 = vunpack.c.h.b16 %v3560
    %v4319 = vunpack.c.l.b16 %v3561
    %v4320 = vunpack.c.h.b16 %v3561
    %v4321 = vunpack.c.l.b16 %v3562
    %v4322 = vunpack.c.h.b16 %v3562
    %v4323 = vunpack.c.l.b16 %v3563
    %v4324 = vunpack.c.h.b16 %v3563
    %v4325 = vunpack.c.l.b16 %v3564
    %v4326 = vunpack.c.h.b16 %v3564
    %v4327 = vunpack.c.l.b16 %v3565
    %v4328 = vunpack.c.h.b16 %v3565
    %v4329 = vunpack.c.l.b16 %v3566
    %v4330 = vunpack.c.h.b16 %v3566
    %v4331 = vunpack.c.l.b16 %v3567
    %v4332 = vunpack.c.h.b16 %v3567
    %v4333 = vunpack.c.l.b16 %v3568
    %v4334 = vunpack.c.h.b16 %v3568
    %v4335 = vunpack.c.l.b16 %v3569
    %v4336 = vunpack.c.h.b16 %v3569
    %v4337 = vunpack.c.l.b16 %v3570
    %v4338 = vunpack.c.h.b16 %v3570
    %v4339 = vunpack.c.l.b16 %v3571
    %v4340 = vunpack.c.h.b16 %v3571
    %v4341 = vunpack.c.l.b16 %v3572
    %v4342 = vunpack.c.h.b16 %v3572
    %v4343 = vunpack.c.l.b16 %v3573
    %v4344 = vunpack.c.h.b16 %v3573
    %v4345 = vunpack.c.l.b16 %v3574
    %v4346 = vunpack.c.h.b16 %v3574
    %v4347 = vunpack.c.l.b16 %v3575
    %v4348 = vunpack.c.h.b16 %v3575
    %v4349 = vunpack.c.l.b16 %v3576
    %v4350 = vunpack.c.h.b16 %v3576
    %v4351 = vunpack.c.l.b16 %v3577
    %v4352 = vunpack.c.h.b16 %v3577
    %v4353 = vunpack.c.l.b16 %v3578
    %v4354 = vunpack.c.h.b16 %v3578
    %v4355 = vunpack.c.l.b16 %v3579
    %v4356 = vunpack.c.h.b16 %v3579
    %v4357 = vunpack.c.l.b16 %v3580
    %v4358 = vunpack.c.h.b16 %v3580
    %v4359 = vunpack.c.l.b16 %v3581
    %v4360 = vunpack.c.h.b16 %v3581
    %v4361 = vunpack.c.l.b16 %v3582
    %v4362 = vunpack.c.h.b16 %v3582
    %v4363 = vunpack.c.l.b16 %v3583
    %v4364 = vunpack.c.h.b16 %v3583
    %v4365 = vunpack.c.l.b16 %v3584
    %v4366 = vunpack.c.h.b16 %v3584
    %v4367 = vunpack.c.l.b16 %v3585
    %v4368 = vunpack.c.h.b16 %v3585
    %v4369 = vunpack.c.l.b16 %v3586
    %v4370 = vunpack.c.h.b16 %v3586
    %v4371 = vunpack.c.l.b16 %v3587
    %v4372 = vunpack.c.h.b16 %v3587
    %v4373 = vunpack.c.l.b16 %v3588
    %v4374 = vunpack.c.h.b16 %v3588
    %v4375 = vunpack.c.l.b16 %v3589
    %v4376 = vunpack.c.h.b16 %v3589
    %v4377 = vunpack.c.l.b16 %v3590
    %v4378 = vunpack.c.h.b16 %v3590
    %v4379 = vunpack.c.l.b16 %v3591
    %v4380 = vunpack.c.h.b16 %v3591
    %v4381 = vunpack.c.l.b16 %v3592
    %v4382 = vunpack.c.h.b16 %v3592
    %v4383 = vunpack.c.l.b16 %v3593
    %v4384 = vunpack.c.h.b16 %v3593
    %v4385 = vunpack.c.l.b16 %v3594
    %v4386 = vunpack.c.h.b16 %v3594
    %v4387 = vunpack.c.l.b16 %v3595
    %v4388 = vunpack.c.h.b16 %v3595
    %v4389 = vunpack.c.l.b16 %v3596
    %v4390 = vunpack.c.h.b16 %v3596
    %v4391 = vunpack.c.l.b16 %v3597
    %v4392 = vunpack.c.h.b16 %v3597
    %v4393 = vunpack.c.l.b16 %v3598
    %v4394 = vunpack.c.h.b16 %v3598
    %v4395 = vunpack.c.l.b16 %v3599
    %v4396 = vunpack.c.h.b16 %v3599
    %v4397 = vunpack.c.l.b16 %v3600
    %v4398 = vunpack.c.h.b16 %v3600
    %v4399 = vunpack.c.l.b16 %v3601
    %v4400 = vunpack.c.h.b16 %v3601
    %v4401 = vunpack.c.l.b16 %v3602
    %v4402 = vunpack.c.h.b16 %v3602
    %v4403 = vunpack.c.l.b16 %v3603
    %v4404 = vunpack.c.h.b16 %v3603
    %v4405 = vunpack.c.l.b16 %v3604
    %v4406 = vunpack.c.h.b16 %v3604
    %v4407 = vunpack.c.l.b16 %v3605
    %v4408 = vunpack.c.h.b16 %v3605
    %v4409 = vunpack.c.l.b16 %v3606
    %v4410 = vunpack.c.h.b16 %v3606
    %v4411 = vunpack.c.l.b16 %v3607
    %v4412 = vunpack.c.h.b16 %v3607
    %v4413 = vunpack.c.l.b16 %v3608
    %v4414 = vunpack.c.h.b16 %v3608
    %v4415 = vunpack.c.l.b16 %v3609
    %v4416 = vunpack.c.h.b16 %v3609
    %v4417 = vunpack.c.l.b16 %v3610
    %v4418 = vunpack.c.h.b16 %v3610
    %v4419 = vunpack.c.l.b16 %v3611
    %v4420 = vunpack.c.h.b16 %v3611
    %v4421 = vunpack.c.l.b16 %v3612
    %v4422 = vunpack.c.h.b16 %v3612
    %v4423 = vpack.c.b16 %v3919, %v3911
    %v4424 = vpack.c.b16 %v3920, %v3912
    %v4425 = vpack.c.b16 %v3921, %v3913
    %v4426 = vpack.c.b16 %v3922, %v3914
    %v4427 = vpack.c.b16 %v3923, %v3915
    %v4428 = vpack.c.b16 %v3924, %v3916
    %v4429 = vpack.c.b16 %v3925, %v3917
    %v4430 = vpack.c.b16 %v3926, %v3918
    %v4431 = vpack.c.b16 %v3935, %v3927
    %v4432 = vpack.c.b16 %v3936, %v3928
    %v4433 = vpack.c.b16 %v3937, %v3929
    %v4434 = vpack.c.b16 %v3938, %v3930
    %v4435 = vpack.c.b16 %v3939, %v3931
    %v4436 = vpack.c.b16 %v3940, %v3932
    %v4437 = vpack.c.b16 %v3941, %v3933
    %v4438 = vpack.c.b16 %v3942, %v3934
    %v4439 = vpack.c.b16 %v3951, %v3943
    %v4440 = vpack.c.b16 %v3952, %v3944
    %v4441 = vpack.c.b16 %v3953, %v3945
    %v4442 = vpack.c.b16 %v3954, %v3946
    %v4443 = vpack.c.b16 %v3955, %v3947
    %v4444 = vpack.c.b16 %v3956, %v3948
    %v4445 = vpack.c.b16 %v3957, %v3949
    %v4446 = vpack.c.b16 %v3958, %v3950
    %v4447 = vpack.c.b16 %v3967, %v3959
    %v4448 = vpack.c.b16 %v3968, %v3960
    %v4449 = vpack.c.b16 %v3969, %v3961
    %v4450 = vpack.c.b16 %v3970, %v3962
    %v4451 = vpack.c.b16 %v3971, %v3963
    %v4452 = vpack.c.b16 %v3972, %v3964
    %v4453 = vpack.c.b16 %v3973, %v3965
    %v4454 = vpack.c.b16 %v3974, %v3966
    %v4455 = vpack.c.b16 %v3983, %v3975
    %v4456 = vpack.c.b16 %v3984, %v3976
    %v4457 = vpack.c.b16 %v3985, %v3977
    %v4458 = vpack.c.b16 %v3986, %v3978
    %v4459 = vpack.c.b16 %v3987, %v3979
    %v4460 = vpack.c.b16 %v3988, %v3980
    %v4461 = vpack.c.b16 %v3989, %v3981
    %v4462 = vpack.c.b16 %v3990, %v3982
    %v4463 = vpack.c.b16 %v3999, %v3991
    %v4464 = vpack.c.b16 %v4000, %v3992
    %v4465 = vpack.c.b16 %v4001, %v3993
    %v4466 = vpack.c.b16 %v4002, %v3994
    %v4467 = vpack.c.b16 %v4003, %v3995
    %v4468 = vpack.c.b16 %v4004, %v3996
    %v4469 = vpack.c.b16 %v4005, %v3997
    %v4470 = vpack.c.b16 %v4006, %v3998
    %v4471 = vpack.c.b16 %v4015, %v4007
    %v4472 = vpack.c.b16 %v4016, %v4008
    %v4473 = vpack.c.b16 %v4017, %v4009
    %v4474 = vpack.c.b16 %v4018, %v4010
    %v4475 = vpack.c.b16 %v4019, %v4011
    %v4476 = vpack.c.b16 %v4020, %v4012
    %v4477 = vpack.c.b16 %v4021, %v4013
    %v4478 = vpack.c.b16 %v4022, %v4014
    %v4479 = vpack.c.b16 %v4031, %v4023
    %v4480 = vpack.c.b16 %v4032, %v4024
    %v4481 = vpack.c.b16 %v4033, %v4025
    %v4482 = vpack.c.b16 %v4034, %v4026
    %v4483 = vpack.c.b16 %v4035, %v4027
    %v4484 = vpack.c.b16 %v4036, %v4028
    %v4485 = vpack.c.b16 %v4037, %v4029
    %v4486 = vpack.c.b16 %v4038, %v4030
    %v4487 = vpack.c.b16 %v4047, %v4039
    %v4488 = vpack.c.b16 %v4048, %v4040
    %v4489 = vpack.c.b16 %v4049, %v4041
    %v4490 = vpack.c.b16 %v4050, %v4042
    %v4491 = vpack.c.b16 %v4051, %v4043
    %v4492 = vpack.c.b16 %v4052, %v4044
    %v4493 = vpack.c.b16 %v4053, %v4045
    %v4494 = vpack.c.b16 %v4054, %v4046
    %v4495 = vpack.c.b16 %v4063, %v4055
    %v4496 = vpack.c.b16 %v4064, %v4056
    %v4497 = vpack.c.b16 %v4065, %v4057
    %v4498 = vpack.c.b16 %v4066, %v4058
    %v4499 = vpack.c.b16 %v4067, %v4059
    %v4500 = vpack.c.b16 %v4068, %v4060
    %v4501 = vpack.c.b16 %v4069, %v4061
    %v4502 = vpack.c.b16 %v4070, %v4062
    %v4503 = vpack.c.b16 %v4079, %v4071
    %v4504 = vpack.c.b16 %v4080, %v4072
    %v4505 = vpack.c.b16 %v4081, %v4073
    %v4506 = vpack.c.b16 %v4082, %v4074
    %v4507 = vpack.c.b16 %v4083, %v4075
    %v4508 = vpack.c.b16 %v4084, %v4076
    %v4509 = vpack.c.b16 %v4085, %v4077
    %v4510 = vpack.c.b16 %v4086, %v4078
    %v4511 = vpack.c.b16 %v4095, %v4087
    %v4512 = vpack.c.b16 %v4096, %v4088
    %v4513 = vpack.c.b16 %v4097, %v4089
    %v4514 = vpack.c.b16 %v4098, %v4090
    %v4515 = vpack.c.b16 %v4099, %v4091
    %v4516 = vpack.c.b16 %v4100, %v4092
    %v4517 = vpack.c.b16 %v4101, %v4093
    %v4518 = vpack.c.b16 %v4102, %v4094
    %v4519 = vpack.c.b16 %v4111, %v4103
    %v4520 = vpack.c.b16 %v4112, %v4104
    %v4521 = vpack.c.b16 %v4113, %v4105
    %v4522 = vpack.c.b16 %v4114, %v4106
    %v4523 = vpack.c.b16 %v4115, %v4107
    %v4524 = vpack.c.b16 %v4116, %v4108
    %v4525 = vpack.c.b16 %v4117, %v4109
    %v4526 = vpack.c.b16 %v4118, %v4110
    %v4527 = vpack.c.b16 %v4127, %v4119
    %v4528 = vpack.c.b16 %v4128, %v4120
    %v4529 = vpack.c.b16 %v4129, %v4121
    %v4530 = vpack.c.b16 %v4130, %v4122
    %v4531 = vpack.c.b16 %v4131, %v4123
    %v4532 = vpack.c.b16 %v4132, %v4124
    %v4533 = vpack.c.b16 %v4133, %v4125
    %v4534 = vpack.c.b16 %v4134, %v4126
    %v4535 = vpack.c.b16 %v4143, %v4135
    %v4536 = vpack.c.b16 %v4144, %v4136
    %v4537 = vpack.c.b16 %v4145, %v4137
    %v4538 = vpack.c.b16 %v4146, %v4138
    %v4539 = vpack.c.b16 %v4147, %v4139
    %v4540 = vpack.c.b16 %v4148, %v4140
    %v4541 = vpack.c.b16 %v4149, %v4141
    %v4542 = vpack.c.b16 %v4150, %v4142
    %v4543 = vpack.c.b16 %v4159, %v4151
    %v4544 = vpack.c.b16 %v4160, %v4152
    %v4545 = vpack.c.b16 %v4161, %v4153
    %v4546 = vpack.c.b16 %v4162, %v4154
    %v4547 = vpack.c.b16 %v4163, %v4155
    %v4548 = vpack.c.b16 %v4164, %v4156
    %v4549 = vpack.c.b16 %v4165, %v4157
    %v4550 = vpack.c.b16 %v4166, %v4158
    %v4551 = vpack.c.b16 %v4175, %v4167
    %v4552 = vpack.c.b16 %v4176, %v4168
    %v4553 = vpack.c.b16 %v4177, %v4169
    %v4554 = vpack.c.b16 %v4178, %v4170
    %v4555 = vpack.c.b16 %v4179, %v4171
    %v4556 = vpack.c.b16 %v4180, %v4172
    %v4557 = vpack.c.b16 %v4181, %v4173
    %v4558 = vpack.c.b16 %v4182, %v4174
    %v4559 = vpack.c.b16 %v4191, %v4183
    %v4560 = vpack.c.b16 %v4192, %v4184
    %v4561 = vpack.c.b16 %v4193, %v4185
    %v4562 = vpack.c.b16 %v4194, %v4186
    %v4563 = vpack.c.b16 %v4195, %v4187
    %v4564 = vpack.c.b16 %v4196, %v4188
    %v4565 = vpack.c.b16 %v4197, %v4189
    %v4566 = vpack.c.b16 %v4198, %v4190
    %v4567 = vpack.c.b16 %v4207, %v4199
    %v4568 = vpack.c.b16 %v4208, %v4200
    %v4569 = vpack.c.b16 %v4209, %v4201
    %v4570 = vpack.c.b16 %v4210, %v4202
    %v4571 = vpack.c.b16 %v4211, %v4203
    %v4572 = vpack.c.b16 %v4212, %v4204
    %v4573 = vpack.c.b16 %v4213, %v4205
    %v4574 = vpack.c.b16 %v4214, %v4206
    %v4575 = vpack.c.b16 %v4223, %v4215
    %v4576 = vpack.c.b16 %v4224, %v4216
    %v4577 = vpack.c.b16 %v4225, %v4217
    %v4578 = vpack.c.b16 %v4226, %v4218
    %v4579 = vpack.c.b16 %v4227, %v4219
    %v4580 = vpack.c.b16 %v4228, %v4220
    %v4581 = vpack.c.b16 %v4229, %v4221
    %v4582 = vpack.c.b16 %v4230, %v4222
    %v4583 = vpack.c.b16 %v4239, %v4231
    %v4584 = vpack.c.b16 %v4240, %v4232
    %v4585 = vpack.c.b16 %v4241, %v4233
    %v4586 = vpack.c.b16 %v4242, %v4234
    %v4587 = vpack.c.b16 %v4243, %v4235
    %v4588 = vpack.c.b16 %v4244, %v4236
    %v4589 = vpack.c.b16 %v4245, %v4237
    %v4590 = vpack.c.b16 %v4246, %v4238
    %v4591 = vpack.c.b16 %v4255, %v4247
    %v4592 = vpack.c.b16 %v4256, %v4248
    %v4593 = vpack.c.b16 %v4257, %v4249
    %v4594 = vpack.c.b16 %v4258, %v4250
    %v4595 = vpack.c.b16 %v4259, %v4251
    %v4596 = vpack.c.b16 %v4260, %v4252
    %v4597 = vpack.c.b16 %v4261, %v4253
    %v4598 = vpack.c.b16 %v4262, %v4254
    %v4599 = vpack.c.b16 %v4271, %v4263
    %v4600 = vpack.c.b16 %v4272, %v4264
    %v4601 = vpack.c.b16 %v4273, %v4265
    %v4602 = vpack.c.b16 %v4274, %v4266
    %v4603 = vpack.c.b16 %v4275, %v4267
    %v4604 = vpack.c.b16 %v4276, %v4268
    %v4605 = vpack.c.b16 %v4277, %v4269
    %v4606 = vpack.c.b16 %v4278, %v4270
    %v4607 = vpack.c.b16 %v4287, %v4279
    %v4608 = vpack.c.b16 %v4288, %v4280
    %v4609 = vpack.c.b16 %v4289, %v4281
    %v4610 = vpack.c.b16 %v4290, %v4282
    %v4611 = vpack.c.b16 %v4291, %v4283
    %v4612 = vpack.c.b16 %v4292, %v4284
    %v4613 = vpack.c.b16 %v4293, %v4285
    %v4614 = vpack.c.b16 %v4294, %v4286
    %v4615 = vpack.c.b16 %v4303, %v4295
    %v4616 = vpack.c.b16 %v4304, %v4296
    %v4617 = vpack.c.b16 %v4305, %v4297
    %v4618 = vpack.c.b16 %v4306, %v4298
    %v4619 = vpack.c.b16 %v4307, %v4299
    %v4620 = vpack.c.b16 %v4308, %v4300
    %v4621 = vpack.c.b16 %v4309, %v4301
    %v4622 = vpack.c.b16 %v4310, %v4302
    %v4623 = vpack.c.b16 %v4319, %v4311
    %v4624 = vpack.c.b16 %v4320, %v4312
    %v4625 = vpack.c.b16 %v4321, %v4313
    %v4626 = vpack.c.b16 %v4322, %v4314
    %v4627 = vpack.c.b16 %v4323, %v4315
    %v4628 = vpack.c.b16 %v4324, %v4316
    %v4629 = vpack.c.b16 %v4325, %v4317
    %v4630 = vpack.c.b16 %v4326, %v4318
    %v4631 = vpack.c.b16 %v4335, %v4327
    %v4632 = vpack.c.b16 %v4336, %v4328
    %v4633 = vpack.c.b16 %v4337, %v4329
    %v4634 = vpack.c.b16 %v4338, %v4330
    %v4635 = vpack.c.b16 %v4339, %v4331
    %v4636 = vpack.c.b16 %v4340, %v4332
    %v4637 = vpack.c.b16 %v4341, %v4333
    %v4638 = vpack.c.b16 %v4342, %v4334
    %v4639 = vpack.c.b16 %v4351, %v4343
    %v4640 = vpack.c.b16 %v4352, %v4344
    %v4641 = vpack.c.b16 %v4353, %v4345
    %v4642 = vpack.c.b16 %v4354, %v4346
    %v4643 = vpack.c.b16 %v4355, %v4347
    %v4644 = vpack.c.b16 %v4356, %v4348
    %v4645 = vpack.c.b16 %v4357, %v4349
    %v4646 = vpack.c.b16 %v4358, %v4350
    %v4647 = vpack.c.b16 %v4367, %v4359
    %v4648 = vpack.c.b16 %v4368, %v4360
    %v4649 = vpack.c.b16 %v4369, %v4361
    %v4650 = vpack.c.b16 %v4370, %v4362
    %v4651 = vpack.c.b16 %v4371, %v4363
    %v4652 = vpack.c.b16 %v4372, %v4364
    %v4653 = vpack.c.b16 %v4373, %v4365
    %v4654 = vpack.c.b16 %v4374, %v4366
    %v4655 = vpack.c.b16 %v4383, %v4375
    %v4656 = vpack.c.b16 %v4384, %v4376
    %v4657 = vpack.c.b16 %v4385, %v4377
    %v4658 = vpack.c.b16 %v4386, %v4378
    %v4659 = vpack.c.b16 %v4387, %v4379
    %v4660 = vpack.c.b16 %v4388, %v4380
    %v4661 = vpack.c.b16 %v4389, %v4381
    %v4662 = vpack.c.b16 %v4390, %v4382
    %v4663 = vpack.c.b16 %v4399, %v4391
    %v4664 = vpack.c.b16 %v4400, %v4392
    %v4665 = vpack.c.b16 %v4401, %v4393
    %v4666 = vpack.c.b16 %v4402, %v4394
    %v4667 = vpack.c.b16 %v4403, %v4395
    %v4668 = vpack.c.b16 %v4404, %v4396
    %v4669 = vpack.c.b16 %v4405, %v4397
    %v4670 = vpack.c.b16 %v4406, %v4398
    %v4671 = vpack.c.b16 %v4415, %v4407
    %v4672 = vpack.c.b16 %v4416, %v4408
    %v4673 = vpack.c.b16 %v4417, %v4409
    %v4674 = vpack.c.b16 %v4418, %v4410
    %v4675 = vpack.c.b16 %v4419, %v4411
    %v4676 = vpack.c.b16 %v4420, %v4412
    %v4677 = vpack.c.b16 %v4421, %v4413
    %v4678 = vpack.c.b16 %v4422, %v4414
    %4935 = vmatprep.subr.bf16.mxu0 %v4424
    %4936 = vmatpush1.bf16.msra.mxu0 %v4423
    %4937 = vmatprep.subr.bf16.mxu0 %v4432
    %4938 = vmatpush1.bf16.msra.mxu0 %v4431
    %4939 = vmatprep.subr.bf16.mxu0 %v4440
    %4940 = vmatpush1.bf16.msra.mxu0 %v4439
    %4941 = vmatprep.subr.bf16.mxu0 %v4448
    %4942 = vmatpush1.bf16.msra.mxu0 %v4447
    %4943 = vmatprep.subr.bf16.mxu0 %v4456
    %4944 = vmatpush1.bf16.msra.mxu0 %v4455
    %4945 = vmatprep.subr.bf16.mxu0 %v4464
    %4946 = vmatpush1.bf16.msra.mxu0 %v4463
    %4947 = vmatprep.subr.bf16.mxu0 %v4472
    %4948 = vmatpush1.bf16.msra.mxu0 %v4471
    %4949 = vmatprep.subr.bf16.mxu0 %v4480
    %4950 = vmatpush1.bf16.msra.mxu0 %v4479
    %4951 = vmatprep.subr.bf16.mxu0 %v4488
    %4952 = vmatpush1.bf16.msra.mxu0 %v4487
    %4953 = vmatprep.subr.bf16.mxu0 %v4496
    %4954 = vmatpush1.bf16.msra.mxu0 %v4495
    %4955 = vmatprep.subr.bf16.mxu0 %v4504
    %4956 = vmatpush1.bf16.msra.mxu0 %v4503
    %4957 = vmatprep.subr.bf16.mxu0 %v4512
    %4958 = vmatpush1.bf16.msra.mxu0 %v4511
    %4959 = vmatprep.subr.bf16.mxu0 %v4520
    %4960 = vmatpush1.bf16.msra.mxu0 %v4519
    %4961 = vmatprep.subr.bf16.mxu0 %v4528
    %4962 = vmatpush1.bf16.msra.mxu0 %v4527
    %4963 = vmatprep.subr.bf16.mxu0 %v4536
    %4964 = vmatpush1.bf16.msra.mxu0 %v4535
    %4965 = vmatprep.subr.bf16.mxu0 %v4544
    %4966 = vmatpush1.bf16.msra.mxu0 %v4543
    %4967 = vmatprep.mubr.bf16.mxu0 %v3354
    %4968 = vmatmul.mubr.bf16.gmra.mrb[0].mxu0 %v3353
    %v4969 = vpop.f32.mrb[0].mxu0
    %v4970 = vadd.f32 %v3618, %v4969
    %v4971 = vpop.f32.mrb[0].mxu0
    %v4972 = vadd.f32 %v3622, %v4971
    %v4973 = vpop.f32.mrb[0].mxu0
    %v4974 = vadd.f32 %v3618, %v4973
    %v4975 = vpop.f32.mrb[0].mxu0
    %v4976 = vadd.f32 %v3622, %v4975
    %4977 = vdwg.mxu0
    %4978 = vmatprep.subr.bf16.mxu0 %v4552
    %4979 = vmatpush1.bf16.msra.mxu0 %v4551
    %4980 = vmatprep.subr.bf16.mxu0 %v4560
    %4981 = vmatpush1.bf16.msra.mxu0 %v4559
    %4982 = vmatprep.subr.bf16.mxu0 %v4568
    %4983 = vmatpush1.bf16.msra.mxu0 %v4567
    %4984 = vmatprep.subr.bf16.mxu0 %v4576
    %4985 = vmatpush1.bf16.msra.mxu0 %v4575
    %4986 = vmatprep.subr.bf16.mxu0 %v4584
    %4987 = vmatpush1.bf16.msra.mxu0 %v4583
    %4988 = vmatprep.subr.bf16.mxu0 %v4592
    %4989 = vmatpush1.bf16.msra.mxu0 %v4591
    %4990 = vmatprep.subr.bf16.mxu0 %v4600
    %4991 = vmatpush1.bf16.msra.mxu0 %v4599
    %4992 = vmatprep.subr.bf16.mxu0 %v4608
    %4993 = vmatpush1.bf16.msra.mxu0 %v4607
    %4994 = vmatprep.subr.bf16.mxu0 %v4616
    %4995 = vmatpush1.bf16.msra.mxu0 %v4615
    %4996 = vmatprep.subr.bf16.mxu0 %v4624
    %4997 = vmatpush1.bf16.msra.mxu0 %v4623
    %4998 = vmatprep.subr.bf16.mxu0 %v4632
    %4999 = vmatpush1.bf16.msra.mxu0 %v4631
    %5000 = vmatprep.subr.bf16.mxu0 %v4640
    %5001 = vmatpush1.bf16.msra.mxu0 %v4639
    %5002 = vmatprep.subr.bf16.mxu0 %v4648
    %5003 = vmatpush1.bf16.msra.mxu0 %v4647
    %5004 = vmatprep.subr.bf16.mxu0 %v4656
    %5005 = vmatpush1.bf16.msra.mxu0 %v4655
    %5006 = vmatprep.subr.bf16.mxu0 %v4664
    %5007 = vmatpush1.bf16.msra.mxu0 %v4663
    %5008 = vmatprep.subr.bf16.mxu0 %v4672
    %5009 = vmatpush1.bf16.msra.mxu0 %v4671
    %5010 = vmatprep.mubr.bf16.mxu0 %v3356
    %5011 = vmatmul.mubr.bf16.gmra.mrb[0].mxu0 %v3355
    %v5012 = vpop.f32.mrb[0].mxu0
    %v5013 = vadd.f32 %v4970, %v5012
    %v5014 = vpop.f32.mrb[0].mxu0
    %v5015 = vadd.f32 %v4972, %v5014
    %v5016 = vpop.f32.mrb[0].mxu0
    %v5017 = vadd.f32 %v4974, %v5016
    %v5018 = vpop.f32.mrb[0].mxu0
    %v5019 = vadd.f32 %v4976, %v5018
    %5020 = vdwg.mxu0
    %5021 = vmatprep.subr.bf16.mxu0 %v4426
    %5022 = vmatpush1.bf16.msra.mxu0 %v4425
    %5023 = vmatprep.subr.bf16.mxu0 %v4434
    %5024 = vmatpush1.bf16.msra.mxu0 %v4433
    %5025 = vmatprep.subr.bf16.mxu0 %v4442
    %5026 = vmatpush1.bf16.msra.mxu0 %v4441
    %5027 = vmatprep.subr.bf16.mxu0 %v4450
    %5028 = vmatpush1.bf16.msra.mxu0 %v4449
    %5029 = vmatprep.subr.bf16.mxu0 %v4458
    %5030 = vmatpush1.bf16.msra.mxu0 %v4457
    %5031 = vmatprep.subr.bf16.mxu0 %v4466
    %5032 = vmatpush1.bf16.msra.mxu0 %v4465
    %5033 = vmatprep.subr.bf16.mxu0 %v4474
    %5034 = vmatpush1.bf16.msra.mxu0 %v4473
    %5035 = vmatprep.subr.bf16.mxu0 %v4482
    %5036 = vmatpush1.bf16.msra.mxu0 %v4481
    %5037 = vmatprep.subr.bf16.mxu0 %v4490
    %5038 = vmatpush1.bf16.msra.mxu0 %v4489
    %5039 = vmatprep.subr.bf16.mxu0 %v4498
    %5040 = vmatpush1.bf16.msra.mxu0 %v4497
    %5041 = vmatprep.subr.bf16.mxu0 %v4506
    %5042 = vmatpush1.bf16.msra.mxu0 %v4505
    %5043 = vmatprep.subr.bf16.mxu0 %v4514
    %5044 = vmatpush1.bf16.msra.mxu0 %v4513
    %5045 = vmatprep.subr.bf16.mxu0 %v4522
    %5046 = vmatpush1.bf16.msra.mxu0 %v4521
    %5047 = vmatprep.subr.bf16.mxu0 %v4530
    %5048 = vmatpush1.bf16.msra.mxu0 %v4529
    %5049 = vmatprep.subr.bf16.mxu0 %v4538
    %5050 = vmatpush1.bf16.msra.mxu0 %v4537
    %5051 = vmatprep.subr.bf16.mxu0 %v4546
    %5052 = vmatpush1.bf16.msra.mxu0 %v4545
    %5053 = vmatprep.mubr.bf16.mxu0 %v3354
    %5054 = vmatmul.mubr.bf16.gmra.mrb[0].mxu0 %v3353
    %v5055 = vpop.f32.mrb[0].mxu0
    %v5056 = vadd.f32 %v3626, %v5055
    %v5057 = vpop.f32.mrb[0].mxu0
    %v5058 = vadd.f32 %v3630, %v5057
    %v5059 = vpop.f32.mrb[0].mxu0
    %v5060 = vadd.f32 %v3626, %v5059
    %v5061 = vpop.f32.mrb[0].mxu0
    %v5062 = vadd.f32 %v3630, %v5061
    %5063 = vdwg.mxu0
    %5064 = vmatprep.subr.bf16.mxu0 %v4554
    %5065 = vmatpush1.bf16.msra.mxu0 %v4553
    %5066 = vmatprep.subr.bf16.mxu0 %v4562
    %5067 = vmatpush1.bf16.msra.mxu0 %v4561
    %5068 = vmatprep.subr.bf16.mxu0 %v4570
    %5069 = vmatpush1.bf16.msra.mxu0 %v4569
    %5070 = vmatprep.subr.bf16.mxu0 %v4578
    %5071 = vmatpush1.bf16.msra.mxu0 %v4577
    %5072 = vmatprep.subr.bf16.mxu0 %v4586
    %5073 = vmatpush1.bf16.msra.mxu0 %v4585
    %5074 = vmatprep.subr.bf16.mxu0 %v4594
    %5075 = vmatpush1.bf16.msra.mxu0 %v4593
    %5076 = vmatprep.subr.bf16.mxu0 %v4602
    %5077 = vmatpush1.bf16.msra.mxu0 %v4601
    %5078 = vmatprep.subr.bf16.mxu0 %v4610
    %5079 = vmatpush1.bf16.msra.mxu0 %v4609
    %5080 = vmatprep.subr.bf16.mxu0 %v4618
    %5081 = vmatpush1.bf16.msra.mxu0 %v4617
    %5082 = vmatprep.subr.bf16.mxu0 %v4626
    %5083 = vmatpush1.bf16.msra.mxu0 %v4625
    %5084 = vmatprep.subr.bf16.mxu0 %v4634
    %5085 = vmatpush1.bf16.msra.mxu0 %v4633
    %5086 = vmatprep.subr.bf16.mxu0 %v4642
    %5087 = vmatpush1.bf16.msra.mxu0 %v4641
    %5088 = vmatprep.subr.bf16.mxu0 %v4650
    %5089 = vmatpush1.bf16.msra.mxu0 %v4649
    %5090 = vmatprep.subr.bf16.mxu0 %v4658
    %5091 = vmatpush1.bf16.msra.mxu0 %v4657
    %5092 = vmatprep.subr.bf16.mxu0 %v4666
    %5093 = vmatpush1.bf16.msra.mxu0 %v4665
    %5094 = vmatprep.subr.bf16.mxu0 %v4674
    %5095 = vmatpush1.bf16.msra.mxu0 %v4673
    %5096 = vmatprep.mubr.bf16.mxu0 %v3356
    %5097 = vmatmul.mubr.bf16.gmra.mrb[0].mxu0 %v3355
    %v5098 = vpop.f32.mrb[0].mxu0
    %v5099 = vadd.f32 %v5056, %v5098
    %v5100 = vpop.f32.mrb[0].mxu0
    %v5101 = vadd.f32 %v5058, %v5100
    %v5102 = vpop.f32.mrb[0].mxu0
    %v5103 = vadd.f32 %v5060, %v5102
    %v5104 = vpop.f32.mrb[0].mxu0
    %v5105 = vadd.f32 %v5062, %v5104
    %5106 = vdwg.mxu0
    %5107 = vmatprep.subr.bf16.mxu0 %v4428
    %5108 = vmatpush1.bf16.msra.mxu0 %v4427
    %5109 = vmatprep.subr.bf16.mxu0 %v4436
    %5110 = vmatpush1.bf16.msra.mxu0 %v4435
    %5111 = vmatprep.subr.bf16.mxu0 %v4444
    %5112 = vmatpush1.bf16.msra.mxu0 %v4443
    %5113 = vmatprep.subr.bf16.mxu0 %v4452
    %5114 = vmatpush1.bf16.msra.mxu0 %v4451
    %5115 = vmatprep.subr.bf16.mxu0 %v4460
    %5116 = vmatpush1.bf16.msra.mxu0 %v4459
    %5117 = vmatprep.subr.bf16.mxu0 %v4468
    %5118 = vmatpush1.bf16.msra.mxu0 %v4467
    %5119 = vmatprep.subr.bf16.mxu0 %v4476
    %5120 = vmatpush1.bf16.msra.mxu0 %v4475
    %5121 = vmatprep.subr.bf16.mxu0 %v4484
    %5122 = vmatpush1.bf16.msra.mxu0 %v4483
    %5123 = vmatprep.subr.bf16.mxu0 %v4492
    %5124 = vmatpush1.bf16.msra.mxu0 %v4491
    %5125 = vmatprep.subr.bf16.mxu0 %v4500
    %5126 = vmatpush1.bf16.msra.mxu0 %v4499
    %5127 = vmatprep.subr.bf16.mxu0 %v4508
    %5128 = vmatpush1.bf16.msra.mxu0 %v4507
    %5129 = vmatprep.subr.bf16.mxu0 %v4516
    %5130 = vmatpush1.bf16.msra.mxu0 %v4515
    %5131 = vmatprep.subr.bf16.mxu0 %v4524
    %5132 = vmatpush1.bf16.msra.mxu0 %v4523
    %5133 = vmatprep.subr.bf16.mxu0 %v4532
    %5134 = vmatpush1.bf16.msra.mxu0 %v4531
    %5135 = vmatprep.subr.bf16.mxu0 %v4540
    %5136 = vmatpush1.bf16.msra.mxu0 %v4539
    %5137 = vmatprep.subr.bf16.mxu0 %v4548
    %5138 = vmatpush1.bf16.msra.mxu0 %v4547
    %5139 = vmatprep.mubr.bf16.mxu0 %v3354
    %5140 = vmatmul.mubr.bf16.gmra.mrb[0].mxu0 %v3353
    %v5141 = vpop.f32.mrb[0].mxu0
    %v5142 = vadd.f32 %v3634, %v5141
    %v5143 = vpop.f32.mrb[0].mxu0
    %v5144 = vadd.f32 %v3638, %v5143
    %v5145 = vpop.f32.mrb[0].mxu0
    %v5146 = vadd.f32 %v3634, %v5145
    %v5147 = vpop.f32.mrb[0].mxu0
    %v5148 = vadd.f32 %v3638, %v5147
    %5149 = vdwg.mxu0
    %5150 = vmatprep.subr.bf16.mxu0 %v4556
    %5151 = vmatpush1.bf16.msra.mxu0 %v4555
    %5152 = vmatprep.subr.bf16.mxu0 %v4564
    %5153 = vmatpush1.bf16.msra.mxu0 %v4563
    %5154 = vmatprep.subr.bf16.mxu0 %v4572
    %5155 = vmatpush1.bf16.msra.mxu0 %v4571
    %5156 = vmatprep.subr.bf16.mxu0 %v4580
    %5157 = vmatpush1.bf16.msra.mxu0 %v4579
    %5158 = vmatprep.subr.bf16.mxu0 %v4588
    %5159 = vmatpush1.bf16.msra.mxu0 %v4587
    %5160 = vmatprep.subr.bf16.mxu0 %v4596
    %5161 = vmatpush1.bf16.msra.mxu0 %v4595
    %5162 = vmatprep.subr.bf16.mxu0 %v4604
    %5163 = vmatpush1.bf16.msra.mxu0 %v4603
    %5164 = vmatprep.subr.bf16.mxu0 %v4612
    %5165 = vmatpush1.bf16.msra.mxu0 %v4611
    %5166 = vmatprep.subr.bf16.mxu0 %v4620
    %5167 = vmatpush1.bf16.msra.mxu0 %v4619
    %5168 = vmatprep.subr.bf16.mxu0 %v4628
    %5169 = vmatpush1.bf16.msra.mxu0 %v4627
    %5170 = vmatprep.subr.bf16.mxu0 %v4636
    %5171 = vmatpush1.bf16.msra.mxu0 %v4635
    %5172 = vmatprep.subr.bf16.mxu0 %v4644
    %5173 = vmatpush1.bf16.msra.mxu0 %v4643
    %5174 = vmatprep.subr.bf16.mxu0 %v4652
    %5175 = vmatpush1.bf16.msra.mxu0 %v4651
    %5176 = vmatprep.subr.bf16.mxu0 %v4660
    %5177 = vmatpush1.bf16.msra.mxu0 %v4659
    %5178 = vmatprep.subr.bf16.mxu0 %v4668
    %5179 = vmatpush1.bf16.msra.mxu0 %v4667
    %5180 = vmatprep.subr.bf16.mxu0 %v4676
    %5181 = vmatpush1.bf16.msra.mxu0 %v4675
    %5182 = vmatprep.mubr.bf16.mxu0 %v3356
    %5183 = vmatmul.mubr.bf16.gmra.mrb[0].mxu0 %v3355
    %v5184 = vpop.f32.mrb[0].mxu0
    %v5185 = vadd.f32 %v5142, %v5184
    %v5186 = vpop.f32.mrb[0].mxu0
    %v5187 = vadd.f32 %v5144, %v5186
    %v5188 = vpop.f32.mrb[0].mxu0
    %v5189 = vadd.f32 %v5146, %v5188
    %v5190 = vpop.f32.mrb[0].mxu0
    %v5191 = vadd.f32 %v5148, %v5190
    %5192 = vdwg.mxu0
    %5193 = vmatprep.subr.bf16.mxu0 %v4430
    %5194 = vmatpush1.bf16.msra.mxu0 %v4429
    %5195 = vmatprep.subr.bf16.mxu0 %v4438
    %5196 = vmatpush1.bf16.msra.mxu0 %v4437
    %5197 = vmatprep.subr.bf16.mxu0 %v4446
    %5198 = vmatpush1.bf16.msra.mxu0 %v4445
    %5199 = vmatprep.subr.bf16.mxu0 %v4454
    %5200 = vmatpush1.bf16.msra.mxu0 %v4453
    %5201 = vmatprep.subr.bf16.mxu0 %v4462
    %5202 = vmatpush1.bf16.msra.mxu0 %v4461
    %5203 = vmatprep.subr.bf16.mxu0 %v4470
    %5204 = vmatpush1.bf16.msra.mxu0 %v4469
    %5205 = vmatprep.subr.bf16.mxu0 %v4478
    %5206 = vmatpush1.bf16.msra.mxu0 %v4477
    %5207 = vmatprep.subr.bf16.mxu0 %v4486
    %5208 = vmatpush1.bf16.msra.mxu0 %v4485
    %5209 = vmatprep.subr.bf16.mxu0 %v4494
    %5210 = vmatpush1.bf16.msra.mxu0 %v4493
    %5211 = vmatprep.subr.bf16.mxu0 %v4502
    %5212 = vmatpush1.bf16.msra.mxu0 %v4501
    %5213 = vmatprep.subr.bf16.mxu0 %v4510
    %5214 = vmatpush1.bf16.msra.mxu0 %v4509
    %5215 = vmatprep.subr.bf16.mxu0 %v4518
    %5216 = vmatpush1.bf16.msra.mxu0 %v4517
    %5217 = vmatprep.subr.bf16.mxu0 %v4526
    %5218 = vmatpush1.bf16.msra.mxu0 %v4525
    %5219 = vmatprep.subr.bf16.mxu0 %v4534
    %5220 = vmatpush1.bf16.msra.mxu0 %v4533
    %5221 = vmatprep.subr.bf16.mxu0 %v4542
    %5222 = vmatpush1.bf16.msra.mxu0 %v4541
    %5223 = vmatprep.subr.bf16.mxu0 %v4550
    %5224 = vmatpush1.bf16.msra.mxu0 %v4549
    %5225 = vmatprep.mubr.bf16.mxu0 %v3354
    %5226 = vmatmul.mubr.bf16.gmra.mrb[0].mxu0 %v3353
    %v5227 = vpop.f32.mrb[0].mxu0
    %v5228 = vadd.f32 %v3642, %v5227
    %v5229 = vpop.f32.mrb[0].mxu0
    %v5230 = vadd.f32 %v3646, %v5229
    %v5231 = vpop.f32.mrb[0].mxu0
    %v5232 = vadd.f32 %v3642, %v5231
    %v5233 = vpop.f32.mrb[0].mxu0
    %v5234 = vadd.f32 %v3646, %v5233
    %5235 = vdwg.mxu0
    %5236 = vmatprep.subr.bf16.mxu0 %v4558
    %5237 = vmatpush1.bf16.msra.mxu0 %v4557
    %5238 = vmatprep.subr.bf16.mxu0 %v4566
    %5239 = vmatpush1.bf16.msra.mxu0 %v4565
    %5240 = vmatprep.subr.bf16.mxu0 %v4574
    %5241 = vmatpush1.bf16.msra.mxu0 %v4573
    %5242 = vmatprep.subr.bf16.mxu0 %v4582
    %5243 = vmatpush1.bf16.msra.mxu0 %v4581
    %5244 = vmatprep.subr.bf16.mxu0 %v4590
    %5245 = vmatpush1.bf16.msra.mxu0 %v4589
    %5246 = vmatprep.subr.bf16.mxu0 %v4598
    %5247 = vmatpush1.bf16.msra.mxu0 %v4597
    %5248 = vmatprep.subr.bf16.mxu0 %v4606
    %5249 = vmatpush1.bf16.msra.mxu0 %v4605
    %5250 = vmatprep.subr.bf16.mxu0 %v4614
    %5251 = vmatpush1.bf16.msra.mxu0 %v4613
    %5252 = vmatprep.subr.bf16.mxu0 %v4622
    %5253 = vmatpush1.bf16.msra.mxu0 %v4621
    %5254 = vmatprep.subr.bf16.mxu0 %v4630
    %5255 = vmatpush1.bf16.msra.mxu0 %v4629
    %5256 = vmatprep.subr.bf16.mxu0 %v4638
    %5257 = vmatpush1.bf16.msra.mxu0 %v4637
    %5258 = vmatprep.subr.bf16.mxu0 %v4646
    %5259 = vmatpush1.bf16.msra.mxu0 %v4645
    %5260 = vmatprep.subr.bf16.mxu0 %v4654
    %5261 = vmatpush1.bf16.msra.mxu0 %v4653
    %5262 = vmatprep.subr.bf16.mxu0 %v4662
    %5263 = vmatpush1.bf16.msra.mxu0 %v4661
    %5264 = vmatprep.subr.bf16.mxu0 %v4670
    %5265 = vmatpush1.bf16.msra.mxu0 %v4669
    %5266 = vmatprep.subr.bf16.mxu0 %v4678
    %5267 = vmatpush1.bf16.msra.mxu0 %v4677
    %5268 = vmatprep.mubr.bf16.mxu0 %v3356
    %5269 = vmatmul.mubr.bf16.gmra.mrb[0].mxu0 %v3355
    %v5270 = vpop.f32.mrb[0].mxu0
    %v5271 = vadd.f32 %v5228, %v5270
    %v5272 = vpop.f32.mrb[0].mxu0
    %v5273 = vadd.f32 %v5230, %v5272
    %v5274 = vpop.f32.mrb[0].mxu0
    %v5275 = vadd.f32 %v5232, %v5274
    %v5276 = vpop.f32.mrb[0].mxu0
    %v5277 = vadd.f32 %v5234, %v5276
    %5278 = vdwg.mxu0
    %v5279 = vmax.f32 %v5013, 0.0
    %v5280 = vmax.f32 %v5015, 0.0
    %v5281 = vmax.f32 %v5099, 0.0
    %v5282 = vmax.f32 %v5101, 0.0
    %v5283 = vmax.f32 %v5185, 0.0
    %v5284 = vmax.f32 %v5187, 0.0
    %v5285 = vmax.f32 %v5271, 0.0
    %v5286 = vmax.f32 %v5273, 0.0
    %v5287 = vmax.f32 %v5017, 0.0
    %v5288 = vmax.f32 %v5019, 0.0
    %v5289 = vmax.f32 %v5103, 0.0
    %v5290 = vmax.f32 %v5105, 0.0
    %v5291 = vmax.f32 %v5189, 0.0
    %v5292 = vmax.f32 %v5191, 0.0
    %v5293 = vmax.f32 %v5275, 0.0
    %v5294 = vmax.f32 %v5277, 0.0
    %5295 = vst [vmem:[#allocation2] sm:$0xff] %v2675
    %5296 = vst [vmem:[#allocation2 + $0x8] sm:$0xff] %v2679
    %5297 = vst [vmem:[#allocation4] sm:$0xff] %v2677
    %5298 = vst [vmem:[#allocation4 + $0x8] sm:$0xff] %v2681
    %5299 = vst [vmem:[#allocation6] sm:$0xff] %v5279
    %5300 = vst [vmem:[#allocation6 + $0x8] sm:$0xff] %v5280
    %5301 = vst [vmem:[#allocation6 + $0x10] sm:$0xff] %v5281
    %5302 = vst [vmem:[#allocation6 + $0x18] sm:$0xff] %v5282
    %5303 = vst [vmem:[#allocation6 + $0x20] sm:$0xff] %v5283
    %5304 = vst [vmem:[#allocation6 + $0x28] sm:$0xff] %v5284
    %5305 = vst [vmem:[#allocation6 + $0x30] sm:$0xff] %v5285
    %5306 = vst.msk [vmem:[#allocation6 + $0x38] sm:$0xff] %vm1575, %v5286
    %5307 = vst [vmem:[#allocation6 + $0x40] sm:$0xff] %v5287
    %5308 = vst [vmem:[#allocation6 + $0x48] sm:$0xff] %v5288
    %5309 = vst [vmem:[#allocation6 + $0x50] sm:$0xff] %v5289
    %5310 = vst [vmem:[#allocation6 + $0x58] sm:$0xff] %v5290
    %5311 = vst [vmem:[#allocation6 + $0x60] sm:$0xff] %v5291
    %5312 = vst [vmem:[#allocation6 + $0x68] sm:$0xff] %v5292
    %5313 = vst [vmem:[#allocation6 + $0x70] sm:$0xff] %v5293
    %5314 = vst.msk [vmem:[#allocation6 + $0x78] sm:$0xff] %vm1575, %v5294
    // Predicated region
    $region58: #{tpu_custom_call.1} parent=1 // pred_check
      _
    $region59: #{tpu_custom_call.1} parent=1 // pred_check_branch
      %5316 = sbr.rel (0) target = $region61
    $region60: #{tpu_custom_call.1} parent=1 // pred_region
      %s5318 = ssub.s32 256, 256
      %5319 = vsyncadd [#allocation3], %s5318
      %s5320 = sshll.u32 [#allocation2], 4
      %s5321 = int_to_ptr.vmem [resolvable:$true] %s5320
      %5326 = dma.vmem_to_hbm [thread:$0]  %s5321, 256, %s14, [#allocation3], 128, 128, 8
    $region61: #{tpu_custom_call.1} parent=1 // pred_fallthru
      _
    // Predicated region
    $region62: #{tpu_custom_call.1} parent=1 // pred_check
      _
    $region63: #{tpu_custom_call.1} parent=1 // pred_check_branch
      %5328 = sbr.rel (0) target = $region65
    $region64: #{tpu_custom_call.1} parent=1 // pred_region
      %s5330 = ssub.s32 256, 256
      %5331 = vsyncadd [#allocation5], %s5330
      %s5332 = sshll.u32 [#allocation4], 4
      %s5333 = int_to_ptr.vmem [resolvable:$true] %s5332
      %5338 = dma.vmem_to_hbm [thread:$0]  %s5333, 256, %s15, [#allocation5], 128, 128, 8
    $region65: #{tpu_custom_call.1} parent=1 // pred_fallthru
      _
    // Predicated region
    $region66: #{tpu_custom_call.1} parent=1 // pred_check
      _
    $region67: #{tpu_custom_call.1} parent=1 // pred_check_branch
      %5340 = sbr.rel (0) target = $region69
    $region68: #{tpu_custom_call.1} parent=1 // pred_region
      %s5342 = ssub.s32 2048, 2048
      %5343 = vsyncadd [#allocation5], %s5342
      %s5344 = sshll.u32 [#allocation6], 4
      %s5345 = int_to_ptr.vmem [resolvable:$true] %s5344
      %5350 = dma.vmem_to_hbm [thread:$0]  %s5345, 2048, %s16, [#allocation5], 1024, 1024, 64
    $region69: #{tpu_custom_call.1} parent=1 // pred_fallthru
      _
    // Predicated region
    $region70: #{tpu_custom_call.1} parent=1 // pred_check
      _
    $region71: #{tpu_custom_call.1} parent=1 // pred_check_branch
      %5352 = sbr.rel (0) target = $region73
    $region72: #{tpu_custom_call.1} parent=1 // pred_region
      %5353 = dma.done [#allocation3], 256
    $region73: #{tpu_custom_call.1} parent=1 // pred_fallthru
      _
    // Predicated region
    $region74: #{tpu_custom_call.1} parent=1 // pred_check
      _
    $region75: #{tpu_custom_call.1} parent=1 // pred_check_branch
      %5355 = sbr.rel (0) target = $region77
    $region76: #{tpu_custom_call.1} parent=1 // pred_region
      %5356 = dma.done [#allocation5], 256
    $region77: #{tpu_custom_call.1} parent=1 // pred_fallthru
      _
    // Predicated region
    $region78: #{tpu_custom_call.1} parent=1 // pred_check
      _
    $region79: #{tpu_custom_call.1} parent=1 // pred_check_branch
      %5358 = sbr.rel (0) target = $region81
    $region80: #{tpu_custom_call.1} parent=1 // pred_region
      %5359 = dma.done [#allocation5], 2048
    $region81: #{tpu_custom_call.1} parent=1 // pred_fallthru
      _
    %5360 = vsyncpa [#allocation3], 1
    %5361 = vsyncpa [#allocation5], 1

</llo_original>
